<compile_context>
chip_gen: v7x
topology: tpu7x:2x2x1
jax: 0.10.0
libtpu: 0.0.40
codegen_flags: <defaults>
</compile_context>

<pallas_src>
import functools

import numpy as np
import jax
import jax.numpy as jnp
from jax.experimental import pallas as pl
from jax.experimental.pallas import tpu as pltpu


def _decode_score_kernel(hw_ref, anc_ref, reg_ref, cls_ref,
                         boxes_ref, scores_ref, classes_ref, *, num_classes):
    # Image size as SMEM scalars (no recompile per resolution).
    img_h = hw_ref[0].astype(jnp.float32)
    img_w = hw_ref[1].astype(jnp.float32)

    anc = anc_ref[...].astype(jnp.float32)     # (T, 4) = [cx, cy, w, h]
    reg = reg_ref[...].astype(jnp.float32)     # (T, 4) = [dx, dy, dw, dh]

    # BBoxTransform (std = (0.1, 0.1, 0.2, 0.2), mean = 0), on 2-lane slabs.
    dxy = reg[:, 0:2] * jnp.float32(0.1)
    dwh = reg[:, 2:4] * jnp.float32(0.2)
    ctr = anc[:, 0:2] + dxy * anc[:, 2:4]
    # NOTE: exp() intentionally unclamped to match the reference BBoxTransform.
    size = jnp.exp(dwh) * anc[:, 2:4]
    lo = jnp.maximum(ctr - 0.5 * size, 0.0)    # (x1, y1)  ClipBoxes min = 0
    hi = ctr + 0.5 * size                      # (x2, y2)

    # Direct stores (no concatenate temporary / sublane shuffle).
    boxes_ref[:, 0:2] = lo
    boxes_ref[:, 2:3] = jnp.minimum(hi[:, 0:1], img_w)   # ClipBoxes max = W
    boxes_ref[:, 3:4] = jnp.minimum(hi[:, 1:2], img_h)   # ClipBoxes max = H

    # scores = max over classes; classes = argmax (first hit on ties).
    # Both reductions run over the lanes of the single resident cls tile, so
    # classification is streamed from HBM exactly once (no wrapper transpose).
    cls = cls_ref[...].astype(jnp.float32)                      # (T, C)
    m = jnp.max(cls, axis=-1, keepdims=True)                    # (T, 1)
    scores_ref[...] = m
    lane = jax.lax.broadcasted_iota(jnp.int32, cls.shape, 1)    # (T, C)
    idx = jnp.min(jnp.where(cls == m, lane, num_classes),
                  axis=-1, keepdims=True)
    # Clamp so a NaN row can never emit an out-of-range class id.
    classes_ref[...] = jnp.minimum(idx, num_classes - 1).astype(jnp.int32)


def _pick_tile_n(n, target):
    """Largest divisor of n that is <= target and sublane-aligned (mult. of 8);
    falls back to the full extent (always a legal block)."""
    if n <= target:
        return n
    t = target - (target % 8)
    while t >= 8:
        if n % t == 0:
            return t
        t -= 8
    return n


@functools.partial(jax.jit, static_argnames=("tile_n", "pre_nms_top_k"))
def _decode_score_topk(hw, anchors, regression, classification, *,
                       tile_n, pre_nms_top_k):
    B, N, _ = regression.shape
    C = classification.shape[2]
    tile = _pick_tile_n(N, tile_n)

    # Hoist the batch-invariant anchor decode out of the kernel (done once on a
    # tiny (N, 4) tensor instead of per batch / per tile).
    a = anchors[0].astype(jnp.float32)                    # (N, 4) x1,y1,x2,y2
    aw = a[:, 2] - a[:, 0]
    ah = a[:, 3] - a[:, 1]
    acx = a[:, 0] + 0.5 * aw
    acy = a[:, 1] + 0.5 * ah
    anchors_dec = jnp.stack([acx, acy, aw, ah], axis=1)   # (N, 4) cx,cy,w,h

    kernel = functools.partial(_decode_score_kernel, num_classes=C)
    boxes, scores, classes = pl.pallas_call(
        kernel,
        out_shape=(
            jax.ShapeDtypeStruct((B, N, 4), jnp.float32),
            jax.ShapeDtypeStruct((B, N, 1), jnp.float32),
            jax.ShapeDtypeStruct((B, N, 1), jnp.int32),
        ),
        grid_spec=pltpu.PrefetchScalarGridSpec(
            num_scalar_prefetch=1,               # hw = [H, W] in SMEM
            grid=(B, N // tile),
            in_specs=[
                pl.BlockSpec((tile, 4), lambda b, n, hw_ref: (n, 0)),
                pl.BlockSpec((None, tile, 4), lambda b, n, hw_ref: (b, n, 0)),
                pl.BlockSpec((None, tile, C), lambda b, n, hw_ref: (b, n, 0)),
            ],
            out_specs=[
                pl.BlockSpec((None, tile, 4), lambda b, n, hw_ref: (b, n, 0)),
                pl.BlockSpec((None, tile, 1), lambda b, n, hw_ref: (b, n, 0)),
                pl.BlockSpec((None, tile, 1), lambda b, n, hw_ref: (b, n, 0)),
            ],
        ),
        compiler_params=pltpu.CompilerParams(
            dimension_semantics=("parallel", "parallel"),
            vmem_limit_bytes=32 * 1024 * 1024,
        ),
    )(hw, anchors_dec, regression, classification)

    # Only batch 0 feeds the (host-side) threshold + NMS tail; shrink the
    # device->host transfer from O(B*N) to the top-K candidates of batch 0.
    k = min(pre_nms_top_k, N)
    top_scores, top_idx = jax.lax.top_k(scores[0, :, 0], k)
    top_boxes = jnp.take(boxes[0], top_idx, axis=0)
    top_classes = jnp.take(classes[0, :, 0], top_idx, axis=0)
    return top_scores, top_boxes, top_classes, top_idx


def _greedy_nms(boxes, scores, iou_thresh):
    """Classic greedy NMS (host-side, dynamic shapes)."""
    order = np.argsort(-scores)
    keep = []
    while order.size > 0:
        i = int(order[0])
        keep.append(i)
        if order.size == 1:
            break
        rest = order[1:]
        xx1 = np.maximum(boxes[i, 0], boxes[rest, 0])
        yy1 = np.maximum(boxes[i, 1], boxes[rest, 1])
        xx2 = np.minimum(boxes[i, 2], boxes[rest, 2])
        yy2 = np.minimum(boxes[i, 3], boxes[rest, 3])
        iw = np.clip(xx2 - xx1, 0.0, None)
        ih = np.clip(yy2 - yy1, 0.0, None)
        inter = iw * ih
        area_i = (boxes[i, 2] - boxes[i, 0]) * (boxes[i, 3] - boxes[i, 1])
        areas = ((boxes[rest, 2] - boxes[rest, 0]) *
                 (boxes[rest, 3] - boxes[rest, 1]))
        union = area_i + areas - inter
        iou = inter / np.maximum(union, 1e-12)
        order = rest[iou <= iou_thresh]
    return np.asarray(keep, dtype=np.int32)


def box_sampler_forward(img_batch, anchors, regression, classification,
                        score_threshold, *, tile_n=2048, pre_nms_top_k=4096):
    """JAX/Pallas equivalent of BoxSampler.forward.

    img_batch:      (B, C_img, H, W)  -- only the spatial shape is used
    anchors:        (1, N, 4)          x1, y1, x2, y2
    regression:     (B, N, 4)          dx, dy, dw, dh  (f32 or bf16)
    classification: (B, N, C)          per-class scores (f32 or bf16)
    """
    H, W = int(img_batch.shape[2]), int(img_batch.shape[3])
    hw = jnp.array([H, W], dtype=jnp.int32)   # SMEM scalars -> no recompile

    top_scores, top_boxes, top_classes, top_idx = _decode_score_topk(
        hw, anchors, regression, classification,
        tile_n=tile_n, pre_nms_top_k=pre_nms_top_k)

    # TODO(synk): threshold filtering + greedy NMS are dynamically shaped and
    # stay on host; if N > pre_nms_top_k the candidate list is capped (standard
    # RetinaNet practice) — set pre_nms_top_k >= N for exact reference parity.
    ts, tb, tc, ti = (np.asarray(x) for x in jax.device_get(
        (top_scores, top_boxes, top_classes, top_idx)))

    over = ts > float(score_threshold)
    if not over.any():
        return (jnp.zeros((1, 1)), jnp.zeros((1, 1)),
                jnp.zeros((1, 4)), jnp.zeros((1,)))

    b_sel, s_sel, c_sel, i_sel = tb[over], ts[over], tc[over], ti[over]
    # The reference nms() hard-codes the IoU threshold to 0.1.
    keep = _greedy_nms(b_sel, s_sel, 0.1)

    return (jnp.asarray(s_sel[keep]),
            jnp.asarray(c_sel[keep]),
            jnp.asarray(b_sel[keep]),
            jnp.asarray(i_sel[keep].astype(np.int32)))


if __name__ == "__main__":
    key = jax.random.PRNGKey(0)
    k_anc, k_wh, k_reg, k_cls = jax.random.split(key, 4)

    B, C_img, Himg, Wimg = 2, 3, 64, 64
    N, C = 4096, 8          # small shapes; tile_n=1024 gives a (2, 4) grid

    img_batch = jnp.zeros((B, C_img, Himg, Wimg), jnp.float32)

    # Deterministic synthetic anchors: random top-left corners + sizes.
    xy = jax.random.uniform(k_anc, (N, 2), minval=0.0, maxval=48.0)
    wh = jax.random.uniform(k_wh, (N, 2), minval=8.0, maxval=24.0)
    anchors = jnp.concatenate([xy, xy + wh], axis=1)[None]      # (1, N, 4)

    regression = 0.5 * jax.random.normal(k_reg, (B, N, 4), jnp.float32)
    classification = jax.nn.sigmoid(
        jax.random.normal(k_cls, (B, N, C), jnp.float32))

    out = box_sampler_forward(img_batch, anchors, regression, classification,
                              score_threshold=0.5, tile_n=1024,
                              pre_nms_top_k=N)
    jax.block_until_ready(out)
    print("KERNEL_OK")
</pallas_src>

<mosaic_0001>
module attributes {stable_mosaic.version = 11 : i64} {
  func.func private @main(%arg0: i32) attributes {dimension_semantics = [#tpu.dimension_semantics<core_parallel>], iteration_bounds = array<i64: 2>, tpu.core_type = #tpu.core_type<sc_scalar_subcore>, window_params = []} {
    return
  }
}

module attributes {stable_mosaic.version = 11 : i64} {
  func.func private @main(%arg0: i32) attributes {dimension_semantics = [#tpu.dimension_semantics<core_parallel>], iteration_bounds = array<i64: 2>, tpu.core_type = #tpu.core_type<sc_scalar_subcore>, window_params = []} {
    return
  }
}

module attributes {stable_mosaic.version = 11 : i64} {
  func.func @_decode_score_kernel(%arg0: i32, %arg1: i32, %arg2: memref<2xi32, #tpu.memory_space<smem>>, %arg3: memref<1024x4xf32, #tpu.memory_space<vmem>>, %arg4: memref<1x1024x4xf32, #tpu.memory_space<vmem>>, %arg5: memref<1x1024x8xf32, #tpu.memory_space<vmem>>, %arg6: memref<1x1024x4xf32, #tpu.memory_space<vmem>>, %arg7: memref<1x1024x1xf32, #tpu.memory_space<vmem>>, %arg8: memref<1x1024x1xi32, #tpu.memory_space<vmem>>) attributes {dimension_semantics = [#tpu.dimension_semantics<parallel>, #tpu.dimension_semantics<parallel>], iteration_bounds = array<i64: 2, 4>, scalar_prefetch = 1 : i64, scratch_operands = 0 : i64, tpu.core_type = #tpu.core_type<tc>, window_params = [{transform_indices = @transform_0, window_bounds = array<i64: 1024, 4>}, {transform_indices = @transform_1, window_bounds = array<i64: 1, 1024, 4>}, {transform_indices = @transform_2, window_bounds = array<i64: 1, 1024, 8>}, {transform_indices = @transform_3, window_bounds = array<i64: 1, 1024, 4>}, {transform_indices = @transform_4, window_bounds = array<i64: 1, 1024, 1>}, {transform_indices = @transform_5, window_bounds = array<i64: 1, 1024, 1>}]} {
    %c0 = arith.constant 0 : index
    %0 = memref.load %arg2[%c0] : memref<2xi32, #tpu.memory_space<smem>>
    %1 = arith.sitofp %0 : i32 to f32
    %c1 = arith.constant 1 : index
    %2 = memref.load %arg2[%c1] : memref<2xi32, #tpu.memory_space<smem>>
    %3 = arith.sitofp %2 : i32 to f32
    %c0_0 = arith.constant 0 : index
    %c0_1 = arith.constant 0 : index
    %4 = vector.load %arg3[%c0_0, %c0_1] : memref<1024x4xf32, #tpu.memory_space<vmem>>, vector<1024x4xf32>
    %c0_2 = arith.constant 0 : index
    %c0_3 = arith.constant 0 : index
    %c0_4 = arith.constant 0 : index
    %5 = vector.load %arg4[%c0_2, %c0_3, %c0_4] : memref<1x1024x4xf32, #tpu.memory_space<vmem>>, vector<1x1024x4xf32>
    %6 = vector.shape_cast %5 : vector<1x1024x4xf32> to vector<1024x4xf32>
    %7 = vector.extract_strided_slice %6 {offsets = [0, 0], sizes = [1024, 2], strides = [1, 1]} : vector<1024x4xf32> to vector<1024x2xf32>
    %cst = arith.constant 1.000000e-01 : f32
    %8 = vector.broadcast %cst : f32 to vector<1024x2xf32>
    %9 = arith.mulf %7, %8 : vector<1024x2xf32>
    %10 = vector.extract_strided_slice %6 {offsets = [0, 2], sizes = [1024, 2], strides = [1, 1]} : vector<1024x4xf32> to vector<1024x2xf32>
    %cst_5 = arith.constant 2.000000e-01 : f32
    %11 = vector.broadcast %cst_5 : f32 to vector<1024x2xf32>
    %12 = arith.mulf %10, %11 : vector<1024x2xf32>
    %13 = vector.extract_strided_slice %4 {offsets = [0, 0], sizes = [1024, 2], strides = [1, 1]} : vector<1024x4xf32> to vector<1024x2xf32>
    %14 = vector.extract_strided_slice %4 {offsets = [0, 2], sizes = [1024, 2], strides = [1, 1]} : vector<1024x4xf32> to vector<1024x2xf32>
    %15 = arith.mulf %9, %14 : vector<1024x2xf32>
    %16 = arith.addf %13, %15 : vector<1024x2xf32>
    %17 = math.exp %12 : vector<1024x2xf32>
    %18 = vector.extract_strided_slice %4 {offsets = [0, 2], sizes = [1024, 2], strides = [1, 1]} : vector<1024x4xf32> to vector<1024x2xf32>
    %19 = arith.mulf %17, %18 : vector<1024x2xf32>
    %cst_6 = arith.constant 5.000000e-01 : f32
    %20 = vector.broadcast %cst_6 : f32 to vector<1024x2xf32>
    %21 = arith.mulf %20, %19 : vector<1024x2xf32>
    %22 = arith.subf %16, %21 : vector<1024x2xf32>
    %cst_7 = arith.constant 0.000000e+00 : f32
    %23 = vector.broadcast %cst_7 : f32 to vector<1024x2xf32>
    %24 = arith.maximumf %22, %23 : vector<1024x2xf32>
    %cst_8 = arith.constant 5.000000e-01 : f32
    %25 = vector.broadcast %cst_8 : f32 to vector<1024x2xf32>
    %26 = arith.mulf %25, %19 : vector<1024x2xf32>
    %27 = arith.addf %16, %26 : vector<1024x2xf32>
    %c0_9 = arith.constant 0 : index
    %c0_10 = arith.constant 0 : index
    %c0_11 = arith.constant 0 : index
    %28 = vector.load %arg6[%c0_9, %c0_10, %c0_11] : memref<1x1024x4xf32, #tpu.memory_space<vmem>>, vector<1x1024x2xf32>
    %29 = vector.shape_cast %28 : vector<1x1024x2xf32> to vector<1024x2xf32>
    %30 = vector.shape_cast %24 : vector<1024x2xf32> to vector<1x1024x2xf32>
    tpu.vector_store %arg6[%c0_9, %c0_10, %c0_11], %30 {strides = array<i32>} : memref<1x1024x4xf32, #tpu.memory_space<vmem>>, vector<1x1024x2xf32>,
    %31 = vector.extract_strided_slice %27 {offsets = [0, 0], sizes = [1024, 1], strides = [1, 1]} : vector<1024x2xf32> to vector<1024x1xf32>
    %32 = vector.broadcast %3 : f32 to vector<1024x1xf32>
    %33 = arith.minimumf %31, %32 : vector<1024x1xf32>
    %c0_12 = arith.constant 0 : index
    %c0_13 = arith.constant 0 : index
    %c2 = arith.constant 2 : index
    %34 = vector.load %arg6[%c0_12, %c0_13, %c2] : memref<1x1024x4xf32, #tpu.memory_space<vmem>>, vector<1x1024x1xf32>
    %35 = vector.shape_cast %34 : vector<1x1024x1xf32> to vector<1024x1xf32>
    %36 = vector.shape_cast %33 : vector<1024x1xf32> to vector<1x1024x1xf32>
    tpu.vector_store %arg6[%c0_12, %c0_13, %c2], %36 {strides = array<i32>} : memref<1x1024x4xf32, #tpu.memory_space<vmem>>, vector<1x1024x1xf32>,
    %37 = vector.extract_strided_slice %27 {offsets = [0, 1], sizes = [1024, 1], strides = [1, 1]} : vector<1024x2xf32> to vector<1024x1xf32>
    %38 = vector.broadcast %1 : f32 to vector<1024x1xf32>
    %39 = arith.minimumf %37, %38 : vector<1024x1xf32>
    %c0_14 = arith.constant 0 : index
    %c0_15 = arith.constant 0 : index
    %c3 = arith.constant 3 : index
    %40 = vector.load %arg6[%c0_14, %c0_15, %c3] : memref<1x1024x4xf32, #tpu.memory_space<vmem>>, vector<1x1024x1xf32>
    %41 = vector.shape_cast %40 : vector<1x1024x1xf32> to vector<1024x1xf32>
    %42 = vector.shape_cast %39 : vector<1024x1xf32> to vector<1x1024x1xf32>
    tpu.vector_store %arg6[%c0_14, %c0_15, %c3], %42 {strides = array<i32>} : memref<1x1024x4xf32, #tpu.memory_space<vmem>>, vector<1x1024x1xf32>,
    %c0_16 = arith.constant 0 : index
    %c0_17 = arith.constant 0 : index
    %c0_18 = arith.constant 0 : index
    %43 = vector.load %arg5[%c0_16, %c0_17, %c0_18] : memref<1x1024x8xf32, #tpu.memory_space<vmem>>, vector<1x1024x8xf32>
    %44 = vector.shape_cast %43 : vector<1x1024x8xf32> to vector<1024x8xf32>
    %cst_19 = arith.constant dense<0xFF800000> : vector<1024xf32>
    %45 = vector.multi_reduction <maximumf>, %44, %cst_19 [1] : vector<1024x8xf32> to vector<1024xf32>
    %46 = vector.shape_cast %45 : vector<1024xf32> to vector<1024x1xf32>
    %c0_20 = arith.constant 0 : index
    %c0_21 = arith.constant 0 : index
    %c0_22 = arith.constant 0 : index
    %47 = vector.load %arg7[%c0_20, %c0_21, %c0_22] : memref<1x1024x1xf32, #tpu.memory_space<vmem>>, vector<1x1024x1xf32>
    %48 = vector.shape_cast %47 : vector<1x1024x1xf32> to vector<1024x1xf32>
    %49 = vector.shape_cast %46 : vector<1024x1xf32> to vector<1x1024x1xf32>
    tpu.vector_store %arg7[%c0_20, %c0_21, %c0_22], %49 {strides = array<i32>} : memref<1x1024x1xf32, #tpu.memory_space<vmem>>, vector<1x1024x1xf32>,
    %50 = tpu.iota {dimensions = array<i32: 1>} : vector<1024x8xi32>
    %51 = vector.broadcast %46 : vector<1024x1xf32> to vector<1024x8xf32>
    %52 = arith.cmpf oeq, %44, %51 : vector<1024x8xf32>
    %c8_i32 = arith.constant 8 : i32
    %53 = vector.broadcast %c8_i32 : i32 to vector<1024x8xi32>
    %54 = arith.select %52, %50, %53 : vector<1024x8xi1>, vector<1024x8xi32>
    %cst_23 = arith.constant dense<2147483647> : vector<1024xi32>
    %55 = vector.multi_reduction <minsi>, %54, %cst_23 [1] : vector<1024x8xi32> to vector<1024xi32>
    %56 = vector.shape_cast %55 : vector<1024xi32> to vector<1024x1xi32>
    %c7_i32 = arith.constant 7 : i32
    %57 = vector.broadcast %c7_i32 : i32 to vector<1024x1xi32>
    %58 = arith.minsi %56, %57 : vector<1024x1xi32>
    %c0_24 = arith.constant 0 : index
    %c0_25 = arith.constant 0 : index
    %c0_26 = arith.constant 0 : index
    %59 = vector.load %arg8[%c0_24, %c0_25, %c0_26] : memref<1x1024x1xi32, #tpu.memory_space<vmem>>, vector<1x1024x1xi32>
    %60 = vector.shape_cast %59 : vector<1x1024x1xi32> to vector<1024x1xi32>
    %61 = vector.shape_cast %58 : vector<1024x1xi32> to vector<1x1024x1xi32>
    tpu.vector_store %arg8[%c0_24, %c0_25, %c0_26], %61 {strides = array<i32>} : memref<1x1024x1xi32, #tpu.memory_space<vmem>>, vector<1x1024x1xi32>,
    return
  }
  func.func @transform_0(%arg0: i32, %arg1: i32, %arg2: memref<2xi32, #tpu.memory_space<smem>>) -> (i32, i32) {
    %c0_i32 = arith.constant 0 : i32
    %c0_i32_0 = arith.constant 0 : i32
    return %arg1, %c0_i32 : i32, i32
  }
  func.func @transform_1(%arg0: i32, %arg1: i32, %arg2: memref<2xi32, #tpu.memory_space<smem>>) -> (i32, i32, i32) {
    %c0_i32 = arith.constant 0 : i32
    %c0_i32_0 = arith.constant 0 : i32
    return %arg0, %arg1, %c0_i32 : i32, i32, i32
  }
  func.func @transform_2(%arg0: i32, %arg1: i32, %arg2: memref<2xi32, #tpu.memory_space<smem>>) -> (i32, i32, i32) {
    %c0_i32 = arith.constant 0 : i32
    %c0_i32_0 = arith.constant 0 : i32
    return %arg0, %arg1, %c0_i32 : i32, i32, i32
  }
  func.func @transform_3(%arg0: i32, %arg1: i32, %arg2: memref<2xi32, #tpu.memory_space<smem>>) -> (i32, i32, i32) {
    %c0_i32 = arith.constant 0 : i32
    %c0_i32_0 = arith.constant 0 : i32
    return %arg0, %arg1, %c0_i32 : i32, i32, i32
  }
  func.func @transform_4(%arg0: i32, %arg1: i32, %arg2: memref<2xi32, #tpu.memory_space<smem>>) -> (i32, i32, i32) {
    %c0_i32 = arith.constant 0 : i32
    %c0_i32_0 = arith.constant 0 : i32
    return %arg0, %arg1, %c0_i32 : i32, i32, i32
  }
  func.func @transform_5(%arg0: i32, %arg1: i32, %arg2: memref<2xi32, #tpu.memory_space<smem>>) -> (i32, i32, i32) {
    %c0_i32 = arith.constant 0 : i32
    %c0_i32_0 = arith.constant 0 : i32
    return %arg0, %arg1, %c0_i32 : i32, i32, i32
  }
}

</mosaic_0001>

<llo_original>
// kernel: _decode_score_topk.1
$region0: #{_decode_score_topk.1}
  #allocation0 [shape = 'u32[]', space=smem, size = 0x4, offset = 0x4, fixed_abs, tag = 'smem constant byte address 0x4 - core index']
  #allocation1 [shape = 'u32[144,128]{1,0:T(1,128)}', space=vmem, size = 0x12000, scoped, tag = 'internal scratch']
  #allocation2 [shape = 's32[1]{0}', space=sflag, size = 0x4, scoped, tag = 'scoped memory for _decode_score_topk.1']
  #allocation3 [shape = 'u8[512]{0}', space=smem, size = 0x200, scoped, tag = 'prefetched SMEM operand 0']
  %s0 = inlined_call_operand.vmem [shape: s32[2], index: 0, kind: input, shape index: {}]
  %s1 = inlined_call_operand.vmem [shape: f32[4096,4], index: 1, kind: input, shape index: {}]
  %s2 = inlined_call_operand.vmem [shape: f32[2,4096,4], index: 2, kind: input, shape index: {}]
  %s3 = inlined_call_operand.vmem [shape: f32[2,4096,8], index: 3, kind: input, shape index: {}]
  %s4 = inlined_call_operand.vmem [shape: f32[2,4096,4], index: 4, kind: output, shape index: {0}]
  %s5 = inlined_call_operand.vmem [shape: f32[2,4096,1], index: 5, kind: output, shape index: {1}]
  %s6 = inlined_call_operand.vmem [shape: s32[2,4096,1], index: 6, kind: output, shape index: {2}]
  %7 = xla_tuple %s4, %s5, %s6
  %s8 = sld [smem:[#allocation0]]
  $region61: #{_decode_score_topk.1} parent=0
    _
  %s10 = ssub.s32 1, %s8
  %s11 = scalar_select 0, %s10, %s8
  %s12 = sshll.u32 %s0, 4
  %s13 = int_to_ptr.vmem [resolvable:$true] %s12
  %15 = dma.vmem_to_smem %s13, 16, [#allocation3], [#allocation2]
  %16 = dma.done [#allocation2], 16
  %17 = sfence
  loop: start=0, step=1, limit=10
  $region2: #{_decode_score_topk.1} parent=0 // loop_pre_header
    _
  $region3: #{_decode_score_topk.1} parent=0 // loop_header
    %s19 = sphi 0, %s23
    %p20 = scmp.ge.s32.totalorder %s19, 10
    %s26 = sphi 0, %s38
    %s27 = sphi 0, %s34
    %s28 = sphi 0, %s26
    %s29 = sphi 0, %s27
    %s30 = sphi 0, %s28
    %s31 = sphi 0, %s29
    %s41 = sphi 0, %s43
    %s44 = sphi 0, %s41
    %s45 = sphi 0, %s44
    %s61 = sphi 0, %s45
    %s69 = sphi 0, %s71
    %s72 = sphi 0, %s69
    %s73 = sphi 0, %s72
    %s89 = sphi 0, %s73
    %s97 = sphi 0, %s99
    %s100 = sphi 0, %s97
    %s101 = sphi 0, %s100
    %s117 = sphi 0, %s101
    %s125 = sphi 0, %s127
    %s128 = sphi 0, %s125
    %s129 = sphi 0, %s128
    %s145 = sphi 0, %s129
    %s153 = sphi 0, %s155
    %s156 = sphi 0, %s153
    %s157 = sphi 0, %s156
    %s173 = sphi 0, %s157
    %s181 = sphi 0, %s183
    %s184 = sphi 0, %s181
    %s185 = sphi 0, %s184
    %s201 = sphi 0, %s185
  $region4: #{_decode_score_topk.1} parent=0 // loop_header_branch
    %22 = sbr.rel (%p20) target = $region8
  $region5: #{_decode_score_topk.1} parent=0 // loop_body
    %s24 = ssub.s32 %s19, 1
    %s25 = ssub.s32 %s19, 2
    %s32 = sadd.s32 1, %s27
    %p33 = scmp.ge.s32.totalorder %s32, 4
    %s34 = scalar_select %p33, 0, %s32
    %s35 = sadd.s32 1, %s26
    %s36 = scalar_select %p33, %s35, %s26
    %p37 = scmp.ge.s32.totalorder %s36, 2
    %s38 = scalar_select %p37, 0, %s36
    %s39 = ssub.s32 %s27, %s34
    %p40 = scmp.eq.s32.totalorder %s39, 0
    %s42 = sadd.s32 %s41, 1
    %s43 = scalar_select %p40, %s41, %s42
    %p46 = pneg %p40
    %p47 = scmp.eq.s32.totalorder %s19, 7
    %p48 = por %p46, %p47
    %p49 = scmp.ne.s32.totalorder %s41, %s44
    %p50 = scmp.eq.s32.totalorder %s19, 0
    %p51 = por %p49, %p50
    %p52 = scmp.ne.s32.totalorder %s41, %s44
    %p53 = scmp.eq.s32.totalorder %s24, 7
    %p54 = por %p52, %p53
    %p55 = scmp.ne.s32.totalorder %s44, %s45
    %p56 = scmp.eq.s32.totalorder %s24, 0
    %p57 = por %p55, %p56
    %p58 = scmp.ne.s32.totalorder %s44, %s45
    %p59 = scmp.eq.s32.totalorder %s25, 7
    %p60 = por %p58, %p59
    %p62 = scmp.ne.s32.totalorder %s45, %s61
    %p63 = scmp.eq.s32.totalorder %s25, 0
    %p64 = por %p62, %p63
    %s65 = ssub.s32 %s26, %s38
    %s66 = ssub.s32 %s27, %s34
    %s67 = sor.u32 %s65, %s66
    %p68 = scmp.eq.s32.totalorder %s67, 0
    %s70 = sadd.s32 %s69, 1
    %s71 = scalar_select %p68, %s69, %s70
    %p74 = pneg %p68
    %p75 = scmp.eq.s32.totalorder %s19, 7
    %p76 = por %p74, %p75
    %p77 = scmp.ne.s32.totalorder %s69, %s72
    %p78 = scmp.eq.s32.totalorder %s19, 0
    %p79 = por %p77, %p78
    %p80 = scmp.ne.s32.totalorder %s69, %s72
    %p81 = scmp.eq.s32.totalorder %s24, 7
    %p82 = por %p80, %p81
    %p83 = scmp.ne.s32.totalorder %s72, %s73
    %p84 = scmp.eq.s32.totalorder %s24, 0
    %p85 = por %p83, %p84
    %p86 = scmp.ne.s32.totalorder %s72, %s73
    %p87 = scmp.eq.s32.totalorder %s25, 7
    %p88 = por %p86, %p87
    %p90 = scmp.ne.s32.totalorder %s73, %s89
    %p91 = scmp.eq.s32.totalorder %s25, 0
    %p92 = por %p90, %p91
    %s93 = ssub.s32 %s26, %s38
    %s94 = ssub.s32 %s27, %s34
    %s95 = sor.u32 %s93, %s94
    %p96 = scmp.eq.s32.totalorder %s95, 0
    %s98 = sadd.s32 %s97, 1
    %s99 = scalar_select %p96, %s97, %s98
    %p102 = pneg %p96
    %p103 = scmp.eq.s32.totalorder %s19, 7
    %p104 = por %p102, %p103
    %p105 = scmp.ne.s32.totalorder %s97, %s100
    %p106 = scmp.eq.s32.totalorder %s19, 0
    %p107 = por %p105, %p106
    %p108 = scmp.ne.s32.totalorder %s97, %s100
    %p109 = scmp.eq.s32.totalorder %s24, 7
    %p110 = por %p108, %p109
    %p111 = scmp.ne.s32.totalorder %s100, %s101
    %p112 = scmp.eq.s32.totalorder %s24, 0
    %p113 = por %p111, %p112
    %p114 = scmp.ne.s32.totalorder %s100, %s101
    %p115 = scmp.eq.s32.totalorder %s25, 7
    %p116 = por %p114, %p115
    %p118 = scmp.ne.s32.totalorder %s101, %s117
    %p119 = scmp.eq.s32.totalorder %s25, 0
    %p120 = por %p118, %p119
    %s121 = ssub.s32 %s26, %s38
    %s122 = ssub.s32 %s27, %s34
    %s123 = sor.u32 %s121, %s122
    %p124 = scmp.eq.s32.totalorder %s123, 0
    %s126 = sadd.s32 %s125, 1
    %s127 = scalar_select %p124, %s125, %s126
    %p130 = pneg %p124
    %p131 = scmp.eq.s32.totalorder %s19, 7
    %p132 = por %p130, %p131
    %p133 = scmp.ne.s32.totalorder %s125, %s128
    %p134 = scmp.eq.s32.totalorder %s19, 0
    %p135 = por %p133, %p134
    %p136 = scmp.ne.s32.totalorder %s125, %s128
    %p137 = scmp.eq.s32.totalorder %s24, 7
    %p138 = por %p136, %p137
    %p139 = scmp.ne.s32.totalorder %s128, %s129
    %p140 = scmp.eq.s32.totalorder %s24, 0
    %p141 = por %p139, %p140
    %p142 = scmp.ne.s32.totalorder %s128, %s129
    %p143 = scmp.eq.s32.totalorder %s25, 7
    %p144 = por %p142, %p143
    %p146 = scmp.ne.s32.totalorder %s129, %s145
    %p147 = scmp.eq.s32.totalorder %s25, 0
    %p148 = por %p146, %p147
    %s149 = ssub.s32 %s26, %s38
    %s150 = ssub.s32 %s27, %s34
    %s151 = sor.u32 %s149, %s150
    %p152 = scmp.eq.s32.totalorder %s151, 0
    %s154 = sadd.s32 %s153, 1
    %s155 = scalar_select %p152, %s153, %s154
    %p158 = pneg %p152
    %p159 = scmp.eq.s32.totalorder %s19, 7
    %p160 = por %p158, %p159
    %p161 = scmp.ne.s32.totalorder %s153, %s156
    %p162 = scmp.eq.s32.totalorder %s19, 0
    %p163 = por %p161, %p162
    %p164 = scmp.ne.s32.totalorder %s153, %s156
    %p165 = scmp.eq.s32.totalorder %s24, 7
    %p166 = por %p164, %p165
    %p167 = scmp.ne.s32.totalorder %s156, %s157
    %p168 = scmp.eq.s32.totalorder %s24, 0
    %p169 = por %p167, %p168
    %p170 = scmp.ne.s32.totalorder %s156, %s157
    %p171 = scmp.eq.s32.totalorder %s25, 7
    %p172 = por %p170, %p171
    %p174 = scmp.ne.s32.totalorder %s157, %s173
    %p175 = scmp.eq.s32.totalorder %s25, 0
    %p176 = por %p174, %p175
    %s177 = ssub.s32 %s26, %s38
    %s178 = ssub.s32 %s27, %s34
    %s179 = sor.u32 %s177, %s178
    %p180 = scmp.eq.s32.totalorder %s179, 0
    %s182 = sadd.s32 %s181, 1
    %s183 = scalar_select %p180, %s181, %s182
    %p186 = pneg %p180
    %p187 = scmp.eq.s32.totalorder %s19, 7
    %p188 = por %p186, %p187
    %p189 = scmp.ne.s32.totalorder %s181, %s184
    %p190 = scmp.eq.s32.totalorder %s19, 0
    %p191 = por %p189, %p190
    %p192 = scmp.ne.s32.totalorder %s181, %s184
    %p193 = scmp.eq.s32.totalorder %s24, 7
    %p194 = por %p192, %p193
    %p195 = scmp.ne.s32.totalorder %s184, %s185
    %p196 = scmp.eq.s32.totalorder %s24, 0
    %p197 = por %p195, %p196
    %p198 = scmp.ne.s32.totalorder %s184, %s185
    %p199 = scmp.eq.s32.totalorder %s25, 7
    %p200 = por %p198, %p199
    %p202 = scmp.ne.s32.totalorder %s185, %s201
    %p203 = scmp.eq.s32.totalorder %s25, 0
    %p204 = por %p202, %p203
    %p205 = scmp.le.s32.totalorder 1, %s19
    %p206 = scmp.lt.s32.totalorder %s19, 9
    %p207 = pnand %p205, %p206
    %p208 = pneg %p207
    // Predicated region
    $region9: #{_decode_score_topk.1} parent=5 // pred_check
      _
    $region10: #{_decode_score_topk.1} parent=5 // pred_check_branch
      %210 = sbr.rel (%p207) target = $region12
    $region11: #{_decode_score_topk.1} parent=5 // pred_region
      %s211 = ssub.s32 %s19, 1
    $region12: #{_decode_score_topk.1} parent=5 // pred_fallthru
      _
    %p212 = scmp.lt.s32.totalorder %s19, 8
    // Predicated region
    $region13: #{_decode_score_topk.1} parent=5 // pred_check
      %p213 = pneg %p212
    $region14: #{_decode_score_topk.1} parent=5 // pred_check_branch
      %215 = sbr.rel (%p213) target = $region16
    $region15: #{_decode_score_topk.1} parent=5 // pred_region
      // Predicated region
      $region17: #{_decode_score_topk.1} parent=15 // pred_check
        %p216 = pneg %p51
      $region18: #{_decode_score_topk.1} parent=15 // pred_check_branch
        %218 = sbr.rel (%p216) target = $region20
      $region19: #{_decode_score_topk.1} parent=15 // pred_region
        %s219 = smul.u32 128, %s27
        %p220 = scmp.lt.s32.totalorder %s219, 511
        %s221 = scalar_select %p220, %s219, 511
        %s222 = smul.addr %s221, 8
        %s223 = scalar_lea.vmem %s1, %s222
        %s224 = smul.u32 128, %s27
      $region20: #{_decode_score_topk.1} parent=15 // pred_fallthru
        _
      // Predicated region
      $region21: #{_decode_score_topk.1} parent=15 // pred_check
        %p225 = pneg %p79
      $region22: #{_decode_score_topk.1} parent=15 // pred_check_branch
        %227 = sbr.rel (%p225) target = $region24
      $region23: #{_decode_score_topk.1} parent=15 // pred_region
        %s228 = smul.u32 128, %s27
        %p229 = scmp.lt.s32.totalorder %s26, 1
        %s230 = scalar_select %p229, %s26, 1
        %p231 = scmp.lt.s32.totalorder %s228, 511
        %s232 = scalar_select %p231, %s228, 511
        %s233 = smul.addr %s230, 512
        %s234 = sadd.s32 %s232, %s233
        %s235 = smul.addr %s234, 8
        %s236 = scalar_lea.vmem %s2, %s235
        %s237 = smul.u32 128, %s27
      $region24: #{_decode_score_topk.1} parent=15 // pred_fallthru
        _
      // Predicated region
      $region25: #{_decode_score_topk.1} parent=15 // pred_check
        %p238 = pneg %p107
      $region26: #{_decode_score_topk.1} parent=15 // pred_check_branch
        %240 = sbr.rel (%p238) target = $region28
      $region27: #{_decode_score_topk.1} parent=15 // pred_region
        %s241 = smul.u32 128, %s27
        %p242 = scmp.lt.s32.totalorder %s26, 1
        %s243 = scalar_select %p242, %s26, 1
        %p244 = scmp.lt.s32.totalorder %s241, 511
        %s245 = scalar_select %p244, %s241, 511
        %s246 = smul.addr %s243, 512
        %s247 = sadd.s32 %s245, %s246
        %s248 = smul.addr %s247, 8
        %s249 = scalar_lea.vmem %s3, %s248
        %s250 = smul.u32 128, %s27
      $region28: #{_decode_score_topk.1} parent=15 // pred_fallthru
        _
    $region16: #{_decode_score_topk.1} parent=5 // pred_fallthru
      _
    %p251 = scmp.le.s32.totalorder 1, %s19
    %p252 = scmp.lt.s32.totalorder %s19, 9
    %p253 = pnand %p251, %p252
    %p254 = pneg %p253
    // Predicated region
    $region29: #{_decode_score_topk.1} parent=5 // pred_check
      _
    $region30: #{_decode_score_topk.1} parent=5 // pred_check_branch
      %256 = sbr.rel (%p253) target = $region32
    $region31: #{_decode_score_topk.1} parent=5 // pred_region
      %s257 = ssub.s32 %s19, 1
      %s258 = smul.u32 128, %s29
      %p259 = scmp.lt.s32.totalorder %s258, 511
      %s260 = scalar_select %p259, %s258, 511
      %s261 = smul.addr %s260, 8
      %s262 = scalar_lea.vmem %s1, %s261
      %p263 = pneg %p57
      %p264 = pneg %p54
      %s265 = smul.u32 128, %s29
      %p266 = scmp.lt.s32.totalorder %s28, 1
      %s267 = scalar_select %p266, %s28, 1
      %p268 = scmp.lt.s32.totalorder %s265, 511
      %s269 = scalar_select %p268, %s265, 511
      %s270 = smul.addr %s267, 512
      %s271 = sadd.s32 %s269, %s270
      %s272 = smul.addr %s271, 8
      %s273 = scalar_lea.vmem %s2, %s272
      %p274 = pneg %p85
      %p275 = pneg %p82
      %s276 = smul.u32 128, %s29
      %p277 = scmp.lt.s32.totalorder %s28, 1
      %s278 = scalar_select %p277, %s28, 1
      %p279 = scmp.lt.s32.totalorder %s276, 511
      %s280 = scalar_select %p279, %s276, 511
      %s281 = smul.addr %s278, 512
      %s282 = sadd.s32 %s280, %s281
      %s283 = smul.addr %s282, 8
      %s284 = scalar_lea.vmem %s3, %s283
      %p285 = pneg %p113
      %p286 = pneg %p110
      %p287 = pneg %p141
      %p288 = pneg %p138
      %s289 = smul.u32 128, %s29
      %p290 = scmp.lt.s32.totalorder %s28, 1
      %s291 = scalar_select %p290, %s28, 1
      %p292 = scmp.lt.s32.totalorder %s289, 511
      %s293 = scalar_select %p292, %s289, 511
      %s294 = smul.addr %s291, 512
      %s295 = sadd.s32 %s293, %s294
      %s296 = smul.addr %s295, 8
      %s297 = scalar_lea.vmem %s4, %s296
      %p298 = pneg %p169
      %p299 = pneg %p166
      %s300 = smul.u32 128, %s29
      %p301 = scmp.lt.s32.totalorder %s28, 1
      %s302 = scalar_select %p301, %s28, 1
      %p303 = scmp.lt.s32.totalorder %s300, 511
      %s304 = scalar_select %p303, %s300, 511
      %s305 = smul.addr %s302, 512
      %s306 = sadd.s32 %s304, %s305
      %s307 = smul.addr %s306, 8
      %s308 = scalar_lea.vmem %s5, %s307
      %p309 = pneg %p197
      %p310 = pneg %p194
      %s311 = smul.u32 128, %s29
      %p312 = scmp.lt.s32.totalorder %s28, 1
      %s313 = scalar_select %p312, %s28, 1
      %p314 = scmp.lt.s32.totalorder %s311, 511
      %s315 = scalar_select %p314, %s311, 511
      %s316 = smul.addr %s313, 512
      %s317 = sadd.s32 %s315, %s316
      %s318 = smul.addr %s317, 8
      %s319 = scalar_lea.vmem %s6, %s318
      %s320 = smul.u32 128, %s29
      %p321 = scmp.lt.s32.totalorder %s320, 511
      %s322 = scalar_select %p321, %s320, 511
      %s323 = smul.addr %s322, 8
      %s324 = scalar_lea.vmem %s1, %s323
      %s325 = smul.u32 128, %s29
      %s326 = smul.u32 128, %s29
      %p327 = scmp.lt.s32.totalorder %s28, 1
      %s328 = scalar_select %p327, %s28, 1
      %p329 = scmp.lt.s32.totalorder %s326, 511
      %s330 = scalar_select %p329, %s326, 511
      %s331 = smul.addr %s328, 512
      %s332 = sadd.s32 %s330, %s331
      %s333 = smul.addr %s332, 8
      %s334 = scalar_lea.vmem %s2, %s333
      %s335 = smul.u32 128, %s29
      %s336 = smul.u32 128, %s29
      %p337 = scmp.lt.s32.totalorder %s28, 1
      %s338 = scalar_select %p337, %s28, 1
      %p339 = scmp.lt.s32.totalorder %s336, 511
      %s340 = scalar_select %p339, %s336, 511
      %s341 = smul.addr %s338, 512
      %s342 = sadd.s32 %s340, %s341
      %s343 = smul.addr %s342, 8
      %s344 = scalar_lea.vmem %s3, %s343
      %s345 = smul.u32 128, %s29
      %s346 = smul.u32 128, %s29
      %p347 = scmp.lt.s32.totalorder %s28, 1
      %s348 = scalar_select %p347, %s28, 1
      %p349 = scmp.lt.s32.totalorder %s346, 511
      %s350 = scalar_select %p349, %s346, 511
      %s351 = smul.addr %s348, 512
      %s352 = sadd.s32 %s350, %s351
      %s353 = smul.addr %s352, 8
      %s354 = scalar_lea.vmem %s4, %s353
      %s355 = smul.u32 128, %s29
      %s356 = smul.u32 128, %s29
      %p357 = scmp.lt.s32.totalorder %s28, 1
      %s358 = scalar_select %p357, %s28, 1
      %p359 = scmp.lt.s32.totalorder %s356, 511
      %s360 = scalar_select %p359, %s356, 511
      %s361 = smul.addr %s358, 512
      %s362 = sadd.s32 %s360, %s361
      %s363 = smul.addr %s362, 8
      %s364 = scalar_lea.vmem %s5, %s363
      %s365 = smul.u32 128, %s29
      %s366 = smul.u32 128, %s29
      %p367 = scmp.lt.s32.totalorder %s28, 1
      %s368 = scalar_select %p367, %s28, 1
      %p369 = scmp.lt.s32.totalorder %s366, 511
      %s370 = scalar_select %p369, %s366, 511
      %s371 = smul.addr %s368, 512
      %s372 = sadd.s32 %s370, %s371
      %s373 = smul.addr %s372, 8
      %s374 = scalar_lea.vmem %s6, %s373
      %s375 = smul.u32 128, %s29
      %s376 = sld [smem:[#allocation3]]
      %s377 = scvt.s32.f32 %s376
      %s378 = sld [smem:[#allocation3 + $0x1]]
      %s379 = scvt.s32.f32 %s378
      %v380 = vld [vmem:[%s324] sm:$0xff]
      %v381 = vld [vmem:[%s324 + $0x8] sm:$0xff]
      %v382 = vld [vmem:[%s324 + $0x10] sm:$0xff]
      %v383 = vld [vmem:[%s324 + $0x18] sm:$0xff]
      %v384 = vld [vmem:[%s324 + $0x20] sm:$0xff]
      %v385 = vld [vmem:[%s324 + $0x28] sm:$0xff]
      %v386 = vld [vmem:[%s324 + $0x30] sm:$0xff]
      %v387 = vld [vmem:[%s324 + $0x38] sm:$0xff]
      %v388 = vld [vmem:[%s324 + $0x40] sm:$0xff]
      %v389 = vld [vmem:[%s324 + $0x48] sm:$0xff]
      %v390 = vld [vmem:[%s324 + $0x50] sm:$0xff]
      %v391 = vld [vmem:[%s324 + $0x58] sm:$0xff]
      %v392 = vld [vmem:[%s324 + $0x60] sm:$0xff]
      %v393 = vld [vmem:[%s324 + $0x68] sm:$0xff]
      %v394 = vld [vmem:[%s324 + $0x70] sm:$0xff]
      %v395 = vld [vmem:[%s324 + $0x78] sm:$0xff]
      %v396 = vld [vmem:[%s324 + $0x80] sm:$0xff]
      %v397 = vld [vmem:[%s324 + $0x88] sm:$0xff]
      %v398 = vld [vmem:[%s324 + $0x90] sm:$0xff]
      %v399 = vld [vmem:[%s324 + $0x98] sm:$0xff]
      %v400 = vld [vmem:[%s324 + $0xa0] sm:$0xff]
      %v401 = vld [vmem:[%s324 + $0xa8] sm:$0xff]
      %v402 = vld [vmem:[%s324 + $0xb0] sm:$0xff]
      %v403 = vld [vmem:[%s324 + $0xb8] sm:$0xff]
      %v404 = vld [vmem:[%s324 + $0xc0] sm:$0xff]
      %v405 = vld [vmem:[%s324 + $0xc8] sm:$0xff]
      %v406 = vld [vmem:[%s324 + $0xd0] sm:$0xff]
      %v407 = vld [vmem:[%s324 + $0xd8] sm:$0xff]
      %v408 = vld [vmem:[%s324 + $0xe0] sm:$0xff]
      %v409 = vld [vmem:[%s324 + $0xe8] sm:$0xff]
      %v410 = vld [vmem:[%s324 + $0xf0] sm:$0xff]
      %v411 = vld [vmem:[%s324 + $0xf8] sm:$0xff]
      %v412 = vld [vmem:[%s324 + $0x100] sm:$0xff]
      %v413 = vld [vmem:[%s324 + $0x108] sm:$0xff]
      %v414 = vld [vmem:[%s324 + $0x110] sm:$0xff]
      %v415 = vld [vmem:[%s324 + $0x118] sm:$0xff]
      %v416 = vld [vmem:[%s324 + $0x120] sm:$0xff]
      %v417 = vld [vmem:[%s324 + $0x128] sm:$0xff]
      %v418 = vld [vmem:[%s324 + $0x130] sm:$0xff]
      %v419 = vld [vmem:[%s324 + $0x138] sm:$0xff]
      %v420 = vld [vmem:[%s324 + $0x140] sm:$0xff]
      %v421 = vld [vmem:[%s324 + $0x148] sm:$0xff]
      %v422 = vld [vmem:[%s324 + $0x150] sm:$0xff]
      %v423 = vld [vmem:[%s324 + $0x158] sm:$0xff]
      %v424 = vld [vmem:[%s324 + $0x160] sm:$0xff]
      %v425 = vld [vmem:[%s324 + $0x168] sm:$0xff]
      %v426 = vld [vmem:[%s324 + $0x170] sm:$0xff]
      %v427 = vld [vmem:[%s324 + $0x178] sm:$0xff]
      %v428 = vld [vmem:[%s324 + $0x180] sm:$0xff]
      %v429 = vld [vmem:[%s324 + $0x188] sm:$0xff]
      %v430 = vld [vmem:[%s324 + $0x190] sm:$0xff]
      %v431 = vld [vmem:[%s324 + $0x198] sm:$0xff]
      %v432 = vld [vmem:[%s324 + $0x1a0] sm:$0xff]
      %v433 = vld [vmem:[%s324 + $0x1a8] sm:$0xff]
      %v434 = vld [vmem:[%s324 + $0x1b0] sm:$0xff]
      %v435 = vld [vmem:[%s324 + $0x1b8] sm:$0xff]
      %v436 = vld [vmem:[%s324 + $0x1c0] sm:$0xff]
      %v437 = vld [vmem:[%s324 + $0x1c8] sm:$0xff]
      %v438 = vld [vmem:[%s324 + $0x1d0] sm:$0xff]
      %v439 = vld [vmem:[%s324 + $0x1d8] sm:$0xff]
      %v440 = vld [vmem:[%s324 + $0x1e0] sm:$0xff]
      %v441 = vld [vmem:[%s324 + $0x1e8] sm:$0xff]
      %v442 = vld [vmem:[%s324 + $0x1f0] sm:$0xff]
      %v443 = vld [vmem:[%s324 + $0x1f8] sm:$0xff]
      %v444 = vld [vmem:[%s324 + $0x200] sm:$0xff]
      %v445 = vld [vmem:[%s324 + $0x208] sm:$0xff]
      %v446 = vld [vmem:[%s324 + $0x210] sm:$0xff]
      %v447 = vld [vmem:[%s324 + $0x218] sm:$0xff]
      %v448 = vld [vmem:[%s324 + $0x220] sm:$0xff]
      %v449 = vld [vmem:[%s324 + $0x228] sm:$0xff]
      %v450 = vld [vmem:[%s324 + $0x230] sm:$0xff]
      %v451 = vld [vmem:[%s324 + $0x238] sm:$0xff]
      %v452 = vld [vmem:[%s324 + $0x240] sm:$0xff]
      %v453 = vld [vmem:[%s324 + $0x248] sm:$0xff]
      %v454 = vld [vmem:[%s324 + $0x250] sm:$0xff]
      %v455 = vld [vmem:[%s324 + $0x258] sm:$0xff]
      %v456 = vld [vmem:[%s324 + $0x260] sm:$0xff]
      %v457 = vld [vmem:[%s324 + $0x268] sm:$0xff]
      %v458 = vld [vmem:[%s324 + $0x270] sm:$0xff]
      %v459 = vld [vmem:[%s324 + $0x278] sm:$0xff]
      %v460 = vld [vmem:[%s324 + $0x280] sm:$0xff]
      %v461 = vld [vmem:[%s324 + $0x288] sm:$0xff]
      %v462 = vld [vmem:[%s324 + $0x290] sm:$0xff]
      %v463 = vld [vmem:[%s324 + $0x298] sm:$0xff]
      %v464 = vld [vmem:[%s324 + $0x2a0] sm:$0xff]
      %v465 = vld [vmem:[%s324 + $0x2a8] sm:$0xff]
      %v466 = vld [vmem:[%s324 + $0x2b0] sm:$0xff]
      %v467 = vld [vmem:[%s324 + $0x2b8] sm:$0xff]
      %v468 = vld [vmem:[%s324 + $0x2c0] sm:$0xff]
      %v469 = vld [vmem:[%s324 + $0x2c8] sm:$0xff]
      %v470 = vld [vmem:[%s324 + $0x2d0] sm:$0xff]
      %v471 = vld [vmem:[%s324 + $0x2d8] sm:$0xff]
      %v472 = vld [vmem:[%s324 + $0x2e0] sm:$0xff]
      %v473 = vld [vmem:[%s324 + $0x2e8] sm:$0xff]
      %v474 = vld [vmem:[%s324 + $0x2f0] sm:$0xff]
      %v475 = vld [vmem:[%s324 + $0x2f8] sm:$0xff]
      %v476 = vld [vmem:[%s324 + $0x300] sm:$0xff]
      %v477 = vld [vmem:[%s324 + $0x308] sm:$0xff]
      %v478 = vld [vmem:[%s324 + $0x310] sm:$0xff]
      %v479 = vld [vmem:[%s324 + $0x318] sm:$0xff]
      %v480 = vld [vmem:[%s324 + $0x320] sm:$0xff]
      %v481 = vld [vmem:[%s324 + $0x328] sm:$0xff]
      %v482 = vld [vmem:[%s324 + $0x330] sm:$0xff]
      %v483 = vld [vmem:[%s324 + $0x338] sm:$0xff]
      %v484 = vld [vmem:[%s324 + $0x340] sm:$0xff]
      %v485 = vld [vmem:[%s324 + $0x348] sm:$0xff]
      %v486 = vld [vmem:[%s324 + $0x350] sm:$0xff]
      %v487 = vld [vmem:[%s324 + $0x358] sm:$0xff]
      %v488 = vld [vmem:[%s324 + $0x360] sm:$0xff]
      %v489 = vld [vmem:[%s324 + $0x368] sm:$0xff]
      %v490 = vld [vmem:[%s324 + $0x370] sm:$0xff]
      %v491 = vld [vmem:[%s324 + $0x378] sm:$0xff]
      %v492 = vld [vmem:[%s324 + $0x380] sm:$0xff]
      %v493 = vld [vmem:[%s324 + $0x388] sm:$0xff]
      %v494 = vld [vmem:[%s324 + $0x390] sm:$0xff]
      %v495 = vld [vmem:[%s324 + $0x398] sm:$0xff]
      %v496 = vld [vmem:[%s324 + $0x3a0] sm:$0xff]
      %v497 = vld [vmem:[%s324 + $0x3a8] sm:$0xff]
      %v498 = vld [vmem:[%s324 + $0x3b0] sm:$0xff]
      %v499 = vld [vmem:[%s324 + $0x3b8] sm:$0xff]
      %v500 = vld [vmem:[%s324 + $0x3c0] sm:$0xff]
      %v501 = vld [vmem:[%s324 + $0x3c8] sm:$0xff]
      %v502 = vld [vmem:[%s324 + $0x3d0] sm:$0xff]
      %v503 = vld [vmem:[%s324 + $0x3d8] sm:$0xff]
      %v504 = vld [vmem:[%s324 + $0x3e0] sm:$0xff]
      %v505 = vld [vmem:[%s324 + $0x3e8] sm:$0xff]
      %v506 = vld [vmem:[%s324 + $0x3f0] sm:$0xff]
      %v507 = vld [vmem:[%s324 + $0x3f8] sm:$0xff]
      %v508 = vld [vmem:[%s334] sm:$0xff]
      %v509 = vld [vmem:[%s334 + $0x8] sm:$0xff]
      %v510 = vld [vmem:[%s334 + $0x10] sm:$0xff]
      %v511 = vld [vmem:[%s334 + $0x18] sm:$0xff]
      %v512 = vld [vmem:[%s334 + $0x20] sm:$0xff]
      %v513 = vld [vmem:[%s334 + $0x28] sm:$0xff]
      %v514 = vld [vmem:[%s334 + $0x30] sm:$0xff]
      %v515 = vld [vmem:[%s334 + $0x38] sm:$0xff]
      %v516 = vld [vmem:[%s334 + $0x40] sm:$0xff]
      %v517 = vld [vmem:[%s334 + $0x48] sm:$0xff]
      %v518 = vld [vmem:[%s334 + $0x50] sm:$0xff]
      %v519 = vld [vmem:[%s334 + $0x58] sm:$0xff]
      %v520 = vld [vmem:[%s334 + $0x60] sm:$0xff]
      %v521 = vld [vmem:[%s334 + $0x68] sm:$0xff]
      %v522 = vld [vmem:[%s334 + $0x70] sm:$0xff]
      %v523 = vld [vmem:[%s334 + $0x78] sm:$0xff]
      %v524 = vld [vmem:[%s334 + $0x80] sm:$0xff]
      %v525 = vld [vmem:[%s334 + $0x88] sm:$0xff]
      %v526 = vld [vmem:[%s334 + $0x90] sm:$0xff]
      %v527 = vld [vmem:[%s334 + $0x98] sm:$0xff]
      %v528 = vld [vmem:[%s334 + $0xa0] sm:$0xff]
      %v529 = vld [vmem:[%s334 + $0xa8] sm:$0xff]
      %v530 = vld [vmem:[%s334 + $0xb0] sm:$0xff]
      %v531 = vld [vmem:[%s334 + $0xb8] sm:$0xff]
      %v532 = vld [vmem:[%s334 + $0xc0] sm:$0xff]
      %v533 = vld [vmem:[%s334 + $0xc8] sm:$0xff]
      %v534 = vld [vmem:[%s334 + $0xd0] sm:$0xff]
      %v535 = vld [vmem:[%s334 + $0xd8] sm:$0xff]
      %v536 = vld [vmem:[%s334 + $0xe0] sm:$0xff]
      %v537 = vld [vmem:[%s334 + $0xe8] sm:$0xff]
      %v538 = vld [vmem:[%s334 + $0xf0] sm:$0xff]
      %v539 = vld [vmem:[%s334 + $0xf8] sm:$0xff]
      %v540 = vld [vmem:[%s334 + $0x100] sm:$0xff]
      %v541 = vld [vmem:[%s334 + $0x108] sm:$0xff]
      %v542 = vld [vmem:[%s334 + $0x110] sm:$0xff]
      %v543 = vld [vmem:[%s334 + $0x118] sm:$0xff]
      %v544 = vld [vmem:[%s334 + $0x120] sm:$0xff]
      %v545 = vld [vmem:[%s334 + $0x128] sm:$0xff]
      %v546 = vld [vmem:[%s334 + $0x130] sm:$0xff]
      %v547 = vld [vmem:[%s334 + $0x138] sm:$0xff]
      %v548 = vld [vmem:[%s334 + $0x140] sm:$0xff]
      %v549 = vld [vmem:[%s334 + $0x148] sm:$0xff]
      %v550 = vld [vmem:[%s334 + $0x150] sm:$0xff]
      %v551 = vld [vmem:[%s334 + $0x158] sm:$0xff]
      %v552 = vld [vmem:[%s334 + $0x160] sm:$0xff]
      %v553 = vld [vmem:[%s334 + $0x168] sm:$0xff]
      %v554 = vld [vmem:[%s334 + $0x170] sm:$0xff]
      %v555 = vld [vmem:[%s334 + $0x178] sm:$0xff]
      %v556 = vld [vmem:[%s334 + $0x180] sm:$0xff]
      %v557 = vld [vmem:[%s334 + $0x188] sm:$0xff]
      %v558 = vld [vmem:[%s334 + $0x190] sm:$0xff]
      %v559 = vld [vmem:[%s334 + $0x198] sm:$0xff]
      %v560 = vld [vmem:[%s334 + $0x1a0] sm:$0xff]
      %v561 = vld [vmem:[%s334 + $0x1a8] sm:$0xff]
      %v562 = vld [vmem:[%s334 + $0x1b0] sm:$0xff]
      %v563 = vld [vmem:[%s334 + $0x1b8] sm:$0xff]
      %v564 = vld [vmem:[%s334 + $0x1c0] sm:$0xff]
      %v565 = vld [vmem:[%s334 + $0x1c8] sm:$0xff]
      %v566 = vld [vmem:[%s334 + $0x1d0] sm:$0xff]
      %v567 = vld [vmem:[%s334 + $0x1d8] sm:$0xff]
      %v568 = vld [vmem:[%s334 + $0x1e0] sm:$0xff]
      %v569 = vld [vmem:[%s334 + $0x1e8] sm:$0xff]
      %v570 = vld [vmem:[%s334 + $0x1f0] sm:$0xff]
      %v571 = vld [vmem:[%s334 + $0x1f8] sm:$0xff]
      %v572 = vld [vmem:[%s334 + $0x200] sm:$0xff]
      %v573 = vld [vmem:[%s334 + $0x208] sm:$0xff]
      %v574 = vld [vmem:[%s334 + $0x210] sm:$0xff]
      %v575 = vld [vmem:[%s334 + $0x218] sm:$0xff]
      %v576 = vld [vmem:[%s334 + $0x220] sm:$0xff]
      %v577 = vld [vmem:[%s334 + $0x228] sm:$0xff]
      %v578 = vld [vmem:[%s334 + $0x230] sm:$0xff]
      %v579 = vld [vmem:[%s334 + $0x238] sm:$0xff]
      %v580 = vld [vmem:[%s334 + $0x240] sm:$0xff]
      %v581 = vld [vmem:[%s334 + $0x248] sm:$0xff]
      %v582 = vld [vmem:[%s334 + $0x250] sm:$0xff]
      %v583 = vld [vmem:[%s334 + $0x258] sm:$0xff]
      %v584 = vld [vmem:[%s334 + $0x260] sm:$0xff]
      %v585 = vld [vmem:[%s334 + $0x268] sm:$0xff]
      %v586 = vld [vmem:[%s334 + $0x270] sm:$0xff]
      %v587 = vld [vmem:[%s334 + $0x278] sm:$0xff]
      %v588 = vld [vmem:[%s334 + $0x280] sm:$0xff]
      %v589 = vld [vmem:[%s334 + $0x288] sm:$0xff]
      %v590 = vld [vmem:[%s334 + $0x290] sm:$0xff]
      %v591 = vld [vmem:[%s334 + $0x298] sm:$0xff]
      %v592 = vld [vmem:[%s334 + $0x2a0] sm:$0xff]
      %v593 = vld [vmem:[%s334 + $0x2a8] sm:$0xff]
      %v594 = vld [vmem:[%s334 + $0x2b0] sm:$0xff]
      %v595 = vld [vmem:[%s334 + $0x2b8] sm:$0xff]
      %v596 = vld [vmem:[%s334 + $0x2c0] sm:$0xff]
      %v597 = vld [vmem:[%s334 + $0x2c8] sm:$0xff]
      %v598 = vld [vmem:[%s334 + $0x2d0] sm:$0xff]
      %v599 = vld [vmem:[%s334 + $0x2d8] sm:$0xff]
      %v600 = vld [vmem:[%s334 + $0x2e0] sm:$0xff]
      %v601 = vld [vmem:[%s334 + $0x2e8] sm:$0xff]
      %v602 = vld [vmem:[%s334 + $0x2f0] sm:$0xff]
      %v603 = vld [vmem:[%s334 + $0x2f8] sm:$0xff]
      %v604 = vld [vmem:[%s334 + $0x300] sm:$0xff]
      %v605 = vld [vmem:[%s334 + $0x308] sm:$0xff]
      %v606 = vld [vmem:[%s334 + $0x310] sm:$0xff]
      %v607 = vld [vmem:[%s334 + $0x318] sm:$0xff]
      %v608 = vld [vmem:[%s334 + $0x320] sm:$0xff]
      %v609 = vld [vmem:[%s334 + $0x328] sm:$0xff]
      %v610 = vld [vmem:[%s334 + $0x330] sm:$0xff]
      %v611 = vld [vmem:[%s334 + $0x338] sm:$0xff]
      %v612 = vld [vmem:[%s334 + $0x340] sm:$0xff]
      %v613 = vld [vmem:[%s334 + $0x348] sm:$0xff]
      %v614 = vld [vmem:[%s334 + $0x350] sm:$0xff]
      %v615 = vld [vmem:[%s334 + $0x358] sm:$0xff]
      %v616 = vld [vmem:[%s334 + $0x360] sm:$0xff]
      %v617 = vld [vmem:[%s334 + $0x368] sm:$0xff]
      %v618 = vld [vmem:[%s334 + $0x370] sm:$0xff]
      %v619 = vld [vmem:[%s334 + $0x378] sm:$0xff]
      %v620 = vld [vmem:[%s334 + $0x380] sm:$0xff]
      %v621 = vld [vmem:[%s334 + $0x388] sm:$0xff]
      %v622 = vld [vmem:[%s334 + $0x390] sm:$0xff]
      %v623 = vld [vmem:[%s334 + $0x398] sm:$0xff]
      %v624 = vld [vmem:[%s334 + $0x3a0] sm:$0xff]
      %v625 = vld [vmem:[%s334 + $0x3a8] sm:$0xff]
      %v626 = vld [vmem:[%s334 + $0x3b0] sm:$0xff]
      %v627 = vld [vmem:[%s334 + $0x3b8] sm:$0xff]
      %v628 = vld [vmem:[%s334 + $0x3c0] sm:$0xff]
      %v629 = vld [vmem:[%s334 + $0x3c8] sm:$0xff]
      %v630 = vld [vmem:[%s334 + $0x3d0] sm:$0xff]
      %v631 = vld [vmem:[%s334 + $0x3d8] sm:$0xff]
      %v632 = vld [vmem:[%s334 + $0x3e0] sm:$0xff]
      %v633 = vld [vmem:[%s334 + $0x3e8] sm:$0xff]
      %v634 = vld [vmem:[%s334 + $0x3f0] sm:$0xff]
      %v635 = vld [vmem:[%s334 + $0x3f8] sm:$0xff]
      %v636 = vmul.f32 %v508, 0.1
      %v637 = vmul.f32 %v509, 0.1
      %v638 = vmul.f32 %v510, 0.1
      %v639 = vmul.f32 %v511, 0.1
      %v640 = vmul.f32 %v512, 0.1
      %v641 = vmul.f32 %v513, 0.1
      %v642 = vmul.f32 %v514, 0.1
      %v643 = vmul.f32 %v515, 0.1
      %v644 = vmul.f32 %v516, 0.1
      %v645 = vmul.f32 %v517, 0.1
      %v646 = vmul.f32 %v518, 0.1
      %v647 = vmul.f32 %v519, 0.1
      %v648 = vmul.f32 %v520, 0.1
      %v649 = vmul.f32 %v521, 0.1
      %v650 = vmul.f32 %v522, 0.1
      %v651 = vmul.f32 %v523, 0.1
      %v652 = vmul.f32 %v524, 0.1
      %v653 = vmul.f32 %v525, 0.1
      %v654 = vmul.f32 %v526, 0.1
      %v655 = vmul.f32 %v527, 0.1
      %v656 = vmul.f32 %v528, 0.1
      %v657 = vmul.f32 %v529, 0.1
      %v658 = vmul.f32 %v530, 0.1
      %v659 = vmul.f32 %v531, 0.1
      %v660 = vmul.f32 %v532, 0.1
      %v661 = vmul.f32 %v533, 0.1
      %v662 = vmul.f32 %v534, 0.1
      %v663 = vmul.f32 %v535, 0.1
      %v664 = vmul.f32 %v536, 0.1
      %v665 = vmul.f32 %v537, 0.1
      %v666 = vmul.f32 %v538, 0.1
      %v667 = vmul.f32 %v539, 0.1
      %v668 = vmul.f32 %v540, 0.1
      %v669 = vmul.f32 %v541, 0.1
      %v670 = vmul.f32 %v542, 0.1
      %v671 = vmul.f32 %v543, 0.1
      %v672 = vmul.f32 %v544, 0.1
      %v673 = vmul.f32 %v545, 0.1
      %v674 = vmul.f32 %v546, 0.1
      %v675 = vmul.f32 %v547, 0.1
      %v676 = vmul.f32 %v548, 0.1
      %v677 = vmul.f32 %v549, 0.1
      %v678 = vmul.f32 %v550, 0.1
      %v679 = vmul.f32 %v551, 0.1
      %v680 = vmul.f32 %v552, 0.1
      %v681 = vmul.f32 %v553, 0.1
      %v682 = vmul.f32 %v554, 0.1
      %v683 = vmul.f32 %v555, 0.1
      %v684 = vmul.f32 %v556, 0.1
      %v685 = vmul.f32 %v557, 0.1
      %v686 = vmul.f32 %v558, 0.1
      %v687 = vmul.f32 %v559, 0.1
      %v688 = vmul.f32 %v560, 0.1
      %v689 = vmul.f32 %v561, 0.1
      %v690 = vmul.f32 %v562, 0.1
      %v691 = vmul.f32 %v563, 0.1
      %v692 = vmul.f32 %v564, 0.1
      %v693 = vmul.f32 %v565, 0.1
      %v694 = vmul.f32 %v566, 0.1
      %v695 = vmul.f32 %v567, 0.1
      %v696 = vmul.f32 %v568, 0.1
      %v697 = vmul.f32 %v569, 0.1
      %v698 = vmul.f32 %v570, 0.1
      %v699 = vmul.f32 %v571, 0.1
      %v700 = vmul.f32 %v572, 0.1
      %v701 = vmul.f32 %v573, 0.1
      %v702 = vmul.f32 %v574, 0.1
      %v703 = vmul.f32 %v575, 0.1
      %v704 = vmul.f32 %v576, 0.1
      %v705 = vmul.f32 %v577, 0.1
      %v706 = vmul.f32 %v578, 0.1
      %v707 = vmul.f32 %v579, 0.1
      %v708 = vmul.f32 %v580, 0.1
      %v709 = vmul.f32 %v581, 0.1
      %v710 = vmul.f32 %v582, 0.1
      %v711 = vmul.f32 %v583, 0.1
      %v712 = vmul.f32 %v584, 0.1
      %v713 = vmul.f32 %v585, 0.1
      %v714 = vmul.f32 %v586, 0.1
      %v715 = vmul.f32 %v587, 0.1
      %v716 = vmul.f32 %v588, 0.1
      %v717 = vmul.f32 %v589, 0.1
      %v718 = vmul.f32 %v590, 0.1
      %v719 = vmul.f32 %v591, 0.1
      %v720 = vmul.f32 %v592, 0.1
      %v721 = vmul.f32 %v593, 0.1
      %v722 = vmul.f32 %v594, 0.1
      %v723 = vmul.f32 %v595, 0.1
      %v724 = vmul.f32 %v596, 0.1
      %v725 = vmul.f32 %v597, 0.1
      %v726 = vmul.f32 %v598, 0.1
      %v727 = vmul.f32 %v599, 0.1
      %v728 = vmul.f32 %v600, 0.1
      %v729 = vmul.f32 %v601, 0.1
      %v730 = vmul.f32 %v602, 0.1
      %v731 = vmul.f32 %v603, 0.1
      %v732 = vmul.f32 %v604, 0.1
      %v733 = vmul.f32 %v605, 0.1
      %v734 = vmul.f32 %v606, 0.1
      %v735 = vmul.f32 %v607, 0.1
      %v736 = vmul.f32 %v608, 0.1
      %v737 = vmul.f32 %v609, 0.1
      %v738 = vmul.f32 %v610, 0.1
      %v739 = vmul.f32 %v611, 0.1
      %v740 = vmul.f32 %v612, 0.1
      %v741 = vmul.f32 %v613, 0.1
      %v742 = vmul.f32 %v614, 0.1
      %v743 = vmul.f32 %v615, 0.1
      %v744 = vmul.f32 %v616, 0.1
      %v745 = vmul.f32 %v617, 0.1
      %v746 = vmul.f32 %v618, 0.1
      %v747 = vmul.f32 %v619, 0.1
      %v748 = vmul.f32 %v620, 0.1
      %v749 = vmul.f32 %v621, 0.1
      %v750 = vmul.f32 %v622, 0.1
      %v751 = vmul.f32 %v623, 0.1
      %v752 = vmul.f32 %v624, 0.1
      %v753 = vmul.f32 %v625, 0.1
      %v754 = vmul.f32 %v626, 0.1
      %v755 = vmul.f32 %v627, 0.1
      %v756 = vmul.f32 %v628, 0.1
      %v757 = vmul.f32 %v629, 0.1
      %v758 = vmul.f32 %v630, 0.1
      %v759 = vmul.f32 %v631, 0.1
      %v760 = vmul.f32 %v632, 0.1
      %v761 = vmul.f32 %v633, 0.1
      %v762 = vmul.f32 %v634, 0.1
      %v763 = vmul.f32 %v635, 0.1
      %v764 = vmul.f32 %v508, 0.2
      %v765 = vmul.f32 %v509, 0.2
      %v766 = vmul.f32 %v510, 0.2
      %v767 = vmul.f32 %v511, 0.2
      %v768 = vmul.f32 %v512, 0.2
      %v769 = vmul.f32 %v513, 0.2
      %v770 = vmul.f32 %v514, 0.2
      %v771 = vmul.f32 %v515, 0.2
      %v772 = vmul.f32 %v516, 0.2
      %v773 = vmul.f32 %v517, 0.2
      %v774 = vmul.f32 %v518, 0.2
      %v775 = vmul.f32 %v519, 0.2
      %v776 = vmul.f32 %v520, 0.2
      %v777 = vmul.f32 %v521, 0.2
      %v778 = vmul.f32 %v522, 0.2
      %v779 = vmul.f32 %v523, 0.2
      %v780 = vmul.f32 %v524, 0.2
      %v781 = vmul.f32 %v525, 0.2
      %v782 = vmul.f32 %v526, 0.2
      %v783 = vmul.f32 %v527, 0.2
      %v784 = vmul.f32 %v528, 0.2
      %v785 = vmul.f32 %v529, 0.2
      %v786 = vmul.f32 %v530, 0.2
      %v787 = vmul.f32 %v531, 0.2
      %v788 = vmul.f32 %v532, 0.2
      %v789 = vmul.f32 %v533, 0.2
      %v790 = vmul.f32 %v534, 0.2
      %v791 = vmul.f32 %v535, 0.2
      %v792 = vmul.f32 %v536, 0.2
      %v793 = vmul.f32 %v537, 0.2
      %v794 = vmul.f32 %v538, 0.2
      %v795 = vmul.f32 %v539, 0.2
      %v796 = vmul.f32 %v540, 0.2
      %v797 = vmul.f32 %v541, 0.2
      %v798 = vmul.f32 %v542, 0.2
      %v799 = vmul.f32 %v543, 0.2
      %v800 = vmul.f32 %v544, 0.2
      %v801 = vmul.f32 %v545, 0.2
      %v802 = vmul.f32 %v546, 0.2
      %v803 = vmul.f32 %v547, 0.2
      %v804 = vmul.f32 %v548, 0.2
      %v805 = vmul.f32 %v549, 0.2
      %v806 = vmul.f32 %v550, 0.2
      %v807 = vmul.f32 %v551, 0.2
      %v808 = vmul.f32 %v552, 0.2
      %v809 = vmul.f32 %v553, 0.2
      %v810 = vmul.f32 %v554, 0.2
      %v811 = vmul.f32 %v555, 0.2
      %v812 = vmul.f32 %v556, 0.2
      %v813 = vmul.f32 %v557, 0.2
      %v814 = vmul.f32 %v558, 0.2
      %v815 = vmul.f32 %v559, 0.2
      %v816 = vmul.f32 %v560, 0.2
      %v817 = vmul.f32 %v561, 0.2
      %v818 = vmul.f32 %v562, 0.2
      %v819 = vmul.f32 %v563, 0.2
      %v820 = vmul.f32 %v564, 0.2
      %v821 = vmul.f32 %v565, 0.2
      %v822 = vmul.f32 %v566, 0.2
      %v823 = vmul.f32 %v567, 0.2
      %v824 = vmul.f32 %v568, 0.2
      %v825 = vmul.f32 %v569, 0.2
      %v826 = vmul.f32 %v570, 0.2
      %v827 = vmul.f32 %v571, 0.2
      %v828 = vmul.f32 %v572, 0.2
      %v829 = vmul.f32 %v573, 0.2
      %v830 = vmul.f32 %v574, 0.2
      %v831 = vmul.f32 %v575, 0.2
      %v832 = vmul.f32 %v576, 0.2
      %v833 = vmul.f32 %v577, 0.2
      %v834 = vmul.f32 %v578, 0.2
      %v835 = vmul.f32 %v579, 0.2
      %v836 = vmul.f32 %v580, 0.2
      %v837 = vmul.f32 %v581, 0.2
      %v838 = vmul.f32 %v582, 0.2
      %v839 = vmul.f32 %v583, 0.2
      %v840 = vmul.f32 %v584, 0.2
      %v841 = vmul.f32 %v585, 0.2
      %v842 = vmul.f32 %v586, 0.2
      %v843 = vmul.f32 %v587, 0.2
      %v844 = vmul.f32 %v588, 0.2
      %v845 = vmul.f32 %v589, 0.2
      %v846 = vmul.f32 %v590, 0.2
      %v847 = vmul.f32 %v591, 0.2
      %v848 = vmul.f32 %v592, 0.2
      %v849 = vmul.f32 %v593, 0.2
      %v850 = vmul.f32 %v594, 0.2
      %v851 = vmul.f32 %v595, 0.2
      %v852 = vmul.f32 %v596, 0.2
      %v853 = vmul.f32 %v597, 0.2
      %v854 = vmul.f32 %v598, 0.2
      %v855 = vmul.f32 %v599, 0.2
      %v856 = vmul.f32 %v600, 0.2
      %v857 = vmul.f32 %v601, 0.2
      %v858 = vmul.f32 %v602, 0.2
      %v859 = vmul.f32 %v603, 0.2
      %v860 = vmul.f32 %v604, 0.2
      %v861 = vmul.f32 %v605, 0.2
      %v862 = vmul.f32 %v606, 0.2
      %v863 = vmul.f32 %v607, 0.2
      %v864 = vmul.f32 %v608, 0.2
      %v865 = vmul.f32 %v609, 0.2
      %v866 = vmul.f32 %v610, 0.2
      %v867 = vmul.f32 %v611, 0.2
      %v868 = vmul.f32 %v612, 0.2
      %v869 = vmul.f32 %v613, 0.2
      %v870 = vmul.f32 %v614, 0.2
      %v871 = vmul.f32 %v615, 0.2
      %v872 = vmul.f32 %v616, 0.2
      %v873 = vmul.f32 %v617, 0.2
      %v874 = vmul.f32 %v618, 0.2
      %v875 = vmul.f32 %v619, 0.2
      %v876 = vmul.f32 %v620, 0.2
      %v877 = vmul.f32 %v621, 0.2
      %v878 = vmul.f32 %v622, 0.2
      %v879 = vmul.f32 %v623, 0.2
      %v880 = vmul.f32 %v624, 0.2
      %v881 = vmul.f32 %v625, 0.2
      %v882 = vmul.f32 %v626, 0.2
      %v883 = vmul.f32 %v627, 0.2
      %v884 = vmul.f32 %v628, 0.2
      %v885 = vmul.f32 %v629, 0.2
      %v886 = vmul.f32 %v630, 0.2
      %v887 = vmul.f32 %v631, 0.2
      %v888 = vmul.f32 %v632, 0.2
      %v889 = vmul.f32 %v633, 0.2
      %v890 = vmul.f32 %v634, 0.2
      %v891 = vmul.f32 %v635, 0.2
      %1020 = vrot.lane.b32.xlu0 %v380, 126
      %v1021 = vpop.permute.xlu0 %1020
      %1022 = vrot.lane.b32.xlu0 %v381, 126
      %v1023 = vpop.permute.xlu0 %1022
      %1024 = vrot.lane.b32.xlu0 %v382, 126
      %v1025 = vpop.permute.xlu0 %1024
      %1026 = vrot.lane.b32.xlu0 %v383, 126
      %v1027 = vpop.permute.xlu0 %1026
      %1028 = vrot.lane.b32.xlu0 %v384, 126
      %v1029 = vpop.permute.xlu0 %1028
      %1030 = vrot.lane.b32.xlu0 %v385, 126
      %v1031 = vpop.permute.xlu0 %1030
      %1032 = vrot.lane.b32.xlu0 %v386, 126
      %v1033 = vpop.permute.xlu0 %1032
      %1034 = vrot.lane.b32.xlu0 %v387, 126
      %v1035 = vpop.permute.xlu0 %1034
      %1036 = vrot.lane.b32.xlu0 %v388, 126
      %v1037 = vpop.permute.xlu0 %1036
      %1038 = vrot.lane.b32.xlu0 %v389, 126
      %v1039 = vpop.permute.xlu0 %1038
      %1040 = vrot.lane.b32.xlu0 %v390, 126
      %v1041 = vpop.permute.xlu0 %1040
      %1042 = vrot.lane.b32.xlu0 %v391, 126
      %v1043 = vpop.permute.xlu0 %1042
      %1044 = vrot.lane.b32.xlu0 %v392, 126
      %v1045 = vpop.permute.xlu0 %1044
      %1046 = vrot.lane.b32.xlu0 %v393, 126
      %v1047 = vpop.permute.xlu0 %1046
      %1048 = vrot.lane.b32.xlu0 %v394, 126
      %v1049 = vpop.permute.xlu0 %1048
      %1050 = vrot.lane.b32.xlu0 %v395, 126
      %v1051 = vpop.permute.xlu0 %1050
      %1052 = vrot.lane.b32.xlu0 %v396, 126
      %v1053 = vpop.permute.xlu0 %1052
      %1054 = vrot.lane.b32.xlu0 %v397, 126
      %v1055 = vpop.permute.xlu0 %1054
      %1056 = vrot.lane.b32.xlu0 %v398, 126
      %v1057 = vpop.permute.xlu0 %1056
      %1058 = vrot.lane.b32.xlu0 %v399, 126
      %v1059 = vpop.permute.xlu0 %1058
      %1060 = vrot.lane.b32.xlu0 %v400, 126
      %v1061 = vpop.permute.xlu0 %1060
      %1062 = vrot.lane.b32.xlu0 %v401, 126
      %v1063 = vpop.permute.xlu0 %1062
      %1064 = vrot.lane.b32.xlu0 %v402, 126
      %v1065 = vpop.permute.xlu0 %1064
      %1066 = vrot.lane.b32.xlu0 %v403, 126
      %v1067 = vpop.permute.xlu0 %1066
      %1068 = vrot.lane.b32.xlu0 %v404, 126
      %v1069 = vpop.permute.xlu0 %1068
      %1070 = vrot.lane.b32.xlu0 %v405, 126
      %v1071 = vpop.permute.xlu0 %1070
      %1072 = vrot.lane.b32.xlu0 %v406, 126
      %v1073 = vpop.permute.xlu0 %1072
      %1074 = vrot.lane.b32.xlu0 %v407, 126
      %v1075 = vpop.permute.xlu0 %1074
      %1076 = vrot.lane.b32.xlu0 %v408, 126
      %v1077 = vpop.permute.xlu0 %1076
      %1078 = vrot.lane.b32.xlu0 %v409, 126
      %v1079 = vpop.permute.xlu0 %1078
      %1080 = vrot.lane.b32.xlu0 %v410, 126
      %v1081 = vpop.permute.xlu0 %1080
      %1082 = vrot.lane.b32.xlu0 %v411, 126
      %v1083 = vpop.permute.xlu0 %1082
      %1084 = vrot.lane.b32.xlu0 %v412, 126
      %v1085 = vpop.permute.xlu0 %1084
      %1086 = vrot.lane.b32.xlu0 %v413, 126
      %v1087 = vpop.permute.xlu0 %1086
      %1088 = vrot.lane.b32.xlu0 %v414, 126
      %v1089 = vpop.permute.xlu0 %1088
      %1090 = vrot.lane.b32.xlu0 %v415, 126
      %v1091 = vpop.permute.xlu0 %1090
      %1092 = vrot.lane.b32.xlu0 %v416, 126
      %v1093 = vpop.permute.xlu0 %1092
      %1094 = vrot.lane.b32.xlu0 %v417, 126
      %v1095 = vpop.permute.xlu0 %1094
      %1096 = vrot.lane.b32.xlu0 %v418, 126
      %v1097 = vpop.permute.xlu0 %1096
      %1098 = vrot.lane.b32.xlu0 %v419, 126
      %v1099 = vpop.permute.xlu0 %1098
      %1100 = vrot.lane.b32.xlu0 %v420, 126
      %v1101 = vpop.permute.xlu0 %1100
      %1102 = vrot.lane.b32.xlu0 %v421, 126
      %v1103 = vpop.permute.xlu0 %1102
      %1104 = vrot.lane.b32.xlu0 %v422, 126
      %v1105 = vpop.permute.xlu0 %1104
      %1106 = vrot.lane.b32.xlu0 %v423, 126
      %v1107 = vpop.permute.xlu0 %1106
      %1108 = vrot.lane.b32.xlu0 %v424, 126
      %v1109 = vpop.permute.xlu0 %1108
      %1110 = vrot.lane.b32.xlu0 %v425, 126
      %v1111 = vpop.permute.xlu0 %1110
      %1112 = vrot.lane.b32.xlu0 %v426, 126
      %v1113 = vpop.permute.xlu0 %1112
      %1114 = vrot.lane.b32.xlu0 %v427, 126
      %v1115 = vpop.permute.xlu0 %1114
      %1116 = vrot.lane.b32.xlu0 %v428, 126
      %v1117 = vpop.permute.xlu0 %1116
      %1118 = vrot.lane.b32.xlu0 %v429, 126
      %v1119 = vpop.permute.xlu0 %1118
      %1120 = vrot.lane.b32.xlu0 %v430, 126
      %v1121 = vpop.permute.xlu0 %1120
      %1122 = vrot.lane.b32.xlu0 %v431, 126
      %v1123 = vpop.permute.xlu0 %1122
      %1124 = vrot.lane.b32.xlu0 %v432, 126
      %v1125 = vpop.permute.xlu0 %1124
      %1126 = vrot.lane.b32.xlu0 %v433, 126
      %v1127 = vpop.permute.xlu0 %1126
      %1128 = vrot.lane.b32.xlu0 %v434, 126
      %v1129 = vpop.permute.xlu0 %1128
      %1130 = vrot.lane.b32.xlu0 %v435, 126
      %v1131 = vpop.permute.xlu0 %1130
      %1132 = vrot.lane.b32.xlu0 %v436, 126
      %v1133 = vpop.permute.xlu0 %1132
      %1134 = vrot.lane.b32.xlu0 %v437, 126
      %v1135 = vpop.permute.xlu0 %1134
      %1136 = vrot.lane.b32.xlu0 %v438, 126
      %v1137 = vpop.permute.xlu0 %1136
      %1138 = vrot.lane.b32.xlu0 %v439, 126
      %v1139 = vpop.permute.xlu0 %1138
      %1140 = vrot.lane.b32.xlu0 %v440, 126
      %v1141 = vpop.permute.xlu0 %1140
      %1142 = vrot.lane.b32.xlu0 %v441, 126
      %v1143 = vpop.permute.xlu0 %1142
      %1144 = vrot.lane.b32.xlu0 %v442, 126
      %v1145 = vpop.permute.xlu0 %1144
      %1146 = vrot.lane.b32.xlu0 %v443, 126
      %v1147 = vpop.permute.xlu0 %1146
      %1148 = vrot.lane.b32.xlu0 %v444, 126
      %v1149 = vpop.permute.xlu0 %1148
      %1150 = vrot.lane.b32.xlu0 %v445, 126
      %v1151 = vpop.permute.xlu0 %1150
      %1152 = vrot.lane.b32.xlu0 %v446, 126
      %v1153 = vpop.permute.xlu0 %1152
      %1154 = vrot.lane.b32.xlu0 %v447, 126
      %v1155 = vpop.permute.xlu0 %1154
      %1156 = vrot.lane.b32.xlu0 %v448, 126
      %v1157 = vpop.permute.xlu0 %1156
      %1158 = vrot.lane.b32.xlu0 %v449, 126
      %v1159 = vpop.permute.xlu0 %1158
      %1160 = vrot.lane.b32.xlu0 %v450, 126
      %v1161 = vpop.permute.xlu0 %1160
      %1162 = vrot.lane.b32.xlu0 %v451, 126
      %v1163 = vpop.permute.xlu0 %1162
      %1164 = vrot.lane.b32.xlu0 %v452, 126
      %v1165 = vpop.permute.xlu0 %1164
      %1166 = vrot.lane.b32.xlu0 %v453, 126
      %v1167 = vpop.permute.xlu0 %1166
      %1168 = vrot.lane.b32.xlu0 %v454, 126
      %v1169 = vpop.permute.xlu0 %1168
      %1170 = vrot.lane.b32.xlu0 %v455, 126
      %v1171 = vpop.permute.xlu0 %1170
      %1172 = vrot.lane.b32.xlu0 %v456, 126
      %v1173 = vpop.permute.xlu0 %1172
      %1174 = vrot.lane.b32.xlu0 %v457, 126
      %v1175 = vpop.permute.xlu0 %1174
      %1176 = vrot.lane.b32.xlu0 %v458, 126
      %v1177 = vpop.permute.xlu0 %1176
      %1178 = vrot.lane.b32.xlu0 %v459, 126
      %v1179 = vpop.permute.xlu0 %1178
      %1180 = vrot.lane.b32.xlu0 %v460, 126
      %v1181 = vpop.permute.xlu0 %1180
      %1182 = vrot.lane.b32.xlu0 %v461, 126
      %v1183 = vpop.permute.xlu0 %1182
      %1184 = vrot.lane.b32.xlu0 %v462, 126
      %v1185 = vpop.permute.xlu0 %1184
      %1186 = vrot.lane.b32.xlu0 %v463, 126
      %v1187 = vpop.permute.xlu0 %1186
      %1188 = vrot.lane.b32.xlu0 %v464, 126
      %v1189 = vpop.permute.xlu0 %1188
      %1190 = vrot.lane.b32.xlu0 %v465, 126
      %v1191 = vpop.permute.xlu0 %1190
      %1192 = vrot.lane.b32.xlu0 %v466, 126
      %v1193 = vpop.permute.xlu0 %1192
      %1194 = vrot.lane.b32.xlu0 %v467, 126
      %v1195 = vpop.permute.xlu0 %1194
      %1196 = vrot.lane.b32.xlu0 %v468, 126
      %v1197 = vpop.permute.xlu0 %1196
      %1198 = vrot.lane.b32.xlu0 %v469, 126
      %v1199 = vpop.permute.xlu0 %1198
      %1200 = vrot.lane.b32.xlu0 %v470, 126
      %v1201 = vpop.permute.xlu0 %1200
      %1202 = vrot.lane.b32.xlu0 %v471, 126
      %v1203 = vpop.permute.xlu0 %1202
      %1204 = vrot.lane.b32.xlu0 %v472, 126
      %v1205 = vpop.permute.xlu0 %1204
      %1206 = vrot.lane.b32.xlu0 %v473, 126
      %v1207 = vpop.permute.xlu0 %1206
      %1208 = vrot.lane.b32.xlu0 %v474, 126
      %v1209 = vpop.permute.xlu0 %1208
      %1210 = vrot.lane.b32.xlu0 %v475, 126
      %v1211 = vpop.permute.xlu0 %1210
      %1212 = vrot.lane.b32.xlu0 %v476, 126
      %v1213 = vpop.permute.xlu0 %1212
      %1214 = vrot.lane.b32.xlu0 %v477, 126
      %v1215 = vpop.permute.xlu0 %1214
      %1216 = vrot.lane.b32.xlu0 %v478, 126
      %v1217 = vpop.permute.xlu0 %1216
      %1218 = vrot.lane.b32.xlu0 %v479, 126
      %v1219 = vpop.permute.xlu0 %1218
      %1220 = vrot.lane.b32.xlu0 %v480, 126
      %v1221 = vpop.permute.xlu0 %1220
      %1222 = vrot.lane.b32.xlu0 %v481, 126
      %v1223 = vpop.permute.xlu0 %1222
      %1224 = vrot.lane.b32.xlu0 %v482, 126
      %v1225 = vpop.permute.xlu0 %1224
      %1226 = vrot.lane.b32.xlu0 %v483, 126
      %v1227 = vpop.permute.xlu0 %1226
      %1228 = vrot.lane.b32.xlu0 %v484, 126
      %v1229 = vpop.permute.xlu0 %1228
      %1230 = vrot.lane.b32.xlu0 %v485, 126
      %v1231 = vpop.permute.xlu0 %1230
      %1232 = vrot.lane.b32.xlu0 %v486, 126
      %v1233 = vpop.permute.xlu0 %1232
      %1234 = vrot.lane.b32.xlu0 %v487, 126
      %v1235 = vpop.permute.xlu0 %1234
      %1236 = vrot.lane.b32.xlu0 %v488, 126
      %v1237 = vpop.permute.xlu0 %1236
      %1238 = vrot.lane.b32.xlu0 %v489, 126
      %v1239 = vpop.permute.xlu0 %1238
      %1240 = vrot.lane.b32.xlu0 %v490, 126
      %v1241 = vpop.permute.xlu0 %1240
      %1242 = vrot.lane.b32.xlu0 %v491, 126
      %v1243 = vpop.permute.xlu0 %1242
      %1244 = vrot.lane.b32.xlu0 %v492, 126
      %v1245 = vpop.permute.xlu0 %1244
      %1246 = vrot.lane.b32.xlu0 %v493, 126
      %v1247 = vpop.permute.xlu0 %1246
      %1248 = vrot.lane.b32.xlu0 %v494, 126
      %v1249 = vpop.permute.xlu0 %1248
      %1250 = vrot.lane.b32.xlu0 %v495, 126
      %v1251 = vpop.permute.xlu0 %1250
      %1252 = vrot.lane.b32.xlu0 %v496, 126
      %v1253 = vpop.permute.xlu0 %1252
      %1254 = vrot.lane.b32.xlu0 %v497, 126
      %v1255 = vpop.permute.xlu0 %1254
      %1256 = vrot.lane.b32.xlu0 %v498, 126
      %v1257 = vpop.permute.xlu0 %1256
      %1258 = vrot.lane.b32.xlu0 %v499, 126
      %v1259 = vpop.permute.xlu0 %1258
      %1260 = vrot.lane.b32.xlu0 %v500, 126
      %v1261 = vpop.permute.xlu0 %1260
      %1262 = vrot.lane.b32.xlu0 %v501, 126
      %v1263 = vpop.permute.xlu0 %1262
      %1264 = vrot.lane.b32.xlu0 %v502, 126
      %v1265 = vpop.permute.xlu0 %1264
      %1266 = vrot.lane.b32.xlu0 %v503, 126
      %v1267 = vpop.permute.xlu0 %1266
      %1268 = vrot.lane.b32.xlu0 %v504, 126
      %v1269 = vpop.permute.xlu0 %1268
      %1270 = vrot.lane.b32.xlu0 %v505, 126
      %v1271 = vpop.permute.xlu0 %1270
      %1272 = vrot.lane.b32.xlu0 %v506, 126
      %v1273 = vpop.permute.xlu0 %1272
      %1274 = vrot.lane.b32.xlu0 %v507, 126
      %v1275 = vpop.permute.xlu0 %1274
      %v1404 = vmul.f32 %v636, %v1021
      %v1405 = vmul.f32 %v637, %v1023
      %v1406 = vmul.f32 %v638, %v1025
      %v1407 = vmul.f32 %v639, %v1027
      %v1408 = vmul.f32 %v640, %v1029
      %v1409 = vmul.f32 %v641, %v1031
      %v1410 = vmul.f32 %v642, %v1033
      %v1411 = vmul.f32 %v643, %v1035
      %v1412 = vmul.f32 %v644, %v1037
      %v1413 = vmul.f32 %v645, %v1039
      %v1414 = vmul.f32 %v646, %v1041
      %v1415 = vmul.f32 %v647, %v1043
      %v1416 = vmul.f32 %v648, %v1045
      %v1417 = vmul.f32 %v649, %v1047
      %v1418 = vmul.f32 %v650, %v1049
      %v1419 = vmul.f32 %v651, %v1051
      %v1420 = vmul.f32 %v652, %v1053
      %v1421 = vmul.f32 %v653, %v1055
      %v1422 = vmul.f32 %v654, %v1057
      %v1423 = vmul.f32 %v655, %v1059
      %v1424 = vmul.f32 %v656, %v1061
      %v1425 = vmul.f32 %v657, %v1063
      %v1426 = vmul.f32 %v658, %v1065
      %v1427 = vmul.f32 %v659, %v1067
      %v1428 = vmul.f32 %v660, %v1069
      %v1429 = vmul.f32 %v661, %v1071
      %v1430 = vmul.f32 %v662, %v1073
      %v1431 = vmul.f32 %v663, %v1075
      %v1432 = vmul.f32 %v664, %v1077
      %v1433 = vmul.f32 %v665, %v1079
      %v1434 = vmul.f32 %v666, %v1081
      %v1435 = vmul.f32 %v667, %v1083
      %v1436 = vmul.f32 %v668, %v1085
      %v1437 = vmul.f32 %v669, %v1087
      %v1438 = vmul.f32 %v670, %v1089
      %v1439 = vmul.f32 %v671, %v1091
      %v1440 = vmul.f32 %v672, %v1093
      %v1441 = vmul.f32 %v673, %v1095
      %v1442 = vmul.f32 %v674, %v1097
      %v1443 = vmul.f32 %v675, %v1099
      %v1444 = vmul.f32 %v676, %v1101
      %v1445 = vmul.f32 %v677, %v1103
      %v1446 = vmul.f32 %v678, %v1105
      %v1447 = vmul.f32 %v679, %v1107
      %v1448 = vmul.f32 %v680, %v1109
      %v1449 = vmul.f32 %v681, %v1111
      %v1450 = vmul.f32 %v682, %v1113
      %v1451 = vmul.f32 %v683, %v1115
      %v1452 = vmul.f32 %v684, %v1117
      %v1453 = vmul.f32 %v685, %v1119
      %v1454 = vmul.f32 %v686, %v1121
      %v1455 = vmul.f32 %v687, %v1123
      %v1456 = vmul.f32 %v688, %v1125
      %v1457 = vmul.f32 %v689, %v1127
      %v1458 = vmul.f32 %v690, %v1129
      %v1459 = vmul.f32 %v691, %v1131
      %v1460 = vmul.f32 %v692, %v1133
      %v1461 = vmul.f32 %v693, %v1135
      %v1462 = vmul.f32 %v694, %v1137
      %v1463 = vmul.f32 %v695, %v1139
      %v1464 = vmul.f32 %v696, %v1141
      %v1465 = vmul.f32 %v697, %v1143
      %v1466 = vmul.f32 %v698, %v1145
      %v1467 = vmul.f32 %v699, %v1147
      %v1468 = vmul.f32 %v700, %v1149
      %v1469 = vmul.f32 %v701, %v1151
      %v1470 = vmul.f32 %v702, %v1153
      %v1471 = vmul.f32 %v703, %v1155
      %v1472 = vmul.f32 %v704, %v1157
      %v1473 = vmul.f32 %v705, %v1159
      %v1474 = vmul.f32 %v706, %v1161
      %v1475 = vmul.f32 %v707, %v1163
      %v1476 = vmul.f32 %v708, %v1165
      %v1477 = vmul.f32 %v709, %v1167
      %v1478 = vmul.f32 %v710, %v1169
      %v1479 = vmul.f32 %v711, %v1171
      %v1480 = vmul.f32 %v712, %v1173
      %v1481 = vmul.f32 %v713, %v1175
      %v1482 = vmul.f32 %v714, %v1177
      %v1483 = vmul.f32 %v715, %v1179
      %v1484 = vmul.f32 %v716, %v1181
      %v1485 = vmul.f32 %v717, %v1183
      %v1486 = vmul.f32 %v718, %v1185
      %v1487 = vmul.f32 %v719, %v1187
      %v1488 = vmul.f32 %v720, %v1189
      %v1489 = vmul.f32 %v721, %v1191
      %v1490 = vmul.f32 %v722, %v1193
      %v1491 = vmul.f32 %v723, %v1195
      %v1492 = vmul.f32 %v724, %v1197
      %v1493 = vmul.f32 %v725, %v1199
      %v1494 = vmul.f32 %v726, %v1201
      %v1495 = vmul.f32 %v727, %v1203
      %v1496 = vmul.f32 %v728, %v1205
      %v1497 = vmul.f32 %v729, %v1207
      %v1498 = vmul.f32 %v730, %v1209
      %v1499 = vmul.f32 %v731, %v1211
      %v1500 = vmul.f32 %v732, %v1213
      %v1501 = vmul.f32 %v733, %v1215
      %v1502 = vmul.f32 %v734, %v1217
      %v1503 = vmul.f32 %v735, %v1219
      %v1504 = vmul.f32 %v736, %v1221
      %v1505 = vmul.f32 %v737, %v1223
      %v1506 = vmul.f32 %v738, %v1225
      %v1507 = vmul.f32 %v739, %v1227
      %v1508 = vmul.f32 %v740, %v1229
      %v1509 = vmul.f32 %v741, %v1231
      %v1510 = vmul.f32 %v742, %v1233
      %v1511 = vmul.f32 %v743, %v1235
      %v1512 = vmul.f32 %v744, %v1237
      %v1513 = vmul.f32 %v745, %v1239
      %v1514 = vmul.f32 %v746, %v1241
      %v1515 = vmul.f32 %v747, %v1243
      %v1516 = vmul.f32 %v748, %v1245
      %v1517 = vmul.f32 %v749, %v1247
      %v1518 = vmul.f32 %v750, %v1249
      %v1519 = vmul.f32 %v751, %v1251
      %v1520 = vmul.f32 %v752, %v1253
      %v1521 = vmul.f32 %v753, %v1255
      %v1522 = vmul.f32 %v754, %v1257
      %v1523 = vmul.f32 %v755, %v1259
      %v1524 = vmul.f32 %v756, %v1261
      %v1525 = vmul.f32 %v757, %v1263
      %v1526 = vmul.f32 %v758, %v1265
      %v1527 = vmul.f32 %v759, %v1267
      %v1528 = vmul.f32 %v760, %v1269
      %v1529 = vmul.f32 %v761, %v1271
      %v1530 = vmul.f32 %v762, %v1273
      %v1531 = vmul.f32 %v763, %v1275
      %v1532 = vadd.f32 %v380, %v1404
      %v1533 = vadd.f32 %v381, %v1405
      %v1534 = vadd.f32 %v382, %v1406
      %v1535 = vadd.f32 %v383, %v1407
      %v1536 = vadd.f32 %v384, %v1408
      %v1537 = vadd.f32 %v385, %v1409
      %v1538 = vadd.f32 %v386, %v1410
      %v1539 = vadd.f32 %v387, %v1411
      %v1540 = vadd.f32 %v388, %v1412
      %v1541 = vadd.f32 %v389, %v1413
      %v1542 = vadd.f32 %v390, %v1414
      %v1543 = vadd.f32 %v391, %v1415
      %v1544 = vadd.f32 %v392, %v1416
      %v1545 = vadd.f32 %v393, %v1417
      %v1546 = vadd.f32 %v394, %v1418
      %v1547 = vadd.f32 %v395, %v1419
      %v1548 = vadd.f32 %v396, %v1420
      %v1549 = vadd.f32 %v397, %v1421
      %v1550 = vadd.f32 %v398, %v1422
      %v1551 = vadd.f32 %v399, %v1423
      %v1552 = vadd.f32 %v400, %v1424
      %v1553 = vadd.f32 %v401, %v1425
      %v1554 = vadd.f32 %v402, %v1426
      %v1555 = vadd.f32 %v403, %v1427
      %v1556 = vadd.f32 %v404, %v1428
      %v1557 = vadd.f32 %v405, %v1429
      %v1558 = vadd.f32 %v406, %v1430
      %v1559 = vadd.f32 %v407, %v1431
      %v1560 = vadd.f32 %v408, %v1432
      %v1561 = vadd.f32 %v409, %v1433
      %v1562 = vadd.f32 %v410, %v1434
      %v1563 = vadd.f32 %v411, %v1435
      %v1564 = vadd.f32 %v412, %v1436
      %v1565 = vadd.f32 %v413, %v1437
      %v1566 = vadd.f32 %v414, %v1438
      %v1567 = vadd.f32 %v415, %v1439
      %v1568 = vadd.f32 %v416, %v1440
      %v1569 = vadd.f32 %v417, %v1441
      %v1570 = vadd.f32 %v418, %v1442
      %v1571 = vadd.f32 %v419, %v1443
      %v1572 = vadd.f32 %v420, %v1444
      %v1573 = vadd.f32 %v421, %v1445
      %v1574 = vadd.f32 %v422, %v1446
      %v1575 = vadd.f32 %v423, %v1447
      %v1576 = vadd.f32 %v424, %v1448
      %v1577 = vadd.f32 %v425, %v1449
      %v1578 = vadd.f32 %v426, %v1450
      %v1579 = vadd.f32 %v427, %v1451
      %v1580 = vadd.f32 %v428, %v1452
      %v1581 = vadd.f32 %v429, %v1453
      %v1582 = vadd.f32 %v430, %v1454
      %v1583 = vadd.f32 %v431, %v1455
      %v1584 = vadd.f32 %v432, %v1456
      %v1585 = vadd.f32 %v433, %v1457
      %v1586 = vadd.f32 %v434, %v1458
      %v1587 = vadd.f32 %v435, %v1459
      %v1588 = vadd.f32 %v436, %v1460
      %v1589 = vadd.f32 %v437, %v1461
      %v1590 = vadd.f32 %v438, %v1462
      %v1591 = vadd.f32 %v439, %v1463
      %v1592 = vadd.f32 %v440, %v1464
      %v1593 = vadd.f32 %v441, %v1465
      %v1594 = vadd.f32 %v442, %v1466
      %v1595 = vadd.f32 %v443, %v1467
      %v1596 = vadd.f32 %v444, %v1468
      %v1597 = vadd.f32 %v445, %v1469
      %v1598 = vadd.f32 %v446, %v1470
      %v1599 = vadd.f32 %v447, %v1471
      %v1600 = vadd.f32 %v448, %v1472
      %v1601 = vadd.f32 %v449, %v1473
      %v1602 = vadd.f32 %v450, %v1474
      %v1603 = vadd.f32 %v451, %v1475
      %v1604 = vadd.f32 %v452, %v1476
      %v1605 = vadd.f32 %v453, %v1477
      %v1606 = vadd.f32 %v454, %v1478
      %v1607 = vadd.f32 %v455, %v1479
      %v1608 = vadd.f32 %v456, %v1480
      %v1609 = vadd.f32 %v457, %v1481
      %v1610 = vadd.f32 %v458, %v1482
      %v1611 = vadd.f32 %v459, %v1483
      %v1612 = vadd.f32 %v460, %v1484
      %v1613 = vadd.f32 %v461, %v1485
      %v1614 = vadd.f32 %v462, %v1486
      %v1615 = vadd.f32 %v463, %v1487
      %v1616 = vadd.f32 %v464, %v1488
      %v1617 = vadd.f32 %v465, %v1489
      %v1618 = vadd.f32 %v466, %v1490
      %v1619 = vadd.f32 %v467, %v1491
      %v1620 = vadd.f32 %v468, %v1492
      %v1621 = vadd.f32 %v469, %v1493
      %v1622 = vadd.f32 %v470, %v1494
      %v1623 = vadd.f32 %v471, %v1495
      %v1624 = vadd.f32 %v472, %v1496
      %v1625 = vadd.f32 %v473, %v1497
      %v1626 = vadd.f32 %v474, %v1498
      %v1627 = vadd.f32 %v475, %v1499
      %v1628 = vadd.f32 %v476, %v1500
      %v1629 = vadd.f32 %v477, %v1501
      %v1630 = vadd.f32 %v478, %v1502
      %v1631 = vadd.f32 %v479, %v1503
      %v1632 = vadd.f32 %v480, %v1504
      %v1633 = vadd.f32 %v481, %v1505
      %v1634 = vadd.f32 %v482, %v1506
      %v1635 = vadd.f32 %v483, %v1507
      %v1636 = vadd.f32 %v484, %v1508
      %v1637 = vadd.f32 %v485, %v1509
      %v1638 = vadd.f32 %v486, %v1510
      %v1639 = vadd.f32 %v487, %v1511
      %v1640 = vadd.f32 %v488, %v1512
      %v1641 = vadd.f32 %v489, %v1513
      %v1642 = vadd.f32 %v490, %v1514
      %v1643 = vadd.f32 %v491, %v1515
      %v1644 = vadd.f32 %v492, %v1516
      %v1645 = vadd.f32 %v493, %v1517
      %v1646 = vadd.f32 %v494, %v1518
      %v1647 = vadd.f32 %v495, %v1519
      %v1648 = vadd.f32 %v496, %v1520
      %v1649 = vadd.f32 %v497, %v1521
      %v1650 = vadd.f32 %v498, %v1522
      %v1651 = vadd.f32 %v499, %v1523
      %v1652 = vadd.f32 %v500, %v1524
      %v1653 = vadd.f32 %v501, %v1525
      %v1654 = vadd.f32 %v502, %v1526
      %v1655 = vadd.f32 %v503, %v1527
      %v1656 = vadd.f32 %v504, %v1528
      %v1657 = vadd.f32 %v505, %v1529
      %v1658 = vadd.f32 %v506, %v1530
      %v1659 = vadd.f32 %v507, %v1531
      %v1660 = vmul.f32 %v764, 1.442695
      %v1661 = vpow.pop %v1660
      %v1662 = vmul.f32 %v765, 1.442695
      %v1663 = vpow.pop %v1662
      %v1664 = vmul.f32 %v766, 1.442695
      %v1665 = vpow.pop %v1664
      %v1666 = vmul.f32 %v767, 1.442695
      %v1667 = vpow.pop %v1666
      %v1668 = vmul.f32 %v768, 1.442695
      %v1669 = vpow.pop %v1668
      %v1670 = vmul.f32 %v769, 1.442695
      %v1671 = vpow.pop %v1670
      %v1672 = vmul.f32 %v770, 1.442695
      %v1673 = vpow.pop %v1672
      %v1674 = vmul.f32 %v771, 1.442695
      %v1675 = vpow.pop %v1674
      %v1676 = vmul.f32 %v772, 1.442695
      %v1677 = vpow.pop %v1676
      %v1678 = vmul.f32 %v773, 1.442695
      %v1679 = vpow.pop %v1678
      %v1680 = vmul.f32 %v774, 1.442695
      %v1681 = vpow.pop %v1680
      %v1682 = vmul.f32 %v775, 1.442695
      %v1683 = vpow.pop %v1682
      %v1684 = vmul.f32 %v776, 1.442695
      %v1685 = vpow.pop %v1684
      %v1686 = vmul.f32 %v777, 1.442695
      %v1687 = vpow.pop %v1686
      %v1688 = vmul.f32 %v778, 1.442695
      %v1689 = vpow.pop %v1688
      %v1690 = vmul.f32 %v779, 1.442695
      %v1691 = vpow.pop %v1690
      %v1692 = vmul.f32 %v780, 1.442695
      %v1693 = vpow.pop %v1692
      %v1694 = vmul.f32 %v781, 1.442695
      %v1695 = vpow.pop %v1694
      %v1696 = vmul.f32 %v782, 1.442695
      %v1697 = vpow.pop %v1696
      %v1698 = vmul.f32 %v783, 1.442695
      %v1699 = vpow.pop %v1698
      %v1700 = vmul.f32 %v784, 1.442695
      %v1701 = vpow.pop %v1700
      %v1702 = vmul.f32 %v785, 1.442695
      %v1703 = vpow.pop %v1702
      %v1704 = vmul.f32 %v786, 1.442695
      %v1705 = vpow.pop %v1704
      %v1706 = vmul.f32 %v787, 1.442695
      %v1707 = vpow.pop %v1706
      %v1708 = vmul.f32 %v788, 1.442695
      %v1709 = vpow.pop %v1708
      %v1710 = vmul.f32 %v789, 1.442695
      %v1711 = vpow.pop %v1710
      %v1712 = vmul.f32 %v790, 1.442695
      %v1713 = vpow.pop %v1712
      %v1714 = vmul.f32 %v791, 1.442695
      %v1715 = vpow.pop %v1714
      %v1716 = vmul.f32 %v792, 1.442695
      %v1717 = vpow.pop %v1716
      %v1718 = vmul.f32 %v793, 1.442695
      %v1719 = vpow.pop %v1718
      %v1720 = vmul.f32 %v794, 1.442695
      %v1721 = vpow.pop %v1720
      %v1722 = vmul.f32 %v795, 1.442695
      %v1723 = vpow.pop %v1722
      %v1724 = vmul.f32 %v796, 1.442695
      %v1725 = vpow.pop %v1724
      %v1726 = vmul.f32 %v797, 1.442695
      %v1727 = vpow.pop %v1726
      %v1728 = vmul.f32 %v798, 1.442695
      %v1729 = vpow.pop %v1728
      %v1730 = vmul.f32 %v799, 1.442695
      %v1731 = vpow.pop %v1730
      %v1732 = vmul.f32 %v800, 1.442695
      %v1733 = vpow.pop %v1732
      %v1734 = vmul.f32 %v801, 1.442695
      %v1735 = vpow.pop %v1734
      %v1736 = vmul.f32 %v802, 1.442695
      %v1737 = vpow.pop %v1736
      %v1738 = vmul.f32 %v803, 1.442695
      %v1739 = vpow.pop %v1738
      %v1740 = vmul.f32 %v804, 1.442695
      %v1741 = vpow.pop %v1740
      %v1742 = vmul.f32 %v805, 1.442695
      %v1743 = vpow.pop %v1742
      %v1744 = vmul.f32 %v806, 1.442695
      %v1745 = vpow.pop %v1744
      %v1746 = vmul.f32 %v807, 1.442695
      %v1747 = vpow.pop %v1746
      %v1748 = vmul.f32 %v808, 1.442695
      %v1749 = vpow.pop %v1748
      %v1750 = vmul.f32 %v809, 1.442695
      %v1751 = vpow.pop %v1750
      %v1752 = vmul.f32 %v810, 1.442695
      %v1753 = vpow.pop %v1752
      %v1754 = vmul.f32 %v811, 1.442695
      %v1755 = vpow.pop %v1754
      %v1756 = vmul.f32 %v812, 1.442695
      %v1757 = vpow.pop %v1756
      %v1758 = vmul.f32 %v813, 1.442695
      %v1759 = vpow.pop %v1758
      %v1760 = vmul.f32 %v814, 1.442695
      %v1761 = vpow.pop %v1760
      %v1762 = vmul.f32 %v815, 1.442695
      %v1763 = vpow.pop %v1762
      %v1764 = vmul.f32 %v816, 1.442695
      %v1765 = vpow.pop %v1764
      %v1766 = vmul.f32 %v817, 1.442695
      %v1767 = vpow.pop %v1766
      %v1768 = vmul.f32 %v818, 1.442695
      %v1769 = vpow.pop %v1768
      %v1770 = vmul.f32 %v819, 1.442695
      %v1771 = vpow.pop %v1770
      %v1772 = vmul.f32 %v820, 1.442695
      %v1773 = vpow.pop %v1772
      %v1774 = vmul.f32 %v821, 1.442695
      %v1775 = vpow.pop %v1774
      %v1776 = vmul.f32 %v822, 1.442695
      %v1777 = vpow.pop %v1776
      %v1778 = vmul.f32 %v823, 1.442695
      %v1779 = vpow.pop %v1778
      %v1780 = vmul.f32 %v824, 1.442695
      %v1781 = vpow.pop %v1780
      %v1782 = vmul.f32 %v825, 1.442695
      %v1783 = vpow.pop %v1782
      %v1784 = vmul.f32 %v826, 1.442695
      %v1785 = vpow.pop %v1784
      %v1786 = vmul.f32 %v827, 1.442695
      %v1787 = vpow.pop %v1786
      %v1788 = vmul.f32 %v828, 1.442695
      %v1789 = vpow.pop %v1788
      %v1790 = vmul.f32 %v829, 1.442695
      %v1791 = vpow.pop %v1790
      %v1792 = vmul.f32 %v830, 1.442695
      %v1793 = vpow.pop %v1792
      %v1794 = vmul.f32 %v831, 1.442695
      %v1795 = vpow.pop %v1794
      %v1796 = vmul.f32 %v832, 1.442695
      %v1797 = vpow.pop %v1796
      %v1798 = vmul.f32 %v833, 1.442695
      %v1799 = vpow.pop %v1798
      %v1800 = vmul.f32 %v834, 1.442695
      %v1801 = vpow.pop %v1800
      %v1802 = vmul.f32 %v835, 1.442695
      %v1803 = vpow.pop %v1802
      %v1804 = vmul.f32 %v836, 1.442695
      %v1805 = vpow.pop %v1804
      %v1806 = vmul.f32 %v837, 1.442695
      %v1807 = vpow.pop %v1806
      %v1808 = vmul.f32 %v838, 1.442695
      %v1809 = vpow.pop %v1808
      %v1810 = vmul.f32 %v839, 1.442695
      %v1811 = vpow.pop %v1810
      %v1812 = vmul.f32 %v840, 1.442695
      %v1813 = vpow.pop %v1812
      %v1814 = vmul.f32 %v841, 1.442695
      %v1815 = vpow.pop %v1814
      %v1816 = vmul.f32 %v842, 1.442695
      %v1817 = vpow.pop %v1816
      %v1818 = vmul.f32 %v843, 1.442695
      %v1819 = vpow.pop %v1818
      %v1820 = vmul.f32 %v844, 1.442695
      %v1821 = vpow.pop %v1820
      %v1822 = vmul.f32 %v845, 1.442695
      %v1823 = vpow.pop %v1822
      %v1824 = vmul.f32 %v846, 1.442695
      %v1825 = vpow.pop %v1824
      %v1826 = vmul.f32 %v847, 1.442695
      %v1827 = vpow.pop %v1826
      %v1828 = vmul.f32 %v848, 1.442695
      %v1829 = vpow.pop %v1828
      %v1830 = vmul.f32 %v849, 1.442695
      %v1831 = vpow.pop %v1830
      %v1832 = vmul.f32 %v850, 1.442695
      %v1833 = vpow.pop %v1832
      %v1834 = vmul.f32 %v851, 1.442695
      %v1835 = vpow.pop %v1834
      %v1836 = vmul.f32 %v852, 1.442695
      %v1837 = vpow.pop %v1836
      %v1838 = vmul.f32 %v853, 1.442695
      %v1839 = vpow.pop %v1838
      %v1840 = vmul.f32 %v854, 1.442695
      %v1841 = vpow.pop %v1840
      %v1842 = vmul.f32 %v855, 1.442695
      %v1843 = vpow.pop %v1842
      %v1844 = vmul.f32 %v856, 1.442695
      %v1845 = vpow.pop %v1844
      %v1846 = vmul.f32 %v857, 1.442695
      %v1847 = vpow.pop %v1846
      %v1848 = vmul.f32 %v858, 1.442695
      %v1849 = vpow.pop %v1848
      %v1850 = vmul.f32 %v859, 1.442695
      %v1851 = vpow.pop %v1850
      %v1852 = vmul.f32 %v860, 1.442695
      %v1853 = vpow.pop %v1852
      %v1854 = vmul.f32 %v861, 1.442695
      %v1855 = vpow.pop %v1854
      %v1856 = vmul.f32 %v862, 1.442695
      %v1857 = vpow.pop %v1856
      %v1858 = vmul.f32 %v863, 1.442695
      %v1859 = vpow.pop %v1858
      %v1860 = vmul.f32 %v864, 1.442695
      %v1861 = vpow.pop %v1860
      %v1862 = vmul.f32 %v865, 1.442695
      %v1863 = vpow.pop %v1862
      %v1864 = vmul.f32 %v866, 1.442695
      %v1865 = vpow.pop %v1864
      %v1866 = vmul.f32 %v867, 1.442695
      %v1867 = vpow.pop %v1866
      %v1868 = vmul.f32 %v868, 1.442695
      %v1869 = vpow.pop %v1868
      %v1870 = vmul.f32 %v869, 1.442695
      %v1871 = vpow.pop %v1870
      %v1872 = vmul.f32 %v870, 1.442695
      %v1873 = vpow.pop %v1872
      %v1874 = vmul.f32 %v871, 1.442695
      %v1875 = vpow.pop %v1874
      %v1876 = vmul.f32 %v872, 1.442695
      %v1877 = vpow.pop %v1876
      %v1878 = vmul.f32 %v873, 1.442695
      %v1879 = vpow.pop %v1878
      %v1880 = vmul.f32 %v874, 1.442695
      %v1881 = vpow.pop %v1880
      %v1882 = vmul.f32 %v875, 1.442695
      %v1883 = vpow.pop %v1882
      %v1884 = vmul.f32 %v876, 1.442695
      %v1885 = vpow.pop %v1884
      %v1886 = vmul.f32 %v877, 1.442695
      %v1887 = vpow.pop %v1886
      %v1888 = vmul.f32 %v878, 1.442695
      %v1889 = vpow.pop %v1888
      %v1890 = vmul.f32 %v879, 1.442695
      %v1891 = vpow.pop %v1890
      %v1892 = vmul.f32 %v880, 1.442695
      %v1893 = vpow.pop %v1892
      %v1894 = vmul.f32 %v881, 1.442695
      %v1895 = vpow.pop %v1894
      %v1896 = vmul.f32 %v882, 1.442695
      %v1897 = vpow.pop %v1896
      %v1898 = vmul.f32 %v883, 1.442695
      %v1899 = vpow.pop %v1898
      %v1900 = vmul.f32 %v884, 1.442695
      %v1901 = vpow.pop %v1900
      %v1902 = vmul.f32 %v885, 1.442695
      %v1903 = vpow.pop %v1902
      %v1904 = vmul.f32 %v886, 1.442695
      %v1905 = vpow.pop %v1904
      %v1906 = vmul.f32 %v887, 1.442695
      %v1907 = vpow.pop %v1906
      %v1908 = vmul.f32 %v888, 1.442695
      %v1909 = vpow.pop %v1908
      %v1910 = vmul.f32 %v889, 1.442695
      %v1911 = vpow.pop %v1910
      %v1912 = vmul.f32 %v890, 1.442695
      %v1913 = vpow.pop %v1912
      %v1914 = vmul.f32 %v891, 1.442695
      %v1915 = vpow.pop %v1914
      %v1916 = vmul.f32 %v1661, %v380
      %v1917 = vmul.f32 %v1663, %v381
      %v1918 = vmul.f32 %v1665, %v382
      %v1919 = vmul.f32 %v1667, %v383
      %v1920 = vmul.f32 %v1669, %v384
      %v1921 = vmul.f32 %v1671, %v385
      %v1922 = vmul.f32 %v1673, %v386
      %v1923 = vmul.f32 %v1675, %v387
      %v1924 = vmul.f32 %v1677, %v388
      %v1925 = vmul.f32 %v1679, %v389
      %v1926 = vmul.f32 %v1681, %v390
      %v1927 = vmul.f32 %v1683, %v391
      %v1928 = vmul.f32 %v1685, %v392
      %v1929 = vmul.f32 %v1687, %v393
      %v1930 = vmul.f32 %v1689, %v394
      %v1931 = vmul.f32 %v1691, %v395
      %v1932 = vmul.f32 %v1693, %v396
      %v1933 = vmul.f32 %v1695, %v397
      %v1934 = vmul.f32 %v1697, %v398
      %v1935 = vmul.f32 %v1699, %v399
      %v1936 = vmul.f32 %v1701, %v400
      %v1937 = vmul.f32 %v1703, %v401
      %v1938 = vmul.f32 %v1705, %v402
      %v1939 = vmul.f32 %v1707, %v403
      %v1940 = vmul.f32 %v1709, %v404
      %v1941 = vmul.f32 %v1711, %v405
      %v1942 = vmul.f32 %v1713, %v406
      %v1943 = vmul.f32 %v1715, %v407
      %v1944 = vmul.f32 %v1717, %v408
      %v1945 = vmul.f32 %v1719, %v409
      %v1946 = vmul.f32 %v1721, %v410
      %v1947 = vmul.f32 %v1723, %v411
      %v1948 = vmul.f32 %v1725, %v412
      %v1949 = vmul.f32 %v1727, %v413
      %v1950 = vmul.f32 %v1729, %v414
      %v1951 = vmul.f32 %v1731, %v415
      %v1952 = vmul.f32 %v1733, %v416
      %v1953 = vmul.f32 %v1735, %v417
      %v1954 = vmul.f32 %v1737, %v418
      %v1955 = vmul.f32 %v1739, %v419
      %v1956 = vmul.f32 %v1741, %v420
      %v1957 = vmul.f32 %v1743, %v421
      %v1958 = vmul.f32 %v1745, %v422
      %v1959 = vmul.f32 %v1747, %v423
      %v1960 = vmul.f32 %v1749, %v424
      %v1961 = vmul.f32 %v1751, %v425
      %v1962 = vmul.f32 %v1753, %v426
      %v1963 = vmul.f32 %v1755, %v427
      %v1964 = vmul.f32 %v1757, %v428
      %v1965 = vmul.f32 %v1759, %v429
      %v1966 = vmul.f32 %v1761, %v430
      %v1967 = vmul.f32 %v1763, %v431
      %v1968 = vmul.f32 %v1765, %v432
      %v1969 = vmul.f32 %v1767, %v433
      %v1970 = vmul.f32 %v1769, %v434
      %v1971 = vmul.f32 %v1771, %v435
      %v1972 = vmul.f32 %v1773, %v436
      %v1973 = vmul.f32 %v1775, %v437
      %v1974 = vmul.f32 %v1777, %v438
      %v1975 = vmul.f32 %v1779, %v439
      %v1976 = vmul.f32 %v1781, %v440
      %v1977 = vmul.f32 %v1783, %v441
      %v1978 = vmul.f32 %v1785, %v442
      %v1979 = vmul.f32 %v1787, %v443
      %v1980 = vmul.f32 %v1789, %v444
      %v1981 = vmul.f32 %v1791, %v445
      %v1982 = vmul.f32 %v1793, %v446
      %v1983 = vmul.f32 %v1795, %v447
      %v1984 = vmul.f32 %v1797, %v448
      %v1985 = vmul.f32 %v1799, %v449
      %v1986 = vmul.f32 %v1801, %v450
      %v1987 = vmul.f32 %v1803, %v451
      %v1988 = vmul.f32 %v1805, %v452
      %v1989 = vmul.f32 %v1807, %v453
      %v1990 = vmul.f32 %v1809, %v454
      %v1991 = vmul.f32 %v1811, %v455
      %v1992 = vmul.f32 %v1813, %v456
      %v1993 = vmul.f32 %v1815, %v457
      %v1994 = vmul.f32 %v1817, %v458
      %v1995 = vmul.f32 %v1819, %v459
      %v1996 = vmul.f32 %v1821, %v460
      %v1997 = vmul.f32 %v1823, %v461
      %v1998 = vmul.f32 %v1825, %v462
      %v1999 = vmul.f32 %v1827, %v463
      %v2000 = vmul.f32 %v1829, %v464
      %v2001 = vmul.f32 %v1831, %v465
      %v2002 = vmul.f32 %v1833, %v466
      %v2003 = vmul.f32 %v1835, %v467
      %v2004 = vmul.f32 %v1837, %v468
      %v2005 = vmul.f32 %v1839, %v469
      %v2006 = vmul.f32 %v1841, %v470
      %v2007 = vmul.f32 %v1843, %v471
      %v2008 = vmul.f32 %v1845, %v472
      %v2009 = vmul.f32 %v1847, %v473
      %v2010 = vmul.f32 %v1849, %v474
      %v2011 = vmul.f32 %v1851, %v475
      %v2012 = vmul.f32 %v1853, %v476
      %v2013 = vmul.f32 %v1855, %v477
      %v2014 = vmul.f32 %v1857, %v478
      %v2015 = vmul.f32 %v1859, %v479
      %v2016 = vmul.f32 %v1861, %v480
      %v2017 = vmul.f32 %v1863, %v481
      %v2018 = vmul.f32 %v1865, %v482
      %v2019 = vmul.f32 %v1867, %v483
      %v2020 = vmul.f32 %v1869, %v484
      %v2021 = vmul.f32 %v1871, %v485
      %v2022 = vmul.f32 %v1873, %v486
      %v2023 = vmul.f32 %v1875, %v487
      %v2024 = vmul.f32 %v1877, %v488
      %v2025 = vmul.f32 %v1879, %v489
      %v2026 = vmul.f32 %v1881, %v490
      %v2027 = vmul.f32 %v1883, %v491
      %v2028 = vmul.f32 %v1885, %v492
      %v2029 = vmul.f32 %v1887, %v493
      %v2030 = vmul.f32 %v1889, %v494
      %v2031 = vmul.f32 %v1891, %v495
      %v2032 = vmul.f32 %v1893, %v496
      %v2033 = vmul.f32 %v1895, %v497
      %v2034 = vmul.f32 %v1897, %v498
      %v2035 = vmul.f32 %v1899, %v499
      %v2036 = vmul.f32 %v1901, %v500
      %v2037 = vmul.f32 %v1903, %v501
      %v2038 = vmul.f32 %v1905, %v502
      %v2039 = vmul.f32 %v1907, %v503
      %v2040 = vmul.f32 %v1909, %v504
      %v2041 = vmul.f32 %v1911, %v505
      %v2042 = vmul.f32 %v1913, %v506
      %v2043 = vmul.f32 %v1915, %v507
      %v2044 = vmul.f32 %v1916, 0.5
      %v2045 = vmul.f32 %v1917, 0.5
      %v2046 = vmul.f32 %v1918, 0.5
      %v2047 = vmul.f32 %v1919, 0.5
      %v2048 = vmul.f32 %v1920, 0.5
      %v2049 = vmul.f32 %v1921, 0.5
      %v2050 = vmul.f32 %v1922, 0.5
      %v2051 = vmul.f32 %v1923, 0.5
      %v2052 = vmul.f32 %v1924, 0.5
      %v2053 = vmul.f32 %v1925, 0.5
      %v2054 = vmul.f32 %v1926, 0.5
      %v2055 = vmul.f32 %v1927, 0.5
      %v2056 = vmul.f32 %v1928, 0.5
      %v2057 = vmul.f32 %v1929, 0.5
      %v2058 = vmul.f32 %v1930, 0.5
      %v2059 = vmul.f32 %v1931, 0.5
      %v2060 = vmul.f32 %v1932, 0.5
      %v2061 = vmul.f32 %v1933, 0.5
      %v2062 = vmul.f32 %v1934, 0.5
      %v2063 = vmul.f32 %v1935, 0.5
      %v2064 = vmul.f32 %v1936, 0.5
      %v2065 = vmul.f32 %v1937, 0.5
      %v2066 = vmul.f32 %v1938, 0.5
      %v2067 = vmul.f32 %v1939, 0.5
      %v2068 = vmul.f32 %v1940, 0.5
      %v2069 = vmul.f32 %v1941, 0.5
      %v2070 = vmul.f32 %v1942, 0.5
      %v2071 = vmul.f32 %v1943, 0.5
      %v2072 = vmul.f32 %v1944, 0.5
      %v2073 = vmul.f32 %v1945, 0.5
      %v2074 = vmul.f32 %v1946, 0.5
      %v2075 = vmul.f32 %v1947, 0.5
      %v2076 = vmul.f32 %v1948, 0.5
      %v2077 = vmul.f32 %v1949, 0.5
      %v2078 = vmul.f32 %v1950, 0.5
      %v2079 = vmul.f32 %v1951, 0.5
      %v2080 = vmul.f32 %v1952, 0.5
      %v2081 = vmul.f32 %v1953, 0.5
      %v2082 = vmul.f32 %v1954, 0.5
      %v2083 = vmul.f32 %v1955, 0.5
      %v2084 = vmul.f32 %v1956, 0.5
      %v2085 = vmul.f32 %v1957, 0.5
      %v2086 = vmul.f32 %v1958, 0.5
      %v2087 = vmul.f32 %v1959, 0.5
      %v2088 = vmul.f32 %v1960, 0.5
      %v2089 = vmul.f32 %v1961, 0.5
      %v2090 = vmul.f32 %v1962, 0.5
      %v2091 = vmul.f32 %v1963, 0.5
      %v2092 = vmul.f32 %v1964, 0.5
      %v2093 = vmul.f32 %v1965, 0.5
      %v2094 = vmul.f32 %v1966, 0.5
      %v2095 = vmul.f32 %v1967, 0.5
      %v2096 = vmul.f32 %v1968, 0.5
      %v2097 = vmul.f32 %v1969, 0.5
      %v2098 = vmul.f32 %v1970, 0.5
      %v2099 = vmul.f32 %v1971, 0.5
      %v2100 = vmul.f32 %v1972, 0.5
      %v2101 = vmul.f32 %v1973, 0.5
      %v2102 = vmul.f32 %v1974, 0.5
      %v2103 = vmul.f32 %v1975, 0.5
      %v2104 = vmul.f32 %v1976, 0.5
      %v2105 = vmul.f32 %v1977, 0.5
      %v2106 = vmul.f32 %v1978, 0.5
      %v2107 = vmul.f32 %v1979, 0.5
      %v2108 = vmul.f32 %v1980, 0.5
      %v2109 = vmul.f32 %v1981, 0.5
      %v2110 = vmul.f32 %v1982, 0.5
      %v2111 = vmul.f32 %v1983, 0.5
      %v2112 = vmul.f32 %v1984, 0.5
      %v2113 = vmul.f32 %v1985, 0.5
      %v2114 = vmul.f32 %v1986, 0.5
      %v2115 = vmul.f32 %v1987, 0.5
      %v2116 = vmul.f32 %v1988, 0.5
      %v2117 = vmul.f32 %v1989, 0.5
      %v2118 = vmul.f32 %v1990, 0.5
      %v2119 = vmul.f32 %v1991, 0.5
      %v2120 = vmul.f32 %v1992, 0.5
      %v2121 = vmul.f32 %v1993, 0.5
      %v2122 = vmul.f32 %v1994, 0.5
      %v2123 = vmul.f32 %v1995, 0.5
      %v2124 = vmul.f32 %v1996, 0.5
      %v2125 = vmul.f32 %v1997, 0.5
      %v2126 = vmul.f32 %v1998, 0.5
      %v2127 = vmul.f32 %v1999, 0.5
      %v2128 = vmul.f32 %v2000, 0.5
      %v2129 = vmul.f32 %v2001, 0.5
      %v2130 = vmul.f32 %v2002, 0.5
      %v2131 = vmul.f32 %v2003, 0.5
      %v2132 = vmul.f32 %v2004, 0.5
      %v2133 = vmul.f32 %v2005, 0.5
      %v2134 = vmul.f32 %v2006, 0.5
      %v2135 = vmul.f32 %v2007, 0.5
      %v2136 = vmul.f32 %v2008, 0.5
      %v2137 = vmul.f32 %v2009, 0.5
      %v2138 = vmul.f32 %v2010, 0.5
      %v2139 = vmul.f32 %v2011, 0.5
      %v2140 = vmul.f32 %v2012, 0.5
      %v2141 = vmul.f32 %v2013, 0.5
      %v2142 = vmul.f32 %v2014, 0.5
      %v2143 = vmul.f32 %v2015, 0.5
      %v2144 = vmul.f32 %v2016, 0.5
      %v2145 = vmul.f32 %v2017, 0.5
      %v2146 = vmul.f32 %v2018, 0.5
      %v2147 = vmul.f32 %v2019, 0.5
      %v2148 = vmul.f32 %v2020, 0.5
      %v2149 = vmul.f32 %v2021, 0.5
      %v2150 = vmul.f32 %v2022, 0.5
      %v2151 = vmul.f32 %v2023, 0.5
      %v2152 = vmul.f32 %v2024, 0.5
      %v2153 = vmul.f32 %v2025, 0.5
      %v2154 = vmul.f32 %v2026, 0.5
      %v2155 = vmul.f32 %v2027, 0.5
      %v2156 = vmul.f32 %v2028, 0.5
      %v2157 = vmul.f32 %v2029, 0.5
      %v2158 = vmul.f32 %v2030, 0.5
      %v2159 = vmul.f32 %v2031, 0.5
      %v2160 = vmul.f32 %v2032, 0.5
      %v2161 = vmul.f32 %v2033, 0.5
      %v2162 = vmul.f32 %v2034, 0.5
      %v2163 = vmul.f32 %v2035, 0.5
      %v2164 = vmul.f32 %v2036, 0.5
      %v2165 = vmul.f32 %v2037, 0.5
      %v2166 = vmul.f32 %v2038, 0.5
      %v2167 = vmul.f32 %v2039, 0.5
      %v2168 = vmul.f32 %v2040, 0.5
      %v2169 = vmul.f32 %v2041, 0.5
      %v2170 = vmul.f32 %v2042, 0.5
      %v2171 = vmul.f32 %v2043, 0.5
      %2300 = vrot.lane.b32.xlu0 %v2044, 126
      %v2301 = vpop.permute.xlu0 %2300
      %2302 = vrot.lane.b32.xlu0 %v2045, 126
      %v2303 = vpop.permute.xlu0 %2302
      %2304 = vrot.lane.b32.xlu0 %v2046, 126
      %v2305 = vpop.permute.xlu0 %2304
      %2306 = vrot.lane.b32.xlu0 %v2047, 126
      %v2307 = vpop.permute.xlu0 %2306
      %2308 = vrot.lane.b32.xlu0 %v2048, 126
      %v2309 = vpop.permute.xlu0 %2308
      %2310 = vrot.lane.b32.xlu0 %v2049, 126
      %v2311 = vpop.permute.xlu0 %2310
      %2312 = vrot.lane.b32.xlu0 %v2050, 126
      %v2313 = vpop.permute.xlu0 %2312
      %2314 = vrot.lane.b32.xlu0 %v2051, 126
      %v2315 = vpop.permute.xlu0 %2314
      %2316 = vrot.lane.b32.xlu0 %v2052, 126
      %v2317 = vpop.permute.xlu0 %2316
      %2318 = vrot.lane.b32.xlu0 %v2053, 126
      %v2319 = vpop.permute.xlu0 %2318
      %2320 = vrot.lane.b32.xlu0 %v2054, 126
      %v2321 = vpop.permute.xlu0 %2320
      %2322 = vrot.lane.b32.xlu0 %v2055, 126
      %v2323 = vpop.permute.xlu0 %2322
      %2324 = vrot.lane.b32.xlu0 %v2056, 126
      %v2325 = vpop.permute.xlu0 %2324
      %2326 = vrot.lane.b32.xlu0 %v2057, 126
      %v2327 = vpop.permute.xlu0 %2326
      %2328 = vrot.lane.b32.xlu0 %v2058, 126
      %v2329 = vpop.permute.xlu0 %2328
      %2330 = vrot.lane.b32.xlu0 %v2059, 126
      %v2331 = vpop.permute.xlu0 %2330
      %2332 = vrot.lane.b32.xlu0 %v2060, 126
      %v2333 = vpop.permute.xlu0 %2332
      %2334 = vrot.lane.b32.xlu0 %v2061, 126
      %v2335 = vpop.permute.xlu0 %2334
      %2336 = vrot.lane.b32.xlu0 %v2062, 126
      %v2337 = vpop.permute.xlu0 %2336
      %2338 = vrot.lane.b32.xlu0 %v2063, 126
      %v2339 = vpop.permute.xlu0 %2338
      %2340 = vrot.lane.b32.xlu0 %v2064, 126
      %v2341 = vpop.permute.xlu0 %2340
      %2342 = vrot.lane.b32.xlu0 %v2065, 126
      %v2343 = vpop.permute.xlu0 %2342
      %2344 = vrot.lane.b32.xlu0 %v2066, 126
      %v2345 = vpop.permute.xlu0 %2344
      %2346 = vrot.lane.b32.xlu0 %v2067, 126
      %v2347 = vpop.permute.xlu0 %2346
      %2348 = vrot.lane.b32.xlu0 %v2068, 126
      %v2349 = vpop.permute.xlu0 %2348
      %2350 = vrot.lane.b32.xlu0 %v2069, 126
      %v2351 = vpop.permute.xlu0 %2350
      %2352 = vrot.lane.b32.xlu0 %v2070, 126
      %v2353 = vpop.permute.xlu0 %2352
      %2354 = vrot.lane.b32.xlu0 %v2071, 126
      %v2355 = vpop.permute.xlu0 %2354
      %2356 = vrot.lane.b32.xlu0 %v2072, 126
      %v2357 = vpop.permute.xlu0 %2356
      %2358 = vrot.lane.b32.xlu0 %v2073, 126
      %v2359 = vpop.permute.xlu0 %2358
      %2360 = vrot.lane.b32.xlu0 %v2074, 126
      %v2361 = vpop.permute.xlu0 %2360
      %2362 = vrot.lane.b32.xlu0 %v2075, 126
      %v2363 = vpop.permute.xlu0 %2362
      %2364 = vrot.lane.b32.xlu0 %v2076, 126
      %v2365 = vpop.permute.xlu0 %2364
      %2366 = vrot.lane.b32.xlu0 %v2077, 126
      %v2367 = vpop.permute.xlu0 %2366
      %2368 = vrot.lane.b32.xlu0 %v2078, 126
      %v2369 = vpop.permute.xlu0 %2368
      %2370 = vrot.lane.b32.xlu0 %v2079, 126
      %v2371 = vpop.permute.xlu0 %2370
      %2372 = vrot.lane.b32.xlu0 %v2080, 126
      %v2373 = vpop.permute.xlu0 %2372
      %2374 = vrot.lane.b32.xlu0 %v2081, 126
      %v2375 = vpop.permute.xlu0 %2374
      %2376 = vrot.lane.b32.xlu0 %v2082, 126
      %v2377 = vpop.permute.xlu0 %2376
      %2378 = vrot.lane.b32.xlu0 %v2083, 126
      %v2379 = vpop.permute.xlu0 %2378
      %2380 = vrot.lane.b32.xlu0 %v2084, 126
      %v2381 = vpop.permute.xlu0 %2380
      %2382 = vrot.lane.b32.xlu0 %v2085, 126
      %v2383 = vpop.permute.xlu0 %2382
      %2384 = vrot.lane.b32.xlu0 %v2086, 126
      %v2385 = vpop.permute.xlu0 %2384
      %2386 = vrot.lane.b32.xlu0 %v2087, 126
      %v2387 = vpop.permute.xlu0 %2386
      %2388 = vrot.lane.b32.xlu0 %v2088, 126
      %v2389 = vpop.permute.xlu0 %2388
      %2390 = vrot.lane.b32.xlu0 %v2089, 126
      %v2391 = vpop.permute.xlu0 %2390
      %2392 = vrot.lane.b32.xlu0 %v2090, 126
      %v2393 = vpop.permute.xlu0 %2392
      %2394 = vrot.lane.b32.xlu0 %v2091, 126
      %v2395 = vpop.permute.xlu0 %2394
      %2396 = vrot.lane.b32.xlu0 %v2092, 126
      %v2397 = vpop.permute.xlu0 %2396
      %2398 = vrot.lane.b32.xlu0 %v2093, 126
      %v2399 = vpop.permute.xlu0 %2398
      %2400 = vrot.lane.b32.xlu0 %v2094, 126
      %v2401 = vpop.permute.xlu0 %2400
      %2402 = vrot.lane.b32.xlu0 %v2095, 126
      %v2403 = vpop.permute.xlu0 %2402
      %2404 = vrot.lane.b32.xlu0 %v2096, 126
      %v2405 = vpop.permute.xlu0 %2404
      %2406 = vrot.lane.b32.xlu0 %v2097, 126
      %v2407 = vpop.permute.xlu0 %2406
      %2408 = vrot.lane.b32.xlu0 %v2098, 126
      %v2409 = vpop.permute.xlu0 %2408
      %2410 = vrot.lane.b32.xlu0 %v2099, 126
      %v2411 = vpop.permute.xlu0 %2410
      %2412 = vrot.lane.b32.xlu0 %v2100, 126
      %v2413 = vpop.permute.xlu0 %2412
      %2414 = vrot.lane.b32.xlu0 %v2101, 126
      %v2415 = vpop.permute.xlu0 %2414
      %2416 = vrot.lane.b32.xlu0 %v2102, 126
      %v2417 = vpop.permute.xlu0 %2416
      %2418 = vrot.lane.b32.xlu0 %v2103, 126
      %v2419 = vpop.permute.xlu0 %2418
      %2420 = vrot.lane.b32.xlu0 %v2104, 126
      %v2421 = vpop.permute.xlu0 %2420
      %2422 = vrot.lane.b32.xlu0 %v2105, 126
      %v2423 = vpop.permute.xlu0 %2422
      %2424 = vrot.lane.b32.xlu0 %v2106, 126
      %v2425 = vpop.permute.xlu0 %2424
      %2426 = vrot.lane.b32.xlu0 %v2107, 126
      %v2427 = vpop.permute.xlu0 %2426
      %2428 = vrot.lane.b32.xlu0 %v2108, 126
      %v2429 = vpop.permute.xlu0 %2428
      %2430 = vrot.lane.b32.xlu0 %v2109, 126
      %v2431 = vpop.permute.xlu0 %2430
      %2432 = vrot.lane.b32.xlu0 %v2110, 126
      %v2433 = vpop.permute.xlu0 %2432
      %2434 = vrot.lane.b32.xlu0 %v2111, 126
      %v2435 = vpop.permute.xlu0 %2434
      %2436 = vrot.lane.b32.xlu0 %v2112, 126
      %v2437 = vpop.permute.xlu0 %2436
      %2438 = vrot.lane.b32.xlu0 %v2113, 126
      %v2439 = vpop.permute.xlu0 %2438
      %2440 = vrot.lane.b32.xlu0 %v2114, 126
      %v2441 = vpop.permute.xlu0 %2440
      %2442 = vrot.lane.b32.xlu0 %v2115, 126
      %v2443 = vpop.permute.xlu0 %2442
      %2444 = vrot.lane.b32.xlu0 %v2116, 126
      %v2445 = vpop.permute.xlu0 %2444
      %2446 = vrot.lane.b32.xlu0 %v2117, 126
      %v2447 = vpop.permute.xlu0 %2446
      %2448 = vrot.lane.b32.xlu0 %v2118, 126
      %v2449 = vpop.permute.xlu0 %2448
      %2450 = vrot.lane.b32.xlu0 %v2119, 126
      %v2451 = vpop.permute.xlu0 %2450
      %2452 = vrot.lane.b32.xlu0 %v2120, 126
      %v2453 = vpop.permute.xlu0 %2452
      %2454 = vrot.lane.b32.xlu0 %v2121, 126
      %v2455 = vpop.permute.xlu0 %2454
      %2456 = vrot.lane.b32.xlu0 %v2122, 126
      %v2457 = vpop.permute.xlu0 %2456
      %2458 = vrot.lane.b32.xlu0 %v2123, 126
      %v2459 = vpop.permute.xlu0 %2458
      %2460 = vrot.lane.b32.xlu0 %v2124, 126
      %v2461 = vpop.permute.xlu0 %2460
      %2462 = vrot.lane.b32.xlu0 %v2125, 126
      %v2463 = vpop.permute.xlu0 %2462
      %2464 = vrot.lane.b32.xlu0 %v2126, 126
      %v2465 = vpop.permute.xlu0 %2464
      %2466 = vrot.lane.b32.xlu0 %v2127, 126
      %v2467 = vpop.permute.xlu0 %2466
      %2468 = vrot.lane.b32.xlu0 %v2128, 126
      %v2469 = vpop.permute.xlu0 %2468
      %2470 = vrot.lane.b32.xlu0 %v2129, 126
      %v2471 = vpop.permute.xlu0 %2470
      %2472 = vrot.lane.b32.xlu0 %v2130, 126
      %v2473 = vpop.permute.xlu0 %2472
      %2474 = vrot.lane.b32.xlu0 %v2131, 126
      %v2475 = vpop.permute.xlu0 %2474
      %2476 = vrot.lane.b32.xlu0 %v2132, 126
      %v2477 = vpop.permute.xlu0 %2476
      %2478 = vrot.lane.b32.xlu0 %v2133, 126
      %v2479 = vpop.permute.xlu0 %2478
      %2480 = vrot.lane.b32.xlu0 %v2134, 126
      %v2481 = vpop.permute.xlu0 %2480
      %2482 = vrot.lane.b32.xlu0 %v2135, 126
      %v2483 = vpop.permute.xlu0 %2482
      %2484 = vrot.lane.b32.xlu0 %v2136, 126
      %v2485 = vpop.permute.xlu0 %2484
      %2486 = vrot.lane.b32.xlu0 %v2137, 126
      %v2487 = vpop.permute.xlu0 %2486
      %2488 = vrot.lane.b32.xlu0 %v2138, 126
      %v2489 = vpop.permute.xlu0 %2488
      %2490 = vrot.lane.b32.xlu0 %v2139, 126
      %v2491 = vpop.permute.xlu0 %2490
      %2492 = vrot.lane.b32.xlu0 %v2140, 126
      %v2493 = vpop.permute.xlu0 %2492
      %2494 = vrot.lane.b32.xlu0 %v2141, 126
      %v2495 = vpop.permute.xlu0 %2494
      %2496 = vrot.lane.b32.xlu0 %v2142, 126
      %v2497 = vpop.permute.xlu0 %2496
      %2498 = vrot.lane.b32.xlu0 %v2143, 126
      %v2499 = vpop.permute.xlu0 %2498
      %2500 = vrot.lane.b32.xlu0 %v2144, 126
      %v2501 = vpop.permute.xlu0 %2500
      %2502 = vrot.lane.b32.xlu0 %v2145, 126
      %v2503 = vpop.permute.xlu0 %2502
      %2504 = vrot.lane.b32.xlu0 %v2146, 126
      %v2505 = vpop.permute.xlu0 %2504
      %2506 = vrot.lane.b32.xlu0 %v2147, 126
      %v2507 = vpop.permute.xlu0 %2506
      %2508 = vrot.lane.b32.xlu0 %v2148, 126
      %v2509 = vpop.permute.xlu0 %2508
      %2510 = vrot.lane.b32.xlu0 %v2149, 126
      %v2511 = vpop.permute.xlu0 %2510
      %2512 = vrot.lane.b32.xlu0 %v2150, 126
      %v2513 = vpop.permute.xlu0 %2512
      %2514 = vrot.lane.b32.xlu0 %v2151, 126
      %v2515 = vpop.permute.xlu0 %2514
      %2516 = vrot.lane.b32.xlu0 %v2152, 126
      %v2517 = vpop.permute.xlu0 %2516
      %2518 = vrot.lane.b32.xlu0 %v2153, 126
      %v2519 = vpop.permute.xlu0 %2518
      %2520 = vrot.lane.b32.xlu0 %v2154, 126
      %v2521 = vpop.permute.xlu0 %2520
      %2522 = vrot.lane.b32.xlu0 %v2155, 126
      %v2523 = vpop.permute.xlu0 %2522
      %2524 = vrot.lane.b32.xlu0 %v2156, 126
      %v2525 = vpop.permute.xlu0 %2524
      %2526 = vrot.lane.b32.xlu0 %v2157, 126
      %v2527 = vpop.permute.xlu0 %2526
      %2528 = vrot.lane.b32.xlu0 %v2158, 126
      %v2529 = vpop.permute.xlu0 %2528
      %2530 = vrot.lane.b32.xlu0 %v2159, 126
      %v2531 = vpop.permute.xlu0 %2530
      %2532 = vrot.lane.b32.xlu0 %v2160, 126
      %v2533 = vpop.permute.xlu0 %2532
      %2534 = vrot.lane.b32.xlu0 %v2161, 126
      %v2535 = vpop.permute.xlu0 %2534
      %2536 = vrot.lane.b32.xlu0 %v2162, 126
      %v2537 = vpop.permute.xlu0 %2536
      %2538 = vrot.lane.b32.xlu0 %v2163, 126
      %v2539 = vpop.permute.xlu0 %2538
      %2540 = vrot.lane.b32.xlu0 %v2164, 126
      %v2541 = vpop.permute.xlu0 %2540
      %2542 = vrot.lane.b32.xlu0 %v2165, 126
      %v2543 = vpop.permute.xlu0 %2542
      %2544 = vrot.lane.b32.xlu0 %v2166, 126
      %v2545 = vpop.permute.xlu0 %2544
      %2546 = vrot.lane.b32.xlu0 %v2167, 126
      %v2547 = vpop.permute.xlu0 %2546
      %2548 = vrot.lane.b32.xlu0 %v2168, 126
      %v2549 = vpop.permute.xlu0 %2548
      %2550 = vrot.lane.b32.xlu0 %v2169, 126
      %v2551 = vpop.permute.xlu0 %2550
      %2552 = vrot.lane.b32.xlu0 %v2170, 126
      %v2553 = vpop.permute.xlu0 %2552
      %2554 = vrot.lane.b32.xlu0 %v2171, 126
      %v2555 = vpop.permute.xlu0 %2554
      %v2684 = vsub.f32 %v1532, %v2301
      %v2685 = vsub.f32 %v1533, %v2303
      %v2686 = vsub.f32 %v1534, %v2305
      %v2687 = vsub.f32 %v1535, %v2307
      %v2688 = vsub.f32 %v1536, %v2309
      %v2689 = vsub.f32 %v1537, %v2311
      %v2690 = vsub.f32 %v1538, %v2313
      %v2691 = vsub.f32 %v1539, %v2315
      %v2692 = vsub.f32 %v1540, %v2317
      %v2693 = vsub.f32 %v1541, %v2319
      %v2694 = vsub.f32 %v1542, %v2321
      %v2695 = vsub.f32 %v1543, %v2323
      %v2696 = vsub.f32 %v1544, %v2325
      %v2697 = vsub.f32 %v1545, %v2327
      %v2698 = vsub.f32 %v1546, %v2329
      %v2699 = vsub.f32 %v1547, %v2331
      %v2700 = vsub.f32 %v1548, %v2333
      %v2701 = vsub.f32 %v1549, %v2335
      %v2702 = vsub.f32 %v1550, %v2337
      %v2703 = vsub.f32 %v1551, %v2339
      %v2704 = vsub.f32 %v1552, %v2341
      %v2705 = vsub.f32 %v1553, %v2343
      %v2706 = vsub.f32 %v1554, %v2345
      %v2707 = vsub.f32 %v1555, %v2347
      %v2708 = vsub.f32 %v1556, %v2349
      %v2709 = vsub.f32 %v1557, %v2351
      %v2710 = vsub.f32 %v1558, %v2353
      %v2711 = vsub.f32 %v1559, %v2355
      %v2712 = vsub.f32 %v1560, %v2357
      %v2713 = vsub.f32 %v1561, %v2359
      %v2714 = vsub.f32 %v1562, %v2361
      %v2715 = vsub.f32 %v1563, %v2363
      %v2716 = vsub.f32 %v1564, %v2365
      %v2717 = vsub.f32 %v1565, %v2367
      %v2718 = vsub.f32 %v1566, %v2369
      %v2719 = vsub.f32 %v1567, %v2371
      %v2720 = vsub.f32 %v1568, %v2373
      %v2721 = vsub.f32 %v1569, %v2375
      %v2722 = vsub.f32 %v1570, %v2377
      %v2723 = vsub.f32 %v1571, %v2379
      %v2724 = vsub.f32 %v1572, %v2381
      %v2725 = vsub.f32 %v1573, %v2383
      %v2726 = vsub.f32 %v1574, %v2385
      %v2727 = vsub.f32 %v1575, %v2387
      %v2728 = vsub.f32 %v1576, %v2389
      %v2729 = vsub.f32 %v1577, %v2391
      %v2730 = vsub.f32 %v1578, %v2393
      %v2731 = vsub.f32 %v1579, %v2395
      %v2732 = vsub.f32 %v1580, %v2397
      %v2733 = vsub.f32 %v1581, %v2399
      %v2734 = vsub.f32 %v1582, %v2401
      %v2735 = vsub.f32 %v1583, %v2403
      %v2736 = vsub.f32 %v1584, %v2405
      %v2737 = vsub.f32 %v1585, %v2407
      %v2738 = vsub.f32 %v1586, %v2409
      %v2739 = vsub.f32 %v1587, %v2411
      %v2740 = vsub.f32 %v1588, %v2413
      %v2741 = vsub.f32 %v1589, %v2415
      %v2742 = vsub.f32 %v1590, %v2417
      %v2743 = vsub.f32 %v1591, %v2419
      %v2744 = vsub.f32 %v1592, %v2421
      %v2745 = vsub.f32 %v1593, %v2423
      %v2746 = vsub.f32 %v1594, %v2425
      %v2747 = vsub.f32 %v1595, %v2427
      %v2748 = vsub.f32 %v1596, %v2429
      %v2749 = vsub.f32 %v1597, %v2431
      %v2750 = vsub.f32 %v1598, %v2433
      %v2751 = vsub.f32 %v1599, %v2435
      %v2752 = vsub.f32 %v1600, %v2437
      %v2753 = vsub.f32 %v1601, %v2439
      %v2754 = vsub.f32 %v1602, %v2441
      %v2755 = vsub.f32 %v1603, %v2443
      %v2756 = vsub.f32 %v1604, %v2445
      %v2757 = vsub.f32 %v1605, %v2447
      %v2758 = vsub.f32 %v1606, %v2449
      %v2759 = vsub.f32 %v1607, %v2451
      %v2760 = vsub.f32 %v1608, %v2453
      %v2761 = vsub.f32 %v1609, %v2455
      %v2762 = vsub.f32 %v1610, %v2457
      %v2763 = vsub.f32 %v1611, %v2459
      %v2764 = vsub.f32 %v1612, %v2461
      %v2765 = vsub.f32 %v1613, %v2463
      %v2766 = vsub.f32 %v1614, %v2465
      %v2767 = vsub.f32 %v1615, %v2467
      %v2768 = vsub.f32 %v1616, %v2469
      %v2769 = vsub.f32 %v1617, %v2471
      %v2770 = vsub.f32 %v1618, %v2473
      %v2771 = vsub.f32 %v1619, %v2475
      %v2772 = vsub.f32 %v1620, %v2477
      %v2773 = vsub.f32 %v1621, %v2479
      %v2774 = vsub.f32 %v1622, %v2481
      %v2775 = vsub.f32 %v1623, %v2483
      %v2776 = vsub.f32 %v1624, %v2485
      %v2777 = vsub.f32 %v1625, %v2487
      %v2778 = vsub.f32 %v1626, %v2489
      %v2779 = vsub.f32 %v1627, %v2491
      %v2780 = vsub.f32 %v1628, %v2493
      %v2781 = vsub.f32 %v1629, %v2495
      %v2782 = vsub.f32 %v1630, %v2497
      %v2783 = vsub.f32 %v1631, %v2499
      %v2784 = vsub.f32 %v1632, %v2501
      %v2785 = vsub.f32 %v1633, %v2503
      %v2786 = vsub.f32 %v1634, %v2505
      %v2787 = vsub.f32 %v1635, %v2507
      %v2788 = vsub.f32 %v1636, %v2509
      %v2789 = vsub.f32 %v1637, %v2511
      %v2790 = vsub.f32 %v1638, %v2513
      %v2791 = vsub.f32 %v1639, %v2515
      %v2792 = vsub.f32 %v1640, %v2517
      %v2793 = vsub.f32 %v1641, %v2519
      %v2794 = vsub.f32 %v1642, %v2521
      %v2795 = vsub.f32 %v1643, %v2523
      %v2796 = vsub.f32 %v1644, %v2525
      %v2797 = vsub.f32 %v1645, %v2527
      %v2798 = vsub.f32 %v1646, %v2529
      %v2799 = vsub.f32 %v1647, %v2531
      %v2800 = vsub.f32 %v1648, %v2533
      %v2801 = vsub.f32 %v1649, %v2535
      %v2802 = vsub.f32 %v1650, %v2537
      %v2803 = vsub.f32 %v1651, %v2539
      %v2804 = vsub.f32 %v1652, %v2541
      %v2805 = vsub.f32 %v1653, %v2543
      %v2806 = vsub.f32 %v1654, %v2545
      %v2807 = vsub.f32 %v1655, %v2547
      %v2808 = vsub.f32 %v1656, %v2549
      %v2809 = vsub.f32 %v1657, %v2551
      %v2810 = vsub.f32 %v1658, %v2553
      %v2811 = vsub.f32 %v1659, %v2555
      %v2812 = vmax.f32 %v2684, 0.0
      %v2813 = vmax.f32 %v2685, 0.0
      %v2814 = vmax.f32 %v2686, 0.0
      %v2815 = vmax.f32 %v2687, 0.0
      %v2816 = vmax.f32 %v2688, 0.0
      %v2817 = vmax.f32 %v2689, 0.0
      %v2818 = vmax.f32 %v2690, 0.0
      %v2819 = vmax.f32 %v2691, 0.0
      %v2820 = vmax.f32 %v2692, 0.0
      %v2821 = vmax.f32 %v2693, 0.0
      %v2822 = vmax.f32 %v2694, 0.0
      %v2823 = vmax.f32 %v2695, 0.0
      %v2824 = vmax.f32 %v2696, 0.0
      %v2825 = vmax.f32 %v2697, 0.0
      %v2826 = vmax.f32 %v2698, 0.0
      %v2827 = vmax.f32 %v2699, 0.0
      %v2828 = vmax.f32 %v2700, 0.0
      %v2829 = vmax.f32 %v2701, 0.0
      %v2830 = vmax.f32 %v2702, 0.0
      %v2831 = vmax.f32 %v2703, 0.0
      %v2832 = vmax.f32 %v2704, 0.0
      %v2833 = vmax.f32 %v2705, 0.0
      %v2834 = vmax.f32 %v2706, 0.0
      %v2835 = vmax.f32 %v2707, 0.0
      %v2836 = vmax.f32 %v2708, 0.0
      %v2837 = vmax.f32 %v2709, 0.0
      %v2838 = vmax.f32 %v2710, 0.0
      %v2839 = vmax.f32 %v2711, 0.0
      %v2840 = vmax.f32 %v2712, 0.0
      %v2841 = vmax.f32 %v2713, 0.0
      %v2842 = vmax.f32 %v2714, 0.0
      %v2843 = vmax.f32 %v2715, 0.0
      %v2844 = vmax.f32 %v2716, 0.0
      %v2845 = vmax.f32 %v2717, 0.0
      %v2846 = vmax.f32 %v2718, 0.0
      %v2847 = vmax.f32 %v2719, 0.0
      %v2848 = vmax.f32 %v2720, 0.0
      %v2849 = vmax.f32 %v2721, 0.0
      %v2850 = vmax.f32 %v2722, 0.0
      %v2851 = vmax.f32 %v2723, 0.0
      %v2852 = vmax.f32 %v2724, 0.0
      %v2853 = vmax.f32 %v2725, 0.0
      %v2854 = vmax.f32 %v2726, 0.0
      %v2855 = vmax.f32 %v2727, 0.0
      %v2856 = vmax.f32 %v2728, 0.0
      %v2857 = vmax.f32 %v2729, 0.0
      %v2858 = vmax.f32 %v2730, 0.0
      %v2859 = vmax.f32 %v2731, 0.0
      %v2860 = vmax.f32 %v2732, 0.0
      %v2861 = vmax.f32 %v2733, 0.0
      %v2862 = vmax.f32 %v2734, 0.0
      %v2863 = vmax.f32 %v2735, 0.0
      %v2864 = vmax.f32 %v2736, 0.0
      %v2865 = vmax.f32 %v2737, 0.0
      %v2866 = vmax.f32 %v2738, 0.0
      %v2867 = vmax.f32 %v2739, 0.0
      %v2868 = vmax.f32 %v2740, 0.0
      %v2869 = vmax.f32 %v2741, 0.0
      %v2870 = vmax.f32 %v2742, 0.0
      %v2871 = vmax.f32 %v2743, 0.0
      %v2872 = vmax.f32 %v2744, 0.0
      %v2873 = vmax.f32 %v2745, 0.0
      %v2874 = vmax.f32 %v2746, 0.0
      %v2875 = vmax.f32 %v2747, 0.0
      %v2876 = vmax.f32 %v2748, 0.0
      %v2877 = vmax.f32 %v2749, 0.0
      %v2878 = vmax.f32 %v2750, 0.0
      %v2879 = vmax.f32 %v2751, 0.0
      %v2880 = vmax.f32 %v2752, 0.0
      %v2881 = vmax.f32 %v2753, 0.0
      %v2882 = vmax.f32 %v2754, 0.0
      %v2883 = vmax.f32 %v2755, 0.0
      %v2884 = vmax.f32 %v2756, 0.0
      %v2885 = vmax.f32 %v2757, 0.0
      %v2886 = vmax.f32 %v2758, 0.0
      %v2887 = vmax.f32 %v2759, 0.0
      %v2888 = vmax.f32 %v2760, 0.0
      %v2889 = vmax.f32 %v2761, 0.0
      %v2890 = vmax.f32 %v2762, 0.0
      %v2891 = vmax.f32 %v2763, 0.0
      %v2892 = vmax.f32 %v2764, 0.0
      %v2893 = vmax.f32 %v2765, 0.0
      %v2894 = vmax.f32 %v2766, 0.0
      %v2895 = vmax.f32 %v2767, 0.0
      %v2896 = vmax.f32 %v2768, 0.0
      %v2897 = vmax.f32 %v2769, 0.0
      %v2898 = vmax.f32 %v2770, 0.0
      %v2899 = vmax.f32 %v2771, 0.0
      %v2900 = vmax.f32 %v2772, 0.0
      %v2901 = vmax.f32 %v2773, 0.0
      %v2902 = vmax.f32 %v2774, 0.0
      %v2903 = vmax.f32 %v2775, 0.0
      %v2904 = vmax.f32 %v2776, 0.0
      %v2905 = vmax.f32 %v2777, 0.0
      %v2906 = vmax.f32 %v2778, 0.0
      %v2907 = vmax.f32 %v2779, 0.0
      %v2908 = vmax.f32 %v2780, 0.0
      %v2909 = vmax.f32 %v2781, 0.0
      %v2910 = vmax.f32 %v2782, 0.0
      %v2911 = vmax.f32 %v2783, 0.0
      %v2912 = vmax.f32 %v2784, 0.0
      %v2913 = vmax.f32 %v2785, 0.0
      %v2914 = vmax.f32 %v2786, 0.0
      %v2915 = vmax.f32 %v2787, 0.0
      %v2916 = vmax.f32 %v2788, 0.0
      %v2917 = vmax.f32 %v2789, 0.0
      %v2918 = vmax.f32 %v2790, 0.0
      %v2919 = vmax.f32 %v2791, 0.0
      %v2920 = vmax.f32 %v2792, 0.0
      %v2921 = vmax.f32 %v2793, 0.0
      %v2922 = vmax.f32 %v2794, 0.0
      %v2923 = vmax.f32 %v2795, 0.0
      %v2924 = vmax.f32 %v2796, 0.0
      %v2925 = vmax.f32 %v2797, 0.0
      %v2926 = vmax.f32 %v2798, 0.0
      %v2927 = vmax.f32 %v2799, 0.0
      %v2928 = vmax.f32 %v2800, 0.0
      %v2929 = vmax.f32 %v2801, 0.0
      %v2930 = vmax.f32 %v2802, 0.0
      %v2931 = vmax.f32 %v2803, 0.0
      %v2932 = vmax.f32 %v2804, 0.0
      %v2933 = vmax.f32 %v2805, 0.0
      %v2934 = vmax.f32 %v2806, 0.0
      %v2935 = vmax.f32 %v2807, 0.0
      %v2936 = vmax.f32 %v2808, 0.0
      %v2937 = vmax.f32 %v2809, 0.0
      %v2938 = vmax.f32 %v2810, 0.0
      %v2939 = vmax.f32 %v2811, 0.0
      %v2940 = vadd.f32 %v1532, %v2301
      %v2941 = vadd.f32 %v1533, %v2303
      %v2942 = vadd.f32 %v1534, %v2305
      %v2943 = vadd.f32 %v1535, %v2307
      %v2944 = vadd.f32 %v1536, %v2309
      %v2945 = vadd.f32 %v1537, %v2311
      %v2946 = vadd.f32 %v1538, %v2313
      %v2947 = vadd.f32 %v1539, %v2315
      %v2948 = vadd.f32 %v1540, %v2317
      %v2949 = vadd.f32 %v1541, %v2319
      %v2950 = vadd.f32 %v1542, %v2321
      %v2951 = vadd.f32 %v1543, %v2323
      %v2952 = vadd.f32 %v1544, %v2325
      %v2953 = vadd.f32 %v1545, %v2327
      %v2954 = vadd.f32 %v1546, %v2329
      %v2955 = vadd.f32 %v1547, %v2331
      %v2956 = vadd.f32 %v1548, %v2333
      %v2957 = vadd.f32 %v1549, %v2335
      %v2958 = vadd.f32 %v1550, %v2337
      %v2959 = vadd.f32 %v1551, %v2339
      %v2960 = vadd.f32 %v1552, %v2341
      %v2961 = vadd.f32 %v1553, %v2343
      %v2962 = vadd.f32 %v1554, %v2345
      %v2963 = vadd.f32 %v1555, %v2347
      %v2964 = vadd.f32 %v1556, %v2349
      %v2965 = vadd.f32 %v1557, %v2351
      %v2966 = vadd.f32 %v1558, %v2353
      %v2967 = vadd.f32 %v1559, %v2355
      %v2968 = vadd.f32 %v1560, %v2357
      %v2969 = vadd.f32 %v1561, %v2359
      %v2970 = vadd.f32 %v1562, %v2361
      %v2971 = vadd.f32 %v1563, %v2363
      %v2972 = vadd.f32 %v1564, %v2365
      %v2973 = vadd.f32 %v1565, %v2367
      %v2974 = vadd.f32 %v1566, %v2369
      %v2975 = vadd.f32 %v1567, %v2371
      %v2976 = vadd.f32 %v1568, %v2373
      %v2977 = vadd.f32 %v1569, %v2375
      %v2978 = vadd.f32 %v1570, %v2377
      %v2979 = vadd.f32 %v1571, %v2379
      %v2980 = vadd.f32 %v1572, %v2381
      %v2981 = vadd.f32 %v1573, %v2383
      %v2982 = vadd.f32 %v1574, %v2385
      %v2983 = vadd.f32 %v1575, %v2387
      %v2984 = vadd.f32 %v1576, %v2389
      %v2985 = vadd.f32 %v1577, %v2391
      %v2986 = vadd.f32 %v1578, %v2393
      %v2987 = vadd.f32 %v1579, %v2395
      %v2988 = vadd.f32 %v1580, %v2397
      %v2989 = vadd.f32 %v1581, %v2399
      %v2990 = vadd.f32 %v1582, %v2401
      %v2991 = vadd.f32 %v1583, %v2403
      %v2992 = vadd.f32 %v1584, %v2405
      %v2993 = vadd.f32 %v1585, %v2407
      %v2994 = vadd.f32 %v1586, %v2409
      %v2995 = vadd.f32 %v1587, %v2411
      %v2996 = vadd.f32 %v1588, %v2413
      %v2997 = vadd.f32 %v1589, %v2415
      %v2998 = vadd.f32 %v1590, %v2417
      %v2999 = vadd.f32 %v1591, %v2419
      %v3000 = vadd.f32 %v1592, %v2421
      %v3001 = vadd.f32 %v1593, %v2423
      %v3002 = vadd.f32 %v1594, %v2425
      %v3003 = vadd.f32 %v1595, %v2427
      %v3004 = vadd.f32 %v1596, %v2429
      %v3005 = vadd.f32 %v1597, %v2431
      %v3006 = vadd.f32 %v1598, %v2433
      %v3007 = vadd.f32 %v1599, %v2435
      %v3008 = vadd.f32 %v1600, %v2437
      %v3009 = vadd.f32 %v1601, %v2439
      %v3010 = vadd.f32 %v1602, %v2441
      %v3011 = vadd.f32 %v1603, %v2443
      %v3012 = vadd.f32 %v1604, %v2445
      %v3013 = vadd.f32 %v1605, %v2447
      %v3014 = vadd.f32 %v1606, %v2449
      %v3015 = vadd.f32 %v1607, %v2451
      %v3016 = vadd.f32 %v1608, %v2453
      %v3017 = vadd.f32 %v1609, %v2455
      %v3018 = vadd.f32 %v1610, %v2457
      %v3019 = vadd.f32 %v1611, %v2459
      %v3020 = vadd.f32 %v1612, %v2461
      %v3021 = vadd.f32 %v1613, %v2463
      %v3022 = vadd.f32 %v1614, %v2465
      %v3023 = vadd.f32 %v1615, %v2467
      %v3024 = vadd.f32 %v1616, %v2469
      %v3025 = vadd.f32 %v1617, %v2471
      %v3026 = vadd.f32 %v1618, %v2473
      %v3027 = vadd.f32 %v1619, %v2475
      %v3028 = vadd.f32 %v1620, %v2477
      %v3029 = vadd.f32 %v1621, %v2479
      %v3030 = vadd.f32 %v1622, %v2481
      %v3031 = vadd.f32 %v1623, %v2483
      %v3032 = vadd.f32 %v1624, %v2485
      %v3033 = vadd.f32 %v1625, %v2487
      %v3034 = vadd.f32 %v1626, %v2489
      %v3035 = vadd.f32 %v1627, %v2491
      %v3036 = vadd.f32 %v1628, %v2493
      %v3037 = vadd.f32 %v1629, %v2495
      %v3038 = vadd.f32 %v1630, %v2497
      %v3039 = vadd.f32 %v1631, %v2499
      %v3040 = vadd.f32 %v1632, %v2501
      %v3041 = vadd.f32 %v1633, %v2503
      %v3042 = vadd.f32 %v1634, %v2505
      %v3043 = vadd.f32 %v1635, %v2507
      %v3044 = vadd.f32 %v1636, %v2509
      %v3045 = vadd.f32 %v1637, %v2511
      %v3046 = vadd.f32 %v1638, %v2513
      %v3047 = vadd.f32 %v1639, %v2515
      %v3048 = vadd.f32 %v1640, %v2517
      %v3049 = vadd.f32 %v1641, %v2519
      %v3050 = vadd.f32 %v1642, %v2521
      %v3051 = vadd.f32 %v1643, %v2523
      %v3052 = vadd.f32 %v1644, %v2525
      %v3053 = vadd.f32 %v1645, %v2527
      %v3054 = vadd.f32 %v1646, %v2529
      %v3055 = vadd.f32 %v1647, %v2531
      %v3056 = vadd.f32 %v1648, %v2533
      %v3057 = vadd.f32 %v1649, %v2535
      %v3058 = vadd.f32 %v1650, %v2537
      %v3059 = vadd.f32 %v1651, %v2539
      %v3060 = vadd.f32 %v1652, %v2541
      %v3061 = vadd.f32 %v1653, %v2543
      %v3062 = vadd.f32 %v1654, %v2545
      %v3063 = vadd.f32 %v1655, %v2547
      %v3064 = vadd.f32 %v1656, %v2549
      %v3065 = vadd.f32 %v1657, %v2551
      %v3066 = vadd.f32 %v1658, %v2553
      %v3067 = vadd.f32 %v1659, %v2555
      %vm3068 = vcmask 15360
      %3069 = vst.msk [vmem:[%s354] sm:$0xff] %vm3068, %v2812
      %3070 = vst.msk [vmem:[%s354 + $0x8] sm:$0xff] %vm3068, %v2813
      %3071 = vst.msk [vmem:[%s354 + $0x10] sm:$0xff] %vm3068, %v2814
      %3072 = vst.msk [vmem:[%s354 + $0x18] sm:$0xff] %vm3068, %v2815
      %3073 = vst.msk [vmem:[%s354 + $0x20] sm:$0xff] %vm3068, %v2816
      %3074 = vst.msk [vmem:[%s354 + $0x28] sm:$0xff] %vm3068, %v2817
      %3075 = vst.msk [vmem:[%s354 + $0x30] sm:$0xff] %vm3068, %v2818
      %3076 = vst.msk [vmem:[%s354 + $0x38] sm:$0xff] %vm3068, %v2819
      %3077 = vst.msk [vmem:[%s354 + $0x40] sm:$0xff] %vm3068, %v2820
      %3078 = vst.msk [vmem:[%s354 + $0x48] sm:$0xff] %vm3068, %v2821
      %3079 = vst.msk [vmem:[%s354 + $0x50] sm:$0xff] %vm3068, %v2822
      %3080 = vst.msk [vmem:[%s354 + $0x58] sm:$0xff] %vm3068, %v2823
      %3081 = vst.msk [vmem:[%s354 + $0x60] sm:$0xff] %vm3068, %v2824
      %3082 = vst.msk [vmem:[%s354 + $0x68] sm:$0xff] %vm3068, %v2825
      %3083 = vst.msk [vmem:[%s354 + $0x70] sm:$0xff] %vm3068, %v2826
      %3084 = vst.msk [vmem:[%s354 + $0x78] sm:$0xff] %vm3068, %v2827
      %3085 = vst.msk [vmem:[%s354 + $0x80] sm:$0xff] %vm3068, %v2828
      %3086 = vst.msk [vmem:[%s354 + $0x88] sm:$0xff] %vm3068, %v2829
      %3087 = vst.msk [vmem:[%s354 + $0x90] sm:$0xff] %vm3068, %v2830
      %3088 = vst.msk [vmem:[%s354 + $0x98] sm:$0xff] %vm3068, %v2831
      %3089 = vst.msk [vmem:[%s354 + $0xa0] sm:$0xff] %vm3068, %v2832
      %3090 = vst.msk [vmem:[%s354 + $0xa8] sm:$0xff] %vm3068, %v2833
      %3091 = vst.msk [vmem:[%s354 + $0xb0] sm:$0xff] %vm3068, %v2834
      %3092 = vst.msk [vmem:[%s354 + $0xb8] sm:$0xff] %vm3068, %v2835
      %3093 = vst.msk [vmem:[%s354 + $0xc0] sm:$0xff] %vm3068, %v2836
      %3094 = vst.msk [vmem:[%s354 + $0xc8] sm:$0xff] %vm3068, %v2837
      %3095 = vst.msk [vmem:[%s354 + $0xd0] sm:$0xff] %vm3068, %v2838
      %3096 = vst.msk [vmem:[%s354 + $0xd8] sm:$0xff] %vm3068, %v2839
      %3097 = vst.msk [vmem:[%s354 + $0xe0] sm:$0xff] %vm3068, %v2840
      %3098 = vst.msk [vmem:[%s354 + $0xe8] sm:$0xff] %vm3068, %v2841
      %3099 = vst.msk [vmem:[%s354 + $0xf0] sm:$0xff] %vm3068, %v2842
      %3100 = vst.msk [vmem:[%s354 + $0xf8] sm:$0xff] %vm3068, %v2843
      %3101 = vst.msk [vmem:[%s354 + $0x100] sm:$0xff] %vm3068, %v2844
      %3102 = vst.msk [vmem:[%s354 + $0x108] sm:$0xff] %vm3068, %v2845
      %3103 = vst.msk [vmem:[%s354 + $0x110] sm:$0xff] %vm3068, %v2846
      %3104 = vst.msk [vmem:[%s354 + $0x118] sm:$0xff] %vm3068, %v2847
      %3105 = vst.msk [vmem:[%s354 + $0x120] sm:$0xff] %vm3068, %v2848
      %3106 = vst.msk [vmem:[%s354 + $0x128] sm:$0xff] %vm3068, %v2849
      %3107 = vst.msk [vmem:[%s354 + $0x130] sm:$0xff] %vm3068, %v2850
      %3108 = vst.msk [vmem:[%s354 + $0x138] sm:$0xff] %vm3068, %v2851
      %3109 = vst.msk [vmem:[%s354 + $0x140] sm:$0xff] %vm3068, %v2852
      %3110 = vst.msk [vmem:[%s354 + $0x148] sm:$0xff] %vm3068, %v2853
      %3111 = vst.msk [vmem:[%s354 + $0x150] sm:$0xff] %vm3068, %v2854
      %3112 = vst.msk [vmem:[%s354 + $0x158] sm:$0xff] %vm3068, %v2855
      %3113 = vst.msk [vmem:[%s354 + $0x160] sm:$0xff] %vm3068, %v2856
      %3114 = vst.msk [vmem:[%s354 + $0x168] sm:$0xff] %vm3068, %v2857
      %3115 = vst.msk [vmem:[%s354 + $0x170] sm:$0xff] %vm3068, %v2858
      %3116 = vst.msk [vmem:[%s354 + $0x178] sm:$0xff] %vm3068, %v2859
      %3117 = vst.msk [vmem:[%s354 + $0x180] sm:$0xff] %vm3068, %v2860
      %3118 = vst.msk [vmem:[%s354 + $0x188] sm:$0xff] %vm3068, %v2861
      %3119 = vst.msk [vmem:[%s354 + $0x190] sm:$0xff] %vm3068, %v2862
      %3120 = vst.msk [vmem:[%s354 + $0x198] sm:$0xff] %vm3068, %v2863
      %3121 = vst.msk [vmem:[%s354 + $0x1a0] sm:$0xff] %vm3068, %v2864
      %3122 = vst.msk [vmem:[%s354 + $0x1a8] sm:$0xff] %vm3068, %v2865
      %3123 = vst.msk [vmem:[%s354 + $0x1b0] sm:$0xff] %vm3068, %v2866
      %3124 = vst.msk [vmem:[%s354 + $0x1b8] sm:$0xff] %vm3068, %v2867
      %3125 = vst.msk [vmem:[%s354 + $0x1c0] sm:$0xff] %vm3068, %v2868
      %3126 = vst.msk [vmem:[%s354 + $0x1c8] sm:$0xff] %vm3068, %v2869
      %3127 = vst.msk [vmem:[%s354 + $0x1d0] sm:$0xff] %vm3068, %v2870
      %3128 = vst.msk [vmem:[%s354 + $0x1d8] sm:$0xff] %vm3068, %v2871
      %3129 = vst.msk [vmem:[%s354 + $0x1e0] sm:$0xff] %vm3068, %v2872
      %3130 = vst.msk [vmem:[%s354 + $0x1e8] sm:$0xff] %vm3068, %v2873
      %3131 = vst.msk [vmem:[%s354 + $0x1f0] sm:$0xff] %vm3068, %v2874
      %3132 = vst.msk [vmem:[%s354 + $0x1f8] sm:$0xff] %vm3068, %v2875
      %3133 = vst.msk [vmem:[%s354 + $0x200] sm:$0xff] %vm3068, %v2876
      %3134 = vst.msk [vmem:[%s354 + $0x208] sm:$0xff] %vm3068, %v2877
      %3135 = vst.msk [vmem:[%s354 + $0x210] sm:$0xff] %vm3068, %v2878
      %3136 = vst.msk [vmem:[%s354 + $0x218] sm:$0xff] %vm3068, %v2879
      %3137 = vst.msk [vmem:[%s354 + $0x220] sm:$0xff] %vm3068, %v2880
      %3138 = vst.msk [vmem:[%s354 + $0x228] sm:$0xff] %vm3068, %v2881
      %3139 = vst.msk [vmem:[%s354 + $0x230] sm:$0xff] %vm3068, %v2882
      %3140 = vst.msk [vmem:[%s354 + $0x238] sm:$0xff] %vm3068, %v2883
      %3141 = vst.msk [vmem:[%s354 + $0x240] sm:$0xff] %vm3068, %v2884
      %3142 = vst.msk [vmem:[%s354 + $0x248] sm:$0xff] %vm3068, %v2885
      %3143 = vst.msk [vmem:[%s354 + $0x250] sm:$0xff] %vm3068, %v2886
      %3144 = vst.msk [vmem:[%s354 + $0x258] sm:$0xff] %vm3068, %v2887
      %3145 = vst.msk [vmem:[%s354 + $0x260] sm:$0xff] %vm3068, %v2888
      %3146 = vst.msk [vmem:[%s354 + $0x268] sm:$0xff] %vm3068, %v2889
      %3147 = vst.msk [vmem:[%s354 + $0x270] sm:$0xff] %vm3068, %v2890
      %3148 = vst.msk [vmem:[%s354 + $0x278] sm:$0xff] %vm3068, %v2891
      %3149 = vst.msk [vmem:[%s354 + $0x280] sm:$0xff] %vm3068, %v2892
      %3150 = vst.msk [vmem:[%s354 + $0x288] sm:$0xff] %vm3068, %v2893
      %3151 = vst.msk [vmem:[%s354 + $0x290] sm:$0xff] %vm3068, %v2894
      %3152 = vst.msk [vmem:[%s354 + $0x298] sm:$0xff] %vm3068, %v2895
      %3153 = vst.msk [vmem:[%s354 + $0x2a0] sm:$0xff] %vm3068, %v2896
      %3154 = vst.msk [vmem:[%s354 + $0x2a8] sm:$0xff] %vm3068, %v2897
      %3155 = vst.msk [vmem:[%s354 + $0x2b0] sm:$0xff] %vm3068, %v2898
      %3156 = vst.msk [vmem:[%s354 + $0x2b8] sm:$0xff] %vm3068, %v2899
      %3157 = vst.msk [vmem:[%s354 + $0x2c0] sm:$0xff] %vm3068, %v2900
      %3158 = vst.msk [vmem:[%s354 + $0x2c8] sm:$0xff] %vm3068, %v2901
      %3159 = vst.msk [vmem:[%s354 + $0x2d0] sm:$0xff] %vm3068, %v2902
      %3160 = vst.msk [vmem:[%s354 + $0x2d8] sm:$0xff] %vm3068, %v2903
      %3161 = vst.msk [vmem:[%s354 + $0x2e0] sm:$0xff] %vm3068, %v2904
      %3162 = vst.msk [vmem:[%s354 + $0x2e8] sm:$0xff] %vm3068, %v2905
      %3163 = vst.msk [vmem:[%s354 + $0x2f0] sm:$0xff] %vm3068, %v2906
      %3164 = vst.msk [vmem:[%s354 + $0x2f8] sm:$0xff] %vm3068, %v2907
      %3165 = vst.msk [vmem:[%s354 + $0x300] sm:$0xff] %vm3068, %v2908
      %3166 = vst.msk [vmem:[%s354 + $0x308] sm:$0xff] %vm3068, %v2909
      %3167 = vst.msk [vmem:[%s354 + $0x310] sm:$0xff] %vm3068, %v2910
      %3168 = vst.msk [vmem:[%s354 + $0x318] sm:$0xff] %vm3068, %v2911
      %3169 = vst.msk [vmem:[%s354 + $0x320] sm:$0xff] %vm3068, %v2912
      %3170 = vst.msk [vmem:[%s354 + $0x328] sm:$0xff] %vm3068, %v2913
      %3171 = vst.msk [vmem:[%s354 + $0x330] sm:$0xff] %vm3068, %v2914
      %3172 = vst.msk [vmem:[%s354 + $0x338] sm:$0xff] %vm3068, %v2915
      %3173 = vst.msk [vmem:[%s354 + $0x340] sm:$0xff] %vm3068, %v2916
      %3174 = vst.msk [vmem:[%s354 + $0x348] sm:$0xff] %vm3068, %v2917
      %3175 = vst.msk [vmem:[%s354 + $0x350] sm:$0xff] %vm3068, %v2918
      %3176 = vst.msk [vmem:[%s354 + $0x358] sm:$0xff] %vm3068, %v2919
      %3177 = vst.msk [vmem:[%s354 + $0x360] sm:$0xff] %vm3068, %v2920
      %3178 = vst.msk [vmem:[%s354 + $0x368] sm:$0xff] %vm3068, %v2921
      %3179 = vst.msk [vmem:[%s354 + $0x370] sm:$0xff] %vm3068, %v2922
      %3180 = vst.msk [vmem:[%s354 + $0x378] sm:$0xff] %vm3068, %v2923
      %3181 = vst.msk [vmem:[%s354 + $0x380] sm:$0xff] %vm3068, %v2924
      %3182 = vst.msk [vmem:[%s354 + $0x388] sm:$0xff] %vm3068, %v2925
      %3183 = vst.msk [vmem:[%s354 + $0x390] sm:$0xff] %vm3068, %v2926
      %3184 = vst.msk [vmem:[%s354 + $0x398] sm:$0xff] %vm3068, %v2927
      %3185 = vst.msk [vmem:[%s354 + $0x3a0] sm:$0xff] %vm3068, %v2928
      %3186 = vst.msk [vmem:[%s354 + $0x3a8] sm:$0xff] %vm3068, %v2929
      %3187 = vst.msk [vmem:[%s354 + $0x3b0] sm:$0xff] %vm3068, %v2930
      %3188 = vst.msk [vmem:[%s354 + $0x3b8] sm:$0xff] %vm3068, %v2931
      %3189 = vst.msk [vmem:[%s354 + $0x3c0] sm:$0xff] %vm3068, %v2932
      %3190 = vst.msk [vmem:[%s354 + $0x3c8] sm:$0xff] %vm3068, %v2933
      %3191 = vst.msk [vmem:[%s354 + $0x3d0] sm:$0xff] %vm3068, %v2934
      %3192 = vst.msk [vmem:[%s354 + $0x3d8] sm:$0xff] %vm3068, %v2935
      %3193 = vst.msk [vmem:[%s354 + $0x3e0] sm:$0xff] %vm3068, %v2936
      %3194 = vst.msk [vmem:[%s354 + $0x3e8] sm:$0xff] %vm3068, %v2937
      %3195 = vst.msk [vmem:[%s354 + $0x3f0] sm:$0xff] %vm3068, %v2938
      %3196 = vst.msk [vmem:[%s354 + $0x3f8] sm:$0xff] %vm3068, %v2939
      %v3197 = vstv %s379
      %v3198 = vmin.f32 %v2940, %v3197
      %v3199 = vmin.f32 %v2941, %v3197
      %v3200 = vmin.f32 %v2942, %v3197
      %v3201 = vmin.f32 %v2943, %v3197
      %v3202 = vmin.f32 %v2944, %v3197
      %v3203 = vmin.f32 %v2945, %v3197
      %v3204 = vmin.f32 %v2946, %v3197
      %v3205 = vmin.f32 %v2947, %v3197
      %v3206 = vmin.f32 %v2948, %v3197
      %v3207 = vmin.f32 %v2949, %v3197
      %v3208 = vmin.f32 %v2950, %v3197
      %v3209 = vmin.f32 %v2951, %v3197
      %v3210 = vmin.f32 %v2952, %v3197
      %v3211 = vmin.f32 %v2953, %v3197
      %v3212 = vmin.f32 %v2954, %v3197
      %v3213 = vmin.f32 %v2955, %v3197
      %v3214 = vmin.f32 %v2956, %v3197
      %v3215 = vmin.f32 %v2957, %v3197
      %v3216 = vmin.f32 %v2958, %v3197
      %v3217 = vmin.f32 %v2959, %v3197
      %v3218 = vmin.f32 %v2960, %v3197
      %v3219 = vmin.f32 %v2961, %v3197
      %v3220 = vmin.f32 %v2962, %v3197
      %v3221 = vmin.f32 %v2963, %v3197
      %v3222 = vmin.f32 %v2964, %v3197
      %v3223 = vmin.f32 %v2965, %v3197
      %v3224 = vmin.f32 %v2966, %v3197
      %v3225 = vmin.f32 %v2967, %v3197
      %v3226 = vmin.f32 %v2968, %v3197
      %v3227 = vmin.f32 %v2969, %v3197
      %v3228 = vmin.f32 %v2970, %v3197
      %v3229 = vmin.f32 %v2971, %v3197
      %v3230 = vmin.f32 %v2972, %v3197
      %v3231 = vmin.f32 %v2973, %v3197
      %v3232 = vmin.f32 %v2974, %v3197
      %v3233 = vmin.f32 %v2975, %v3197
      %v3234 = vmin.f32 %v2976, %v3197
      %v3235 = vmin.f32 %v2977, %v3197
      %v3236 = vmin.f32 %v2978, %v3197
      %v3237 = vmin.f32 %v2979, %v3197
      %v3238 = vmin.f32 %v2980, %v3197
      %v3239 = vmin.f32 %v2981, %v3197
      %v3240 = vmin.f32 %v2982, %v3197
      %v3241 = vmin.f32 %v2983, %v3197
      %v3242 = vmin.f32 %v2984, %v3197
      %v3243 = vmin.f32 %v2985, %v3197
      %v3244 = vmin.f32 %v2986, %v3197
      %v3245 = vmin.f32 %v2987, %v3197
      %v3246 = vmin.f32 %v2988, %v3197
      %v3247 = vmin.f32 %v2989, %v3197
      %v3248 = vmin.f32 %v2990, %v3197
      %v3249 = vmin.f32 %v2991, %v3197
      %v3250 = vmin.f32 %v2992, %v3197
      %v3251 = vmin.f32 %v2993, %v3197
      %v3252 = vmin.f32 %v2994, %v3197
      %v3253 = vmin.f32 %v2995, %v3197
      %v3254 = vmin.f32 %v2996, %v3197
      %v3255 = vmin.f32 %v2997, %v3197
      %v3256 = vmin.f32 %v2998, %v3197
      %v3257 = vmin.f32 %v2999, %v3197
      %v3258 = vmin.f32 %v3000, %v3197
      %v3259 = vmin.f32 %v3001, %v3197
      %v3260 = vmin.f32 %v3002, %v3197
      %v3261 = vmin.f32 %v3003, %v3197
      %v3262 = vmin.f32 %v3004, %v3197
      %v3263 = vmin.f32 %v3005, %v3197
      %v3264 = vmin.f32 %v3006, %v3197
      %v3265 = vmin.f32 %v3007, %v3197
      %v3266 = vmin.f32 %v3008, %v3197
      %v3267 = vmin.f32 %v3009, %v3197
      %v3268 = vmin.f32 %v3010, %v3197
      %v3269 = vmin.f32 %v3011, %v3197
      %v3270 = vmin.f32 %v3012, %v3197
      %v3271 = vmin.f32 %v3013, %v3197
      %v3272 = vmin.f32 %v3014, %v3197
      %v3273 = vmin.f32 %v3015, %v3197
      %v3274 = vmin.f32 %v3016, %v3197
      %v3275 = vmin.f32 %v3017, %v3197
      %v3276 = vmin.f32 %v3018, %v3197
      %v3277 = vmin.f32 %v3019, %v3197
      %v3278 = vmin.f32 %v3020, %v3197
      %v3279 = vmin.f32 %v3021, %v3197
      %v3280 = vmin.f32 %v3022, %v3197
      %v3281 = vmin.f32 %v3023, %v3197
      %v3282 = vmin.f32 %v3024, %v3197
      %v3283 = vmin.f32 %v3025, %v3197
      %v3284 = vmin.f32 %v3026, %v3197
      %v3285 = vmin.f32 %v3027, %v3197
      %v3286 = vmin.f32 %v3028, %v3197
      %v3287 = vmin.f32 %v3029, %v3197
      %v3288 = vmin.f32 %v3030, %v3197
      %v3289 = vmin.f32 %v3031, %v3197
      %v3290 = vmin.f32 %v3032, %v3197
      %v3291 = vmin.f32 %v3033, %v3197
      %v3292 = vmin.f32 %v3034, %v3197
      %v3293 = vmin.f32 %v3035, %v3197
      %v3294 = vmin.f32 %v3036, %v3197
      %v3295 = vmin.f32 %v3037, %v3197
      %v3296 = vmin.f32 %v3038, %v3197
      %v3297 = vmin.f32 %v3039, %v3197
      %v3298 = vmin.f32 %v3040, %v3197
      %v3299 = vmin.f32 %v3041, %v3197
      %v3300 = vmin.f32 %v3042, %v3197
      %v3301 = vmin.f32 %v3043, %v3197
      %v3302 = vmin.f32 %v3044, %v3197
      %v3303 = vmin.f32 %v3045, %v3197
      %v3304 = vmin.f32 %v3046, %v3197
      %v3305 = vmin.f32 %v3047, %v3197
      %v3306 = vmin.f32 %v3048, %v3197
      %v3307 = vmin.f32 %v3049, %v3197
      %v3308 = vmin.f32 %v3050, %v3197
      %v3309 = vmin.f32 %v3051, %v3197
      %v3310 = vmin.f32 %v3052, %v3197
      %v3311 = vmin.f32 %v3053, %v3197
      %v3312 = vmin.f32 %v3054, %v3197
      %v3313 = vmin.f32 %v3055, %v3197
      %v3314 = vmin.f32 %v3056, %v3197
      %v3315 = vmin.f32 %v3057, %v3197
      %v3316 = vmin.f32 %v3058, %v3197
      %v3317 = vmin.f32 %v3059, %v3197
      %v3318 = vmin.f32 %v3060, %v3197
      %v3319 = vmin.f32 %v3061, %v3197
      %v3320 = vmin.f32 %v3062, %v3197
      %v3321 = vmin.f32 %v3063, %v3197
      %v3322 = vmin.f32 %v3064, %v3197
      %v3323 = vmin.f32 %v3065, %v3197
      %v3324 = vmin.f32 %v3066, %v3197
      %v3325 = vmin.f32 %v3067, %v3197
      %3454 = vrot.lane.b32.xlu0 %v3198, 2
      %v3455 = vpop.permute.xlu0 %3454
      %3456 = vrot.lane.b32.xlu0 %v3199, 2
      %v3457 = vpop.permute.xlu0 %3456
      %3458 = vrot.lane.b32.xlu0 %v3200, 2
      %v3459 = vpop.permute.xlu0 %3458
      %3460 = vrot.lane.b32.xlu0 %v3201, 2
      %v3461 = vpop.permute.xlu0 %3460
      %3462 = vrot.lane.b32.xlu0 %v3202, 2
      %v3463 = vpop.permute.xlu0 %3462
      %3464 = vrot.lane.b32.xlu0 %v3203, 2
      %v3465 = vpop.permute.xlu0 %3464
      %3466 = vrot.lane.b32.xlu0 %v3204, 2
      %v3467 = vpop.permute.xlu0 %3466
      %3468 = vrot.lane.b32.xlu0 %v3205, 2
      %v3469 = vpop.permute.xlu0 %3468
      %3470 = vrot.lane.b32.xlu0 %v3206, 2
      %v3471 = vpop.permute.xlu0 %3470
      %3472 = vrot.lane.b32.xlu0 %v3207, 2
      %v3473 = vpop.permute.xlu0 %3472
      %3474 = vrot.lane.b32.xlu0 %v3208, 2
      %v3475 = vpop.permute.xlu0 %3474
      %3476 = vrot.lane.b32.xlu0 %v3209, 2
      %v3477 = vpop.permute.xlu0 %3476
      %3478 = vrot.lane.b32.xlu0 %v3210, 2
      %v3479 = vpop.permute.xlu0 %3478
      %3480 = vrot.lane.b32.xlu0 %v3211, 2
      %v3481 = vpop.permute.xlu0 %3480
      %3482 = vrot.lane.b32.xlu0 %v3212, 2
      %v3483 = vpop.permute.xlu0 %3482
      %3484 = vrot.lane.b32.xlu0 %v3213, 2
      %v3485 = vpop.permute.xlu0 %3484
      %3486 = vrot.lane.b32.xlu0 %v3214, 2
      %v3487 = vpop.permute.xlu0 %3486
      %3488 = vrot.lane.b32.xlu0 %v3215, 2
      %v3489 = vpop.permute.xlu0 %3488
      %3490 = vrot.lane.b32.xlu0 %v3216, 2
      %v3491 = vpop.permute.xlu0 %3490
      %3492 = vrot.lane.b32.xlu0 %v3217, 2
      %v3493 = vpop.permute.xlu0 %3492
      %3494 = vrot.lane.b32.xlu0 %v3218, 2
      %v3495 = vpop.permute.xlu0 %3494
      %3496 = vrot.lane.b32.xlu0 %v3219, 2
      %v3497 = vpop.permute.xlu0 %3496
      %3498 = vrot.lane.b32.xlu0 %v3220, 2
      %v3499 = vpop.permute.xlu0 %3498
      %3500 = vrot.lane.b32.xlu0 %v3221, 2
      %v3501 = vpop.permute.xlu0 %3500
      %3502 = vrot.lane.b32.xlu0 %v3222, 2
      %v3503 = vpop.permute.xlu0 %3502
      %3504 = vrot.lane.b32.xlu0 %v3223, 2
      %v3505 = vpop.permute.xlu0 %3504
      %3506 = vrot.lane.b32.xlu0 %v3224, 2
      %v3507 = vpop.permute.xlu0 %3506
      %3508 = vrot.lane.b32.xlu0 %v3225, 2
      %v3509 = vpop.permute.xlu0 %3508
      %3510 = vrot.lane.b32.xlu0 %v3226, 2
      %v3511 = vpop.permute.xlu0 %3510
      %3512 = vrot.lane.b32.xlu0 %v3227, 2
      %v3513 = vpop.permute.xlu0 %3512
      %3514 = vrot.lane.b32.xlu0 %v3228, 2
      %v3515 = vpop.permute.xlu0 %3514
      %3516 = vrot.lane.b32.xlu0 %v3229, 2
      %v3517 = vpop.permute.xlu0 %3516
      %3518 = vrot.lane.b32.xlu0 %v3230, 2
      %v3519 = vpop.permute.xlu0 %3518
      %3520 = vrot.lane.b32.xlu0 %v3231, 2
      %v3521 = vpop.permute.xlu0 %3520
      %3522 = vrot.lane.b32.xlu0 %v3232, 2
      %v3523 = vpop.permute.xlu0 %3522
      %3524 = vrot.lane.b32.xlu0 %v3233, 2
      %v3525 = vpop.permute.xlu0 %3524
      %3526 = vrot.lane.b32.xlu0 %v3234, 2
      %v3527 = vpop.permute.xlu0 %3526
      %3528 = vrot.lane.b32.xlu0 %v3235, 2
      %v3529 = vpop.permute.xlu0 %3528
      %3530 = vrot.lane.b32.xlu0 %v3236, 2
      %v3531 = vpop.permute.xlu0 %3530
      %3532 = vrot.lane.b32.xlu0 %v3237, 2
      %v3533 = vpop.permute.xlu0 %3532
      %3534 = vrot.lane.b32.xlu0 %v3238, 2
      %v3535 = vpop.permute.xlu0 %3534
      %3536 = vrot.lane.b32.xlu0 %v3239, 2
      %v3537 = vpop.permute.xlu0 %3536
      %3538 = vrot.lane.b32.xlu0 %v3240, 2
      %v3539 = vpop.permute.xlu0 %3538
      %3540 = vrot.lane.b32.xlu0 %v3241, 2
      %v3541 = vpop.permute.xlu0 %3540
      %3542 = vrot.lane.b32.xlu0 %v3242, 2
      %v3543 = vpop.permute.xlu0 %3542
      %3544 = vrot.lane.b32.xlu0 %v3243, 2
      %v3545 = vpop.permute.xlu0 %3544
      %3546 = vrot.lane.b32.xlu0 %v3244, 2
      %v3547 = vpop.permute.xlu0 %3546
      %3548 = vrot.lane.b32.xlu0 %v3245, 2
      %v3549 = vpop.permute.xlu0 %3548
      %3550 = vrot.lane.b32.xlu0 %v3246, 2
      %v3551 = vpop.permute.xlu0 %3550
      %3552 = vrot.lane.b32.xlu0 %v3247, 2
      %v3553 = vpop.permute.xlu0 %3552
      %3554 = vrot.lane.b32.xlu0 %v3248, 2
      %v3555 = vpop.permute.xlu0 %3554
      %3556 = vrot.lane.b32.xlu0 %v3249, 2
      %v3557 = vpop.permute.xlu0 %3556
      %3558 = vrot.lane.b32.xlu0 %v3250, 2
      %v3559 = vpop.permute.xlu0 %3558
      %3560 = vrot.lane.b32.xlu0 %v3251, 2
      %v3561 = vpop.permute.xlu0 %3560
      %3562 = vrot.lane.b32.xlu0 %v3252, 2
      %v3563 = vpop.permute.xlu0 %3562
      %3564 = vrot.lane.b32.xlu0 %v3253, 2
      %v3565 = vpop.permute.xlu0 %3564
      %3566 = vrot.lane.b32.xlu0 %v3254, 2
      %v3567 = vpop.permute.xlu0 %3566
      %3568 = vrot.lane.b32.xlu0 %v3255, 2
      %v3569 = vpop.permute.xlu0 %3568
      %3570 = vrot.lane.b32.xlu0 %v3256, 2
      %v3571 = vpop.permute.xlu0 %3570
      %3572 = vrot.lane.b32.xlu0 %v3257, 2
      %v3573 = vpop.permute.xlu0 %3572
      %3574 = vrot.lane.b32.xlu0 %v3258, 2
      %v3575 = vpop.permute.xlu0 %3574
      %3576 = vrot.lane.b32.xlu0 %v3259, 2
      %v3577 = vpop.permute.xlu0 %3576
      %3578 = vrot.lane.b32.xlu0 %v3260, 2
      %v3579 = vpop.permute.xlu0 %3578
      %3580 = vrot.lane.b32.xlu0 %v3261, 2
      %v3581 = vpop.permute.xlu0 %3580
      %3582 = vrot.lane.b32.xlu0 %v3262, 2
      %v3583 = vpop.permute.xlu0 %3582
      %3584 = vrot.lane.b32.xlu0 %v3263, 2
      %v3585 = vpop.permute.xlu0 %3584
      %3586 = vrot.lane.b32.xlu0 %v3264, 2
      %v3587 = vpop.permute.xlu0 %3586
      %3588 = vrot.lane.b32.xlu0 %v3265, 2
      %v3589 = vpop.permute.xlu0 %3588
      %3590 = vrot.lane.b32.xlu0 %v3266, 2
      %v3591 = vpop.permute.xlu0 %3590
      %3592 = vrot.lane.b32.xlu0 %v3267, 2
      %v3593 = vpop.permute.xlu0 %3592
      %3594 = vrot.lane.b32.xlu0 %v3268, 2
      %v3595 = vpop.permute.xlu0 %3594
      %3596 = vrot.lane.b32.xlu0 %v3269, 2
      %v3597 = vpop.permute.xlu0 %3596
      %3598 = vrot.lane.b32.xlu0 %v3270, 2
      %v3599 = vpop.permute.xlu0 %3598
      %3600 = vrot.lane.b32.xlu0 %v3271, 2
      %v3601 = vpop.permute.xlu0 %3600
      %3602 = vrot.lane.b32.xlu0 %v3272, 2
      %v3603 = vpop.permute.xlu0 %3602
      %3604 = vrot.lane.b32.xlu0 %v3273, 2
      %v3605 = vpop.permute.xlu0 %3604
      %3606 = vrot.lane.b32.xlu0 %v3274, 2
      %v3607 = vpop.permute.xlu0 %3606
      %3608 = vrot.lane.b32.xlu0 %v3275, 2
      %v3609 = vpop.permute.xlu0 %3608
      %3610 = vrot.lane.b32.xlu0 %v3276, 2
      %v3611 = vpop.permute.xlu0 %3610
      %3612 = vrot.lane.b32.xlu0 %v3277, 2
      %v3613 = vpop.permute.xlu0 %3612
      %3614 = vrot.lane.b32.xlu0 %v3278, 2
      %v3615 = vpop.permute.xlu0 %3614
      %3616 = vrot.lane.b32.xlu0 %v3279, 2
      %v3617 = vpop.permute.xlu0 %3616
      %3618 = vrot.lane.b32.xlu0 %v3280, 2
      %v3619 = vpop.permute.xlu0 %3618
      %3620 = vrot.lane.b32.xlu0 %v3281, 2
      %v3621 = vpop.permute.xlu0 %3620
      %3622 = vrot.lane.b32.xlu0 %v3282, 2
      %v3623 = vpop.permute.xlu0 %3622
      %3624 = vrot.lane.b32.xlu0 %v3283, 2
      %v3625 = vpop.permute.xlu0 %3624
      %3626 = vrot.lane.b32.xlu0 %v3284, 2
      %v3627 = vpop.permute.xlu0 %3626
      %3628 = vrot.lane.b32.xlu0 %v3285, 2
      %v3629 = vpop.permute.xlu0 %3628
      %3630 = vrot.lane.b32.xlu0 %v3286, 2
      %v3631 = vpop.permute.xlu0 %3630
      %3632 = vrot.lane.b32.xlu0 %v3287, 2
      %v3633 = vpop.permute.xlu0 %3632
      %3634 = vrot.lane.b32.xlu0 %v3288, 2
      %v3635 = vpop.permute.xlu0 %3634
      %3636 = vrot.lane.b32.xlu0 %v3289, 2
      %v3637 = vpop.permute.xlu0 %3636
      %3638 = vrot.lane.b32.xlu0 %v3290, 2
      %v3639 = vpop.permute.xlu0 %3638
      %3640 = vrot.lane.b32.xlu0 %v3291, 2
      %v3641 = vpop.permute.xlu0 %3640
      %3642 = vrot.lane.b32.xlu0 %v3292, 2
      %v3643 = vpop.permute.xlu0 %3642
      %3644 = vrot.lane.b32.xlu0 %v3293, 2
      %v3645 = vpop.permute.xlu0 %3644
      %3646 = vrot.lane.b32.xlu0 %v3294, 2
      %v3647 = vpop.permute.xlu0 %3646
      %3648 = vrot.lane.b32.xlu0 %v3295, 2
      %v3649 = vpop.permute.xlu0 %3648
      %3650 = vrot.lane.b32.xlu0 %v3296, 2
      %v3651 = vpop.permute.xlu0 %3650
      %3652 = vrot.lane.b32.xlu0 %v3297, 2
      %v3653 = vpop.permute.xlu0 %3652
      %3654 = vrot.lane.b32.xlu0 %v3298, 2
      %v3655 = vpop.permute.xlu0 %3654
      %3656 = vrot.lane.b32.xlu0 %v3299, 2
      %v3657 = vpop.permute.xlu0 %3656
      %3658 = vrot.lane.b32.xlu0 %v3300, 2
      %v3659 = vpop.permute.xlu0 %3658
      %3660 = vrot.lane.b32.xlu0 %v3301, 2
      %v3661 = vpop.permute.xlu0 %3660
      %3662 = vrot.lane.b32.xlu0 %v3302, 2
      %v3663 = vpop.permute.xlu0 %3662
      %3664 = vrot.lane.b32.xlu0 %v3303, 2
      %v3665 = vpop.permute.xlu0 %3664
      %3666 = vrot.lane.b32.xlu0 %v3304, 2
      %v3667 = vpop.permute.xlu0 %3666
      %3668 = vrot.lane.b32.xlu0 %v3305, 2
      %v3669 = vpop.permute.xlu0 %3668
      %3670 = vrot.lane.b32.xlu0 %v3306, 2
      %v3671 = vpop.permute.xlu0 %3670
      %3672 = vrot.lane.b32.xlu0 %v3307, 2
      %v3673 = vpop.permute.xlu0 %3672
      %3674 = vrot.lane.b32.xlu0 %v3308, 2
      %v3675 = vpop.permute.xlu0 %3674
      %3676 = vrot.lane.b32.xlu0 %v3309, 2
      %v3677 = vpop.permute.xlu0 %3676
      %3678 = vrot.lane.b32.xlu0 %v3310, 2
      %v3679 = vpop.permute.xlu0 %3678
      %3680 = vrot.lane.b32.xlu0 %v3311, 2
      %v3681 = vpop.permute.xlu0 %3680
      %3682 = vrot.lane.b32.xlu0 %v3312, 2
      %v3683 = vpop.permute.xlu0 %3682
      %3684 = vrot.lane.b32.xlu0 %v3313, 2
      %v3685 = vpop.permute.xlu0 %3684
      %3686 = vrot.lane.b32.xlu0 %v3314, 2
      %v3687 = vpop.permute.xlu0 %3686
      %3688 = vrot.lane.b32.xlu0 %v3315, 2
      %v3689 = vpop.permute.xlu0 %3688
      %3690 = vrot.lane.b32.xlu0 %v3316, 2
      %v3691 = vpop.permute.xlu0 %3690
      %3692 = vrot.lane.b32.xlu0 %v3317, 2
      %v3693 = vpop.permute.xlu0 %3692
      %3694 = vrot.lane.b32.xlu0 %v3318, 2
      %v3695 = vpop.permute.xlu0 %3694
      %3696 = vrot.lane.b32.xlu0 %v3319, 2
      %v3697 = vpop.permute.xlu0 %3696
      %3698 = vrot.lane.b32.xlu0 %v3320, 2
      %v3699 = vpop.permute.xlu0 %3698
      %3700 = vrot.lane.b32.xlu0 %v3321, 2
      %v3701 = vpop.permute.xlu0 %3700
      %3702 = vrot.lane.b32.xlu0 %v3322, 2
      %v3703 = vpop.permute.xlu0 %3702
      %3704 = vrot.lane.b32.xlu0 %v3323, 2
      %v3705 = vpop.permute.xlu0 %3704
      %3706 = vrot.lane.b32.xlu0 %v3324, 2
      %v3707 = vpop.permute.xlu0 %3706
      %3708 = vrot.lane.b32.xlu0 %v3325, 2
      %v3709 = vpop.permute.xlu0 %3708
      %vm3838 = vcmask 23568
      %3839 = vst.msk [vmem:[%s354] sm:$0xff] %vm3838, %v3455
      %3840 = vst.msk [vmem:[%s354 + $0x8] sm:$0xff] %vm3838, %v3457
      %3841 = vst.msk [vmem:[%s354 + $0x10] sm:$0xff] %vm3838, %v3459
      %3842 = vst.msk [vmem:[%s354 + $0x18] sm:$0xff] %vm3838, %v3461
      %3843 = vst.msk [vmem:[%s354 + $0x20] sm:$0xff] %vm3838, %v3463
      %3844 = vst.msk [vmem:[%s354 + $0x28] sm:$0xff] %vm3838, %v3465
      %3845 = vst.msk [vmem:[%s354 + $0x30] sm:$0xff] %vm3838, %v3467
      %3846 = vst.msk [vmem:[%s354 + $0x38] sm:$0xff] %vm3838, %v3469
      %3847 = vst.msk [vmem:[%s354 + $0x40] sm:$0xff] %vm3838, %v3471
      %3848 = vst.msk [vmem:[%s354 + $0x48] sm:$0xff] %vm3838, %v3473
      %3849 = vst.msk [vmem:[%s354 + $0x50] sm:$0xff] %vm3838, %v3475
      %3850 = vst.msk [vmem:[%s354 + $0x58] sm:$0xff] %vm3838, %v3477
      %3851 = vst.msk [vmem:[%s354 + $0x60] sm:$0xff] %vm3838, %v3479
      %3852 = vst.msk [vmem:[%s354 + $0x68] sm:$0xff] %vm3838, %v3481
      %3853 = vst.msk [vmem:[%s354 + $0x70] sm:$0xff] %vm3838, %v3483
      %3854 = vst.msk [vmem:[%s354 + $0x78] sm:$0xff] %vm3838, %v3485
      %3855 = vst.msk [vmem:[%s354 + $0x80] sm:$0xff] %vm3838, %v3487
      %3856 = vst.msk [vmem:[%s354 + $0x88] sm:$0xff] %vm3838, %v3489
      %3857 = vst.msk [vmem:[%s354 + $0x90] sm:$0xff] %vm3838, %v3491
      %3858 = vst.msk [vmem:[%s354 + $0x98] sm:$0xff] %vm3838, %v3493
      %3859 = vst.msk [vmem:[%s354 + $0xa0] sm:$0xff] %vm3838, %v3495
      %3860 = vst.msk [vmem:[%s354 + $0xa8] sm:$0xff] %vm3838, %v3497
      %3861 = vst.msk [vmem:[%s354 + $0xb0] sm:$0xff] %vm3838, %v3499
      %3862 = vst.msk [vmem:[%s354 + $0xb8] sm:$0xff] %vm3838, %v3501
      %3863 = vst.msk [vmem:[%s354 + $0xc0] sm:$0xff] %vm3838, %v3503
      %3864 = vst.msk [vmem:[%s354 + $0xc8] sm:$0xff] %vm3838, %v3505
      %3865 = vst.msk [vmem:[%s354 + $0xd0] sm:$0xff] %vm3838, %v3507
      %3866 = vst.msk [vmem:[%s354 + $0xd8] sm:$0xff] %vm3838, %v3509
      %3867 = vst.msk [vmem:[%s354 + $0xe0] sm:$0xff] %vm3838, %v3511
      %3868 = vst.msk [vmem:[%s354 + $0xe8] sm:$0xff] %vm3838, %v3513
      %3869 = vst.msk [vmem:[%s354 + $0xf0] sm:$0xff] %vm3838, %v3515
      %3870 = vst.msk [vmem:[%s354 + $0xf8] sm:$0xff] %vm3838, %v3517
      %3871 = vst.msk [vmem:[%s354 + $0x100] sm:$0xff] %vm3838, %v3519
      %3872 = vst.msk [vmem:[%s354 + $0x108] sm:$0xff] %vm3838, %v3521
      %3873 = vst.msk [vmem:[%s354 + $0x110] sm:$0xff] %vm3838, %v3523
      %3874 = vst.msk [vmem:[%s354 + $0x118] sm:$0xff] %vm3838, %v3525
      %3875 = vst.msk [vmem:[%s354 + $0x120] sm:$0xff] %vm3838, %v3527
      %3876 = vst.msk [vmem:[%s354 + $0x128] sm:$0xff] %vm3838, %v3529
      %3877 = vst.msk [vmem:[%s354 + $0x130] sm:$0xff] %vm3838, %v3531
      %3878 = vst.msk [vmem:[%s354 + $0x138] sm:$0xff] %vm3838, %v3533
      %3879 = vst.msk [vmem:[%s354 + $0x140] sm:$0xff] %vm3838, %v3535
      %3880 = vst.msk [vmem:[%s354 + $0x148] sm:$0xff] %vm3838, %v3537
      %3881 = vst.msk [vmem:[%s354 + $0x150] sm:$0xff] %vm3838, %v3539
      %3882 = vst.msk [vmem:[%s354 + $0x158] sm:$0xff] %vm3838, %v3541
      %3883 = vst.msk [vmem:[%s354 + $0x160] sm:$0xff] %vm3838, %v3543
      %3884 = vst.msk [vmem:[%s354 + $0x168] sm:$0xff] %vm3838, %v3545
      %3885 = vst.msk [vmem:[%s354 + $0x170] sm:$0xff] %vm3838, %v3547
      %3886 = vst.msk [vmem:[%s354 + $0x178] sm:$0xff] %vm3838, %v3549
      %3887 = vst.msk [vmem:[%s354 + $0x180] sm:$0xff] %vm3838, %v3551
      %3888 = vst.msk [vmem:[%s354 + $0x188] sm:$0xff] %vm3838, %v3553
      %3889 = vst.msk [vmem:[%s354 + $0x190] sm:$0xff] %vm3838, %v3555
      %3890 = vst.msk [vmem:[%s354 + $0x198] sm:$0xff] %vm3838, %v3557
      %3891 = vst.msk [vmem:[%s354 + $0x1a0] sm:$0xff] %vm3838, %v3559
      %3892 = vst.msk [vmem:[%s354 + $0x1a8] sm:$0xff] %vm3838, %v3561
      %3893 = vst.msk [vmem:[%s354 + $0x1b0] sm:$0xff] %vm3838, %v3563
      %3894 = vst.msk [vmem:[%s354 + $0x1b8] sm:$0xff] %vm3838, %v3565
      %3895 = vst.msk [vmem:[%s354 + $0x1c0] sm:$0xff] %vm3838, %v3567
      %3896 = vst.msk [vmem:[%s354 + $0x1c8] sm:$0xff] %vm3838, %v3569
      %3897 = vst.msk [vmem:[%s354 + $0x1d0] sm:$0xff] %vm3838, %v3571
      %3898 = vst.msk [vmem:[%s354 + $0x1d8] sm:$0xff] %vm3838, %v3573
      %3899 = vst.msk [vmem:[%s354 + $0x1e0] sm:$0xff] %vm3838, %v3575
      %3900 = vst.msk [vmem:[%s354 + $0x1e8] sm:$0xff] %vm3838, %v3577
      %3901 = vst.msk [vmem:[%s354 + $0x1f0] sm:$0xff] %vm3838, %v3579
      %3902 = vst.msk [vmem:[%s354 + $0x1f8] sm:$0xff] %vm3838, %v3581
      %3903 = vst.msk [vmem:[%s354 + $0x200] sm:$0xff] %vm3838, %v3583
      %3904 = vst.msk [vmem:[%s354 + $0x208] sm:$0xff] %vm3838, %v3585
      %3905 = vst.msk [vmem:[%s354 + $0x210] sm:$0xff] %vm3838, %v3587
      %3906 = vst.msk [vmem:[%s354 + $0x218] sm:$0xff] %vm3838, %v3589
      %3907 = vst.msk [vmem:[%s354 + $0x220] sm:$0xff] %vm3838, %v3591
      %3908 = vst.msk [vmem:[%s354 + $0x228] sm:$0xff] %vm3838, %v3593
      %3909 = vst.msk [vmem:[%s354 + $0x230] sm:$0xff] %vm3838, %v3595
      %3910 = vst.msk [vmem:[%s354 + $0x238] sm:$0xff] %vm3838, %v3597
      %3911 = vst.msk [vmem:[%s354 + $0x240] sm:$0xff] %vm3838, %v3599
      %3912 = vst.msk [vmem:[%s354 + $0x248] sm:$0xff] %vm3838, %v3601
      %3913 = vst.msk [vmem:[%s354 + $0x250] sm:$0xff] %vm3838, %v3603
      %3914 = vst.msk [vmem:[%s354 + $0x258] sm:$0xff] %vm3838, %v3605
      %3915 = vst.msk [vmem:[%s354 + $0x260] sm:$0xff] %vm3838, %v3607
      %3916 = vst.msk [vmem:[%s354 + $0x268] sm:$0xff] %vm3838, %v3609
      %3917 = vst.msk [vmem:[%s354 + $0x270] sm:$0xff] %vm3838, %v3611
      %3918 = vst.msk [vmem:[%s354 + $0x278] sm:$0xff] %vm3838, %v3613
      %3919 = vst.msk [vmem:[%s354 + $0x280] sm:$0xff] %vm3838, %v3615
      %3920 = vst.msk [vmem:[%s354 + $0x288] sm:$0xff] %vm3838, %v3617
      %3921 = vst.msk [vmem:[%s354 + $0x290] sm:$0xff] %vm3838, %v3619
      %3922 = vst.msk [vmem:[%s354 + $0x298] sm:$0xff] %vm3838, %v3621
      %3923 = vst.msk [vmem:[%s354 + $0x2a0] sm:$0xff] %vm3838, %v3623
      %3924 = vst.msk [vmem:[%s354 + $0x2a8] sm:$0xff] %vm3838, %v3625
      %3925 = vst.msk [vmem:[%s354 + $0x2b0] sm:$0xff] %vm3838, %v3627
      %3926 = vst.msk [vmem:[%s354 + $0x2b8] sm:$0xff] %vm3838, %v3629
      %3927 = vst.msk [vmem:[%s354 + $0x2c0] sm:$0xff] %vm3838, %v3631
      %3928 = vst.msk [vmem:[%s354 + $0x2c8] sm:$0xff] %vm3838, %v3633
      %3929 = vst.msk [vmem:[%s354 + $0x2d0] sm:$0xff] %vm3838, %v3635
      %3930 = vst.msk [vmem:[%s354 + $0x2d8] sm:$0xff] %vm3838, %v3637
      %3931 = vst.msk [vmem:[%s354 + $0x2e0] sm:$0xff] %vm3838, %v3639
      %3932 = vst.msk [vmem:[%s354 + $0x2e8] sm:$0xff] %vm3838, %v3641
      %3933 = vst.msk [vmem:[%s354 + $0x2f0] sm:$0xff] %vm3838, %v3643
      %3934 = vst.msk [vmem:[%s354 + $0x2f8] sm:$0xff] %vm3838, %v3645
      %3935 = vst.msk [vmem:[%s354 + $0x300] sm:$0xff] %vm3838, %v3647
      %3936 = vst.msk [vmem:[%s354 + $0x308] sm:$0xff] %vm3838, %v3649
      %3937 = vst.msk [vmem:[%s354 + $0x310] sm:$0xff] %vm3838, %v3651
      %3938 = vst.msk [vmem:[%s354 + $0x318] sm:$0xff] %vm3838, %v3653
      %3939 = vst.msk [vmem:[%s354 + $0x320] sm:$0xff] %vm3838, %v3655
      %3940 = vst.msk [vmem:[%s354 + $0x328] sm:$0xff] %vm3838, %v3657
      %3941 = vst.msk [vmem:[%s354 + $0x330] sm:$0xff] %vm3838, %v3659
      %3942 = vst.msk [vmem:[%s354 + $0x338] sm:$0xff] %vm3838, %v3661
      %3943 = vst.msk [vmem:[%s354 + $0x340] sm:$0xff] %vm3838, %v3663
      %3944 = vst.msk [vmem:[%s354 + $0x348] sm:$0xff] %vm3838, %v3665
      %3945 = vst.msk [vmem:[%s354 + $0x350] sm:$0xff] %vm3838, %v3667
      %3946 = vst.msk [vmem:[%s354 + $0x358] sm:$0xff] %vm3838, %v3669
      %3947 = vst.msk [vmem:[%s354 + $0x360] sm:$0xff] %vm3838, %v3671
      %3948 = vst.msk [vmem:[%s354 + $0x368] sm:$0xff] %vm3838, %v3673
      %3949 = vst.msk [vmem:[%s354 + $0x370] sm:$0xff] %vm3838, %v3675
      %3950 = vst.msk [vmem:[%s354 + $0x378] sm:$0xff] %vm3838, %v3677
      %3951 = vst.msk [vmem:[%s354 + $0x380] sm:$0xff] %vm3838, %v3679
      %3952 = vst.msk [vmem:[%s354 + $0x388] sm:$0xff] %vm3838, %v3681
      %3953 = vst.msk [vmem:[%s354 + $0x390] sm:$0xff] %vm3838, %v3683
      %3954 = vst.msk [vmem:[%s354 + $0x398] sm:$0xff] %vm3838, %v3685
      %3955 = vst.msk [vmem:[%s354 + $0x3a0] sm:$0xff] %vm3838, %v3687
      %3956 = vst.msk [vmem:[%s354 + $0x3a8] sm:$0xff] %vm3838, %v3689
      %3957 = vst.msk [vmem:[%s354 + $0x3b0] sm:$0xff] %vm3838, %v3691
      %3958 = vst.msk [vmem:[%s354 + $0x3b8] sm:$0xff] %vm3838, %v3693
      %3959 = vst.msk [vmem:[%s354 + $0x3c0] sm:$0xff] %vm3838, %v3695
      %3960 = vst.msk [vmem:[%s354 + $0x3c8] sm:$0xff] %vm3838, %v3697
      %3961 = vst.msk [vmem:[%s354 + $0x3d0] sm:$0xff] %vm3838, %v3699
      %3962 = vst.msk [vmem:[%s354 + $0x3d8] sm:$0xff] %vm3838, %v3701
      %3963 = vst.msk [vmem:[%s354 + $0x3e0] sm:$0xff] %vm3838, %v3703
      %3964 = vst.msk [vmem:[%s354 + $0x3e8] sm:$0xff] %vm3838, %v3705
      %3965 = vst.msk [vmem:[%s354 + $0x3f0] sm:$0xff] %vm3838, %v3707
      %3966 = vst.msk [vmem:[%s354 + $0x3f8] sm:$0xff] %vm3838, %v3709
      %v3967 = vstv %s377
      %v3968 = vmin.f32 %v2940, %v3967
      %v3969 = vmin.f32 %v2941, %v3967
      %v3970 = vmin.f32 %v2942, %v3967
      %v3971 = vmin.f32 %v2943, %v3967
      %v3972 = vmin.f32 %v2944, %v3967
      %v3973 = vmin.f32 %v2945, %v3967
      %v3974 = vmin.f32 %v2946, %v3967
      %v3975 = vmin.f32 %v2947, %v3967
      %v3976 = vmin.f32 %v2948, %v3967
      %v3977 = vmin.f32 %v2949, %v3967
      %v3978 = vmin.f32 %v2950, %v3967
      %v3979 = vmin.f32 %v2951, %v3967
      %v3980 = vmin.f32 %v2952, %v3967
      %v3981 = vmin.f32 %v2953, %v3967
      %v3982 = vmin.f32 %v2954, %v3967
      %v3983 = vmin.f32 %v2955, %v3967
      %v3984 = vmin.f32 %v2956, %v3967
      %v3985 = vmin.f32 %v2957, %v3967
      %v3986 = vmin.f32 %v2958, %v3967
      %v3987 = vmin.f32 %v2959, %v3967
      %v3988 = vmin.f32 %v2960, %v3967
      %v3989 = vmin.f32 %v2961, %v3967
      %v3990 = vmin.f32 %v2962, %v3967
      %v3991 = vmin.f32 %v2963, %v3967
      %v3992 = vmin.f32 %v2964, %v3967
      %v3993 = vmin.f32 %v2965, %v3967
      %v3994 = vmin.f32 %v2966, %v3967
      %v3995 = vmin.f32 %v2967, %v3967
      %v3996 = vmin.f32 %v2968, %v3967
      %v3997 = vmin.f32 %v2969, %v3967
      %v3998 = vmin.f32 %v2970, %v3967
      %v3999 = vmin.f32 %v2971, %v3967
      %v4000 = vmin.f32 %v2972, %v3967
      %v4001 = vmin.f32 %v2973, %v3967
      %v4002 = vmin.f32 %v2974, %v3967
      %v4003 = vmin.f32 %v2975, %v3967
      %v4004 = vmin.f32 %v2976, %v3967
      %v4005 = vmin.f32 %v2977, %v3967
      %v4006 = vmin.f32 %v2978, %v3967
      %v4007 = vmin.f32 %v2979, %v3967
      %v4008 = vmin.f32 %v2980, %v3967
      %v4009 = vmin.f32 %v2981, %v3967
      %v4010 = vmin.f32 %v2982, %v3967
      %v4011 = vmin.f32 %v2983, %v3967
      %v4012 = vmin.f32 %v2984, %v3967
      %v4013 = vmin.f32 %v2985, %v3967
      %v4014 = vmin.f32 %v2986, %v3967
      %v4015 = vmin.f32 %v2987, %v3967
      %v4016 = vmin.f32 %v2988, %v3967
      %v4017 = vmin.f32 %v2989, %v3967
      %v4018 = vmin.f32 %v2990, %v3967
      %v4019 = vmin.f32 %v2991, %v3967
      %v4020 = vmin.f32 %v2992, %v3967
      %v4021 = vmin.f32 %v2993, %v3967
      %v4022 = vmin.f32 %v2994, %v3967
      %v4023 = vmin.f32 %v2995, %v3967
      %v4024 = vmin.f32 %v2996, %v3967
      %v4025 = vmin.f32 %v2997, %v3967
      %v4026 = vmin.f32 %v2998, %v3967
      %v4027 = vmin.f32 %v2999, %v3967
      %v4028 = vmin.f32 %v3000, %v3967
      %v4029 = vmin.f32 %v3001, %v3967
      %v4030 = vmin.f32 %v3002, %v3967
      %v4031 = vmin.f32 %v3003, %v3967
      %v4032 = vmin.f32 %v3004, %v3967
      %v4033 = vmin.f32 %v3005, %v3967
      %v4034 = vmin.f32 %v3006, %v3967
      %v4035 = vmin.f32 %v3007, %v3967
      %v4036 = vmin.f32 %v3008, %v3967
      %v4037 = vmin.f32 %v3009, %v3967
      %v4038 = vmin.f32 %v3010, %v3967
      %v4039 = vmin.f32 %v3011, %v3967
      %v4040 = vmin.f32 %v3012, %v3967
      %v4041 = vmin.f32 %v3013, %v3967
      %v4042 = vmin.f32 %v3014, %v3967
      %v4043 = vmin.f32 %v3015, %v3967
      %v4044 = vmin.f32 %v3016, %v3967
      %v4045 = vmin.f32 %v3017, %v3967
      %v4046 = vmin.f32 %v3018, %v3967
      %v4047 = vmin.f32 %v3019, %v3967
      %v4048 = vmin.f32 %v3020, %v3967
      %v4049 = vmin.f32 %v3021, %v3967
      %v4050 = vmin.f32 %v3022, %v3967
      %v4051 = vmin.f32 %v3023, %v3967
      %v4052 = vmin.f32 %v3024, %v3967
      %v4053 = vmin.f32 %v3025, %v3967
      %v4054 = vmin.f32 %v3026, %v3967
      %v4055 = vmin.f32 %v3027, %v3967
      %v4056 = vmin.f32 %v3028, %v3967
      %v4057 = vmin.f32 %v3029, %v3967
      %v4058 = vmin.f32 %v3030, %v3967
      %v4059 = vmin.f32 %v3031, %v3967
      %v4060 = vmin.f32 %v3032, %v3967
      %v4061 = vmin.f32 %v3033, %v3967
      %v4062 = vmin.f32 %v3034, %v3967
      %v4063 = vmin.f32 %v3035, %v3967
      %v4064 = vmin.f32 %v3036, %v3967
      %v4065 = vmin.f32 %v3037, %v3967
      %v4066 = vmin.f32 %v3038, %v3967
      %v4067 = vmin.f32 %v3039, %v3967
      %v4068 = vmin.f32 %v3040, %v3967
      %v4069 = vmin.f32 %v3041, %v3967
      %v4070 = vmin.f32 %v3042, %v3967
      %v4071 = vmin.f32 %v3043, %v3967
      %v4072 = vmin.f32 %v3044, %v3967
      %v4073 = vmin.f32 %v3045, %v3967
      %v4074 = vmin.f32 %v3046, %v3967
      %v4075 = vmin.f32 %v3047, %v3967
      %v4076 = vmin.f32 %v3048, %v3967
      %v4077 = vmin.f32 %v3049, %v3967
      %v4078 = vmin.f32 %v3050, %v3967
      %v4079 = vmin.f32 %v3051, %v3967
      %v4080 = vmin.f32 %v3052, %v3967
      %v4081 = vmin.f32 %v3053, %v3967
      %v4082 = vmin.f32 %v3054, %v3967
      %v4083 = vmin.f32 %v3055, %v3967
      %v4084 = vmin.f32 %v3056, %v3967
      %v4085 = vmin.f32 %v3057, %v3967
      %v4086 = vmin.f32 %v3058, %v3967
      %v4087 = vmin.f32 %v3059, %v3967
      %v4088 = vmin.f32 %v3060, %v3967
      %v4089 = vmin.f32 %v3061, %v3967
      %v4090 = vmin.f32 %v3062, %v3967
      %v4091 = vmin.f32 %v3063, %v3967
      %v4092 = vmin.f32 %v3064, %v3967
      %v4093 = vmin.f32 %v3065, %v3967
      %v4094 = vmin.f32 %v3066, %v3967
      %v4095 = vmin.f32 %v3067, %v3967
      %4224 = vrot.lane.b32.xlu0 %v3968, 2
      %v4225 = vpop.permute.xlu0 %4224
      %4226 = vrot.lane.b32.xlu0 %v3969, 2
      %v4227 = vpop.permute.xlu0 %4226
      %4228 = vrot.lane.b32.xlu0 %v3970, 2
      %v4229 = vpop.permute.xlu0 %4228
      %4230 = vrot.lane.b32.xlu0 %v3971, 2
      %v4231 = vpop.permute.xlu0 %4230
      %4232 = vrot.lane.b32.xlu0 %v3972, 2
      %v4233 = vpop.permute.xlu0 %4232
      %4234 = vrot.lane.b32.xlu0 %v3973, 2
      %v4235 = vpop.permute.xlu0 %4234
      %4236 = vrot.lane.b32.xlu0 %v3974, 2
      %v4237 = vpop.permute.xlu0 %4236
      %4238 = vrot.lane.b32.xlu0 %v3975, 2
      %v4239 = vpop.permute.xlu0 %4238
      %4240 = vrot.lane.b32.xlu0 %v3976, 2
      %v4241 = vpop.permute.xlu0 %4240
      %4242 = vrot.lane.b32.xlu0 %v3977, 2
      %v4243 = vpop.permute.xlu0 %4242
      %4244 = vrot.lane.b32.xlu0 %v3978, 2
      %v4245 = vpop.permute.xlu0 %4244
      %4246 = vrot.lane.b32.xlu0 %v3979, 2
      %v4247 = vpop.permute.xlu0 %4246
      %4248 = vrot.lane.b32.xlu0 %v3980, 2
      %v4249 = vpop.permute.xlu0 %4248
      %4250 = vrot.lane.b32.xlu0 %v3981, 2
      %v4251 = vpop.permute.xlu0 %4250
      %4252 = vrot.lane.b32.xlu0 %v3982, 2
      %v4253 = vpop.permute.xlu0 %4252
      %4254 = vrot.lane.b32.xlu0 %v3983, 2
      %v4255 = vpop.permute.xlu0 %4254
      %4256 = vrot.lane.b32.xlu0 %v3984, 2
      %v4257 = vpop.permute.xlu0 %4256
      %4258 = vrot.lane.b32.xlu0 %v3985, 2
      %v4259 = vpop.permute.xlu0 %4258
      %4260 = vrot.lane.b32.xlu0 %v3986, 2
      %v4261 = vpop.permute.xlu0 %4260
      %4262 = vrot.lane.b32.xlu0 %v3987, 2
      %v4263 = vpop.permute.xlu0 %4262
      %4264 = vrot.lane.b32.xlu0 %v3988, 2
      %v4265 = vpop.permute.xlu0 %4264
      %4266 = vrot.lane.b32.xlu0 %v3989, 2
      %v4267 = vpop.permute.xlu0 %4266
      %4268 = vrot.lane.b32.xlu0 %v3990, 2
      %v4269 = vpop.permute.xlu0 %4268
      %4270 = vrot.lane.b32.xlu0 %v3991, 2
      %v4271 = vpop.permute.xlu0 %4270
      %4272 = vrot.lane.b32.xlu0 %v3992, 2
      %v4273 = vpop.permute.xlu0 %4272
      %4274 = vrot.lane.b32.xlu0 %v3993, 2
      %v4275 = vpop.permute.xlu0 %4274
      %4276 = vrot.lane.b32.xlu0 %v3994, 2
      %v4277 = vpop.permute.xlu0 %4276
      %4278 = vrot.lane.b32.xlu0 %v3995, 2
      %v4279 = vpop.permute.xlu0 %4278
      %4280 = vrot.lane.b32.xlu0 %v3996, 2
      %v4281 = vpop.permute.xlu0 %4280
      %4282 = vrot.lane.b32.xlu0 %v3997, 2
      %v4283 = vpop.permute.xlu0 %4282
      %4284 = vrot.lane.b32.xlu0 %v3998, 2
      %v4285 = vpop.permute.xlu0 %4284
      %4286 = vrot.lane.b32.xlu0 %v3999, 2
      %v4287 = vpop.permute.xlu0 %4286
      %4288 = vrot.lane.b32.xlu0 %v4000, 2
      %v4289 = vpop.permute.xlu0 %4288
      %4290 = vrot.lane.b32.xlu0 %v4001, 2
      %v4291 = vpop.permute.xlu0 %4290
      %4292 = vrot.lane.b32.xlu0 %v4002, 2
      %v4293 = vpop.permute.xlu0 %4292
      %4294 = vrot.lane.b32.xlu0 %v4003, 2
      %v4295 = vpop.permute.xlu0 %4294
      %4296 = vrot.lane.b32.xlu0 %v4004, 2
      %v4297 = vpop.permute.xlu0 %4296
      %4298 = vrot.lane.b32.xlu0 %v4005, 2
      %v4299 = vpop.permute.xlu0 %4298
      %4300 = vrot.lane.b32.xlu0 %v4006, 2
      %v4301 = vpop.permute.xlu0 %4300
      %4302 = vrot.lane.b32.xlu0 %v4007, 2
      %v4303 = vpop.permute.xlu0 %4302
      %4304 = vrot.lane.b32.xlu0 %v4008, 2
      %v4305 = vpop.permute.xlu0 %4304
      %4306 = vrot.lane.b32.xlu0 %v4009, 2
      %v4307 = vpop.permute.xlu0 %4306
      %4308 = vrot.lane.b32.xlu0 %v4010, 2
      %v4309 = vpop.permute.xlu0 %4308
      %4310 = vrot.lane.b32.xlu0 %v4011, 2
      %v4311 = vpop.permute.xlu0 %4310
      %4312 = vrot.lane.b32.xlu0 %v4012, 2
      %v4313 = vpop.permute.xlu0 %4312
      %4314 = vrot.lane.b32.xlu0 %v4013, 2
      %v4315 = vpop.permute.xlu0 %4314
      %4316 = vrot.lane.b32.xlu0 %v4014, 2
      %v4317 = vpop.permute.xlu0 %4316
      %4318 = vrot.lane.b32.xlu0 %v4015, 2
      %v4319 = vpop.permute.xlu0 %4318
      %4320 = vrot.lane.b32.xlu0 %v4016, 2
      %v4321 = vpop.permute.xlu0 %4320
      %4322 = vrot.lane.b32.xlu0 %v4017, 2
      %v4323 = vpop.permute.xlu0 %4322
      %4324 = vrot.lane.b32.xlu0 %v4018, 2
      %v4325 = vpop.permute.xlu0 %4324
      %4326 = vrot.lane.b32.xlu0 %v4019, 2
      %v4327 = vpop.permute.xlu0 %4326
      %4328 = vrot.lane.b32.xlu0 %v4020, 2
      %v4329 = vpop.permute.xlu0 %4328
      %4330 = vrot.lane.b32.xlu0 %v4021, 2
      %v4331 = vpop.permute.xlu0 %4330
      %4332 = vrot.lane.b32.xlu0 %v4022, 2
      %v4333 = vpop.permute.xlu0 %4332
      %4334 = vrot.lane.b32.xlu0 %v4023, 2
      %v4335 = vpop.permute.xlu0 %4334
      %4336 = vrot.lane.b32.xlu0 %v4024, 2
      %v4337 = vpop.permute.xlu0 %4336
      %4338 = vrot.lane.b32.xlu0 %v4025, 2
      %v4339 = vpop.permute.xlu0 %4338
      %4340 = vrot.lane.b32.xlu0 %v4026, 2
      %v4341 = vpop.permute.xlu0 %4340
      %4342 = vrot.lane.b32.xlu0 %v4027, 2
      %v4343 = vpop.permute.xlu0 %4342
      %4344 = vrot.lane.b32.xlu0 %v4028, 2
      %v4345 = vpop.permute.xlu0 %4344
      %4346 = vrot.lane.b32.xlu0 %v4029, 2
      %v4347 = vpop.permute.xlu0 %4346
      %4348 = vrot.lane.b32.xlu0 %v4030, 2
      %v4349 = vpop.permute.xlu0 %4348
      %4350 = vrot.lane.b32.xlu0 %v4031, 2
      %v4351 = vpop.permute.xlu0 %4350
      %4352 = vrot.lane.b32.xlu0 %v4032, 2
      %v4353 = vpop.permute.xlu0 %4352
      %4354 = vrot.lane.b32.xlu0 %v4033, 2
      %v4355 = vpop.permute.xlu0 %4354
      %4356 = vrot.lane.b32.xlu0 %v4034, 2
      %v4357 = vpop.permute.xlu0 %4356
      %4358 = vrot.lane.b32.xlu0 %v4035, 2
      %v4359 = vpop.permute.xlu0 %4358
      %4360 = vrot.lane.b32.xlu0 %v4036, 2
      %v4361 = vpop.permute.xlu0 %4360
      %4362 = vrot.lane.b32.xlu0 %v4037, 2
      %v4363 = vpop.permute.xlu0 %4362
      %4364 = vrot.lane.b32.xlu0 %v4038, 2
      %v4365 = vpop.permute.xlu0 %4364
      %4366 = vrot.lane.b32.xlu0 %v4039, 2
      %v4367 = vpop.permute.xlu0 %4366
      %4368 = vrot.lane.b32.xlu0 %v4040, 2
      %v4369 = vpop.permute.xlu0 %4368
      %4370 = vrot.lane.b32.xlu0 %v4041, 2
      %v4371 = vpop.permute.xlu0 %4370
      %4372 = vrot.lane.b32.xlu0 %v4042, 2
      %v4373 = vpop.permute.xlu0 %4372
      %4374 = vrot.lane.b32.xlu0 %v4043, 2
      %v4375 = vpop.permute.xlu0 %4374
      %4376 = vrot.lane.b32.xlu0 %v4044, 2
      %v4377 = vpop.permute.xlu0 %4376
      %4378 = vrot.lane.b32.xlu0 %v4045, 2
      %v4379 = vpop.permute.xlu0 %4378
      %4380 = vrot.lane.b32.xlu0 %v4046, 2
      %v4381 = vpop.permute.xlu0 %4380
      %4382 = vrot.lane.b32.xlu0 %v4047, 2
      %v4383 = vpop.permute.xlu0 %4382
      %4384 = vrot.lane.b32.xlu0 %v4048, 2
      %v4385 = vpop.permute.xlu0 %4384
      %4386 = vrot.lane.b32.xlu0 %v4049, 2
      %v4387 = vpop.permute.xlu0 %4386
      %4388 = vrot.lane.b32.xlu0 %v4050, 2
      %v4389 = vpop.permute.xlu0 %4388
      %4390 = vrot.lane.b32.xlu0 %v4051, 2
      %v4391 = vpop.permute.xlu0 %4390
      %4392 = vrot.lane.b32.xlu0 %v4052, 2
      %v4393 = vpop.permute.xlu0 %4392
      %4394 = vrot.lane.b32.xlu0 %v4053, 2
      %v4395 = vpop.permute.xlu0 %4394
      %4396 = vrot.lane.b32.xlu0 %v4054, 2
      %v4397 = vpop.permute.xlu0 %4396
      %4398 = vrot.lane.b32.xlu0 %v4055, 2
      %v4399 = vpop.permute.xlu0 %4398
      %4400 = vrot.lane.b32.xlu0 %v4056, 2
      %v4401 = vpop.permute.xlu0 %4400
      %4402 = vrot.lane.b32.xlu0 %v4057, 2
      %v4403 = vpop.permute.xlu0 %4402
      %4404 = vrot.lane.b32.xlu0 %v4058, 2
      %v4405 = vpop.permute.xlu0 %4404
      %4406 = vrot.lane.b32.xlu0 %v4059, 2
      %v4407 = vpop.permute.xlu0 %4406
      %4408 = vrot.lane.b32.xlu0 %v4060, 2
      %v4409 = vpop.permute.xlu0 %4408
      %4410 = vrot.lane.b32.xlu0 %v4061, 2
      %v4411 = vpop.permute.xlu0 %4410
      %4412 = vrot.lane.b32.xlu0 %v4062, 2
      %v4413 = vpop.permute.xlu0 %4412
      %4414 = vrot.lane.b32.xlu0 %v4063, 2
      %v4415 = vpop.permute.xlu0 %4414
      %4416 = vrot.lane.b32.xlu0 %v4064, 2
      %v4417 = vpop.permute.xlu0 %4416
      %4418 = vrot.lane.b32.xlu0 %v4065, 2
      %v4419 = vpop.permute.xlu0 %4418
      %4420 = vrot.lane.b32.xlu0 %v4066, 2
      %v4421 = vpop.permute.xlu0 %4420
      %4422 = vrot.lane.b32.xlu0 %v4067, 2
      %v4423 = vpop.permute.xlu0 %4422
      %4424 = vrot.lane.b32.xlu0 %v4068, 2
      %v4425 = vpop.permute.xlu0 %4424
      %4426 = vrot.lane.b32.xlu0 %v4069, 2
      %v4427 = vpop.permute.xlu0 %4426
      %4428 = vrot.lane.b32.xlu0 %v4070, 2
      %v4429 = vpop.permute.xlu0 %4428
      %4430 = vrot.lane.b32.xlu0 %v4071, 2
      %v4431 = vpop.permute.xlu0 %4430
      %4432 = vrot.lane.b32.xlu0 %v4072, 2
      %v4433 = vpop.permute.xlu0 %4432
      %4434 = vrot.lane.b32.xlu0 %v4073, 2
      %v4435 = vpop.permute.xlu0 %4434
      %4436 = vrot.lane.b32.xlu0 %v4074, 2
      %v4437 = vpop.permute.xlu0 %4436
      %4438 = vrot.lane.b32.xlu0 %v4075, 2
      %v4439 = vpop.permute.xlu0 %4438
      %4440 = vrot.lane.b32.xlu0 %v4076, 2
      %v4441 = vpop.permute.xlu0 %4440
      %4442 = vrot.lane.b32.xlu0 %v4077, 2
      %v4443 = vpop.permute.xlu0 %4442
      %4444 = vrot.lane.b32.xlu0 %v4078, 2
      %v4445 = vpop.permute.xlu0 %4444
      %4446 = vrot.lane.b32.xlu0 %v4079, 2
      %v4447 = vpop.permute.xlu0 %4446
      %4448 = vrot.lane.b32.xlu0 %v4080, 2
      %v4449 = vpop.permute.xlu0 %4448
      %4450 = vrot.lane.b32.xlu0 %v4081, 2
      %v4451 = vpop.permute.xlu0 %4450
      %4452 = vrot.lane.b32.xlu0 %v4082, 2
      %v4453 = vpop.permute.xlu0 %4452
      %4454 = vrot.lane.b32.xlu0 %v4083, 2
      %v4455 = vpop.permute.xlu0 %4454
      %4456 = vrot.lane.b32.xlu0 %v4084, 2
      %v4457 = vpop.permute.xlu0 %4456
      %4458 = vrot.lane.b32.xlu0 %v4085, 2
      %v4459 = vpop.permute.xlu0 %4458
      %4460 = vrot.lane.b32.xlu0 %v4086, 2
      %v4461 = vpop.permute.xlu0 %4460
      %4462 = vrot.lane.b32.xlu0 %v4087, 2
      %v4463 = vpop.permute.xlu0 %4462
      %4464 = vrot.lane.b32.xlu0 %v4088, 2
      %v4465 = vpop.permute.xlu0 %4464
      %4466 = vrot.lane.b32.xlu0 %v4089, 2
      %v4467 = vpop.permute.xlu0 %4466
      %4468 = vrot.lane.b32.xlu0 %v4090, 2
      %v4469 = vpop.permute.xlu0 %4468
      %4470 = vrot.lane.b32.xlu0 %v4091, 2
      %v4471 = vpop.permute.xlu0 %4470
      %4472 = vrot.lane.b32.xlu0 %v4092, 2
      %v4473 = vpop.permute.xlu0 %4472
      %4474 = vrot.lane.b32.xlu0 %v4093, 2
      %v4475 = vpop.permute.xlu0 %4474
      %4476 = vrot.lane.b32.xlu0 %v4094, 2
      %v4477 = vpop.permute.xlu0 %4476
      %4478 = vrot.lane.b32.xlu0 %v4095, 2
      %v4479 = vpop.permute.xlu0 %4478
      %vm4608 = vcmask 31768
      %4609 = vst.msk [vmem:[%s354] sm:$0xff] %vm4608, %v4225
      %4610 = vst.msk [vmem:[%s354 + $0x8] sm:$0xff] %vm4608, %v4227
      %4611 = vst.msk [vmem:[%s354 + $0x10] sm:$0xff] %vm4608, %v4229
      %4612 = vst.msk [vmem:[%s354 + $0x18] sm:$0xff] %vm4608, %v4231
      %4613 = vst.msk [vmem:[%s354 + $0x20] sm:$0xff] %vm4608, %v4233
      %4614 = vst.msk [vmem:[%s354 + $0x28] sm:$0xff] %vm4608, %v4235
      %4615 = vst.msk [vmem:[%s354 + $0x30] sm:$0xff] %vm4608, %v4237
      %4616 = vst.msk [vmem:[%s354 + $0x38] sm:$0xff] %vm4608, %v4239
      %4617 = vst.msk [vmem:[%s354 + $0x40] sm:$0xff] %vm4608, %v4241
      %4618 = vst.msk [vmem:[%s354 + $0x48] sm:$0xff] %vm4608, %v4243
      %4619 = vst.msk [vmem:[%s354 + $0x50] sm:$0xff] %vm4608, %v4245
      %4620 = vst.msk [vmem:[%s354 + $0x58] sm:$0xff] %vm4608, %v4247
      %4621 = vst.msk [vmem:[%s354 + $0x60] sm:$0xff] %vm4608, %v4249
      %4622 = vst.msk [vmem:[%s354 + $0x68] sm:$0xff] %vm4608, %v4251
      %4623 = vst.msk [vmem:[%s354 + $0x70] sm:$0xff] %vm4608, %v4253
      %4624 = vst.msk [vmem:[%s354 + $0x78] sm:$0xff] %vm4608, %v4255
      %4625 = vst.msk [vmem:[%s354 + $0x80] sm:$0xff] %vm4608, %v4257
      %4626 = vst.msk [vmem:[%s354 + $0x88] sm:$0xff] %vm4608, %v4259
      %4627 = vst.msk [vmem:[%s354 + $0x90] sm:$0xff] %vm4608, %v4261
      %4628 = vst.msk [vmem:[%s354 + $0x98] sm:$0xff] %vm4608, %v4263
      %4629 = vst.msk [vmem:[%s354 + $0xa0] sm:$0xff] %vm4608, %v4265
      %4630 = vst.msk [vmem:[%s354 + $0xa8] sm:$0xff] %vm4608, %v4267
      %4631 = vst.msk [vmem:[%s354 + $0xb0] sm:$0xff] %vm4608, %v4269
      %4632 = vst.msk [vmem:[%s354 + $0xb8] sm:$0xff] %vm4608, %v4271
      %4633 = vst.msk [vmem:[%s354 + $0xc0] sm:$0xff] %vm4608, %v4273
      %4634 = vst.msk [vmem:[%s354 + $0xc8] sm:$0xff] %vm4608, %v4275
      %4635 = vst.msk [vmem:[%s354 + $0xd0] sm:$0xff] %vm4608, %v4277
      %4636 = vst.msk [vmem:[%s354 + $0xd8] sm:$0xff] %vm4608, %v4279
      %4637 = vst.msk [vmem:[%s354 + $0xe0] sm:$0xff] %vm4608, %v4281
      %4638 = vst.msk [vmem:[%s354 + $0xe8] sm:$0xff] %vm4608, %v4283
      %4639 = vst.msk [vmem:[%s354 + $0xf0] sm:$0xff] %vm4608, %v4285
      %4640 = vst.msk [vmem:[%s354 + $0xf8] sm:$0xff] %vm4608, %v4287
      %4641 = vst.msk [vmem:[%s354 + $0x100] sm:$0xff] %vm4608, %v4289
      %4642 = vst.msk [vmem:[%s354 + $0x108] sm:$0xff] %vm4608, %v4291
      %4643 = vst.msk [vmem:[%s354 + $0x110] sm:$0xff] %vm4608, %v4293
      %4644 = vst.msk [vmem:[%s354 + $0x118] sm:$0xff] %vm4608, %v4295
      %4645 = vst.msk [vmem:[%s354 + $0x120] sm:$0xff] %vm4608, %v4297
      %4646 = vst.msk [vmem:[%s354 + $0x128] sm:$0xff] %vm4608, %v4299
      %4647 = vst.msk [vmem:[%s354 + $0x130] sm:$0xff] %vm4608, %v4301
      %4648 = vst.msk [vmem:[%s354 + $0x138] sm:$0xff] %vm4608, %v4303
      %4649 = vst.msk [vmem:[%s354 + $0x140] sm:$0xff] %vm4608, %v4305
      %4650 = vst.msk [vmem:[%s354 + $0x148] sm:$0xff] %vm4608, %v4307
      %4651 = vst.msk [vmem:[%s354 + $0x150] sm:$0xff] %vm4608, %v4309
      %4652 = vst.msk [vmem:[%s354 + $0x158] sm:$0xff] %vm4608, %v4311
      %4653 = vst.msk [vmem:[%s354 + $0x160] sm:$0xff] %vm4608, %v4313
      %4654 = vst.msk [vmem:[%s354 + $0x168] sm:$0xff] %vm4608, %v4315
      %4655 = vst.msk [vmem:[%s354 + $0x170] sm:$0xff] %vm4608, %v4317
      %4656 = vst.msk [vmem:[%s354 + $0x178] sm:$0xff] %vm4608, %v4319
      %4657 = vst.msk [vmem:[%s354 + $0x180] sm:$0xff] %vm4608, %v4321
      %4658 = vst.msk [vmem:[%s354 + $0x188] sm:$0xff] %vm4608, %v4323
      %4659 = vst.msk [vmem:[%s354 + $0x190] sm:$0xff] %vm4608, %v4325
      %4660 = vst.msk [vmem:[%s354 + $0x198] sm:$0xff] %vm4608, %v4327
      %4661 = vst.msk [vmem:[%s354 + $0x1a0] sm:$0xff] %vm4608, %v4329
      %4662 = vst.msk [vmem:[%s354 + $0x1a8] sm:$0xff] %vm4608, %v4331
      %4663 = vst.msk [vmem:[%s354 + $0x1b0] sm:$0xff] %vm4608, %v4333
      %4664 = vst.msk [vmem:[%s354 + $0x1b8] sm:$0xff] %vm4608, %v4335
      %4665 = vst.msk [vmem:[%s354 + $0x1c0] sm:$0xff] %vm4608, %v4337
      %4666 = vst.msk [vmem:[%s354 + $0x1c8] sm:$0xff] %vm4608, %v4339
      %4667 = vst.msk [vmem:[%s354 + $0x1d0] sm:$0xff] %vm4608, %v4341
      %4668 = vst.msk [vmem:[%s354 + $0x1d8] sm:$0xff] %vm4608, %v4343
      %4669 = vst.msk [vmem:[%s354 + $0x1e0] sm:$0xff] %vm4608, %v4345
      %4670 = vst.msk [vmem:[%s354 + $0x1e8] sm:$0xff] %vm4608, %v4347
      %4671 = vst.msk [vmem:[%s354 + $0x1f0] sm:$0xff] %vm4608, %v4349
      %4672 = vst.msk [vmem:[%s354 + $0x1f8] sm:$0xff] %vm4608, %v4351
      %4673 = vst.msk [vmem:[%s354 + $0x200] sm:$0xff] %vm4608, %v4353
      %4674 = vst.msk [vmem:[%s354 + $0x208] sm:$0xff] %vm4608, %v4355
      %4675 = vst.msk [vmem:[%s354 + $0x210] sm:$0xff] %vm4608, %v4357
      %4676 = vst.msk [vmem:[%s354 + $0x218] sm:$0xff] %vm4608, %v4359
      %4677 = vst.msk [vmem:[%s354 + $0x220] sm:$0xff] %vm4608, %v4361
      %4678 = vst.msk [vmem:[%s354 + $0x228] sm:$0xff] %vm4608, %v4363
      %4679 = vst.msk [vmem:[%s354 + $0x230] sm:$0xff] %vm4608, %v4365
      %4680 = vst.msk [vmem:[%s354 + $0x238] sm:$0xff] %vm4608, %v4367
      %4681 = vst.msk [vmem:[%s354 + $0x240] sm:$0xff] %vm4608, %v4369
      %4682 = vst.msk [vmem:[%s354 + $0x248] sm:$0xff] %vm4608, %v4371
      %4683 = vst.msk [vmem:[%s354 + $0x250] sm:$0xff] %vm4608, %v4373
      %4684 = vst.msk [vmem:[%s354 + $0x258] sm:$0xff] %vm4608, %v4375
      %4685 = vst.msk [vmem:[%s354 + $0x260] sm:$0xff] %vm4608, %v4377
      %4686 = vst.msk [vmem:[%s354 + $0x268] sm:$0xff] %vm4608, %v4379
      %4687 = vst.msk [vmem:[%s354 + $0x270] sm:$0xff] %vm4608, %v4381
      %4688 = vst.msk [vmem:[%s354 + $0x278] sm:$0xff] %vm4608, %v4383
      %4689 = vst.msk [vmem:[%s354 + $0x280] sm:$0xff] %vm4608, %v4385
      %4690 = vst.msk [vmem:[%s354 + $0x288] sm:$0xff] %vm4608, %v4387
      %4691 = vst.msk [vmem:[%s354 + $0x290] sm:$0xff] %vm4608, %v4389
      %4692 = vst.msk [vmem:[%s354 + $0x298] sm:$0xff] %vm4608, %v4391
      %4693 = vst.msk [vmem:[%s354 + $0x2a0] sm:$0xff] %vm4608, %v4393
      %4694 = vst.msk [vmem:[%s354 + $0x2a8] sm:$0xff] %vm4608, %v4395
      %4695 = vst.msk [vmem:[%s354 + $0x2b0] sm:$0xff] %vm4608, %v4397
      %4696 = vst.msk [vmem:[%s354 + $0x2b8] sm:$0xff] %vm4608, %v4399
      %4697 = vst.msk [vmem:[%s354 + $0x2c0] sm:$0xff] %vm4608, %v4401
      %4698 = vst.msk [vmem:[%s354 + $0x2c8] sm:$0xff] %vm4608, %v4403
      %4699 = vst.msk [vmem:[%s354 + $0x2d0] sm:$0xff] %vm4608, %v4405
      %4700 = vst.msk [vmem:[%s354 + $0x2d8] sm:$0xff] %vm4608, %v4407
      %4701 = vst.msk [vmem:[%s354 + $0x2e0] sm:$0xff] %vm4608, %v4409
      %4702 = vst.msk [vmem:[%s354 + $0x2e8] sm:$0xff] %vm4608, %v4411
      %4703 = vst.msk [vmem:[%s354 + $0x2f0] sm:$0xff] %vm4608, %v4413
      %4704 = vst.msk [vmem:[%s354 + $0x2f8] sm:$0xff] %vm4608, %v4415
      %4705 = vst.msk [vmem:[%s354 + $0x300] sm:$0xff] %vm4608, %v4417
      %4706 = vst.msk [vmem:[%s354 + $0x308] sm:$0xff] %vm4608, %v4419
      %4707 = vst.msk [vmem:[%s354 + $0x310] sm:$0xff] %vm4608, %v4421
      %4708 = vst.msk [vmem:[%s354 + $0x318] sm:$0xff] %vm4608, %v4423
      %4709 = vst.msk [vmem:[%s354 + $0x320] sm:$0xff] %vm4608, %v4425
      %4710 = vst.msk [vmem:[%s354 + $0x328] sm:$0xff] %vm4608, %v4427
      %4711 = vst.msk [vmem:[%s354 + $0x330] sm:$0xff] %vm4608, %v4429
      %4712 = vst.msk [vmem:[%s354 + $0x338] sm:$0xff] %vm4608, %v4431
      %4713 = vst.msk [vmem:[%s354 + $0x340] sm:$0xff] %vm4608, %v4433
      %4714 = vst.msk [vmem:[%s354 + $0x348] sm:$0xff] %vm4608, %v4435
      %4715 = vst.msk [vmem:[%s354 + $0x350] sm:$0xff] %vm4608, %v4437
      %4716 = vst.msk [vmem:[%s354 + $0x358] sm:$0xff] %vm4608, %v4439
      %4717 = vst.msk [vmem:[%s354 + $0x360] sm:$0xff] %vm4608, %v4441
      %4718 = vst.msk [vmem:[%s354 + $0x368] sm:$0xff] %vm4608, %v4443
      %4719 = vst.msk [vmem:[%s354 + $0x370] sm:$0xff] %vm4608, %v4445
      %4720 = vst.msk [vmem:[%s354 + $0x378] sm:$0xff] %vm4608, %v4447
      %4721 = vst.msk [vmem:[%s354 + $0x380] sm:$0xff] %vm4608, %v4449
      %4722 = vst.msk [vmem:[%s354 + $0x388] sm:$0xff] %vm4608, %v4451
      %4723 = vst.msk [vmem:[%s354 + $0x390] sm:$0xff] %vm4608, %v4453
      %4724 = vst.msk [vmem:[%s354 + $0x398] sm:$0xff] %vm4608, %v4455
      %4725 = vst.msk [vmem:[%s354 + $0x3a0] sm:$0xff] %vm4608, %v4457
      %4726 = vst.msk [vmem:[%s354 + $0x3a8] sm:$0xff] %vm4608, %v4459
      %4727 = vst.msk [vmem:[%s354 + $0x3b0] sm:$0xff] %vm4608, %v4461
      %4728 = vst.msk [vmem:[%s354 + $0x3b8] sm:$0xff] %vm4608, %v4463
      %4729 = vst.msk [vmem:[%s354 + $0x3c0] sm:$0xff] %vm4608, %v4465
      %4730 = vst.msk [vmem:[%s354 + $0x3c8] sm:$0xff] %vm4608, %v4467
      %4731 = vst.msk [vmem:[%s354 + $0x3d0] sm:$0xff] %vm4608, %v4469
      %4732 = vst.msk [vmem:[%s354 + $0x3d8] sm:$0xff] %vm4608, %v4471
      %4733 = vst.msk [vmem:[%s354 + $0x3e0] sm:$0xff] %vm4608, %v4473
      %4734 = vst.msk [vmem:[%s354 + $0x3e8] sm:$0xff] %vm4608, %v4475
      %4735 = vst.msk [vmem:[%s354 + $0x3f0] sm:$0xff] %vm4608, %v4477
      %4736 = vst.msk [vmem:[%s354 + $0x3f8] sm:$0xff] %vm4608, %v4479
      %v4737 = vld [vmem:[%s344] sm:$0xff]
      %v4738 = vld [vmem:[%s344 + $0x8] sm:$0xff]
      %v4739 = vld [vmem:[%s344 + $0x10] sm:$0xff]
      %v4740 = vld [vmem:[%s344 + $0x18] sm:$0xff]
      %v4741 = vld [vmem:[%s344 + $0x20] sm:$0xff]
      %v4742 = vld [vmem:[%s344 + $0x28] sm:$0xff]
      %v4743 = vld [vmem:[%s344 + $0x30] sm:$0xff]
      %v4744 = vld [vmem:[%s344 + $0x38] sm:$0xff]
      %v4745 = vld [vmem:[%s344 + $0x40] sm:$0xff]
      %v4746 = vld [vmem:[%s344 + $0x48] sm:$0xff]
      %v4747 = vld [vmem:[%s344 + $0x50] sm:$0xff]
      %v4748 = vld [vmem:[%s344 + $0x58] sm:$0xff]
      %v4749 = vld [vmem:[%s344 + $0x60] sm:$0xff]
      %v4750 = vld [vmem:[%s344 + $0x68] sm:$0xff]
      %v4751 = vld [vmem:[%s344 + $0x70] sm:$0xff]
      %v4752 = vld [vmem:[%s344 + $0x78] sm:$0xff]
      %v4753 = vld [vmem:[%s344 + $0x80] sm:$0xff]
      %v4754 = vld [vmem:[%s344 + $0x88] sm:$0xff]
      %v4755 = vld [vmem:[%s344 + $0x90] sm:$0xff]
      %v4756 = vld [vmem:[%s344 + $0x98] sm:$0xff]
      %v4757 = vld [vmem:[%s344 + $0xa0] sm:$0xff]
      %v4758 = vld [vmem:[%s344 + $0xa8] sm:$0xff]
      %v4759 = vld [vmem:[%s344 + $0xb0] sm:$0xff]
      %v4760 = vld [vmem:[%s344 + $0xb8] sm:$0xff]
      %v4761 = vld [vmem:[%s344 + $0xc0] sm:$0xff]
      %v4762 = vld [vmem:[%s344 + $0xc8] sm:$0xff]
      %v4763 = vld [vmem:[%s344 + $0xd0] sm:$0xff]
      %v4764 = vld [vmem:[%s344 + $0xd8] sm:$0xff]
      %v4765 = vld [vmem:[%s344 + $0xe0] sm:$0xff]
      %v4766 = vld [vmem:[%s344 + $0xe8] sm:$0xff]
      %v4767 = vld [vmem:[%s344 + $0xf0] sm:$0xff]
      %v4768 = vld [vmem:[%s344 + $0xf8] sm:$0xff]
      %v4769 = vld [vmem:[%s344 + $0x100] sm:$0xff]
      %v4770 = vld [vmem:[%s344 + $0x108] sm:$0xff]
      %v4771 = vld [vmem:[%s344 + $0x110] sm:$0xff]
      %v4772 = vld [vmem:[%s344 + $0x118] sm:$0xff]
      %v4773 = vld [vmem:[%s344 + $0x120] sm:$0xff]
      %v4774 = vld [vmem:[%s344 + $0x128] sm:$0xff]
      %v4775 = vld [vmem:[%s344 + $0x130] sm:$0xff]
      %v4776 = vld [vmem:[%s344 + $0x138] sm:$0xff]
      %v4777 = vld [vmem:[%s344 + $0x140] sm:$0xff]
      %v4778 = vld [vmem:[%s344 + $0x148] sm:$0xff]
      %v4779 = vld [vmem:[%s344 + $0x150] sm:$0xff]
      %v4780 = vld [vmem:[%s344 + $0x158] sm:$0xff]
      %v4781 = vld [vmem:[%s344 + $0x160] sm:$0xff]
      %v4782 = vld [vmem:[%s344 + $0x168] sm:$0xff]
      %v4783 = vld [vmem:[%s344 + $0x170] sm:$0xff]
      %v4784 = vld [vmem:[%s344 + $0x178] sm:$0xff]
      %v4785 = vld [vmem:[%s344 + $0x180] sm:$0xff]
      %v4786 = vld [vmem:[%s344 + $0x188] sm:$0xff]
      %v4787 = vld [vmem:[%s344 + $0x190] sm:$0xff]
      %v4788 = vld [vmem:[%s344 + $0x198] sm:$0xff]
      %v4789 = vld [vmem:[%s344 + $0x1a0] sm:$0xff]
      %v4790 = vld [vmem:[%s344 + $0x1a8] sm:$0xff]
      %v4791 = vld [vmem:[%s344 + $0x1b0] sm:$0xff]
      %v4792 = vld [vmem:[%s344 + $0x1b8] sm:$0xff]
      %v4793 = vld [vmem:[%s344 + $0x1c0] sm:$0xff]
      %v4794 = vld [vmem:[%s344 + $0x1c8] sm:$0xff]
      %v4795 = vld [vmem:[%s344 + $0x1d0] sm:$0xff]
      %v4796 = vld [vmem:[%s344 + $0x1d8] sm:$0xff]
      %v4797 = vld [vmem:[%s344 + $0x1e0] sm:$0xff]
      %v4798 = vld [vmem:[%s344 + $0x1e8] sm:$0xff]
      %v4799 = vld [vmem:[%s344 + $0x1f0] sm:$0xff]
      %v4800 = vld [vmem:[%s344 + $0x1f8] sm:$0xff]
      %v4801 = vld [vmem:[%s344 + $0x200] sm:$0xff]
      %v4802 = vld [vmem:[%s344 + $0x208] sm:$0xff]
      %v4803 = vld [vmem:[%s344 + $0x210] sm:$0xff]
      %v4804 = vld [vmem:[%s344 + $0x218] sm:$0xff]
      %v4805 = vld [vmem:[%s344 + $0x220] sm:$0xff]
      %v4806 = vld [vmem:[%s344 + $0x228] sm:$0xff]
      %v4807 = vld [vmem:[%s344 + $0x230] sm:$0xff]
      %v4808 = vld [vmem:[%s344 + $0x238] sm:$0xff]
      %v4809 = vld [vmem:[%s344 + $0x240] sm:$0xff]
      %v4810 = vld [vmem:[%s344 + $0x248] sm:$0xff]
      %v4811 = vld [vmem:[%s344 + $0x250] sm:$0xff]
      %v4812 = vld [vmem:[%s344 + $0x258] sm:$0xff]
      %v4813 = vld [vmem:[%s344 + $0x260] sm:$0xff]
      %v4814 = vld [vmem:[%s344 + $0x268] sm:$0xff]
      %v4815 = vld [vmem:[%s344 + $0x270] sm:$0xff]
      %v4816 = vld [vmem:[%s344 + $0x278] sm:$0xff]
      %v4817 = vld [vmem:[%s344 + $0x280] sm:$0xff]
      %v4818 = vld [vmem:[%s344 + $0x288] sm:$0xff]
      %v4819 = vld [vmem:[%s344 + $0x290] sm:$0xff]
      %v4820 = vld [vmem:[%s344 + $0x298] sm:$0xff]
      %v4821 = vld [vmem:[%s344 + $0x2a0] sm:$0xff]
      %v4822 = vld [vmem:[%s344 + $0x2a8] sm:$0xff]
      %v4823 = vld [vmem:[%s344 + $0x2b0] sm:$0xff]
      %v4824 = vld [vmem:[%s344 + $0x2b8] sm:$0xff]
      %v4825 = vld [vmem:[%s344 + $0x2c0] sm:$0xff]
      %v4826 = vld [vmem:[%s344 + $0x2c8] sm:$0xff]
      %v4827 = vld [vmem:[%s344 + $0x2d0] sm:$0xff]
      %v4828 = vld [vmem:[%s344 + $0x2d8] sm:$0xff]
      %v4829 = vld [vmem:[%s344 + $0x2e0] sm:$0xff]
      %v4830 = vld [vmem:[%s344 + $0x2e8] sm:$0xff]
      %v4831 = vld [vmem:[%s344 + $0x2f0] sm:$0xff]
      %v4832 = vld [vmem:[%s344 + $0x2f8] sm:$0xff]
      %v4833 = vld [vmem:[%s344 + $0x300] sm:$0xff]
      %v4834 = vld [vmem:[%s344 + $0x308] sm:$0xff]
      %v4835 = vld [vmem:[%s344 + $0x310] sm:$0xff]
      %v4836 = vld [vmem:[%s344 + $0x318] sm:$0xff]
      %v4837 = vld [vmem:[%s344 + $0x320] sm:$0xff]
      %v4838 = vld [vmem:[%s344 + $0x328] sm:$0xff]
      %v4839 = vld [vmem:[%s344 + $0x330] sm:$0xff]
      %v4840 = vld [vmem:[%s344 + $0x338] sm:$0xff]
      %v4841 = vld [vmem:[%s344 + $0x340] sm:$0xff]
      %v4842 = vld [vmem:[%s344 + $0x348] sm:$0xff]
      %v4843 = vld [vmem:[%s344 + $0x350] sm:$0xff]
      %v4844 = vld [vmem:[%s344 + $0x358] sm:$0xff]
      %v4845 = vld [vmem:[%s344 + $0x360] sm:$0xff]
      %v4846 = vld [vmem:[%s344 + $0x368] sm:$0xff]
      %v4847 = vld [vmem:[%s344 + $0x370] sm:$0xff]
      %v4848 = vld [vmem:[%s344 + $0x378] sm:$0xff]
      %v4849 = vld [vmem:[%s344 + $0x380] sm:$0xff]
      %v4850 = vld [vmem:[%s344 + $0x388] sm:$0xff]
      %v4851 = vld [vmem:[%s344 + $0x390] sm:$0xff]
      %v4852 = vld [vmem:[%s344 + $0x398] sm:$0xff]
      %v4853 = vld [vmem:[%s344 + $0x3a0] sm:$0xff]
      %v4854 = vld [vmem:[%s344 + $0x3a8] sm:$0xff]
      %v4855 = vld [vmem:[%s344 + $0x3b0] sm:$0xff]
      %v4856 = vld [vmem:[%s344 + $0x3b8] sm:$0xff]
      %v4857 = vld [vmem:[%s344 + $0x3c0] sm:$0xff]
      %v4858 = vld [vmem:[%s344 + $0x3c8] sm:$0xff]
      %v4859 = vld [vmem:[%s344 + $0x3d0] sm:$0xff]
      %v4860 = vld [vmem:[%s344 + $0x3d8] sm:$0xff]
      %v4861 = vld [vmem:[%s344 + $0x3e0] sm:$0xff]
      %v4862 = vld [vmem:[%s344 + $0x3e8] sm:$0xff]
      %v4863 = vld [vmem:[%s344 + $0x3f0] sm:$0xff]
      %v4864 = vld [vmem:[%s344 + $0x3f8] sm:$0xff]
      %vm4865 = vcmask 64512
      %v4866 = vsel %vm4865, %v4737, -inf
      %4867 = vmax.xlane.f32.xlu0 %v4866
      %v4868 = vpop.xlane.xlu0 %4867
      %v4869 = vsel %vm4865, %v4738, -inf
      %4870 = vmax.xlane.f32.xlu0 %v4869
      %v4871 = vpop.xlane.xlu0 %4870
      %v4872 = vsel %vm4865, %v4739, -inf
      %4873 = vmax.xlane.f32.xlu0 %v4872
      %v4874 = vpop.xlane.xlu0 %4873
      %v4875 = vsel %vm4865, %v4740, -inf
      %4876 = vmax.xlane.f32.xlu0 %v4875
      %v4877 = vpop.xlane.xlu0 %4876
      %v4878 = vsel %vm4865, %v4741, -inf
      %4879 = vmax.xlane.f32.xlu0 %v4878
      %v4880 = vpop.xlane.xlu0 %4879
      %v4881 = vsel %vm4865, %v4742, -inf
      %4882 = vmax.xlane.f32.xlu0 %v4881
      %v4883 = vpop.xlane.xlu0 %4882
      %v4884 = vsel %vm4865, %v4743, -inf
      %4885 = vmax.xlane.f32.xlu0 %v4884
      %v4886 = vpop.xlane.xlu0 %4885
      %v4887 = vsel %vm4865, %v4744, -inf
      %4888 = vmax.xlane.f32.xlu0 %v4887
      %v4889 = vpop.xlane.xlu0 %4888
      %v4890 = vsel %vm4865, %v4745, -inf
      %4891 = vmax.xlane.f32.xlu0 %v4890
      %v4892 = vpop.xlane.xlu0 %4891
      %v4893 = vsel %vm4865, %v4746, -inf
      %4894 = vmax.xlane.f32.xlu0 %v4893
      %v4895 = vpop.xlane.xlu0 %4894
      %v4896 = vsel %vm4865, %v4747, -inf
      %4897 = vmax.xlane.f32.xlu0 %v4896
      %v4898 = vpop.xlane.xlu0 %4897
      %v4899 = vsel %vm4865, %v4748, -inf
      %4900 = vmax.xlane.f32.xlu0 %v4899
      %v4901 = vpop.xlane.xlu0 %4900
      %v4902 = vsel %vm4865, %v4749, -inf
      %4903 = vmax.xlane.f32.xlu0 %v4902
      %v4904 = vpop.xlane.xlu0 %4903
      %v4905 = vsel %vm4865, %v4750, -inf
      %4906 = vmax.xlane.f32.xlu0 %v4905
      %v4907 = vpop.xlane.xlu0 %4906
      %v4908 = vsel %vm4865, %v4751, -inf
      %4909 = vmax.xlane.f32.xlu0 %v4908
      %v4910 = vpop.xlane.xlu0 %4909
      %v4911 = vsel %vm4865, %v4752, -inf
      %4912 = vmax.xlane.f32.xlu0 %v4911
      %v4913 = vpop.xlane.xlu0 %4912
      %v4914 = vsel %vm4865, %v4753, -inf
      %4915 = vmax.xlane.f32.xlu0 %v4914
      %v4916 = vpop.xlane.xlu0 %4915
      %v4917 = vsel %vm4865, %v4754, -inf
      %4918 = vmax.xlane.f32.xlu0 %v4917
      %v4919 = vpop.xlane.xlu0 %4918
      %v4920 = vsel %vm4865, %v4755, -inf
      %4921 = vmax.xlane.f32.xlu0 %v4920
      %v4922 = vpop.xlane.xlu0 %4921
      %v4923 = vsel %vm4865, %v4756, -inf
      %4924 = vmax.xlane.f32.xlu0 %v4923
      %v4925 = vpop.xlane.xlu0 %4924
      %v4926 = vsel %vm4865, %v4757, -inf
      %4927 = vmax.xlane.f32.xlu0 %v4926
      %v4928 = vpop.xlane.xlu0 %4927
      %v4929 = vsel %vm4865, %v4758, -inf
      %4930 = vmax.xlane.f32.xlu0 %v4929
      %v4931 = vpop.xlane.xlu0 %4930
      %v4932 = vsel %vm4865, %v4759, -inf
      %4933 = vmax.xlane.f32.xlu0 %v4932
      %v4934 = vpop.xlane.xlu0 %4933
      %v4935 = vsel %vm4865, %v4760, -inf
      %4936 = vmax.xlane.f32.xlu0 %v4935
      %v4937 = vpop.xlane.xlu0 %4936
      %v4938 = vsel %vm4865, %v4761, -inf
      %4939 = vmax.xlane.f32.xlu0 %v4938
      %v4940 = vpop.xlane.xlu0 %4939
      %v4941 = vsel %vm4865, %v4762, -inf
      %4942 = vmax.xlane.f32.xlu0 %v4941
      %v4943 = vpop.xlane.xlu0 %4942
      %v4944 = vsel %vm4865, %v4763, -inf
      %4945 = vmax.xlane.f32.xlu0 %v4944
      %v4946 = vpop.xlane.xlu0 %4945
      %v4947 = vsel %vm4865, %v4764, -inf
      %4948 = vmax.xlane.f32.xlu0 %v4947
      %v4949 = vpop.xlane.xlu0 %4948
      %v4950 = vsel %vm4865, %v4765, -inf
      %4951 = vmax.xlane.f32.xlu0 %v4950
      %v4952 = vpop.xlane.xlu0 %4951
      %v4953 = vsel %vm4865, %v4766, -inf
      %4954 = vmax.xlane.f32.xlu0 %v4953
      %v4955 = vpop.xlane.xlu0 %4954
      %v4956 = vsel %vm4865, %v4767, -inf
      %4957 = vmax.xlane.f32.xlu0 %v4956
      %v4958 = vpop.xlane.xlu0 %4957
      %v4959 = vsel %vm4865, %v4768, -inf
      %4960 = vmax.xlane.f32.xlu0 %v4959
      %v4961 = vpop.xlane.xlu0 %4960
      %v4962 = vsel %vm4865, %v4769, -inf
      %4963 = vmax.xlane.f32.xlu0 %v4962
      %v4964 = vpop.xlane.xlu0 %4963
      %v4965 = vsel %vm4865, %v4770, -inf
      %4966 = vmax.xlane.f32.xlu0 %v4965
      %v4967 = vpop.xlane.xlu0 %4966
      %v4968 = vsel %vm4865, %v4771, -inf
      %4969 = vmax.xlane.f32.xlu0 %v4968
      %v4970 = vpop.xlane.xlu0 %4969
      %v4971 = vsel %vm4865, %v4772, -inf
      %4972 = vmax.xlane.f32.xlu0 %v4971
      %v4973 = vpop.xlane.xlu0 %4972
      %v4974 = vsel %vm4865, %v4773, -inf
      %4975 = vmax.xlane.f32.xlu0 %v4974
      %v4976 = vpop.xlane.xlu0 %4975
      %v4977 = vsel %vm4865, %v4774, -inf
      %4978 = vmax.xlane.f32.xlu0 %v4977
      %v4979 = vpop.xlane.xlu0 %4978
      %v4980 = vsel %vm4865, %v4775, -inf
      %4981 = vmax.xlane.f32.xlu0 %v4980
      %v4982 = vpop.xlane.xlu0 %4981
      %v4983 = vsel %vm4865, %v4776, -inf
      %4984 = vmax.xlane.f32.xlu0 %v4983
      %v4985 = vpop.xlane.xlu0 %4984
      %v4986 = vsel %vm4865, %v4777, -inf
      %4987 = vmax.xlane.f32.xlu0 %v4986
      %v4988 = vpop.xlane.xlu0 %4987
      %v4989 = vsel %vm4865, %v4778, -inf
      %4990 = vmax.xlane.f32.xlu0 %v4989
      %v4991 = vpop.xlane.xlu0 %4990
      %v4992 = vsel %vm4865, %v4779, -inf
      %4993 = vmax.xlane.f32.xlu0 %v4992
      %v4994 = vpop.xlane.xlu0 %4993
      %v4995 = vsel %vm4865, %v4780, -inf
      %4996 = vmax.xlane.f32.xlu0 %v4995
      %v4997 = vpop.xlane.xlu0 %4996
      %v4998 = vsel %vm4865, %v4781, -inf
      %4999 = vmax.xlane.f32.xlu0 %v4998
      %v5000 = vpop.xlane.xlu0 %4999
      %v5001 = vsel %vm4865, %v4782, -inf
      %5002 = vmax.xlane.f32.xlu0 %v5001
      %v5003 = vpop.xlane.xlu0 %5002
      %v5004 = vsel %vm4865, %v4783, -inf
      %5005 = vmax.xlane.f32.xlu0 %v5004
      %v5006 = vpop.xlane.xlu0 %5005
      %v5007 = vsel %vm4865, %v4784, -inf
      %5008 = vmax.xlane.f32.xlu0 %v5007
      %v5009 = vpop.xlane.xlu0 %5008
      %v5010 = vsel %vm4865, %v4785, -inf
      %5011 = vmax.xlane.f32.xlu0 %v5010
      %v5012 = vpop.xlane.xlu0 %5011
      %v5013 = vsel %vm4865, %v4786, -inf
      %5014 = vmax.xlane.f32.xlu0 %v5013
      %v5015 = vpop.xlane.xlu0 %5014
      %v5016 = vsel %vm4865, %v4787, -inf
      %5017 = vmax.xlane.f32.xlu0 %v5016
      %v5018 = vpop.xlane.xlu0 %5017
      %v5019 = vsel %vm4865, %v4788, -inf
      %5020 = vmax.xlane.f32.xlu0 %v5019
      %v5021 = vpop.xlane.xlu0 %5020
      %v5022 = vsel %vm4865, %v4789, -inf
      %5023 = vmax.xlane.f32.xlu0 %v5022
      %v5024 = vpop.xlane.xlu0 %5023
      %v5025 = vsel %vm4865, %v4790, -inf
      %5026 = vmax.xlane.f32.xlu0 %v5025
      %v5027 = vpop.xlane.xlu0 %5026
      %v5028 = vsel %vm4865, %v4791, -inf
      %5029 = vmax.xlane.f32.xlu0 %v5028
      %v5030 = vpop.xlane.xlu0 %5029
      %v5031 = vsel %vm4865, %v4792, -inf
      %5032 = vmax.xlane.f32.xlu0 %v5031
      %v5033 = vpop.xlane.xlu0 %5032
      %v5034 = vsel %vm4865, %v4793, -inf
      %5035 = vmax.xlane.f32.xlu0 %v5034
      %v5036 = vpop.xlane.xlu0 %5035
      %v5037 = vsel %vm4865, %v4794, -inf
      %5038 = vmax.xlane.f32.xlu0 %v5037
      %v5039 = vpop.xlane.xlu0 %5038
      %v5040 = vsel %vm4865, %v4795, -inf
      %5041 = vmax.xlane.f32.xlu0 %v5040
      %v5042 = vpop.xlane.xlu0 %5041
      %v5043 = vsel %vm4865, %v4796, -inf
      %5044 = vmax.xlane.f32.xlu0 %v5043
      %v5045 = vpop.xlane.xlu0 %5044
      %v5046 = vsel %vm4865, %v4797, -inf
      %5047 = vmax.xlane.f32.xlu0 %v5046
      %v5048 = vpop.xlane.xlu0 %5047
      %v5049 = vsel %vm4865, %v4798, -inf
      %5050 = vmax.xlane.f32.xlu0 %v5049
      %v5051 = vpop.xlane.xlu0 %5050
      %v5052 = vsel %vm4865, %v4799, -inf
      %5053 = vmax.xlane.f32.xlu0 %v5052
      %v5054 = vpop.xlane.xlu0 %5053
      %v5055 = vsel %vm4865, %v4800, -inf
      %5056 = vmax.xlane.f32.xlu0 %v5055
      %v5057 = vpop.xlane.xlu0 %5056
      %v5058 = vsel %vm4865, %v4801, -inf
      %5059 = vmax.xlane.f32.xlu0 %v5058
      %v5060 = vpop.xlane.xlu0 %5059
      %v5061 = vsel %vm4865, %v4802, -inf
      %5062 = vmax.xlane.f32.xlu0 %v5061
      %v5063 = vpop.xlane.xlu0 %5062
      %v5064 = vsel %vm4865, %v4803, -inf
      %5065 = vmax.xlane.f32.xlu0 %v5064
      %v5066 = vpop.xlane.xlu0 %5065
      %v5067 = vsel %vm4865, %v4804, -inf
      %5068 = vmax.xlane.f32.xlu0 %v5067
      %v5069 = vpop.xlane.xlu0 %5068
      %v5070 = vsel %vm4865, %v4805, -inf
      %5071 = vmax.xlane.f32.xlu0 %v5070
      %v5072 = vpop.xlane.xlu0 %5071
      %v5073 = vsel %vm4865, %v4806, -inf
      %5074 = vmax.xlane.f32.xlu0 %v5073
      %v5075 = vpop.xlane.xlu0 %5074
      %v5076 = vsel %vm4865, %v4807, -inf
      %5077 = vmax.xlane.f32.xlu0 %v5076
      %v5078 = vpop.xlane.xlu0 %5077
      %v5079 = vsel %vm4865, %v4808, -inf
      %5080 = vmax.xlane.f32.xlu0 %v5079
      %v5081 = vpop.xlane.xlu0 %5080
      %v5082 = vsel %vm4865, %v4809, -inf
      %5083 = vmax.xlane.f32.xlu0 %v5082
      %v5084 = vpop.xlane.xlu0 %5083
      %v5085 = vsel %vm4865, %v4810, -inf
      %5086 = vmax.xlane.f32.xlu0 %v5085
      %v5087 = vpop.xlane.xlu0 %5086
      %v5088 = vsel %vm4865, %v4811, -inf
      %5089 = vmax.xlane.f32.xlu0 %v5088
      %v5090 = vpop.xlane.xlu0 %5089
      %v5091 = vsel %vm4865, %v4812, -inf
      %5092 = vmax.xlane.f32.xlu0 %v5091
      %v5093 = vpop.xlane.xlu0 %5092
      %v5094 = vsel %vm4865, %v4813, -inf
      %5095 = vmax.xlane.f32.xlu0 %v5094
      %v5096 = vpop.xlane.xlu0 %5095
      %v5097 = vsel %vm4865, %v4814, -inf
      %5098 = vmax.xlane.f32.xlu0 %v5097
      %v5099 = vpop.xlane.xlu0 %5098
      %v5100 = vsel %vm4865, %v4815, -inf
      %5101 = vmax.xlane.f32.xlu0 %v5100
      %v5102 = vpop.xlane.xlu0 %5101
      %v5103 = vsel %vm4865, %v4816, -inf
      %5104 = vmax.xlane.f32.xlu0 %v5103
      %v5105 = vpop.xlane.xlu0 %5104
      %v5106 = vsel %vm4865, %v4817, -inf
      %5107 = vmax.xlane.f32.xlu0 %v5106
      %v5108 = vpop.xlane.xlu0 %5107
      %v5109 = vsel %vm4865, %v4818, -inf
      %5110 = vmax.xlane.f32.xlu0 %v5109
      %v5111 = vpop.xlane.xlu0 %5110
      %v5112 = vsel %vm4865, %v4819, -inf
      %5113 = vmax.xlane.f32.xlu0 %v5112
      %v5114 = vpop.xlane.xlu0 %5113
      %v5115 = vsel %vm4865, %v4820, -inf
      %5116 = vmax.xlane.f32.xlu0 %v5115
      %v5117 = vpop.xlane.xlu0 %5116
      %v5118 = vsel %vm4865, %v4821, -inf
      %5119 = vmax.xlane.f32.xlu0 %v5118
      %v5120 = vpop.xlane.xlu0 %5119
      %v5121 = vsel %vm4865, %v4822, -inf
      %5122 = vmax.xlane.f32.xlu0 %v5121
      %v5123 = vpop.xlane.xlu0 %5122
      %v5124 = vsel %vm4865, %v4823, -inf
      %5125 = vmax.xlane.f32.xlu0 %v5124
      %v5126 = vpop.xlane.xlu0 %5125
      %v5127 = vsel %vm4865, %v4824, -inf
      %5128 = vmax.xlane.f32.xlu0 %v5127
      %v5129 = vpop.xlane.xlu0 %5128
      %v5130 = vsel %vm4865, %v4825, -inf
      %5131 = vmax.xlane.f32.xlu0 %v5130
      %v5132 = vpop.xlane.xlu0 %5131
      %v5133 = vsel %vm4865, %v4826, -inf
      %5134 = vmax.xlane.f32.xlu0 %v5133
      %v5135 = vpop.xlane.xlu0 %5134
      %v5136 = vsel %vm4865, %v4827, -inf
      %5137 = vmax.xlane.f32.xlu0 %v5136
      %v5138 = vpop.xlane.xlu0 %5137
      %v5139 = vsel %vm4865, %v4828, -inf
      %5140 = vmax.xlane.f32.xlu0 %v5139
      %v5141 = vpop.xlane.xlu0 %5140
      %v5142 = vsel %vm4865, %v4829, -inf
      %5143 = vmax.xlane.f32.xlu0 %v5142
      %v5144 = vpop.xlane.xlu0 %5143
      %v5145 = vsel %vm4865, %v4830, -inf
      %5146 = vmax.xlane.f32.xlu0 %v5145
      %v5147 = vpop.xlane.xlu0 %5146
      %v5148 = vsel %vm4865, %v4831, -inf
      %5149 = vmax.xlane.f32.xlu0 %v5148
      %v5150 = vpop.xlane.xlu0 %5149
      %v5151 = vsel %vm4865, %v4832, -inf
      %5152 = vmax.xlane.f32.xlu0 %v5151
      %v5153 = vpop.xlane.xlu0 %5152
      %v5154 = vsel %vm4865, %v4833, -inf
      %5155 = vmax.xlane.f32.xlu0 %v5154
      %v5156 = vpop.xlane.xlu0 %5155
      %v5157 = vsel %vm4865, %v4834, -inf
      %5158 = vmax.xlane.f32.xlu0 %v5157
      %v5159 = vpop.xlane.xlu0 %5158
      %v5160 = vsel %vm4865, %v4835, -inf
      %5161 = vmax.xlane.f32.xlu0 %v5160
      %v5162 = vpop.xlane.xlu0 %5161
      %v5163 = vsel %vm4865, %v4836, -inf
      %5164 = vmax.xlane.f32.xlu0 %v5163
      %v5165 = vpop.xlane.xlu0 %5164
      %v5166 = vsel %vm4865, %v4837, -inf
      %5167 = vmax.xlane.f32.xlu0 %v5166
      %v5168 = vpop.xlane.xlu0 %5167
      %v5169 = vsel %vm4865, %v4838, -inf
      %5170 = vmax.xlane.f32.xlu0 %v5169
      %v5171 = vpop.xlane.xlu0 %5170
      %v5172 = vsel %vm4865, %v4839, -inf
      %5173 = vmax.xlane.f32.xlu0 %v5172
      %v5174 = vpop.xlane.xlu0 %5173
      %v5175 = vsel %vm4865, %v4840, -inf
      %5176 = vmax.xlane.f32.xlu0 %v5175
      %v5177 = vpop.xlane.xlu0 %5176
      %v5178 = vsel %vm4865, %v4841, -inf
      %5179 = vmax.xlane.f32.xlu0 %v5178
      %v5180 = vpop.xlane.xlu0 %5179
      %v5181 = vsel %vm4865, %v4842, -inf
      %5182 = vmax.xlane.f32.xlu0 %v5181
      %v5183 = vpop.xlane.xlu0 %5182
      %v5184 = vsel %vm4865, %v4843, -inf
      %5185 = vmax.xlane.f32.xlu0 %v5184
      %v5186 = vpop.xlane.xlu0 %5185
      %v5187 = vsel %vm4865, %v4844, -inf
      %5188 = vmax.xlane.f32.xlu0 %v5187
      %v5189 = vpop.xlane.xlu0 %5188
      %v5190 = vsel %vm4865, %v4845, -inf
      %5191 = vmax.xlane.f32.xlu0 %v5190
      %v5192 = vpop.xlane.xlu0 %5191
      %v5193 = vsel %vm4865, %v4846, -inf
      %5194 = vmax.xlane.f32.xlu0 %v5193
      %v5195 = vpop.xlane.xlu0 %5194
      %v5196 = vsel %vm4865, %v4847, -inf
      %5197 = vmax.xlane.f32.xlu0 %v5196
      %v5198 = vpop.xlane.xlu0 %5197
      %v5199 = vsel %vm4865, %v4848, -inf
      %5200 = vmax.xlane.f32.xlu0 %v5199
      %v5201 = vpop.xlane.xlu0 %5200
      %v5202 = vsel %vm4865, %v4849, -inf
      %5203 = vmax.xlane.f32.xlu0 %v5202
      %v5204 = vpop.xlane.xlu0 %5203
      %v5205 = vsel %vm4865, %v4850, -inf
      %5206 = vmax.xlane.f32.xlu0 %v5205
      %v5207 = vpop.xlane.xlu0 %5206
      %v5208 = vsel %vm4865, %v4851, -inf
      %5209 = vmax.xlane.f32.xlu0 %v5208
      %v5210 = vpop.xlane.xlu0 %5209
      %v5211 = vsel %vm4865, %v4852, -inf
      %5212 = vmax.xlane.f32.xlu0 %v5211
      %v5213 = vpop.xlane.xlu0 %5212
      %v5214 = vsel %vm4865, %v4853, -inf
      %5215 = vmax.xlane.f32.xlu0 %v5214
      %v5216 = vpop.xlane.xlu0 %5215
      %v5217 = vsel %vm4865, %v4854, -inf
      %5218 = vmax.xlane.f32.xlu0 %v5217
      %v5219 = vpop.xlane.xlu0 %5218
      %v5220 = vsel %vm4865, %v4855, -inf
      %5221 = vmax.xlane.f32.xlu0 %v5220
      %v5222 = vpop.xlane.xlu0 %5221
      %v5223 = vsel %vm4865, %v4856, -inf
      %5224 = vmax.xlane.f32.xlu0 %v5223
      %v5225 = vpop.xlane.xlu0 %5224
      %v5226 = vsel %vm4865, %v4857, -inf
      %5227 = vmax.xlane.f32.xlu0 %v5226
      %v5228 = vpop.xlane.xlu0 %5227
      %v5229 = vsel %vm4865, %v4858, -inf
      %5230 = vmax.xlane.f32.xlu0 %v5229
      %v5231 = vpop.xlane.xlu0 %5230
      %v5232 = vsel %vm4865, %v4859, -inf
      %5233 = vmax.xlane.f32.xlu0 %v5232
      %v5234 = vpop.xlane.xlu0 %5233
      %v5235 = vsel %vm4865, %v4860, -inf
      %5236 = vmax.xlane.f32.xlu0 %v5235
      %v5237 = vpop.xlane.xlu0 %5236
      %v5238 = vsel %vm4865, %v4861, -inf
      %5239 = vmax.xlane.f32.xlu0 %v5238
      %v5240 = vpop.xlane.xlu0 %5239
      %v5241 = vsel %vm4865, %v4862, -inf
      %5242 = vmax.xlane.f32.xlu0 %v5241
      %v5243 = vpop.xlane.xlu0 %5242
      %v5244 = vsel %vm4865, %v4863, -inf
      %5245 = vmax.xlane.f32.xlu0 %v5244
      %v5246 = vpop.xlane.xlu0 %5245
      %v5247 = vsel %vm4865, %v4864, -inf
      %5248 = vmax.xlane.f32.xlu0 %v5247
      %v5249 = vpop.xlane.xlu0 %5248
      %vm5250 = vcmask 7168
      %5251 = vst.msk [vmem:[%s364] sm:$0xff] %vm5250, %v4868
      %5252 = vst.msk [vmem:[%s364 + $0x8] sm:$0xff] %vm5250, %v4871
      %5253 = vst.msk [vmem:[%s364 + $0x10] sm:$0xff] %vm5250, %v4874
      %5254 = vst.msk [vmem:[%s364 + $0x18] sm:$0xff] %vm5250, %v4877
      %5255 = vst.msk [vmem:[%s364 + $0x20] sm:$0xff] %vm5250, %v4880
      %5256 = vst.msk [vmem:[%s364 + $0x28] sm:$0xff] %vm5250, %v4883
      %5257 = vst.msk [vmem:[%s364 + $0x30] sm:$0xff] %vm5250, %v4886
      %5258 = vst.msk [vmem:[%s364 + $0x38] sm:$0xff] %vm5250, %v4889
      %5259 = vst.msk [vmem:[%s364 + $0x40] sm:$0xff] %vm5250, %v4892
      %5260 = vst.msk [vmem:[%s364 + $0x48] sm:$0xff] %vm5250, %v4895
      %5261 = vst.msk [vmem:[%s364 + $0x50] sm:$0xff] %vm5250, %v4898
      %5262 = vst.msk [vmem:[%s364 + $0x58] sm:$0xff] %vm5250, %v4901
      %5263 = vst.msk [vmem:[%s364 + $0x60] sm:$0xff] %vm5250, %v4904
      %5264 = vst.msk [vmem:[%s364 + $0x68] sm:$0xff] %vm5250, %v4907
      %5265 = vst.msk [vmem:[%s364 + $0x70] sm:$0xff] %vm5250, %v4910
      %5266 = vst.msk [vmem:[%s364 + $0x78] sm:$0xff] %vm5250, %v4913
      %5267 = vst.msk [vmem:[%s364 + $0x80] sm:$0xff] %vm5250, %v4916
      %5268 = vst.msk [vmem:[%s364 + $0x88] sm:$0xff] %vm5250, %v4919
      %5269 = vst.msk [vmem:[%s364 + $0x90] sm:$0xff] %vm5250, %v4922
      %5270 = vst.msk [vmem:[%s364 + $0x98] sm:$0xff] %vm5250, %v4925
      %5271 = vst.msk [vmem:[%s364 + $0xa0] sm:$0xff] %vm5250, %v4928
      %5272 = vst.msk [vmem:[%s364 + $0xa8] sm:$0xff] %vm5250, %v4931
      %5273 = vst.msk [vmem:[%s364 + $0xb0] sm:$0xff] %vm5250, %v4934
      %5274 = vst.msk [vmem:[%s364 + $0xb8] sm:$0xff] %vm5250, %v4937
      %5275 = vst.msk [vmem:[%s364 + $0xc0] sm:$0xff] %vm5250, %v4940
      %5276 = vst.msk [vmem:[%s364 + $0xc8] sm:$0xff] %vm5250, %v4943
      %5277 = vst.msk [vmem:[%s364 + $0xd0] sm:$0xff] %vm5250, %v4946
      %5278 = vst.msk [vmem:[%s364 + $0xd8] sm:$0xff] %vm5250, %v4949
      %5279 = vst.msk [vmem:[%s364 + $0xe0] sm:$0xff] %vm5250, %v4952
      %5280 = vst.msk [vmem:[%s364 + $0xe8] sm:$0xff] %vm5250, %v4955
      %5281 = vst.msk [vmem:[%s364 + $0xf0] sm:$0xff] %vm5250, %v4958
      %5282 = vst.msk [vmem:[%s364 + $0xf8] sm:$0xff] %vm5250, %v4961
      %5283 = vst.msk [vmem:[%s364 + $0x100] sm:$0xff] %vm5250, %v4964
      %5284 = vst.msk [vmem:[%s364 + $0x108] sm:$0xff] %vm5250, %v4967
      %5285 = vst.msk [vmem:[%s364 + $0x110] sm:$0xff] %vm5250, %v4970
      %5286 = vst.msk [vmem:[%s364 + $0x118] sm:$0xff] %vm5250, %v4973
      %5287 = vst.msk [vmem:[%s364 + $0x120] sm:$0xff] %vm5250, %v4976
      %5288 = vst.msk [vmem:[%s364 + $0x128] sm:$0xff] %vm5250, %v4979
      %5289 = vst.msk [vmem:[%s364 + $0x130] sm:$0xff] %vm5250, %v4982
      %5290 = vst.msk [vmem:[%s364 + $0x138] sm:$0xff] %vm5250, %v4985
      %5291 = vst.msk [vmem:[%s364 + $0x140] sm:$0xff] %vm5250, %v4988
      %5292 = vst.msk [vmem:[%s364 + $0x148] sm:$0xff] %vm5250, %v4991
      %5293 = vst.msk [vmem:[%s364 + $0x150] sm:$0xff] %vm5250, %v4994
      %5294 = vst.msk [vmem:[%s364 + $0x158] sm:$0xff] %vm5250, %v4997
      %5295 = vst.msk [vmem:[%s364 + $0x160] sm:$0xff] %vm5250, %v5000
      %5296 = vst.msk [vmem:[%s364 + $0x168] sm:$0xff] %vm5250, %v5003
      %5297 = vst.msk [vmem:[%s364 + $0x170] sm:$0xff] %vm5250, %v5006
      %5298 = vst.msk [vmem:[%s364 + $0x178] sm:$0xff] %vm5250, %v5009
      %5299 = vst.msk [vmem:[%s364 + $0x180] sm:$0xff] %vm5250, %v5012
      %5300 = vst.msk [vmem:[%s364 + $0x188] sm:$0xff] %vm5250, %v5015
      %5301 = vst.msk [vmem:[%s364 + $0x190] sm:$0xff] %vm5250, %v5018
      %5302 = vst.msk [vmem:[%s364 + $0x198] sm:$0xff] %vm5250, %v5021
      %5303 = vst.msk [vmem:[%s364 + $0x1a0] sm:$0xff] %vm5250, %v5024
      %5304 = vst.msk [vmem:[%s364 + $0x1a8] sm:$0xff] %vm5250, %v5027
      %5305 = vst.msk [vmem:[%s364 + $0x1b0] sm:$0xff] %vm5250, %v5030
      %5306 = vst.msk [vmem:[%s364 + $0x1b8] sm:$0xff] %vm5250, %v5033
      %5307 = vst.msk [vmem:[%s364 + $0x1c0] sm:$0xff] %vm5250, %v5036
      %5308 = vst.msk [vmem:[%s364 + $0x1c8] sm:$0xff] %vm5250, %v5039
      %5309 = vst.msk [vmem:[%s364 + $0x1d0] sm:$0xff] %vm5250, %v5042
      %5310 = vst.msk [vmem:[%s364 + $0x1d8] sm:$0xff] %vm5250, %v5045
      %5311 = vst.msk [vmem:[%s364 + $0x1e0] sm:$0xff] %vm5250, %v5048
      %5312 = vst.msk [vmem:[%s364 + $0x1e8] sm:$0xff] %vm5250, %v5051
      %5313 = vst.msk [vmem:[%s364 + $0x1f0] sm:$0xff] %vm5250, %v5054
      %5314 = vst.msk [vmem:[%s364 + $0x1f8] sm:$0xff] %vm5250, %v5057
      %5315 = vst.msk [vmem:[%s364 + $0x200] sm:$0xff] %vm5250, %v5060
      %5316 = vst.msk [vmem:[%s364 + $0x208] sm:$0xff] %vm5250, %v5063
      %5317 = vst.msk [vmem:[%s364 + $0x210] sm:$0xff] %vm5250, %v5066
      %5318 = vst.msk [vmem:[%s364 + $0x218] sm:$0xff] %vm5250, %v5069
      %5319 = vst.msk [vmem:[%s364 + $0x220] sm:$0xff] %vm5250, %v5072
      %5320 = vst.msk [vmem:[%s364 + $0x228] sm:$0xff] %vm5250, %v5075
      %5321 = vst.msk [vmem:[%s364 + $0x230] sm:$0xff] %vm5250, %v5078
      %5322 = vst.msk [vmem:[%s364 + $0x238] sm:$0xff] %vm5250, %v5081
      %5323 = vst.msk [vmem:[%s364 + $0x240] sm:$0xff] %vm5250, %v5084
      %5324 = vst.msk [vmem:[%s364 + $0x248] sm:$0xff] %vm5250, %v5087
      %5325 = vst.msk [vmem:[%s364 + $0x250] sm:$0xff] %vm5250, %v5090
      %5326 = vst.msk [vmem:[%s364 + $0x258] sm:$0xff] %vm5250, %v5093
      %5327 = vst.msk [vmem:[%s364 + $0x260] sm:$0xff] %vm5250, %v5096
      %5328 = vst.msk [vmem:[%s364 + $0x268] sm:$0xff] %vm5250, %v5099
      %5329 = vst.msk [vmem:[%s364 + $0x270] sm:$0xff] %vm5250, %v5102
      %5330 = vst.msk [vmem:[%s364 + $0x278] sm:$0xff] %vm5250, %v5105
      %5331 = vst.msk [vmem:[%s364 + $0x280] sm:$0xff] %vm5250, %v5108
      %5332 = vst.msk [vmem:[%s364 + $0x288] sm:$0xff] %vm5250, %v5111
      %5333 = vst.msk [vmem:[%s364 + $0x290] sm:$0xff] %vm5250, %v5114
      %5334 = vst.msk [vmem:[%s364 + $0x298] sm:$0xff] %vm5250, %v5117
      %5335 = vst.msk [vmem:[%s364 + $0x2a0] sm:$0xff] %vm5250, %v5120
      %5336 = vst.msk [vmem:[%s364 + $0x2a8] sm:$0xff] %vm5250, %v5123
      %5337 = vst.msk [vmem:[%s364 + $0x2b0] sm:$0xff] %vm5250, %v5126
      %5338 = vst.msk [vmem:[%s364 + $0x2b8] sm:$0xff] %vm5250, %v5129
      %5339 = vst.msk [vmem:[%s364 + $0x2c0] sm:$0xff] %vm5250, %v5132
      %5340 = vst.msk [vmem:[%s364 + $0x2c8] sm:$0xff] %vm5250, %v5135
      %5341 = vst.msk [vmem:[%s364 + $0x2d0] sm:$0xff] %vm5250, %v5138
      %5342 = vst.msk [vmem:[%s364 + $0x2d8] sm:$0xff] %vm5250, %v5141
      %5343 = vst.msk [vmem:[%s364 + $0x2e0] sm:$0xff] %vm5250, %v5144
      %5344 = vst.msk [vmem:[%s364 + $0x2e8] sm:$0xff] %vm5250, %v5147
      %5345 = vst.msk [vmem:[%s364 + $0x2f0] sm:$0xff] %vm5250, %v5150
      %5346 = vst.msk [vmem:[%s364 + $0x2f8] sm:$0xff] %vm5250, %v5153
      %5347 = vst.msk [vmem:[%s364 + $0x300] sm:$0xff] %vm5250, %v5156
      %5348 = vst.msk [vmem:[%s364 + $0x308] sm:$0xff] %vm5250, %v5159
      %5349 = vst.msk [vmem:[%s364 + $0x310] sm:$0xff] %vm5250, %v5162
      %5350 = vst.msk [vmem:[%s364 + $0x318] sm:$0xff] %vm5250, %v5165
      %5351 = vst.msk [vmem:[%s364 + $0x320] sm:$0xff] %vm5250, %v5168
      %5352 = vst.msk [vmem:[%s364 + $0x328] sm:$0xff] %vm5250, %v5171
      %5353 = vst.msk [vmem:[%s364 + $0x330] sm:$0xff] %vm5250, %v5174
      %5354 = vst.msk [vmem:[%s364 + $0x338] sm:$0xff] %vm5250, %v5177
      %5355 = vst.msk [vmem:[%s364 + $0x340] sm:$0xff] %vm5250, %v5180
      %5356 = vst.msk [vmem:[%s364 + $0x348] sm:$0xff] %vm5250, %v5183
      %5357 = vst.msk [vmem:[%s364 + $0x350] sm:$0xff] %vm5250, %v5186
      %5358 = vst.msk [vmem:[%s364 + $0x358] sm:$0xff] %vm5250, %v5189
      %5359 = vst.msk [vmem:[%s364 + $0x360] sm:$0xff] %vm5250, %v5192
      %5360 = vst.msk [vmem:[%s364 + $0x368] sm:$0xff] %vm5250, %v5195
      %5361 = vst.msk [vmem:[%s364 + $0x370] sm:$0xff] %vm5250, %v5198
      %5362 = vst.msk [vmem:[%s364 + $0x378] sm:$0xff] %vm5250, %v5201
      %5363 = vst.msk [vmem:[%s364 + $0x380] sm:$0xff] %vm5250, %v5204
      %5364 = vst.msk [vmem:[%s364 + $0x388] sm:$0xff] %vm5250, %v5207
      %5365 = vst.msk [vmem:[%s364 + $0x390] sm:$0xff] %vm5250, %v5210
      %5366 = vst.msk [vmem:[%s364 + $0x398] sm:$0xff] %vm5250, %v5213
      %5367 = vst.msk [vmem:[%s364 + $0x3a0] sm:$0xff] %vm5250, %v5216
      %5368 = vst.msk [vmem:[%s364 + $0x3a8] sm:$0xff] %vm5250, %v5219
      %5369 = vst.msk [vmem:[%s364 + $0x3b0] sm:$0xff] %vm5250, %v5222
      %5370 = vst.msk [vmem:[%s364 + $0x3b8] sm:$0xff] %vm5250, %v5225
      %5371 = vst.msk [vmem:[%s364 + $0x3c0] sm:$0xff] %vm5250, %v5228
      %5372 = vst.msk [vmem:[%s364 + $0x3c8] sm:$0xff] %vm5250, %v5231
      %5373 = vst.msk [vmem:[%s364 + $0x3d0] sm:$0xff] %vm5250, %v5234
      %5374 = vst.msk [vmem:[%s364 + $0x3d8] sm:$0xff] %vm5250, %v5237
      %5375 = vst.msk [vmem:[%s364 + $0x3e0] sm:$0xff] %vm5250, %v5240
      %5376 = vst.msk [vmem:[%s364 + $0x3e8] sm:$0xff] %vm5250, %v5243
      %5377 = vst.msk [vmem:[%s364 + $0x3f0] sm:$0xff] %vm5250, %v5246
      %5378 = vst.msk [vmem:[%s364 + $0x3f8] sm:$0xff] %vm5250, %v5249
      %v5379 = vlaneseq
      %v5380 = vand.u32 %v5379, 127
      %vm5381 = vcmp.eq.f32.partialorder %v4737, %v4868
      %vm5382 = vcmp.eq.f32.partialorder %v4738, %v4871
      %vm5383 = vcmp.eq.f32.partialorder %v4739, %v4874
      %vm5384 = vcmp.eq.f32.partialorder %v4740, %v4877
      %vm5385 = vcmp.eq.f32.partialorder %v4741, %v4880
      %vm5386 = vcmp.eq.f32.partialorder %v4742, %v4883
      %vm5387 = vcmp.eq.f32.partialorder %v4743, %v4886
      %vm5388 = vcmp.eq.f32.partialorder %v4744, %v4889
      %vm5389 = vcmp.eq.f32.partialorder %v4745, %v4892
      %vm5390 = vcmp.eq.f32.partialorder %v4746, %v4895
      %vm5391 = vcmp.eq.f32.partialorder %v4747, %v4898
      %vm5392 = vcmp.eq.f32.partialorder %v4748, %v4901
      %vm5393 = vcmp.eq.f32.partialorder %v4749, %v4904
      %vm5394 = vcmp.eq.f32.partialorder %v4750, %v4907
      %vm5395 = vcmp.eq.f32.partialorder %v4751, %v4910
      %vm5396 = vcmp.eq.f32.partialorder %v4752, %v4913
      %vm5397 = vcmp.eq.f32.partialorder %v4753, %v4916
      %vm5398 = vcmp.eq.f32.partialorder %v4754, %v4919
      %vm5399 = vcmp.eq.f32.partialorder %v4755, %v4922
      %vm5400 = vcmp.eq.f32.partialorder %v4756, %v4925
      %vm5401 = vcmp.eq.f32.partialorder %v4757, %v4928
      %vm5402 = vcmp.eq.f32.partialorder %v4758, %v4931
      %vm5403 = vcmp.eq.f32.partialorder %v4759, %v4934
      %vm5404 = vcmp.eq.f32.partialorder %v4760, %v4937
      %vm5405 = vcmp.eq.f32.partialorder %v4761, %v4940
      %vm5406 = vcmp.eq.f32.partialorder %v4762, %v4943
      %vm5407 = vcmp.eq.f32.partialorder %v4763, %v4946
      %vm5408 = vcmp.eq.f32.partialorder %v4764, %v4949
      %vm5409 = vcmp.eq.f32.partialorder %v4765, %v4952
      %vm5410 = vcmp.eq.f32.partialorder %v4766, %v4955
      %vm5411 = vcmp.eq.f32.partialorder %v4767, %v4958
      %vm5412 = vcmp.eq.f32.partialorder %v4768, %v4961
      %vm5413 = vcmp.eq.f32.partialorder %v4769, %v4964
      %vm5414 = vcmp.eq.f32.partialorder %v4770, %v4967
      %vm5415 = vcmp.eq.f32.partialorder %v4771, %v4970
      %vm5416 = vcmp.eq.f32.partialorder %v4772, %v4973
      %vm5417 = vcmp.eq.f32.partialorder %v4773, %v4976
      %vm5418 = vcmp.eq.f32.partialorder %v4774, %v4979
      %vm5419 = vcmp.eq.f32.partialorder %v4775, %v4982
      %vm5420 = vcmp.eq.f32.partialorder %v4776, %v4985
      %vm5421 = vcmp.eq.f32.partialorder %v4777, %v4988
      %vm5422 = vcmp.eq.f32.partialorder %v4778, %v4991
      %vm5423 = vcmp.eq.f32.partialorder %v4779, %v4994
      %vm5424 = vcmp.eq.f32.partialorder %v4780, %v4997
      %vm5425 = vcmp.eq.f32.partialorder %v4781, %v5000
      %vm5426 = vcmp.eq.f32.partialorder %v4782, %v5003
      %vm5427 = vcmp.eq.f32.partialorder %v4783, %v5006
      %vm5428 = vcmp.eq.f32.partialorder %v4784, %v5009
      %vm5429 = vcmp.eq.f32.partialorder %v4785, %v5012
      %vm5430 = vcmp.eq.f32.partialorder %v4786, %v5015
      %vm5431 = vcmp.eq.f32.partialorder %v4787, %v5018
      %vm5432 = vcmp.eq.f32.partialorder %v4788, %v5021
      %vm5433 = vcmp.eq.f32.partialorder %v4789, %v5024
      %vm5434 = vcmp.eq.f32.partialorder %v4790, %v5027
      %vm5435 = vcmp.eq.f32.partialorder %v4791, %v5030
      %vm5436 = vcmp.eq.f32.partialorder %v4792, %v5033
      %vm5437 = vcmp.eq.f32.partialorder %v4793, %v5036
      %vm5438 = vcmp.eq.f32.partialorder %v4794, %v5039
      %vm5439 = vcmp.eq.f32.partialorder %v4795, %v5042
      %vm5440 = vcmp.eq.f32.partialorder %v4796, %v5045
      %vm5441 = vcmp.eq.f32.partialorder %v4797, %v5048
      %vm5442 = vcmp.eq.f32.partialorder %v4798, %v5051
      %vm5443 = vcmp.eq.f32.partialorder %v4799, %v5054
      %vm5444 = vcmp.eq.f32.partialorder %v4800, %v5057
      %vm5445 = vcmp.eq.f32.partialorder %v4801, %v5060
      %vm5446 = vcmp.eq.f32.partialorder %v4802, %v5063
      %vm5447 = vcmp.eq.f32.partialorder %v4803, %v5066
      %vm5448 = vcmp.eq.f32.partialorder %v4804, %v5069
      %vm5449 = vcmp.eq.f32.partialorder %v4805, %v5072
      %vm5450 = vcmp.eq.f32.partialorder %v4806, %v5075
      %vm5451 = vcmp.eq.f32.partialorder %v4807, %v5078
      %vm5452 = vcmp.eq.f32.partialorder %v4808, %v5081
      %vm5453 = vcmp.eq.f32.partialorder %v4809, %v5084
      %vm5454 = vcmp.eq.f32.partialorder %v4810, %v5087
      %vm5455 = vcmp.eq.f32.partialorder %v4811, %v5090
      %vm5456 = vcmp.eq.f32.partialorder %v4812, %v5093
      %vm5457 = vcmp.eq.f32.partialorder %v4813, %v5096
      %vm5458 = vcmp.eq.f32.partialorder %v4814, %v5099
      %vm5459 = vcmp.eq.f32.partialorder %v4815, %v5102
      %vm5460 = vcmp.eq.f32.partialorder %v4816, %v5105
      %vm5461 = vcmp.eq.f32.partialorder %v4817, %v5108
      %vm5462 = vcmp.eq.f32.partialorder %v4818, %v5111
      %vm5463 = vcmp.eq.f32.partialorder %v4819, %v5114
      %vm5464 = vcmp.eq.f32.partialorder %v4820, %v5117
      %vm5465 = vcmp.eq.f32.partialorder %v4821, %v5120
      %vm5466 = vcmp.eq.f32.partialorder %v4822, %v5123
      %vm5467 = vcmp.eq.f32.partialorder %v4823, %v5126
      %vm5468 = vcmp.eq.f32.partialorder %v4824, %v5129
      %vm5469 = vcmp.eq.f32.partialorder %v4825, %v5132
      %vm5470 = vcmp.eq.f32.partialorder %v4826, %v5135
      %vm5471 = vcmp.eq.f32.partialorder %v4827, %v5138
      %vm5472 = vcmp.eq.f32.partialorder %v4828, %v5141
      %vm5473 = vcmp.eq.f32.partialorder %v4829, %v5144
      %vm5474 = vcmp.eq.f32.partialorder %v4830, %v5147
      %vm5475 = vcmp.eq.f32.partialorder %v4831, %v5150
      %vm5476 = vcmp.eq.f32.partialorder %v4832, %v5153
      %vm5477 = vcmp.eq.f32.partialorder %v4833, %v5156
      %vm5478 = vcmp.eq.f32.partialorder %v4834, %v5159
      %vm5479 = vcmp.eq.f32.partialorder %v4835, %v5162
      %vm5480 = vcmp.eq.f32.partialorder %v4836, %v5165
      %vm5481 = vcmp.eq.f32.partialorder %v4837, %v5168
      %vm5482 = vcmp.eq.f32.partialorder %v4838, %v5171
      %vm5483 = vcmp.eq.f32.partialorder %v4839, %v5174
      %vm5484 = vcmp.eq.f32.partialorder %v4840, %v5177
      %vm5485 = vcmp.eq.f32.partialorder %v4841, %v5180
      %vm5486 = vcmp.eq.f32.partialorder %v4842, %v5183
      %vm5487 = vcmp.eq.f32.partialorder %v4843, %v5186
      %vm5488 = vcmp.eq.f32.partialorder %v4844, %v5189
      %vm5489 = vcmp.eq.f32.partialorder %v4845, %v5192
      %vm5490 = vcmp.eq.f32.partialorder %v4846, %v5195
      %vm5491 = vcmp.eq.f32.partialorder %v4847, %v5198
      %vm5492 = vcmp.eq.f32.partialorder %v4848, %v5201
      %vm5493 = vcmp.eq.f32.partialorder %v4849, %v5204
      %vm5494 = vcmp.eq.f32.partialorder %v4850, %v5207
      %vm5495 = vcmp.eq.f32.partialorder %v4851, %v5210
      %vm5496 = vcmp.eq.f32.partialorder %v4852, %v5213
      %vm5497 = vcmp.eq.f32.partialorder %v4853, %v5216
      %vm5498 = vcmp.eq.f32.partialorder %v4854, %v5219
      %vm5499 = vcmp.eq.f32.partialorder %v4855, %v5222
      %vm5500 = vcmp.eq.f32.partialorder %v4856, %v5225
      %vm5501 = vcmp.eq.f32.partialorder %v4857, %v5228
      %vm5502 = vcmp.eq.f32.partialorder %v4858, %v5231
      %vm5503 = vcmp.eq.f32.partialorder %v4859, %v5234
      %vm5504 = vcmp.eq.f32.partialorder %v4860, %v5237
      %vm5505 = vcmp.eq.f32.partialorder %v4861, %v5240
      %vm5506 = vcmp.eq.f32.partialorder %v4862, %v5243
      %vm5507 = vcmp.eq.f32.partialorder %v4863, %v5246
      %vm5508 = vcmp.eq.f32.partialorder %v4864, %v5249
      %v5509 = vsel %vm5381, %v5380, 8
      %v5510 = vsel %vm5382, %v5380, 8
      %v5511 = vsel %vm5383, %v5380, 8
      %v5512 = vsel %vm5384, %v5380, 8
      %v5513 = vsel %vm5385, %v5380, 8
      %v5514 = vsel %vm5386, %v5380, 8
      %v5515 = vsel %vm5387, %v5380, 8
      %v5516 = vsel %vm5388, %v5380, 8
      %v5517 = vsel %vm5389, %v5380, 8
      %v5518 = vsel %vm5390, %v5380, 8
      %v5519 = vsel %vm5391, %v5380, 8
      %v5520 = vsel %vm5392, %v5380, 8
      %v5521 = vsel %vm5393, %v5380, 8
      %v5522 = vsel %vm5394, %v5380, 8
      %v5523 = vsel %vm5395, %v5380, 8
      %v5524 = vsel %vm5396, %v5380, 8
      %v5525 = vsel %vm5397, %v5380, 8
      %v5526 = vsel %vm5398, %v5380, 8
      %v5527 = vsel %vm5399, %v5380, 8
      %v5528 = vsel %vm5400, %v5380, 8
      %v5529 = vsel %vm5401, %v5380, 8
      %v5530 = vsel %vm5402, %v5380, 8
      %v5531 = vsel %vm5403, %v5380, 8
      %v5532 = vsel %vm5404, %v5380, 8
      %v5533 = vsel %vm5405, %v5380, 8
      %v5534 = vsel %vm5406, %v5380, 8
      %v5535 = vsel %vm5407, %v5380, 8
      %v5536 = vsel %vm5408, %v5380, 8
      %v5537 = vsel %vm5409, %v5380, 8
      %v5538 = vsel %vm5410, %v5380, 8
      %v5539 = vsel %vm5411, %v5380, 8
      %v5540 = vsel %vm5412, %v5380, 8
      %v5541 = vsel %vm5413, %v5380, 8
      %v5542 = vsel %vm5414, %v5380, 8
      %v5543 = vsel %vm5415, %v5380, 8
      %v5544 = vsel %vm5416, %v5380, 8
      %v5545 = vsel %vm5417, %v5380, 8
      %v5546 = vsel %vm5418, %v5380, 8
      %v5547 = vsel %vm5419, %v5380, 8
      %v5548 = vsel %vm5420, %v5380, 8
      %v5549 = vsel %vm5421, %v5380, 8
      %v5550 = vsel %vm5422, %v5380, 8
      %v5551 = vsel %vm5423, %v5380, 8
      %v5552 = vsel %vm5424, %v5380, 8
      %v5553 = vsel %vm5425, %v5380, 8
      %v5554 = vsel %vm5426, %v5380, 8
      %v5555 = vsel %vm5427, %v5380, 8
      %v5556 = vsel %vm5428, %v5380, 8
      %v5557 = vsel %vm5429, %v5380, 8
      %v5558 = vsel %vm5430, %v5380, 8
      %v5559 = vsel %vm5431, %v5380, 8
      %v5560 = vsel %vm5432, %v5380, 8
      %v5561 = vsel %vm5433, %v5380, 8
      %v5562 = vsel %vm5434, %v5380, 8
      %v5563 = vsel %vm5435, %v5380, 8
      %v5564 = vsel %vm5436, %v5380, 8
      %v5565 = vsel %vm5437, %v5380, 8
      %v5566 = vsel %vm5438, %v5380, 8
      %v5567 = vsel %vm5439, %v5380, 8
      %v5568 = vsel %vm5440, %v5380, 8
      %v5569 = vsel %vm5441, %v5380, 8
      %v5570 = vsel %vm5442, %v5380, 8
      %v5571 = vsel %vm5443, %v5380, 8
      %v5572 = vsel %vm5444, %v5380, 8
      %v5573 = vsel %vm5445, %v5380, 8
      %v5574 = vsel %vm5446, %v5380, 8
      %v5575 = vsel %vm5447, %v5380, 8
      %v5576 = vsel %vm5448, %v5380, 8
      %v5577 = vsel %vm5449, %v5380, 8
      %v5578 = vsel %vm5450, %v5380, 8
      %v5579 = vsel %vm5451, %v5380, 8
      %v5580 = vsel %vm5452, %v5380, 8
      %v5581 = vsel %vm5453, %v5380, 8
      %v5582 = vsel %vm5454, %v5380, 8
      %v5583 = vsel %vm5455, %v5380, 8
      %v5584 = vsel %vm5456, %v5380, 8
      %v5585 = vsel %vm5457, %v5380, 8
      %v5586 = vsel %vm5458, %v5380, 8
      %v5587 = vsel %vm5459, %v5380, 8
      %v5588 = vsel %vm5460, %v5380, 8
      %v5589 = vsel %vm5461, %v5380, 8
      %v5590 = vsel %vm5462, %v5380, 8
      %v5591 = vsel %vm5463, %v5380, 8
      %v5592 = vsel %vm5464, %v5380, 8
      %v5593 = vsel %vm5465, %v5380, 8
      %v5594 = vsel %vm5466, %v5380, 8
      %v5595 = vsel %vm5467, %v5380, 8
      %v5596 = vsel %vm5468, %v5380, 8
      %v5597 = vsel %vm5469, %v5380, 8
      %v5598 = vsel %vm5470, %v5380, 8
      %v5599 = vsel %vm5471, %v5380, 8
      %v5600 = vsel %vm5472, %v5380, 8
      %v5601 = vsel %vm5473, %v5380, 8
      %v5602 = vsel %vm5474, %v5380, 8
      %v5603 = vsel %vm5475, %v5380, 8
      %v5604 = vsel %vm5476, %v5380, 8
      %v5605 = vsel %vm5477, %v5380, 8
      %v5606 = vsel %vm5478, %v5380, 8
      %v5607 = vsel %vm5479, %v5380, 8
      %v5608 = vsel %vm5480, %v5380, 8
      %v5609 = vsel %vm5481, %v5380, 8
      %v5610 = vsel %vm5482, %v5380, 8
      %v5611 = vsel %vm5483, %v5380, 8
      %v5612 = vsel %vm5484, %v5380, 8
      %v5613 = vsel %vm5485, %v5380, 8
      %v5614 = vsel %vm5486, %v5380, 8
      %v5615 = vsel %vm5487, %v5380, 8
      %v5616 = vsel %vm5488, %v5380, 8
      %v5617 = vsel %vm5489, %v5380, 8
      %v5618 = vsel %vm5490, %v5380, 8
      %v5619 = vsel %vm5491, %v5380, 8
      %v5620 = vsel %vm5492, %v5380, 8
      %v5621 = vsel %vm5493, %v5380, 8
      %v5622 = vsel %vm5494, %v5380, 8
      %v5623 = vsel %vm5495, %v5380, 8
      %v5624 = vsel %vm5496, %v5380, 8
      %v5625 = vsel %vm5497, %v5380, 8
      %v5626 = vsel %vm5498, %v5380, 8
      %v5627 = vsel %vm5499, %v5380, 8
      %v5628 = vsel %vm5500, %v5380, 8
      %v5629 = vsel %vm5501, %v5380, 8
      %v5630 = vsel %vm5502, %v5380, 8
      %v5631 = vsel %vm5503, %v5380, 8
      %v5632 = vsel %vm5504, %v5380, 8
      %v5633 = vsel %vm5505, %v5380, 8
      %v5634 = vsel %vm5506, %v5380, 8
      %v5635 = vsel %vm5507, %v5380, 8
      %v5636 = vsel %vm5508, %v5380, 8
      %v5637 = vsel %vm4865, %v5509, 2147483647
      %v5638 = vand.u32 %v5637, 65535
      %v5639 = vshra.s32 %v5637, 16
      %v5640 = vcvt.s32.f32 %v5638
      %v5641 = vcvt.s32.f32 %v5639
      %5642 = vmin.xlane.f32.xlu0 %v5641
      %v5643 = vpop.xlane.xlu0 %5642
      %vm5644 = vcmp.eq.f32.partialorder %v5641, %v5643
      %v5645 = vsel %vm5644, %v5640, inf
      %5646 = vmin.xlane.f32.xlu0 %v5645
      %v5647 = vpop.xlane.xlu0 %5646
      %v5648 = vcvt.f32.s32 %v5647
      %v5649 = vcvt.f32.s32 %v5643
      %v5650 = vshll.u32 %v5649, 16
      %v5651 = vadd.s32 %v5650, %v5648
      %v5652 = vsel %vm4865, %v5510, 2147483647
      %v5653 = vand.u32 %v5652, 65535
      %v5654 = vshra.s32 %v5652, 16
      %v5655 = vcvt.s32.f32 %v5653
      %v5656 = vcvt.s32.f32 %v5654
      %5657 = vmin.xlane.f32.xlu0 %v5656
      %v5658 = vpop.xlane.xlu0 %5657
      %vm5659 = vcmp.eq.f32.partialorder %v5656, %v5658
      %v5660 = vsel %vm5659, %v5655, inf
      %5661 = vmin.xlane.f32.xlu0 %v5660
      %v5662 = vpop.xlane.xlu0 %5661
      %v5663 = vcvt.f32.s32 %v5662
      %v5664 = vcvt.f32.s32 %v5658
      %v5665 = vshll.u32 %v5664, 16
      %v5666 = vadd.s32 %v5665, %v5663
      %v5667 = vsel %vm4865, %v5511, 2147483647
      %v5668 = vand.u32 %v5667, 65535
      %v5669 = vshra.s32 %v5667, 16
      %v5670 = vcvt.s32.f32 %v5668
      %v5671 = vcvt.s32.f32 %v5669
      %5672 = vmin.xlane.f32.xlu0 %v5671
      %v5673 = vpop.xlane.xlu0 %5672
      %vm5674 = vcmp.eq.f32.partialorder %v5671, %v5673
      %v5675 = vsel %vm5674, %v5670, inf
      %5676 = vmin.xlane.f32.xlu0 %v5675
      %v5677 = vpop.xlane.xlu0 %5676
      %v5678 = vcvt.f32.s32 %v5677
      %v5679 = vcvt.f32.s32 %v5673
      %v5680 = vshll.u32 %v5679, 16
      %v5681 = vadd.s32 %v5680, %v5678
      %v5682 = vsel %vm4865, %v5512, 2147483647
      %v5683 = vand.u32 %v5682, 65535
      %v5684 = vshra.s32 %v5682, 16
      %v5685 = vcvt.s32.f32 %v5683
      %v5686 = vcvt.s32.f32 %v5684
      %5687 = vmin.xlane.f32.xlu0 %v5686
      %v5688 = vpop.xlane.xlu0 %5687
      %vm5689 = vcmp.eq.f32.partialorder %v5686, %v5688
      %v5690 = vsel %vm5689, %v5685, inf
      %5691 = vmin.xlane.f32.xlu0 %v5690
      %v5692 = vpop.xlane.xlu0 %5691
      %v5693 = vcvt.f32.s32 %v5692
      %v5694 = vcvt.f32.s32 %v5688
      %v5695 = vshll.u32 %v5694, 16
      %v5696 = vadd.s32 %v5695, %v5693
      %v5697 = vsel %vm4865, %v5513, 2147483647
      %v5698 = vand.u32 %v5697, 65535
      %v5699 = vshra.s32 %v5697, 16
      %v5700 = vcvt.s32.f32 %v5698
      %v5701 = vcvt.s32.f32 %v5699
      %5702 = vmin.xlane.f32.xlu0 %v5701
      %v5703 = vpop.xlane.xlu0 %5702
      %vm5704 = vcmp.eq.f32.partialorder %v5701, %v5703
      %v5705 = vsel %vm5704, %v5700, inf
      %5706 = vmin.xlane.f32.xlu0 %v5705
      %v5707 = vpop.xlane.xlu0 %5706
      %v5708 = vcvt.f32.s32 %v5707
      %v5709 = vcvt.f32.s32 %v5703
      %v5710 = vshll.u32 %v5709, 16
      %v5711 = vadd.s32 %v5710, %v5708
      %v5712 = vsel %vm4865, %v5514, 2147483647
      %v5713 = vand.u32 %v5712, 65535
      %v5714 = vshra.s32 %v5712, 16
      %v5715 = vcvt.s32.f32 %v5713
      %v5716 = vcvt.s32.f32 %v5714
      %5717 = vmin.xlane.f32.xlu0 %v5716
      %v5718 = vpop.xlane.xlu0 %5717
      %vm5719 = vcmp.eq.f32.partialorder %v5716, %v5718
      %v5720 = vsel %vm5719, %v5715, inf
      %5721 = vmin.xlane.f32.xlu0 %v5720
      %v5722 = vpop.xlane.xlu0 %5721
      %v5723 = vcvt.f32.s32 %v5722
      %v5724 = vcvt.f32.s32 %v5718
      %v5725 = vshll.u32 %v5724, 16
      %v5726 = vadd.s32 %v5725, %v5723
      %v5727 = vsel %vm4865, %v5515, 2147483647
      %v5728 = vand.u32 %v5727, 65535
      %v5729 = vshra.s32 %v5727, 16
      %v5730 = vcvt.s32.f32 %v5728
      %v5731 = vcvt.s32.f32 %v5729
      %5732 = vmin.xlane.f32.xlu0 %v5731
      %v5733 = vpop.xlane.xlu0 %5732
      %vm5734 = vcmp.eq.f32.partialorder %v5731, %v5733
      %v5735 = vsel %vm5734, %v5730, inf
      %5736 = vmin.xlane.f32.xlu0 %v5735
      %v5737 = vpop.xlane.xlu0 %5736
      %v5738 = vcvt.f32.s32 %v5737
      %v5739 = vcvt.f32.s32 %v5733
      %v5740 = vshll.u32 %v5739, 16
      %v5741 = vadd.s32 %v5740, %v5738
      %v5742 = vsel %vm4865, %v5516, 2147483647
      %v5743 = vand.u32 %v5742, 65535
      %v5744 = vshra.s32 %v5742, 16
      %v5745 = vcvt.s32.f32 %v5743
      %v5746 = vcvt.s32.f32 %v5744
      %5747 = vmin.xlane.f32.xlu0 %v5746
      %v5748 = vpop.xlane.xlu0 %5747
      %vm5749 = vcmp.eq.f32.partialorder %v5746, %v5748
      %v5750 = vsel %vm5749, %v5745, inf
      %5751 = vmin.xlane.f32.xlu0 %v5750
      %v5752 = vpop.xlane.xlu0 %5751
      %v5753 = vcvt.f32.s32 %v5752
      %v5754 = vcvt.f32.s32 %v5748
      %v5755 = vshll.u32 %v5754, 16
      %v5756 = vadd.s32 %v5755, %v5753
      %v5757 = vsel %vm4865, %v5517, 2147483647
      %v5758 = vand.u32 %v5757, 65535
      %v5759 = vshra.s32 %v5757, 16
      %v5760 = vcvt.s32.f32 %v5758
      %v5761 = vcvt.s32.f32 %v5759
      %5762 = vmin.xlane.f32.xlu0 %v5761
      %v5763 = vpop.xlane.xlu0 %5762
      %vm5764 = vcmp.eq.f32.partialorder %v5761, %v5763
      %v5765 = vsel %vm5764, %v5760, inf
      %5766 = vmin.xlane.f32.xlu0 %v5765
      %v5767 = vpop.xlane.xlu0 %5766
      %v5768 = vcvt.f32.s32 %v5767
      %v5769 = vcvt.f32.s32 %v5763
      %v5770 = vshll.u32 %v5769, 16
      %v5771 = vadd.s32 %v5770, %v5768
      %v5772 = vsel %vm4865, %v5518, 2147483647
      %v5773 = vand.u32 %v5772, 65535
      %v5774 = vshra.s32 %v5772, 16
      %v5775 = vcvt.s32.f32 %v5773
      %v5776 = vcvt.s32.f32 %v5774
      %5777 = vmin.xlane.f32.xlu0 %v5776
      %v5778 = vpop.xlane.xlu0 %5777
      %vm5779 = vcmp.eq.f32.partialorder %v5776, %v5778
      %v5780 = vsel %vm5779, %v5775, inf
      %5781 = vmin.xlane.f32.xlu0 %v5780
      %v5782 = vpop.xlane.xlu0 %5781
      %v5783 = vcvt.f32.s32 %v5782
      %v5784 = vcvt.f32.s32 %v5778
      %v5785 = vshll.u32 %v5784, 16
      %v5786 = vadd.s32 %v5785, %v5783
      %v5787 = vsel %vm4865, %v5519, 2147483647
      %v5788 = vand.u32 %v5787, 65535
      %v5789 = vshra.s32 %v5787, 16
      %v5790 = vcvt.s32.f32 %v5788
      %v5791 = vcvt.s32.f32 %v5789
      %5792 = vmin.xlane.f32.xlu0 %v5791
      %v5793 = vpop.xlane.xlu0 %5792
      %vm5794 = vcmp.eq.f32.partialorder %v5791, %v5793
      %v5795 = vsel %vm5794, %v5790, inf
      %5796 = vmin.xlane.f32.xlu0 %v5795
      %v5797 = vpop.xlane.xlu0 %5796
      %v5798 = vcvt.f32.s32 %v5797
      %v5799 = vcvt.f32.s32 %v5793
      %v5800 = vshll.u32 %v5799, 16
      %v5801 = vadd.s32 %v5800, %v5798
      %v5802 = vsel %vm4865, %v5520, 2147483647
      %v5803 = vand.u32 %v5802, 65535
      %v5804 = vshra.s32 %v5802, 16
      %v5805 = vcvt.s32.f32 %v5803
      %v5806 = vcvt.s32.f32 %v5804
      %5807 = vmin.xlane.f32.xlu0 %v5806
      %v5808 = vpop.xlane.xlu0 %5807
      %vm5809 = vcmp.eq.f32.partialorder %v5806, %v5808
      %v5810 = vsel %vm5809, %v5805, inf
      %5811 = vmin.xlane.f32.xlu0 %v5810
      %v5812 = vpop.xlane.xlu0 %5811
      %v5813 = vcvt.f32.s32 %v5812
      %v5814 = vcvt.f32.s32 %v5808
      %v5815 = vshll.u32 %v5814, 16
      %v5816 = vadd.s32 %v5815, %v5813
      %v5817 = vsel %vm4865, %v5521, 2147483647
      %v5818 = vand.u32 %v5817, 65535
      %v5819 = vshra.s32 %v5817, 16
      %v5820 = vcvt.s32.f32 %v5818
      %v5821 = vcvt.s32.f32 %v5819
      %5822 = vmin.xlane.f32.xlu0 %v5821
      %v5823 = vpop.xlane.xlu0 %5822
      %vm5824 = vcmp.eq.f32.partialorder %v5821, %v5823
      %v5825 = vsel %vm5824, %v5820, inf
      %5826 = vmin.xlane.f32.xlu0 %v5825
      %v5827 = vpop.xlane.xlu0 %5826
      %v5828 = vcvt.f32.s32 %v5827
      %v5829 = vcvt.f32.s32 %v5823
      %v5830 = vshll.u32 %v5829, 16
      %v5831 = vadd.s32 %v5830, %v5828
      %v5832 = vsel %vm4865, %v5522, 2147483647
      %v5833 = vand.u32 %v5832, 65535
      %v5834 = vshra.s32 %v5832, 16
      %v5835 = vcvt.s32.f32 %v5833
      %v5836 = vcvt.s32.f32 %v5834
      %5837 = vmin.xlane.f32.xlu0 %v5836
      %v5838 = vpop.xlane.xlu0 %5837
      %vm5839 = vcmp.eq.f32.partialorder %v5836, %v5838
      %v5840 = vsel %vm5839, %v5835, inf
      %5841 = vmin.xlane.f32.xlu0 %v5840
      %v5842 = vpop.xlane.xlu0 %5841
      %v5843 = vcvt.f32.s32 %v5842
      %v5844 = vcvt.f32.s32 %v5838
      %v5845 = vshll.u32 %v5844, 16
      %v5846 = vadd.s32 %v5845, %v5843
      %v5847 = vsel %vm4865, %v5523, 2147483647
      %v5848 = vand.u32 %v5847, 65535
      %v5849 = vshra.s32 %v5847, 16
      %v5850 = vcvt.s32.f32 %v5848
      %v5851 = vcvt.s32.f32 %v5849
      %5852 = vmin.xlane.f32.xlu0 %v5851
      %v5853 = vpop.xlane.xlu0 %5852
      %vm5854 = vcmp.eq.f32.partialorder %v5851, %v5853
      %v5855 = vsel %vm5854, %v5850, inf
      %5856 = vmin.xlane.f32.xlu0 %v5855
      %v5857 = vpop.xlane.xlu0 %5856
      %v5858 = vcvt.f32.s32 %v5857
      %v5859 = vcvt.f32.s32 %v5853
      %v5860 = vshll.u32 %v5859, 16
      %v5861 = vadd.s32 %v5860, %v5858
      %v5862 = vsel %vm4865, %v5524, 2147483647
      %v5863 = vand.u32 %v5862, 65535
      %v5864 = vshra.s32 %v5862, 16
      %v5865 = vcvt.s32.f32 %v5863
      %v5866 = vcvt.s32.f32 %v5864
      %5867 = vmin.xlane.f32.xlu0 %v5866
      %v5868 = vpop.xlane.xlu0 %5867
      %vm5869 = vcmp.eq.f32.partialorder %v5866, %v5868
      %v5870 = vsel %vm5869, %v5865, inf
      %5871 = vmin.xlane.f32.xlu0 %v5870
      %v5872 = vpop.xlane.xlu0 %5871
      %v5873 = vcvt.f32.s32 %v5872
      %v5874 = vcvt.f32.s32 %v5868
      %v5875 = vshll.u32 %v5874, 16
      %v5876 = vadd.s32 %v5875, %v5873
      %v5877 = vsel %vm4865, %v5525, 2147483647
      %v5878 = vand.u32 %v5877, 65535
      %v5879 = vshra.s32 %v5877, 16
      %v5880 = vcvt.s32.f32 %v5878
      %v5881 = vcvt.s32.f32 %v5879
      %5882 = vmin.xlane.f32.xlu0 %v5881
      %v5883 = vpop.xlane.xlu0 %5882
      %vm5884 = vcmp.eq.f32.partialorder %v5881, %v5883
      %v5885 = vsel %vm5884, %v5880, inf
      %5886 = vmin.xlane.f32.xlu0 %v5885
      %v5887 = vpop.xlane.xlu0 %5886
      %v5888 = vcvt.f32.s32 %v5887
      %v5889 = vcvt.f32.s32 %v5883
      %v5890 = vshll.u32 %v5889, 16
      %v5891 = vadd.s32 %v5890, %v5888
      %v5892 = vsel %vm4865, %v5526, 2147483647
      %v5893 = vand.u32 %v5892, 65535
      %v5894 = vshra.s32 %v5892, 16
      %v5895 = vcvt.s32.f32 %v5893
      %v5896 = vcvt.s32.f32 %v5894
      %5897 = vmin.xlane.f32.xlu0 %v5896
      %v5898 = vpop.xlane.xlu0 %5897
      %vm5899 = vcmp.eq.f32.partialorder %v5896, %v5898
      %v5900 = vsel %vm5899, %v5895, inf
      %5901 = vmin.xlane.f32.xlu0 %v5900
      %v5902 = vpop.xlane.xlu0 %5901
      %v5903 = vcvt.f32.s32 %v5902
      %v5904 = vcvt.f32.s32 %v5898
      %v5905 = vshll.u32 %v5904, 16
      %v5906 = vadd.s32 %v5905, %v5903
      %v5907 = vsel %vm4865, %v5527, 2147483647
      %v5908 = vand.u32 %v5907, 65535
      %v5909 = vshra.s32 %v5907, 16
      %v5910 = vcvt.s32.f32 %v5908
      %v5911 = vcvt.s32.f32 %v5909
      %5912 = vmin.xlane.f32.xlu0 %v5911
      %v5913 = vpop.xlane.xlu0 %5912
      %vm5914 = vcmp.eq.f32.partialorder %v5911, %v5913
      %v5915 = vsel %vm5914, %v5910, inf
      %5916 = vmin.xlane.f32.xlu0 %v5915
      %v5917 = vpop.xlane.xlu0 %5916
      %v5918 = vcvt.f32.s32 %v5917
      %v5919 = vcvt.f32.s32 %v5913
      %v5920 = vshll.u32 %v5919, 16
      %v5921 = vadd.s32 %v5920, %v5918
      %v5922 = vsel %vm4865, %v5528, 2147483647
      %v5923 = vand.u32 %v5922, 65535
      %v5924 = vshra.s32 %v5922, 16
      %v5925 = vcvt.s32.f32 %v5923
      %v5926 = vcvt.s32.f32 %v5924
      %5927 = vmin.xlane.f32.xlu0 %v5926
      %v5928 = vpop.xlane.xlu0 %5927
      %vm5929 = vcmp.eq.f32.partialorder %v5926, %v5928
      %v5930 = vsel %vm5929, %v5925, inf
      %5931 = vmin.xlane.f32.xlu0 %v5930
      %v5932 = vpop.xlane.xlu0 %5931
      %v5933 = vcvt.f32.s32 %v5932
      %v5934 = vcvt.f32.s32 %v5928
      %v5935 = vshll.u32 %v5934, 16
      %v5936 = vadd.s32 %v5935, %v5933
      %v5937 = vsel %vm4865, %v5529, 2147483647
      %v5938 = vand.u32 %v5937, 65535
      %v5939 = vshra.s32 %v5937, 16
      %v5940 = vcvt.s32.f32 %v5938
      %v5941 = vcvt.s32.f32 %v5939
      %5942 = vmin.xlane.f32.xlu0 %v5941
      %v5943 = vpop.xlane.xlu0 %5942
      %vm5944 = vcmp.eq.f32.partialorder %v5941, %v5943
      %v5945 = vsel %vm5944, %v5940, inf
      %5946 = vmin.xlane.f32.xlu0 %v5945
      %v5947 = vpop.xlane.xlu0 %5946
      %v5948 = vcvt.f32.s32 %v5947
      %v5949 = vcvt.f32.s32 %v5943
      %v5950 = vshll.u32 %v5949, 16
      %v5951 = vadd.s32 %v5950, %v5948
      %v5952 = vsel %vm4865, %v5530, 2147483647
      %v5953 = vand.u32 %v5952, 65535
      %v5954 = vshra.s32 %v5952, 16
      %v5955 = vcvt.s32.f32 %v5953
      %v5956 = vcvt.s32.f32 %v5954
      %5957 = vmin.xlane.f32.xlu0 %v5956
      %v5958 = vpop.xlane.xlu0 %5957
      %vm5959 = vcmp.eq.f32.partialorder %v5956, %v5958
      %v5960 = vsel %vm5959, %v5955, inf
      %5961 = vmin.xlane.f32.xlu0 %v5960
      %v5962 = vpop.xlane.xlu0 %5961
      %v5963 = vcvt.f32.s32 %v5962
      %v5964 = vcvt.f32.s32 %v5958
      %v5965 = vshll.u32 %v5964, 16
      %v5966 = vadd.s32 %v5965, %v5963
      %v5967 = vsel %vm4865, %v5531, 2147483647
      %v5968 = vand.u32 %v5967, 65535
      %v5969 = vshra.s32 %v5967, 16
      %v5970 = vcvt.s32.f32 %v5968
      %v5971 = vcvt.s32.f32 %v5969
      %5972 = vmin.xlane.f32.xlu0 %v5971
      %v5973 = vpop.xlane.xlu0 %5972
      %vm5974 = vcmp.eq.f32.partialorder %v5971, %v5973
      %v5975 = vsel %vm5974, %v5970, inf
      %5976 = vmin.xlane.f32.xlu0 %v5975
      %v5977 = vpop.xlane.xlu0 %5976
      %v5978 = vcvt.f32.s32 %v5977
      %v5979 = vcvt.f32.s32 %v5973
      %v5980 = vshll.u32 %v5979, 16
      %v5981 = vadd.s32 %v5980, %v5978
      %v5982 = vsel %vm4865, %v5532, 2147483647
      %v5983 = vand.u32 %v5982, 65535
      %v5984 = vshra.s32 %v5982, 16
      %v5985 = vcvt.s32.f32 %v5983
      %v5986 = vcvt.s32.f32 %v5984
      %5987 = vmin.xlane.f32.xlu0 %v5986
      %v5988 = vpop.xlane.xlu0 %5987
      %vm5989 = vcmp.eq.f32.partialorder %v5986, %v5988
      %v5990 = vsel %vm5989, %v5985, inf
      %5991 = vmin.xlane.f32.xlu0 %v5990
      %v5992 = vpop.xlane.xlu0 %5991
      %v5993 = vcvt.f32.s32 %v5992
      %v5994 = vcvt.f32.s32 %v5988
      %v5995 = vshll.u32 %v5994, 16
      %v5996 = vadd.s32 %v5995, %v5993
      %v5997 = vsel %vm4865, %v5533, 2147483647
      %v5998 = vand.u32 %v5997, 65535
      %v5999 = vshra.s32 %v5997, 16
      %v6000 = vcvt.s32.f32 %v5998
      %v6001 = vcvt.s32.f32 %v5999
      %6002 = vmin.xlane.f32.xlu0 %v6001
      %v6003 = vpop.xlane.xlu0 %6002
      %vm6004 = vcmp.eq.f32.partialorder %v6001, %v6003
      %v6005 = vsel %vm6004, %v6000, inf
      %6006 = vmin.xlane.f32.xlu0 %v6005
      %v6007 = vpop.xlane.xlu0 %6006
      %v6008 = vcvt.f32.s32 %v6007
      %v6009 = vcvt.f32.s32 %v6003
      %v6010 = vshll.u32 %v6009, 16
      %v6011 = vadd.s32 %v6010, %v6008
      %v6012 = vsel %vm4865, %v5534, 2147483647
      %v6013 = vand.u32 %v6012, 65535
      %v6014 = vshra.s32 %v6012, 16
      %v6015 = vcvt.s32.f32 %v6013
      %v6016 = vcvt.s32.f32 %v6014
      %6017 = vmin.xlane.f32.xlu0 %v6016
      %v6018 = vpop.xlane.xlu0 %6017
      %vm6019 = vcmp.eq.f32.partialorder %v6016, %v6018
      %v6020 = vsel %vm6019, %v6015, inf
      %6021 = vmin.xlane.f32.xlu0 %v6020
      %v6022 = vpop.xlane.xlu0 %6021
      %v6023 = vcvt.f32.s32 %v6022
      %v6024 = vcvt.f32.s32 %v6018
      %v6025 = vshll.u32 %v6024, 16
      %v6026 = vadd.s32 %v6025, %v6023
      %v6027 = vsel %vm4865, %v5535, 2147483647
      %v6028 = vand.u32 %v6027, 65535
      %v6029 = vshra.s32 %v6027, 16
      %v6030 = vcvt.s32.f32 %v6028
      %v6031 = vcvt.s32.f32 %v6029
      %6032 = vmin.xlane.f32.xlu0 %v6031
      %v6033 = vpop.xlane.xlu0 %6032
      %vm6034 = vcmp.eq.f32.partialorder %v6031, %v6033
      %v6035 = vsel %vm6034, %v6030, inf
      %6036 = vmin.xlane.f32.xlu0 %v6035
      %v6037 = vpop.xlane.xlu0 %6036
      %v6038 = vcvt.f32.s32 %v6037
      %v6039 = vcvt.f32.s32 %v6033
      %v6040 = vshll.u32 %v6039, 16
      %v6041 = vadd.s32 %v6040, %v6038
      %v6042 = vsel %vm4865, %v5536, 2147483647
      %v6043 = vand.u32 %v6042, 65535
      %v6044 = vshra.s32 %v6042, 16
      %v6045 = vcvt.s32.f32 %v6043
      %v6046 = vcvt.s32.f32 %v6044
      %6047 = vmin.xlane.f32.xlu0 %v6046
      %v6048 = vpop.xlane.xlu0 %6047
      %vm6049 = vcmp.eq.f32.partialorder %v6046, %v6048
      %v6050 = vsel %vm6049, %v6045, inf
      %6051 = vmin.xlane.f32.xlu0 %v6050
      %v6052 = vpop.xlane.xlu0 %6051
      %v6053 = vcvt.f32.s32 %v6052
      %v6054 = vcvt.f32.s32 %v6048
      %v6055 = vshll.u32 %v6054, 16
      %v6056 = vadd.s32 %v6055, %v6053
      %v6057 = vsel %vm4865, %v5537, 2147483647
      %v6058 = vand.u32 %v6057, 65535
      %v6059 = vshra.s32 %v6057, 16
      %v6060 = vcvt.s32.f32 %v6058
      %v6061 = vcvt.s32.f32 %v6059
      %6062 = vmin.xlane.f32.xlu0 %v6061
      %v6063 = vpop.xlane.xlu0 %6062
      %vm6064 = vcmp.eq.f32.partialorder %v6061, %v6063
      %v6065 = vsel %vm6064, %v6060, inf
      %6066 = vmin.xlane.f32.xlu0 %v6065
      %v6067 = vpop.xlane.xlu0 %6066
      %v6068 = vcvt.f32.s32 %v6067
      %v6069 = vcvt.f32.s32 %v6063
      %v6070 = vshll.u32 %v6069, 16
      %v6071 = vadd.s32 %v6070, %v6068
      %v6072 = vsel %vm4865, %v5538, 2147483647
      %v6073 = vand.u32 %v6072, 65535
      %v6074 = vshra.s32 %v6072, 16
      %v6075 = vcvt.s32.f32 %v6073
      %v6076 = vcvt.s32.f32 %v6074
      %6077 = vmin.xlane.f32.xlu0 %v6076
      %v6078 = vpop.xlane.xlu0 %6077
      %vm6079 = vcmp.eq.f32.partialorder %v6076, %v6078
      %v6080 = vsel %vm6079, %v6075, inf
      %6081 = vmin.xlane.f32.xlu0 %v6080
      %v6082 = vpop.xlane.xlu0 %6081
      %v6083 = vcvt.f32.s32 %v6082
      %v6084 = vcvt.f32.s32 %v6078
      %v6085 = vshll.u32 %v6084, 16
      %v6086 = vadd.s32 %v6085, %v6083
      %v6087 = vsel %vm4865, %v5539, 2147483647
      %v6088 = vand.u32 %v6087, 65535
      %v6089 = vshra.s32 %v6087, 16
      %v6090 = vcvt.s32.f32 %v6088
      %v6091 = vcvt.s32.f32 %v6089
      %6092 = vmin.xlane.f32.xlu0 %v6091
      %v6093 = vpop.xlane.xlu0 %6092
      %vm6094 = vcmp.eq.f32.partialorder %v6091, %v6093
      %v6095 = vsel %vm6094, %v6090, inf
      %6096 = vmin.xlane.f32.xlu0 %v6095
      %v6097 = vpop.xlane.xlu0 %6096
      %v6098 = vcvt.f32.s32 %v6097
      %v6099 = vcvt.f32.s32 %v6093
      %v6100 = vshll.u32 %v6099, 16
      %v6101 = vadd.s32 %v6100, %v6098
      %v6102 = vsel %vm4865, %v5540, 2147483647
      %v6103 = vand.u32 %v6102, 65535
      %v6104 = vshra.s32 %v6102, 16
      %v6105 = vcvt.s32.f32 %v6103
      %v6106 = vcvt.s32.f32 %v6104
      %6107 = vmin.xlane.f32.xlu0 %v6106
      %v6108 = vpop.xlane.xlu0 %6107
      %vm6109 = vcmp.eq.f32.partialorder %v6106, %v6108
      %v6110 = vsel %vm6109, %v6105, inf
      %6111 = vmin.xlane.f32.xlu0 %v6110
      %v6112 = vpop.xlane.xlu0 %6111
      %v6113 = vcvt.f32.s32 %v6112
      %v6114 = vcvt.f32.s32 %v6108
      %v6115 = vshll.u32 %v6114, 16
      %v6116 = vadd.s32 %v6115, %v6113
      %v6117 = vsel %vm4865, %v5541, 2147483647
      %v6118 = vand.u32 %v6117, 65535
      %v6119 = vshra.s32 %v6117, 16
      %v6120 = vcvt.s32.f32 %v6118
      %v6121 = vcvt.s32.f32 %v6119
      %6122 = vmin.xlane.f32.xlu0 %v6121
      %v6123 = vpop.xlane.xlu0 %6122
      %vm6124 = vcmp.eq.f32.partialorder %v6121, %v6123
      %v6125 = vsel %vm6124, %v6120, inf
      %6126 = vmin.xlane.f32.xlu0 %v6125
      %v6127 = vpop.xlane.xlu0 %6126
      %v6128 = vcvt.f32.s32 %v6127
      %v6129 = vcvt.f32.s32 %v6123
      %v6130 = vshll.u32 %v6129, 16
      %v6131 = vadd.s32 %v6130, %v6128
      %v6132 = vsel %vm4865, %v5542, 2147483647
      %v6133 = vand.u32 %v6132, 65535
      %v6134 = vshra.s32 %v6132, 16
      %v6135 = vcvt.s32.f32 %v6133
      %v6136 = vcvt.s32.f32 %v6134
      %6137 = vmin.xlane.f32.xlu0 %v6136
      %v6138 = vpop.xlane.xlu0 %6137
      %vm6139 = vcmp.eq.f32.partialorder %v6136, %v6138
      %v6140 = vsel %vm6139, %v6135, inf
      %6141 = vmin.xlane.f32.xlu0 %v6140
      %v6142 = vpop.xlane.xlu0 %6141
      %v6143 = vcvt.f32.s32 %v6142
      %v6144 = vcvt.f32.s32 %v6138
      %v6145 = vshll.u32 %v6144, 16
      %v6146 = vadd.s32 %v6145, %v6143
      %v6147 = vsel %vm4865, %v5543, 2147483647
      %v6148 = vand.u32 %v6147, 65535
      %v6149 = vshra.s32 %v6147, 16
      %v6150 = vcvt.s32.f32 %v6148
      %v6151 = vcvt.s32.f32 %v6149
      %6152 = vmin.xlane.f32.xlu0 %v6151
      %v6153 = vpop.xlane.xlu0 %6152
      %vm6154 = vcmp.eq.f32.partialorder %v6151, %v6153
      %v6155 = vsel %vm6154, %v6150, inf
      %6156 = vmin.xlane.f32.xlu0 %v6155
      %v6157 = vpop.xlane.xlu0 %6156
      %v6158 = vcvt.f32.s32 %v6157
      %v6159 = vcvt.f32.s32 %v6153
      %v6160 = vshll.u32 %v6159, 16
      %v6161 = vadd.s32 %v6160, %v6158
      %v6162 = vsel %vm4865, %v5544, 2147483647
      %v6163 = vand.u32 %v6162, 65535
      %v6164 = vshra.s32 %v6162, 16
      %v6165 = vcvt.s32.f32 %v6163
      %v6166 = vcvt.s32.f32 %v6164
      %6167 = vmin.xlane.f32.xlu0 %v6166
      %v6168 = vpop.xlane.xlu0 %6167
      %vm6169 = vcmp.eq.f32.partialorder %v6166, %v6168
      %v6170 = vsel %vm6169, %v6165, inf
      %6171 = vmin.xlane.f32.xlu0 %v6170
      %v6172 = vpop.xlane.xlu0 %6171
      %v6173 = vcvt.f32.s32 %v6172
      %v6174 = vcvt.f32.s32 %v6168
      %v6175 = vshll.u32 %v6174, 16
      %v6176 = vadd.s32 %v6175, %v6173
      %v6177 = vsel %vm4865, %v5545, 2147483647
      %v6178 = vand.u32 %v6177, 65535
      %v6179 = vshra.s32 %v6177, 16
      %v6180 = vcvt.s32.f32 %v6178
      %v6181 = vcvt.s32.f32 %v6179
      %6182 = vmin.xlane.f32.xlu0 %v6181
      %v6183 = vpop.xlane.xlu0 %6182
      %vm6184 = vcmp.eq.f32.partialorder %v6181, %v6183
      %v6185 = vsel %vm6184, %v6180, inf
      %6186 = vmin.xlane.f32.xlu0 %v6185
      %v6187 = vpop.xlane.xlu0 %6186
      %v6188 = vcvt.f32.s32 %v6187
      %v6189 = vcvt.f32.s32 %v6183
      %v6190 = vshll.u32 %v6189, 16
      %v6191 = vadd.s32 %v6190, %v6188
      %v6192 = vsel %vm4865, %v5546, 2147483647
      %v6193 = vand.u32 %v6192, 65535
      %v6194 = vshra.s32 %v6192, 16
      %v6195 = vcvt.s32.f32 %v6193
      %v6196 = vcvt.s32.f32 %v6194
      %6197 = vmin.xlane.f32.xlu0 %v6196
      %v6198 = vpop.xlane.xlu0 %6197
      %vm6199 = vcmp.eq.f32.partialorder %v6196, %v6198
      %v6200 = vsel %vm6199, %v6195, inf
      %6201 = vmin.xlane.f32.xlu0 %v6200
      %v6202 = vpop.xlane.xlu0 %6201
      %v6203 = vcvt.f32.s32 %v6202
      %v6204 = vcvt.f32.s32 %v6198
      %v6205 = vshll.u32 %v6204, 16
      %v6206 = vadd.s32 %v6205, %v6203
      %v6207 = vsel %vm4865, %v5547, 2147483647
      %v6208 = vand.u32 %v6207, 65535
      %v6209 = vshra.s32 %v6207, 16
      %v6210 = vcvt.s32.f32 %v6208
      %v6211 = vcvt.s32.f32 %v6209
      %6212 = vmin.xlane.f32.xlu0 %v6211
      %v6213 = vpop.xlane.xlu0 %6212
      %vm6214 = vcmp.eq.f32.partialorder %v6211, %v6213
      %v6215 = vsel %vm6214, %v6210, inf
      %6216 = vmin.xlane.f32.xlu0 %v6215
      %v6217 = vpop.xlane.xlu0 %6216
      %v6218 = vcvt.f32.s32 %v6217
      %v6219 = vcvt.f32.s32 %v6213
      %v6220 = vshll.u32 %v6219, 16
      %v6221 = vadd.s32 %v6220, %v6218
      %v6222 = vsel %vm4865, %v5548, 2147483647
      %v6223 = vand.u32 %v6222, 65535
      %v6224 = vshra.s32 %v6222, 16
      %v6225 = vcvt.s32.f32 %v6223
      %v6226 = vcvt.s32.f32 %v6224
      %6227 = vmin.xlane.f32.xlu0 %v6226
      %v6228 = vpop.xlane.xlu0 %6227
      %vm6229 = vcmp.eq.f32.partialorder %v6226, %v6228
      %v6230 = vsel %vm6229, %v6225, inf
      %6231 = vmin.xlane.f32.xlu0 %v6230
      %v6232 = vpop.xlane.xlu0 %6231
      %v6233 = vcvt.f32.s32 %v6232
      %v6234 = vcvt.f32.s32 %v6228
      %v6235 = vshll.u32 %v6234, 16
      %v6236 = vadd.s32 %v6235, %v6233
      %v6237 = vsel %vm4865, %v5549, 2147483647
      %v6238 = vand.u32 %v6237, 65535
      %v6239 = vshra.s32 %v6237, 16
      %v6240 = vcvt.s32.f32 %v6238
      %v6241 = vcvt.s32.f32 %v6239
      %6242 = vmin.xlane.f32.xlu0 %v6241
      %v6243 = vpop.xlane.xlu0 %6242
      %vm6244 = vcmp.eq.f32.partialorder %v6241, %v6243
      %v6245 = vsel %vm6244, %v6240, inf
      %6246 = vmin.xlane.f32.xlu0 %v6245
      %v6247 = vpop.xlane.xlu0 %6246
      %v6248 = vcvt.f32.s32 %v6247
      %v6249 = vcvt.f32.s32 %v6243
      %v6250 = vshll.u32 %v6249, 16
      %v6251 = vadd.s32 %v6250, %v6248
      %v6252 = vsel %vm4865, %v5550, 2147483647
      %v6253 = vand.u32 %v6252, 65535
      %v6254 = vshra.s32 %v6252, 16
      %v6255 = vcvt.s32.f32 %v6253
      %v6256 = vcvt.s32.f32 %v6254
      %6257 = vmin.xlane.f32.xlu0 %v6256
      %v6258 = vpop.xlane.xlu0 %6257
      %vm6259 = vcmp.eq.f32.partialorder %v6256, %v6258
      %v6260 = vsel %vm6259, %v6255, inf
      %6261 = vmin.xlane.f32.xlu0 %v6260
      %v6262 = vpop.xlane.xlu0 %6261
      %v6263 = vcvt.f32.s32 %v6262
      %v6264 = vcvt.f32.s32 %v6258
      %v6265 = vshll.u32 %v6264, 16
      %v6266 = vadd.s32 %v6265, %v6263
      %v6267 = vsel %vm4865, %v5551, 2147483647
      %v6268 = vand.u32 %v6267, 65535
      %v6269 = vshra.s32 %v6267, 16
      %v6270 = vcvt.s32.f32 %v6268
      %v6271 = vcvt.s32.f32 %v6269
      %6272 = vmin.xlane.f32.xlu0 %v6271
      %v6273 = vpop.xlane.xlu0 %6272
      %vm6274 = vcmp.eq.f32.partialorder %v6271, %v6273
      %v6275 = vsel %vm6274, %v6270, inf
      %6276 = vmin.xlane.f32.xlu0 %v6275
      %v6277 = vpop.xlane.xlu0 %6276
      %v6278 = vcvt.f32.s32 %v6277
      %v6279 = vcvt.f32.s32 %v6273
      %v6280 = vshll.u32 %v6279, 16
      %v6281 = vadd.s32 %v6280, %v6278
      %v6282 = vsel %vm4865, %v5552, 2147483647
      %v6283 = vand.u32 %v6282, 65535
      %v6284 = vshra.s32 %v6282, 16
      %v6285 = vcvt.s32.f32 %v6283
      %v6286 = vcvt.s32.f32 %v6284
      %6287 = vmin.xlane.f32.xlu0 %v6286
      %v6288 = vpop.xlane.xlu0 %6287
      %vm6289 = vcmp.eq.f32.partialorder %v6286, %v6288
      %v6290 = vsel %vm6289, %v6285, inf
      %6291 = vmin.xlane.f32.xlu0 %v6290
      %v6292 = vpop.xlane.xlu0 %6291
      %v6293 = vcvt.f32.s32 %v6292
      %v6294 = vcvt.f32.s32 %v6288
      %v6295 = vshll.u32 %v6294, 16
      %v6296 = vadd.s32 %v6295, %v6293
      %v6297 = vsel %vm4865, %v5553, 2147483647
      %v6298 = vand.u32 %v6297, 65535
      %v6299 = vshra.s32 %v6297, 16
      %v6300 = vcvt.s32.f32 %v6298
      %v6301 = vcvt.s32.f32 %v6299
      %6302 = vmin.xlane.f32.xlu0 %v6301
      %v6303 = vpop.xlane.xlu0 %6302
      %vm6304 = vcmp.eq.f32.partialorder %v6301, %v6303
      %v6305 = vsel %vm6304, %v6300, inf
      %6306 = vmin.xlane.f32.xlu0 %v6305
      %v6307 = vpop.xlane.xlu0 %6306
      %v6308 = vcvt.f32.s32 %v6307
      %v6309 = vcvt.f32.s32 %v6303
      %v6310 = vshll.u32 %v6309, 16
      %v6311 = vadd.s32 %v6310, %v6308
      %v6312 = vsel %vm4865, %v5554, 2147483647
      %v6313 = vand.u32 %v6312, 65535
      %v6314 = vshra.s32 %v6312, 16
      %v6315 = vcvt.s32.f32 %v6313
      %v6316 = vcvt.s32.f32 %v6314
      %6317 = vmin.xlane.f32.xlu0 %v6316
      %v6318 = vpop.xlane.xlu0 %6317
      %vm6319 = vcmp.eq.f32.partialorder %v6316, %v6318
      %v6320 = vsel %vm6319, %v6315, inf
      %6321 = vmin.xlane.f32.xlu0 %v6320
      %v6322 = vpop.xlane.xlu0 %6321
      %v6323 = vcvt.f32.s32 %v6322
      %v6324 = vcvt.f32.s32 %v6318
      %v6325 = vshll.u32 %v6324, 16
      %v6326 = vadd.s32 %v6325, %v6323
      %v6327 = vsel %vm4865, %v5555, 2147483647
      %v6328 = vand.u32 %v6327, 65535
      %v6329 = vshra.s32 %v6327, 16
      %v6330 = vcvt.s32.f32 %v6328
      %v6331 = vcvt.s32.f32 %v6329
      %6332 = vmin.xlane.f32.xlu0 %v6331
      %v6333 = vpop.xlane.xlu0 %6332
      %vm6334 = vcmp.eq.f32.partialorder %v6331, %v6333
      %v6335 = vsel %vm6334, %v6330, inf
      %6336 = vmin.xlane.f32.xlu0 %v6335
      %v6337 = vpop.xlane.xlu0 %6336
      %v6338 = vcvt.f32.s32 %v6337
      %v6339 = vcvt.f32.s32 %v6333
      %v6340 = vshll.u32 %v6339, 16
      %v6341 = vadd.s32 %v6340, %v6338
      %v6342 = vsel %vm4865, %v5556, 2147483647
      %v6343 = vand.u32 %v6342, 65535
      %v6344 = vshra.s32 %v6342, 16
      %v6345 = vcvt.s32.f32 %v6343
      %v6346 = vcvt.s32.f32 %v6344
      %6347 = vmin.xlane.f32.xlu0 %v6346
      %v6348 = vpop.xlane.xlu0 %6347
      %vm6349 = vcmp.eq.f32.partialorder %v6346, %v6348
      %v6350 = vsel %vm6349, %v6345, inf
      %6351 = vmin.xlane.f32.xlu0 %v6350
      %v6352 = vpop.xlane.xlu0 %6351
      %v6353 = vcvt.f32.s32 %v6352
      %v6354 = vcvt.f32.s32 %v6348
      %v6355 = vshll.u32 %v6354, 16
      %v6356 = vadd.s32 %v6355, %v6353
      %v6357 = vsel %vm4865, %v5557, 2147483647
      %v6358 = vand.u32 %v6357, 65535
      %v6359 = vshra.s32 %v6357, 16
      %v6360 = vcvt.s32.f32 %v6358
      %v6361 = vcvt.s32.f32 %v6359
      %6362 = vmin.xlane.f32.xlu0 %v6361
      %v6363 = vpop.xlane.xlu0 %6362
      %vm6364 = vcmp.eq.f32.partialorder %v6361, %v6363
      %v6365 = vsel %vm6364, %v6360, inf
      %6366 = vmin.xlane.f32.xlu0 %v6365
      %v6367 = vpop.xlane.xlu0 %6366
      %v6368 = vcvt.f32.s32 %v6367
      %v6369 = vcvt.f32.s32 %v6363
      %v6370 = vshll.u32 %v6369, 16
      %v6371 = vadd.s32 %v6370, %v6368
      %v6372 = vsel %vm4865, %v5558, 2147483647
      %v6373 = vand.u32 %v6372, 65535
      %v6374 = vshra.s32 %v6372, 16
      %v6375 = vcvt.s32.f32 %v6373
      %v6376 = vcvt.s32.f32 %v6374
      %6377 = vmin.xlane.f32.xlu0 %v6376
      %v6378 = vpop.xlane.xlu0 %6377
      %vm6379 = vcmp.eq.f32.partialorder %v6376, %v6378
      %v6380 = vsel %vm6379, %v6375, inf
      %6381 = vmin.xlane.f32.xlu0 %v6380
      %v6382 = vpop.xlane.xlu0 %6381
      %v6383 = vcvt.f32.s32 %v6382
      %v6384 = vcvt.f32.s32 %v6378
      %v6385 = vshll.u32 %v6384, 16
      %v6386 = vadd.s32 %v6385, %v6383
      %v6387 = vsel %vm4865, %v5559, 2147483647
      %v6388 = vand.u32 %v6387, 65535
      %v6389 = vshra.s32 %v6387, 16
      %v6390 = vcvt.s32.f32 %v6388
      %v6391 = vcvt.s32.f32 %v6389
      %6392 = vmin.xlane.f32.xlu0 %v6391
      %v6393 = vpop.xlane.xlu0 %6392
      %vm6394 = vcmp.eq.f32.partialorder %v6391, %v6393
      %v6395 = vsel %vm6394, %v6390, inf
      %6396 = vmin.xlane.f32.xlu0 %v6395
      %v6397 = vpop.xlane.xlu0 %6396
      %v6398 = vcvt.f32.s32 %v6397
      %v6399 = vcvt.f32.s32 %v6393
      %v6400 = vshll.u32 %v6399, 16
      %v6401 = vadd.s32 %v6400, %v6398
      %v6402 = vsel %vm4865, %v5560, 2147483647
      %v6403 = vand.u32 %v6402, 65535
      %v6404 = vshra.s32 %v6402, 16
      %v6405 = vcvt.s32.f32 %v6403
      %v6406 = vcvt.s32.f32 %v6404
      %6407 = vmin.xlane.f32.xlu0 %v6406
      %v6408 = vpop.xlane.xlu0 %6407
      %vm6409 = vcmp.eq.f32.partialorder %v6406, %v6408
      %v6410 = vsel %vm6409, %v6405, inf
      %6411 = vmin.xlane.f32.xlu0 %v6410
      %v6412 = vpop.xlane.xlu0 %6411
      %v6413 = vcvt.f32.s32 %v6412
      %v6414 = vcvt.f32.s32 %v6408
      %v6415 = vshll.u32 %v6414, 16
      %v6416 = vadd.s32 %v6415, %v6413
      %v6417 = vsel %vm4865, %v5561, 2147483647
      %v6418 = vand.u32 %v6417, 65535
      %v6419 = vshra.s32 %v6417, 16
      %v6420 = vcvt.s32.f32 %v6418
      %v6421 = vcvt.s32.f32 %v6419
      %6422 = vmin.xlane.f32.xlu0 %v6421
      %v6423 = vpop.xlane.xlu0 %6422
      %vm6424 = vcmp.eq.f32.partialorder %v6421, %v6423
      %v6425 = vsel %vm6424, %v6420, inf
      %6426 = vmin.xlane.f32.xlu0 %v6425
      %v6427 = vpop.xlane.xlu0 %6426
      %v6428 = vcvt.f32.s32 %v6427
      %v6429 = vcvt.f32.s32 %v6423
      %v6430 = vshll.u32 %v6429, 16
      %v6431 = vadd.s32 %v6430, %v6428
      %v6432 = vsel %vm4865, %v5562, 2147483647
      %v6433 = vand.u32 %v6432, 65535
      %v6434 = vshra.s32 %v6432, 16
      %v6435 = vcvt.s32.f32 %v6433
      %v6436 = vcvt.s32.f32 %v6434
      %6437 = vmin.xlane.f32.xlu0 %v6436
      %v6438 = vpop.xlane.xlu0 %6437
      %vm6439 = vcmp.eq.f32.partialorder %v6436, %v6438
      %v6440 = vsel %vm6439, %v6435, inf
      %6441 = vmin.xlane.f32.xlu0 %v6440
      %v6442 = vpop.xlane.xlu0 %6441
      %v6443 = vcvt.f32.s32 %v6442
      %v6444 = vcvt.f32.s32 %v6438
      %v6445 = vshll.u32 %v6444, 16
      %v6446 = vadd.s32 %v6445, %v6443
      %v6447 = vsel %vm4865, %v5563, 2147483647
      %v6448 = vand.u32 %v6447, 65535
      %v6449 = vshra.s32 %v6447, 16
      %v6450 = vcvt.s32.f32 %v6448
      %v6451 = vcvt.s32.f32 %v6449
      %6452 = vmin.xlane.f32.xlu0 %v6451
      %v6453 = vpop.xlane.xlu0 %6452
      %vm6454 = vcmp.eq.f32.partialorder %v6451, %v6453
      %v6455 = vsel %vm6454, %v6450, inf
      %6456 = vmin.xlane.f32.xlu0 %v6455
      %v6457 = vpop.xlane.xlu0 %6456
      %v6458 = vcvt.f32.s32 %v6457
      %v6459 = vcvt.f32.s32 %v6453
      %v6460 = vshll.u32 %v6459, 16
      %v6461 = vadd.s32 %v6460, %v6458
      %v6462 = vsel %vm4865, %v5564, 2147483647
      %v6463 = vand.u32 %v6462, 65535
      %v6464 = vshra.s32 %v6462, 16
      %v6465 = vcvt.s32.f32 %v6463
      %v6466 = vcvt.s32.f32 %v6464
      %6467 = vmin.xlane.f32.xlu0 %v6466
      %v6468 = vpop.xlane.xlu0 %6467
      %vm6469 = vcmp.eq.f32.partialorder %v6466, %v6468
      %v6470 = vsel %vm6469, %v6465, inf
      %6471 = vmin.xlane.f32.xlu0 %v6470
      %v6472 = vpop.xlane.xlu0 %6471
      %v6473 = vcvt.f32.s32 %v6472
      %v6474 = vcvt.f32.s32 %v6468
      %v6475 = vshll.u32 %v6474, 16
      %v6476 = vadd.s32 %v6475, %v6473
      %v6477 = vsel %vm4865, %v5565, 2147483647
      %v6478 = vand.u32 %v6477, 65535
      %v6479 = vshra.s32 %v6477, 16
      %v6480 = vcvt.s32.f32 %v6478
      %v6481 = vcvt.s32.f32 %v6479
      %6482 = vmin.xlane.f32.xlu0 %v6481
      %v6483 = vpop.xlane.xlu0 %6482
      %vm6484 = vcmp.eq.f32.partialorder %v6481, %v6483
      %v6485 = vsel %vm6484, %v6480, inf
      %6486 = vmin.xlane.f32.xlu0 %v6485
      %v6487 = vpop.xlane.xlu0 %6486
      %v6488 = vcvt.f32.s32 %v6487
      %v6489 = vcvt.f32.s32 %v6483
      %v6490 = vshll.u32 %v6489, 16
      %v6491 = vadd.s32 %v6490, %v6488
      %v6492 = vsel %vm4865, %v5566, 2147483647
      %v6493 = vand.u32 %v6492, 65535
      %v6494 = vshra.s32 %v6492, 16
      %v6495 = vcvt.s32.f32 %v6493
      %v6496 = vcvt.s32.f32 %v6494
      %6497 = vmin.xlane.f32.xlu0 %v6496
      %v6498 = vpop.xlane.xlu0 %6497
      %vm6499 = vcmp.eq.f32.partialorder %v6496, %v6498
      %v6500 = vsel %vm6499, %v6495, inf
      %6501 = vmin.xlane.f32.xlu0 %v6500
      %v6502 = vpop.xlane.xlu0 %6501
      %v6503 = vcvt.f32.s32 %v6502
      %v6504 = vcvt.f32.s32 %v6498
      %v6505 = vshll.u32 %v6504, 16
      %v6506 = vadd.s32 %v6505, %v6503
      %v6507 = vsel %vm4865, %v5567, 2147483647
      %v6508 = vand.u32 %v6507, 65535
      %v6509 = vshra.s32 %v6507, 16
      %v6510 = vcvt.s32.f32 %v6508
      %v6511 = vcvt.s32.f32 %v6509
      %6512 = vmin.xlane.f32.xlu0 %v6511
      %v6513 = vpop.xlane.xlu0 %6512
      %vm6514 = vcmp.eq.f32.partialorder %v6511, %v6513
      %v6515 = vsel %vm6514, %v6510, inf
      %6516 = vmin.xlane.f32.xlu0 %v6515
      %v6517 = vpop.xlane.xlu0 %6516
      %v6518 = vcvt.f32.s32 %v6517
      %v6519 = vcvt.f32.s32 %v6513
      %v6520 = vshll.u32 %v6519, 16
      %v6521 = vadd.s32 %v6520, %v6518
      %v6522 = vsel %vm4865, %v5568, 2147483647
      %v6523 = vand.u32 %v6522, 65535
      %v6524 = vshra.s32 %v6522, 16
      %v6525 = vcvt.s32.f32 %v6523
      %v6526 = vcvt.s32.f32 %v6524
      %6527 = vmin.xlane.f32.xlu0 %v6526
      %v6528 = vpop.xlane.xlu0 %6527
      %vm6529 = vcmp.eq.f32.partialorder %v6526, %v6528
      %v6530 = vsel %vm6529, %v6525, inf
      %6531 = vmin.xlane.f32.xlu0 %v6530
      %v6532 = vpop.xlane.xlu0 %6531
      %v6533 = vcvt.f32.s32 %v6532
      %v6534 = vcvt.f32.s32 %v6528
      %v6535 = vshll.u32 %v6534, 16
      %v6536 = vadd.s32 %v6535, %v6533
      %v6537 = vsel %vm4865, %v5569, 2147483647
      %v6538 = vand.u32 %v6537, 65535
      %v6539 = vshra.s32 %v6537, 16
      %v6540 = vcvt.s32.f32 %v6538
      %v6541 = vcvt.s32.f32 %v6539
      %6542 = vmin.xlane.f32.xlu0 %v6541
      %v6543 = vpop.xlane.xlu0 %6542
      %vm6544 = vcmp.eq.f32.partialorder %v6541, %v6543
      %v6545 = vsel %vm6544, %v6540, inf
      %6546 = vmin.xlane.f32.xlu0 %v6545
      %v6547 = vpop.xlane.xlu0 %6546
      %v6548 = vcvt.f32.s32 %v6547
      %v6549 = vcvt.f32.s32 %v6543
      %v6550 = vshll.u32 %v6549, 16
      %v6551 = vadd.s32 %v6550, %v6548
      %v6552 = vsel %vm4865, %v5570, 2147483647
      %v6553 = vand.u32 %v6552, 65535
      %v6554 = vshra.s32 %v6552, 16
      %v6555 = vcvt.s32.f32 %v6553
      %v6556 = vcvt.s32.f32 %v6554
      %6557 = vmin.xlane.f32.xlu0 %v6556
      %v6558 = vpop.xlane.xlu0 %6557
      %vm6559 = vcmp.eq.f32.partialorder %v6556, %v6558
      %v6560 = vsel %vm6559, %v6555, inf
      %6561 = vmin.xlane.f32.xlu0 %v6560
      %v6562 = vpop.xlane.xlu0 %6561
      %v6563 = vcvt.f32.s32 %v6562
      %v6564 = vcvt.f32.s32 %v6558
      %v6565 = vshll.u32 %v6564, 16
      %v6566 = vadd.s32 %v6565, %v6563
      %v6567 = vsel %vm4865, %v5571, 2147483647
      %v6568 = vand.u32 %v6567, 65535
      %v6569 = vshra.s32 %v6567, 16
      %v6570 = vcvt.s32.f32 %v6568
      %v6571 = vcvt.s32.f32 %v6569
      %6572 = vmin.xlane.f32.xlu0 %v6571
      %v6573 = vpop.xlane.xlu0 %6572
      %vm6574 = vcmp.eq.f32.partialorder %v6571, %v6573
      %v6575 = vsel %vm6574, %v6570, inf
      %6576 = vmin.xlane.f32.xlu0 %v6575
      %v6577 = vpop.xlane.xlu0 %6576
      %v6578 = vcvt.f32.s32 %v6577
      %v6579 = vcvt.f32.s32 %v6573
      %v6580 = vshll.u32 %v6579, 16
      %v6581 = vadd.s32 %v6580, %v6578
      %v6582 = vsel %vm4865, %v5572, 2147483647
      %v6583 = vand.u32 %v6582, 65535
      %v6584 = vshra.s32 %v6582, 16
      %v6585 = vcvt.s32.f32 %v6583
      %v6586 = vcvt.s32.f32 %v6584
      %6587 = vmin.xlane.f32.xlu0 %v6586
      %v6588 = vpop.xlane.xlu0 %6587
      %vm6589 = vcmp.eq.f32.partialorder %v6586, %v6588
      %v6590 = vsel %vm6589, %v6585, inf
      %6591 = vmin.xlane.f32.xlu0 %v6590
      %v6592 = vpop.xlane.xlu0 %6591
      %v6593 = vcvt.f32.s32 %v6592
      %v6594 = vcvt.f32.s32 %v6588
      %v6595 = vshll.u32 %v6594, 16
      %v6596 = vadd.s32 %v6595, %v6593
      %v6597 = vsel %vm4865, %v5573, 2147483647
      %v6598 = vand.u32 %v6597, 65535
      %v6599 = vshra.s32 %v6597, 16
      %v6600 = vcvt.s32.f32 %v6598
      %v6601 = vcvt.s32.f32 %v6599
      %6602 = vmin.xlane.f32.xlu0 %v6601
      %v6603 = vpop.xlane.xlu0 %6602
      %vm6604 = vcmp.eq.f32.partialorder %v6601, %v6603
      %v6605 = vsel %vm6604, %v6600, inf
      %6606 = vmin.xlane.f32.xlu0 %v6605
      %v6607 = vpop.xlane.xlu0 %6606
      %v6608 = vcvt.f32.s32 %v6607
      %v6609 = vcvt.f32.s32 %v6603
      %v6610 = vshll.u32 %v6609, 16
      %v6611 = vadd.s32 %v6610, %v6608
      %v6612 = vsel %vm4865, %v5574, 2147483647
      %v6613 = vand.u32 %v6612, 65535
      %v6614 = vshra.s32 %v6612, 16
      %v6615 = vcvt.s32.f32 %v6613
      %v6616 = vcvt.s32.f32 %v6614
      %6617 = vmin.xlane.f32.xlu0 %v6616
      %v6618 = vpop.xlane.xlu0 %6617
      %vm6619 = vcmp.eq.f32.partialorder %v6616, %v6618
      %v6620 = vsel %vm6619, %v6615, inf
      %6621 = vmin.xlane.f32.xlu0 %v6620
      %v6622 = vpop.xlane.xlu0 %6621
      %v6623 = vcvt.f32.s32 %v6622
      %v6624 = vcvt.f32.s32 %v6618
      %v6625 = vshll.u32 %v6624, 16
      %v6626 = vadd.s32 %v6625, %v6623
      %v6627 = vsel %vm4865, %v5575, 2147483647
      %v6628 = vand.u32 %v6627, 65535
      %v6629 = vshra.s32 %v6627, 16
      %v6630 = vcvt.s32.f32 %v6628
      %v6631 = vcvt.s32.f32 %v6629
      %6632 = vmin.xlane.f32.xlu0 %v6631
      %v6633 = vpop.xlane.xlu0 %6632
      %vm6634 = vcmp.eq.f32.partialorder %v6631, %v6633
      %v6635 = vsel %vm6634, %v6630, inf
      %6636 = vmin.xlane.f32.xlu0 %v6635
      %v6637 = vpop.xlane.xlu0 %6636
      %v6638 = vcvt.f32.s32 %v6637
      %v6639 = vcvt.f32.s32 %v6633
      %v6640 = vshll.u32 %v6639, 16
      %v6641 = vadd.s32 %v6640, %v6638
      %v6642 = vsel %vm4865, %v5576, 2147483647
      %v6643 = vand.u32 %v6642, 65535
      %v6644 = vshra.s32 %v6642, 16
      %v6645 = vcvt.s32.f32 %v6643
      %v6646 = vcvt.s32.f32 %v6644
      %6647 = vmin.xlane.f32.xlu0 %v6646
      %v6648 = vpop.xlane.xlu0 %6647
      %vm6649 = vcmp.eq.f32.partialorder %v6646, %v6648
      %v6650 = vsel %vm6649, %v6645, inf
      %6651 = vmin.xlane.f32.xlu0 %v6650
      %v6652 = vpop.xlane.xlu0 %6651
      %v6653 = vcvt.f32.s32 %v6652
      %v6654 = vcvt.f32.s32 %v6648
      %v6655 = vshll.u32 %v6654, 16
      %v6656 = vadd.s32 %v6655, %v6653
      %v6657 = vsel %vm4865, %v5577, 2147483647
      %v6658 = vand.u32 %v6657, 65535
      %v6659 = vshra.s32 %v6657, 16
      %v6660 = vcvt.s32.f32 %v6658
      %v6661 = vcvt.s32.f32 %v6659
      %6662 = vmin.xlane.f32.xlu0 %v6661
      %v6663 = vpop.xlane.xlu0 %6662
      %vm6664 = vcmp.eq.f32.partialorder %v6661, %v6663
      %v6665 = vsel %vm6664, %v6660, inf
      %6666 = vmin.xlane.f32.xlu0 %v6665
      %v6667 = vpop.xlane.xlu0 %6666
      %v6668 = vcvt.f32.s32 %v6667
      %v6669 = vcvt.f32.s32 %v6663
      %v6670 = vshll.u32 %v6669, 16
      %v6671 = vadd.s32 %v6670, %v6668
      %v6672 = vsel %vm4865, %v5578, 2147483647
      %v6673 = vand.u32 %v6672, 65535
      %v6674 = vshra.s32 %v6672, 16
      %v6675 = vcvt.s32.f32 %v6673
      %v6676 = vcvt.s32.f32 %v6674
      %6677 = vmin.xlane.f32.xlu0 %v6676
      %v6678 = vpop.xlane.xlu0 %6677
      %vm6679 = vcmp.eq.f32.partialorder %v6676, %v6678
      %v6680 = vsel %vm6679, %v6675, inf
      %6681 = vmin.xlane.f32.xlu0 %v6680
      %v6682 = vpop.xlane.xlu0 %6681
      %v6683 = vcvt.f32.s32 %v6682
      %v6684 = vcvt.f32.s32 %v6678
      %v6685 = vshll.u32 %v6684, 16
      %v6686 = vadd.s32 %v6685, %v6683
      %v6687 = vsel %vm4865, %v5579, 2147483647
      %v6688 = vand.u32 %v6687, 65535
      %v6689 = vshra.s32 %v6687, 16
      %v6690 = vcvt.s32.f32 %v6688
      %v6691 = vcvt.s32.f32 %v6689
      %6692 = vmin.xlane.f32.xlu0 %v6691
      %v6693 = vpop.xlane.xlu0 %6692
      %vm6694 = vcmp.eq.f32.partialorder %v6691, %v6693
      %v6695 = vsel %vm6694, %v6690, inf
      %6696 = vmin.xlane.f32.xlu0 %v6695
      %v6697 = vpop.xlane.xlu0 %6696
      %v6698 = vcvt.f32.s32 %v6697
      %v6699 = vcvt.f32.s32 %v6693
      %v6700 = vshll.u32 %v6699, 16
      %v6701 = vadd.s32 %v6700, %v6698
      %v6702 = vsel %vm4865, %v5580, 2147483647
      %v6703 = vand.u32 %v6702, 65535
      %v6704 = vshra.s32 %v6702, 16
      %v6705 = vcvt.s32.f32 %v6703
      %v6706 = vcvt.s32.f32 %v6704
      %6707 = vmin.xlane.f32.xlu0 %v6706
      %v6708 = vpop.xlane.xlu0 %6707
      %vm6709 = vcmp.eq.f32.partialorder %v6706, %v6708
      %v6710 = vsel %vm6709, %v6705, inf
      %6711 = vmin.xlane.f32.xlu0 %v6710
      %v6712 = vpop.xlane.xlu0 %6711
      %v6713 = vcvt.f32.s32 %v6712
      %v6714 = vcvt.f32.s32 %v6708
      %v6715 = vshll.u32 %v6714, 16
      %v6716 = vadd.s32 %v6715, %v6713
      %v6717 = vsel %vm4865, %v5581, 2147483647
      %v6718 = vand.u32 %v6717, 65535
      %v6719 = vshra.s32 %v6717, 16
      %v6720 = vcvt.s32.f32 %v6718
      %v6721 = vcvt.s32.f32 %v6719
      %6722 = vmin.xlane.f32.xlu0 %v6721
      %v6723 = vpop.xlane.xlu0 %6722
      %vm6724 = vcmp.eq.f32.partialorder %v6721, %v6723
      %v6725 = vsel %vm6724, %v6720, inf
      %6726 = vmin.xlane.f32.xlu0 %v6725
      %v6727 = vpop.xlane.xlu0 %6726
      %v6728 = vcvt.f32.s32 %v6727
      %v6729 = vcvt.f32.s32 %v6723
      %v6730 = vshll.u32 %v6729, 16
      %v6731 = vadd.s32 %v6730, %v6728
      %v6732 = vsel %vm4865, %v5582, 2147483647
      %v6733 = vand.u32 %v6732, 65535
      %v6734 = vshra.s32 %v6732, 16
      %v6735 = vcvt.s32.f32 %v6733
      %v6736 = vcvt.s32.f32 %v6734
      %6737 = vmin.xlane.f32.xlu0 %v6736
      %v6738 = vpop.xlane.xlu0 %6737
      %vm6739 = vcmp.eq.f32.partialorder %v6736, %v6738
      %v6740 = vsel %vm6739, %v6735, inf
      %6741 = vmin.xlane.f32.xlu0 %v6740
      %v6742 = vpop.xlane.xlu0 %6741
      %v6743 = vcvt.f32.s32 %v6742
      %v6744 = vcvt.f32.s32 %v6738
      %v6745 = vshll.u32 %v6744, 16
      %v6746 = vadd.s32 %v6745, %v6743
      %v6747 = vsel %vm4865, %v5583, 2147483647
      %v6748 = vand.u32 %v6747, 65535
      %v6749 = vshra.s32 %v6747, 16
      %v6750 = vcvt.s32.f32 %v6748
      %v6751 = vcvt.s32.f32 %v6749
      %6752 = vmin.xlane.f32.xlu0 %v6751
      %v6753 = vpop.xlane.xlu0 %6752
      %vm6754 = vcmp.eq.f32.partialorder %v6751, %v6753
      %v6755 = vsel %vm6754, %v6750, inf
      %6756 = vmin.xlane.f32.xlu0 %v6755
      %v6757 = vpop.xlane.xlu0 %6756
      %v6758 = vcvt.f32.s32 %v6757
      %v6759 = vcvt.f32.s32 %v6753
      %v6760 = vshll.u32 %v6759, 16
      %v6761 = vadd.s32 %v6760, %v6758
      %v6762 = vsel %vm4865, %v5584, 2147483647
      %v6763 = vand.u32 %v6762, 65535
      %v6764 = vshra.s32 %v6762, 16
      %v6765 = vcvt.s32.f32 %v6763
      %v6766 = vcvt.s32.f32 %v6764
      %6767 = vmin.xlane.f32.xlu0 %v6766
      %v6768 = vpop.xlane.xlu0 %6767
      %vm6769 = vcmp.eq.f32.partialorder %v6766, %v6768
      %v6770 = vsel %vm6769, %v6765, inf
      %6771 = vmin.xlane.f32.xlu0 %v6770
      %v6772 = vpop.xlane.xlu0 %6771
      %v6773 = vcvt.f32.s32 %v6772
      %v6774 = vcvt.f32.s32 %v6768
      %v6775 = vshll.u32 %v6774, 16
      %v6776 = vadd.s32 %v6775, %v6773
      %v6777 = vsel %vm4865, %v5585, 2147483647
      %v6778 = vand.u32 %v6777, 65535
      %v6779 = vshra.s32 %v6777, 16
      %v6780 = vcvt.s32.f32 %v6778
      %v6781 = vcvt.s32.f32 %v6779
      %6782 = vmin.xlane.f32.xlu0 %v6781
      %v6783 = vpop.xlane.xlu0 %6782
      %vm6784 = vcmp.eq.f32.partialorder %v6781, %v6783
      %v6785 = vsel %vm6784, %v6780, inf
      %6786 = vmin.xlane.f32.xlu0 %v6785
      %v6787 = vpop.xlane.xlu0 %6786
      %v6788 = vcvt.f32.s32 %v6787
      %v6789 = vcvt.f32.s32 %v6783
      %v6790 = vshll.u32 %v6789, 16
      %v6791 = vadd.s32 %v6790, %v6788
      %v6792 = vsel %vm4865, %v5586, 2147483647
      %v6793 = vand.u32 %v6792, 65535
      %v6794 = vshra.s32 %v6792, 16
      %v6795 = vcvt.s32.f32 %v6793
      %v6796 = vcvt.s32.f32 %v6794
      %6797 = vmin.xlane.f32.xlu0 %v6796
      %v6798 = vpop.xlane.xlu0 %6797
      %vm6799 = vcmp.eq.f32.partialorder %v6796, %v6798
      %v6800 = vsel %vm6799, %v6795, inf
      %6801 = vmin.xlane.f32.xlu0 %v6800
      %v6802 = vpop.xlane.xlu0 %6801
      %v6803 = vcvt.f32.s32 %v6802
      %v6804 = vcvt.f32.s32 %v6798
      %v6805 = vshll.u32 %v6804, 16
      %v6806 = vadd.s32 %v6805, %v6803
      %v6807 = vsel %vm4865, %v5587, 2147483647
      %v6808 = vand.u32 %v6807, 65535
      %v6809 = vshra.s32 %v6807, 16
      %v6810 = vcvt.s32.f32 %v6808
      %v6811 = vcvt.s32.f32 %v6809
      %6812 = vmin.xlane.f32.xlu0 %v6811
      %v6813 = vpop.xlane.xlu0 %6812
      %vm6814 = vcmp.eq.f32.partialorder %v6811, %v6813
      %v6815 = vsel %vm6814, %v6810, inf
      %6816 = vmin.xlane.f32.xlu0 %v6815
      %v6817 = vpop.xlane.xlu0 %6816
      %v6818 = vcvt.f32.s32 %v6817
      %v6819 = vcvt.f32.s32 %v6813
      %v6820 = vshll.u32 %v6819, 16
      %v6821 = vadd.s32 %v6820, %v6818
      %v6822 = vsel %vm4865, %v5588, 2147483647
      %v6823 = vand.u32 %v6822, 65535
      %v6824 = vshra.s32 %v6822, 16
      %v6825 = vcvt.s32.f32 %v6823
      %v6826 = vcvt.s32.f32 %v6824
      %6827 = vmin.xlane.f32.xlu0 %v6826
      %v6828 = vpop.xlane.xlu0 %6827
      %vm6829 = vcmp.eq.f32.partialorder %v6826, %v6828
      %v6830 = vsel %vm6829, %v6825, inf
      %6831 = vmin.xlane.f32.xlu0 %v6830
      %v6832 = vpop.xlane.xlu0 %6831
      %v6833 = vcvt.f32.s32 %v6832
      %v6834 = vcvt.f32.s32 %v6828
      %v6835 = vshll.u32 %v6834, 16
      %v6836 = vadd.s32 %v6835, %v6833
      %v6837 = vsel %vm4865, %v5589, 2147483647
      %v6838 = vand.u32 %v6837, 65535
      %v6839 = vshra.s32 %v6837, 16
      %v6840 = vcvt.s32.f32 %v6838
      %v6841 = vcvt.s32.f32 %v6839
      %6842 = vmin.xlane.f32.xlu0 %v6841
      %v6843 = vpop.xlane.xlu0 %6842
      %vm6844 = vcmp.eq.f32.partialorder %v6841, %v6843
      %v6845 = vsel %vm6844, %v6840, inf
      %6846 = vmin.xlane.f32.xlu0 %v6845
      %v6847 = vpop.xlane.xlu0 %6846
      %v6848 = vcvt.f32.s32 %v6847
      %v6849 = vcvt.f32.s32 %v6843
      %v6850 = vshll.u32 %v6849, 16
      %v6851 = vadd.s32 %v6850, %v6848
      %v6852 = vsel %vm4865, %v5590, 2147483647
      %v6853 = vand.u32 %v6852, 65535
      %v6854 = vshra.s32 %v6852, 16
      %v6855 = vcvt.s32.f32 %v6853
      %v6856 = vcvt.s32.f32 %v6854
      %6857 = vmin.xlane.f32.xlu0 %v6856
      %v6858 = vpop.xlane.xlu0 %6857
      %vm6859 = vcmp.eq.f32.partialorder %v6856, %v6858
      %v6860 = vsel %vm6859, %v6855, inf
      %6861 = vmin.xlane.f32.xlu0 %v6860
      %v6862 = vpop.xlane.xlu0 %6861
      %v6863 = vcvt.f32.s32 %v6862
      %v6864 = vcvt.f32.s32 %v6858
      %v6865 = vshll.u32 %v6864, 16
      %v6866 = vadd.s32 %v6865, %v6863
      %v6867 = vsel %vm4865, %v5591, 2147483647
      %v6868 = vand.u32 %v6867, 65535
      %v6869 = vshra.s32 %v6867, 16
      %v6870 = vcvt.s32.f32 %v6868
      %v6871 = vcvt.s32.f32 %v6869
      %6872 = vmin.xlane.f32.xlu0 %v6871
      %v6873 = vpop.xlane.xlu0 %6872
      %vm6874 = vcmp.eq.f32.partialorder %v6871, %v6873
      %v6875 = vsel %vm6874, %v6870, inf
      %6876 = vmin.xlane.f32.xlu0 %v6875
      %v6877 = vpop.xlane.xlu0 %6876
      %v6878 = vcvt.f32.s32 %v6877
      %v6879 = vcvt.f32.s32 %v6873
      %v6880 = vshll.u32 %v6879, 16
      %v6881 = vadd.s32 %v6880, %v6878
      %v6882 = vsel %vm4865, %v5592, 2147483647
      %v6883 = vand.u32 %v6882, 65535
      %v6884 = vshra.s32 %v6882, 16
      %v6885 = vcvt.s32.f32 %v6883
      %v6886 = vcvt.s32.f32 %v6884
      %6887 = vmin.xlane.f32.xlu0 %v6886
      %v6888 = vpop.xlane.xlu0 %6887
      %vm6889 = vcmp.eq.f32.partialorder %v6886, %v6888
      %v6890 = vsel %vm6889, %v6885, inf
      %6891 = vmin.xlane.f32.xlu0 %v6890
      %v6892 = vpop.xlane.xlu0 %6891
      %v6893 = vcvt.f32.s32 %v6892
      %v6894 = vcvt.f32.s32 %v6888
      %v6895 = vshll.u32 %v6894, 16
      %v6896 = vadd.s32 %v6895, %v6893
      %v6897 = vsel %vm4865, %v5593, 2147483647
      %v6898 = vand.u32 %v6897, 65535
      %v6899 = vshra.s32 %v6897, 16
      %v6900 = vcvt.s32.f32 %v6898
      %v6901 = vcvt.s32.f32 %v6899
      %6902 = vmin.xlane.f32.xlu0 %v6901
      %v6903 = vpop.xlane.xlu0 %6902
      %vm6904 = vcmp.eq.f32.partialorder %v6901, %v6903
      %v6905 = vsel %vm6904, %v6900, inf
      %6906 = vmin.xlane.f32.xlu0 %v6905
      %v6907 = vpop.xlane.xlu0 %6906
      %v6908 = vcvt.f32.s32 %v6907
      %v6909 = vcvt.f32.s32 %v6903
      %v6910 = vshll.u32 %v6909, 16
      %v6911 = vadd.s32 %v6910, %v6908
      %v6912 = vsel %vm4865, %v5594, 2147483647
      %v6913 = vand.u32 %v6912, 65535
      %v6914 = vshra.s32 %v6912, 16
      %v6915 = vcvt.s32.f32 %v6913
      %v6916 = vcvt.s32.f32 %v6914
      %6917 = vmin.xlane.f32.xlu0 %v6916
      %v6918 = vpop.xlane.xlu0 %6917
      %vm6919 = vcmp.eq.f32.partialorder %v6916, %v6918
      %v6920 = vsel %vm6919, %v6915, inf
      %6921 = vmin.xlane.f32.xlu0 %v6920
      %v6922 = vpop.xlane.xlu0 %6921
      %v6923 = vcvt.f32.s32 %v6922
      %v6924 = vcvt.f32.s32 %v6918
      %v6925 = vshll.u32 %v6924, 16
      %v6926 = vadd.s32 %v6925, %v6923
      %v6927 = vsel %vm4865, %v5595, 2147483647
      %v6928 = vand.u32 %v6927, 65535
      %v6929 = vshra.s32 %v6927, 16
      %v6930 = vcvt.s32.f32 %v6928
      %v6931 = vcvt.s32.f32 %v6929
      %6932 = vmin.xlane.f32.xlu0 %v6931
      %v6933 = vpop.xlane.xlu0 %6932
      %vm6934 = vcmp.eq.f32.partialorder %v6931, %v6933
      %v6935 = vsel %vm6934, %v6930, inf
      %6936 = vmin.xlane.f32.xlu0 %v6935
      %v6937 = vpop.xlane.xlu0 %6936
      %v6938 = vcvt.f32.s32 %v6937
      %v6939 = vcvt.f32.s32 %v6933
      %v6940 = vshll.u32 %v6939, 16
      %v6941 = vadd.s32 %v6940, %v6938
      %v6942 = vsel %vm4865, %v5596, 2147483647
      %v6943 = vand.u32 %v6942, 65535
      %v6944 = vshra.s32 %v6942, 16
      %v6945 = vcvt.s32.f32 %v6943
      %v6946 = vcvt.s32.f32 %v6944
      %6947 = vmin.xlane.f32.xlu0 %v6946
      %v6948 = vpop.xlane.xlu0 %6947
      %vm6949 = vcmp.eq.f32.partialorder %v6946, %v6948
      %v6950 = vsel %vm6949, %v6945, inf
      %6951 = vmin.xlane.f32.xlu0 %v6950
      %v6952 = vpop.xlane.xlu0 %6951
      %v6953 = vcvt.f32.s32 %v6952
      %v6954 = vcvt.f32.s32 %v6948
      %v6955 = vshll.u32 %v6954, 16
      %v6956 = vadd.s32 %v6955, %v6953
      %v6957 = vsel %vm4865, %v5597, 2147483647
      %v6958 = vand.u32 %v6957, 65535
      %v6959 = vshra.s32 %v6957, 16
      %v6960 = vcvt.s32.f32 %v6958
      %v6961 = vcvt.s32.f32 %v6959
      %6962 = vmin.xlane.f32.xlu0 %v6961
      %v6963 = vpop.xlane.xlu0 %6962
      %vm6964 = vcmp.eq.f32.partialorder %v6961, %v6963
      %v6965 = vsel %vm6964, %v6960, inf
      %6966 = vmin.xlane.f32.xlu0 %v6965
      %v6967 = vpop.xlane.xlu0 %6966
      %v6968 = vcvt.f32.s32 %v6967
      %v6969 = vcvt.f32.s32 %v6963
      %v6970 = vshll.u32 %v6969, 16
      %v6971 = vadd.s32 %v6970, %v6968
      %v6972 = vsel %vm4865, %v5598, 2147483647
      %v6973 = vand.u32 %v6972, 65535
      %v6974 = vshra.s32 %v6972, 16
      %v6975 = vcvt.s32.f32 %v6973
      %v6976 = vcvt.s32.f32 %v6974
      %6977 = vmin.xlane.f32.xlu0 %v6976
      %v6978 = vpop.xlane.xlu0 %6977
      %vm6979 = vcmp.eq.f32.partialorder %v6976, %v6978
      %v6980 = vsel %vm6979, %v6975, inf
      %6981 = vmin.xlane.f32.xlu0 %v6980
      %v6982 = vpop.xlane.xlu0 %6981
      %v6983 = vcvt.f32.s32 %v6982
      %v6984 = vcvt.f32.s32 %v6978
      %v6985 = vshll.u32 %v6984, 16
      %v6986 = vadd.s32 %v6985, %v6983
      %v6987 = vsel %vm4865, %v5599, 2147483647
      %v6988 = vand.u32 %v6987, 65535
      %v6989 = vshra.s32 %v6987, 16
      %v6990 = vcvt.s32.f32 %v6988
      %v6991 = vcvt.s32.f32 %v6989
      %6992 = vmin.xlane.f32.xlu0 %v6991
      %v6993 = vpop.xlane.xlu0 %6992
      %vm6994 = vcmp.eq.f32.partialorder %v6991, %v6993
      %v6995 = vsel %vm6994, %v6990, inf
      %6996 = vmin.xlane.f32.xlu0 %v6995
      %v6997 = vpop.xlane.xlu0 %6996
      %v6998 = vcvt.f32.s32 %v6997
      %v6999 = vcvt.f32.s32 %v6993
      %v7000 = vshll.u32 %v6999, 16
      %v7001 = vadd.s32 %v7000, %v6998
      %v7002 = vsel %vm4865, %v5600, 2147483647
      %v7003 = vand.u32 %v7002, 65535
      %v7004 = vshra.s32 %v7002, 16
      %v7005 = vcvt.s32.f32 %v7003
      %v7006 = vcvt.s32.f32 %v7004
      %7007 = vmin.xlane.f32.xlu0 %v7006
      %v7008 = vpop.xlane.xlu0 %7007
      %vm7009 = vcmp.eq.f32.partialorder %v7006, %v7008
      %v7010 = vsel %vm7009, %v7005, inf
      %7011 = vmin.xlane.f32.xlu0 %v7010
      %v7012 = vpop.xlane.xlu0 %7011
      %v7013 = vcvt.f32.s32 %v7012
      %v7014 = vcvt.f32.s32 %v7008
      %v7015 = vshll.u32 %v7014, 16
      %v7016 = vadd.s32 %v7015, %v7013
      %v7017 = vsel %vm4865, %v5601, 2147483647
      %v7018 = vand.u32 %v7017, 65535
      %v7019 = vshra.s32 %v7017, 16
      %v7020 = vcvt.s32.f32 %v7018
      %v7021 = vcvt.s32.f32 %v7019
      %7022 = vmin.xlane.f32.xlu0 %v7021
      %v7023 = vpop.xlane.xlu0 %7022
      %vm7024 = vcmp.eq.f32.partialorder %v7021, %v7023
      %v7025 = vsel %vm7024, %v7020, inf
      %7026 = vmin.xlane.f32.xlu0 %v7025
      %v7027 = vpop.xlane.xlu0 %7026
      %v7028 = vcvt.f32.s32 %v7027
      %v7029 = vcvt.f32.s32 %v7023
      %v7030 = vshll.u32 %v7029, 16
      %v7031 = vadd.s32 %v7030, %v7028
      %v7032 = vsel %vm4865, %v5602, 2147483647
      %v7033 = vand.u32 %v7032, 65535
      %v7034 = vshra.s32 %v7032, 16
      %v7035 = vcvt.s32.f32 %v7033
      %v7036 = vcvt.s32.f32 %v7034
      %7037 = vmin.xlane.f32.xlu0 %v7036
      %v7038 = vpop.xlane.xlu0 %7037
      %vm7039 = vcmp.eq.f32.partialorder %v7036, %v7038
      %v7040 = vsel %vm7039, %v7035, inf
      %7041 = vmin.xlane.f32.xlu0 %v7040
      %v7042 = vpop.xlane.xlu0 %7041
      %v7043 = vcvt.f32.s32 %v7042
      %v7044 = vcvt.f32.s32 %v7038
      %v7045 = vshll.u32 %v7044, 16
      %v7046 = vadd.s32 %v7045, %v7043
      %v7047 = vsel %vm4865, %v5603, 2147483647
      %v7048 = vand.u32 %v7047, 65535
      %v7049 = vshra.s32 %v7047, 16
      %v7050 = vcvt.s32.f32 %v7048
      %v7051 = vcvt.s32.f32 %v7049
      %7052 = vmin.xlane.f32.xlu0 %v7051
      %v7053 = vpop.xlane.xlu0 %7052
      %vm7054 = vcmp.eq.f32.partialorder %v7051, %v7053
      %v7055 = vsel %vm7054, %v7050, inf
      %7056 = vmin.xlane.f32.xlu0 %v7055
      %v7057 = vpop.xlane.xlu0 %7056
      %v7058 = vcvt.f32.s32 %v7057
      %v7059 = vcvt.f32.s32 %v7053
      %v7060 = vshll.u32 %v7059, 16
      %v7061 = vadd.s32 %v7060, %v7058
      %v7062 = vsel %vm4865, %v5604, 2147483647
      %v7063 = vand.u32 %v7062, 65535
      %v7064 = vshra.s32 %v7062, 16
      %v7065 = vcvt.s32.f32 %v7063
      %v7066 = vcvt.s32.f32 %v7064
      %7067 = vmin.xlane.f32.xlu0 %v7066
      %v7068 = vpop.xlane.xlu0 %7067
      %vm7069 = vcmp.eq.f32.partialorder %v7066, %v7068
      %v7070 = vsel %vm7069, %v7065, inf
      %7071 = vmin.xlane.f32.xlu0 %v7070
      %v7072 = vpop.xlane.xlu0 %7071
      %v7073 = vcvt.f32.s32 %v7072
      %v7074 = vcvt.f32.s32 %v7068
      %v7075 = vshll.u32 %v7074, 16
      %v7076 = vadd.s32 %v7075, %v7073
      %v7077 = vsel %vm4865, %v5605, 2147483647
      %v7078 = vand.u32 %v7077, 65535
      %v7079 = vshra.s32 %v7077, 16
      %v7080 = vcvt.s32.f32 %v7078
      %v7081 = vcvt.s32.f32 %v7079
      %7082 = vmin.xlane.f32.xlu0 %v7081
      %v7083 = vpop.xlane.xlu0 %7082
      %vm7084 = vcmp.eq.f32.partialorder %v7081, %v7083
      %v7085 = vsel %vm7084, %v7080, inf
      %7086 = vmin.xlane.f32.xlu0 %v7085
      %v7087 = vpop.xlane.xlu0 %7086
      %v7088 = vcvt.f32.s32 %v7087
      %v7089 = vcvt.f32.s32 %v7083
      %v7090 = vshll.u32 %v7089, 16
      %v7091 = vadd.s32 %v7090, %v7088
      %v7092 = vsel %vm4865, %v5606, 2147483647
      %v7093 = vand.u32 %v7092, 65535
      %v7094 = vshra.s32 %v7092, 16
      %v7095 = vcvt.s32.f32 %v7093
      %v7096 = vcvt.s32.f32 %v7094
      %7097 = vmin.xlane.f32.xlu0 %v7096
      %v7098 = vpop.xlane.xlu0 %7097
      %vm7099 = vcmp.eq.f32.partialorder %v7096, %v7098
      %v7100 = vsel %vm7099, %v7095, inf
      %7101 = vmin.xlane.f32.xlu0 %v7100
      %v7102 = vpop.xlane.xlu0 %7101
      %v7103 = vcvt.f32.s32 %v7102
      %v7104 = vcvt.f32.s32 %v7098
      %v7105 = vshll.u32 %v7104, 16
      %v7106 = vadd.s32 %v7105, %v7103
      %v7107 = vsel %vm4865, %v5607, 2147483647
      %v7108 = vand.u32 %v7107, 65535
      %v7109 = vshra.s32 %v7107, 16
      %v7110 = vcvt.s32.f32 %v7108
      %v7111 = vcvt.s32.f32 %v7109
      %7112 = vmin.xlane.f32.xlu0 %v7111
      %v7113 = vpop.xlane.xlu0 %7112
      %vm7114 = vcmp.eq.f32.partialorder %v7111, %v7113
      %v7115 = vsel %vm7114, %v7110, inf
      %7116 = vmin.xlane.f32.xlu0 %v7115
      %v7117 = vpop.xlane.xlu0 %7116
      %v7118 = vcvt.f32.s32 %v7117
      %v7119 = vcvt.f32.s32 %v7113
      %v7120 = vshll.u32 %v7119, 16
      %v7121 = vadd.s32 %v7120, %v7118
      %v7122 = vsel %vm4865, %v5608, 2147483647
      %v7123 = vand.u32 %v7122, 65535
      %v7124 = vshra.s32 %v7122, 16
      %v7125 = vcvt.s32.f32 %v7123
      %v7126 = vcvt.s32.f32 %v7124
      %7127 = vmin.xlane.f32.xlu0 %v7126
      %v7128 = vpop.xlane.xlu0 %7127
      %vm7129 = vcmp.eq.f32.partialorder %v7126, %v7128
      %v7130 = vsel %vm7129, %v7125, inf
      %7131 = vmin.xlane.f32.xlu0 %v7130
      %v7132 = vpop.xlane.xlu0 %7131
      %v7133 = vcvt.f32.s32 %v7132
      %v7134 = vcvt.f32.s32 %v7128
      %v7135 = vshll.u32 %v7134, 16
      %v7136 = vadd.s32 %v7135, %v7133
      %v7137 = vsel %vm4865, %v5609, 2147483647
      %v7138 = vand.u32 %v7137, 65535
      %v7139 = vshra.s32 %v7137, 16
      %v7140 = vcvt.s32.f32 %v7138
      %v7141 = vcvt.s32.f32 %v7139
      %7142 = vmin.xlane.f32.xlu0 %v7141
      %v7143 = vpop.xlane.xlu0 %7142
      %vm7144 = vcmp.eq.f32.partialorder %v7141, %v7143
      %v7145 = vsel %vm7144, %v7140, inf
      %7146 = vmin.xlane.f32.xlu0 %v7145
      %v7147 = vpop.xlane.xlu0 %7146
      %v7148 = vcvt.f32.s32 %v7147
      %v7149 = vcvt.f32.s32 %v7143
      %v7150 = vshll.u32 %v7149, 16
      %v7151 = vadd.s32 %v7150, %v7148
      %v7152 = vsel %vm4865, %v5610, 2147483647
      %v7153 = vand.u32 %v7152, 65535
      %v7154 = vshra.s32 %v7152, 16
      %v7155 = vcvt.s32.f32 %v7153
      %v7156 = vcvt.s32.f32 %v7154
      %7157 = vmin.xlane.f32.xlu0 %v7156
      %v7158 = vpop.xlane.xlu0 %7157
      %vm7159 = vcmp.eq.f32.partialorder %v7156, %v7158
      %v7160 = vsel %vm7159, %v7155, inf
      %7161 = vmin.xlane.f32.xlu0 %v7160
      %v7162 = vpop.xlane.xlu0 %7161
      %v7163 = vcvt.f32.s32 %v7162
      %v7164 = vcvt.f32.s32 %v7158
      %v7165 = vshll.u32 %v7164, 16
      %v7166 = vadd.s32 %v7165, %v7163
      %v7167 = vsel %vm4865, %v5611, 2147483647
      %v7168 = vand.u32 %v7167, 65535
      %v7169 = vshra.s32 %v7167, 16
      %v7170 = vcvt.s32.f32 %v7168
      %v7171 = vcvt.s32.f32 %v7169
      %7172 = vmin.xlane.f32.xlu0 %v7171
      %v7173 = vpop.xlane.xlu0 %7172
      %vm7174 = vcmp.eq.f32.partialorder %v7171, %v7173
      %v7175 = vsel %vm7174, %v7170, inf
      %7176 = vmin.xlane.f32.xlu0 %v7175
      %v7177 = vpop.xlane.xlu0 %7176
      %v7178 = vcvt.f32.s32 %v7177
      %v7179 = vcvt.f32.s32 %v7173
      %v7180 = vshll.u32 %v7179, 16
      %v7181 = vadd.s32 %v7180, %v7178
      %v7182 = vsel %vm4865, %v5612, 2147483647
      %v7183 = vand.u32 %v7182, 65535
      %v7184 = vshra.s32 %v7182, 16
      %v7185 = vcvt.s32.f32 %v7183
      %v7186 = vcvt.s32.f32 %v7184
      %7187 = vmin.xlane.f32.xlu0 %v7186
      %v7188 = vpop.xlane.xlu0 %7187
      %vm7189 = vcmp.eq.f32.partialorder %v7186, %v7188
      %v7190 = vsel %vm7189, %v7185, inf
      %7191 = vmin.xlane.f32.xlu0 %v7190
      %v7192 = vpop.xlane.xlu0 %7191
      %v7193 = vcvt.f32.s32 %v7192
      %v7194 = vcvt.f32.s32 %v7188
      %v7195 = vshll.u32 %v7194, 16
      %v7196 = vadd.s32 %v7195, %v7193
      %v7197 = vsel %vm4865, %v5613, 2147483647
      %v7198 = vand.u32 %v7197, 65535
      %v7199 = vshra.s32 %v7197, 16
      %v7200 = vcvt.s32.f32 %v7198
      %v7201 = vcvt.s32.f32 %v7199
      %7202 = vmin.xlane.f32.xlu0 %v7201
      %v7203 = vpop.xlane.xlu0 %7202
      %vm7204 = vcmp.eq.f32.partialorder %v7201, %v7203
      %v7205 = vsel %vm7204, %v7200, inf
      %7206 = vmin.xlane.f32.xlu0 %v7205
      %v7207 = vpop.xlane.xlu0 %7206
      %v7208 = vcvt.f32.s32 %v7207
      %v7209 = vcvt.f32.s32 %v7203
      %v7210 = vshll.u32 %v7209, 16
      %v7211 = vadd.s32 %v7210, %v7208
      %v7212 = vsel %vm4865, %v5614, 2147483647
      %v7213 = vand.u32 %v7212, 65535
      %v7214 = vshra.s32 %v7212, 16
      %v7215 = vcvt.s32.f32 %v7213
      %v7216 = vcvt.s32.f32 %v7214
      %7217 = vmin.xlane.f32.xlu0 %v7216
      %v7218 = vpop.xlane.xlu0 %7217
      %vm7219 = vcmp.eq.f32.partialorder %v7216, %v7218
      %v7220 = vsel %vm7219, %v7215, inf
      %7221 = vmin.xlane.f32.xlu0 %v7220
      %v7222 = vpop.xlane.xlu0 %7221
      %v7223 = vcvt.f32.s32 %v7222
      %v7224 = vcvt.f32.s32 %v7218
      %v7225 = vshll.u32 %v7224, 16
      %v7226 = vadd.s32 %v7225, %v7223
      %v7227 = vsel %vm4865, %v5615, 2147483647
      %v7228 = vand.u32 %v7227, 65535
      %v7229 = vshra.s32 %v7227, 16
      %v7230 = vcvt.s32.f32 %v7228
      %v7231 = vcvt.s32.f32 %v7229
      %7232 = vmin.xlane.f32.xlu0 %v7231
      %v7233 = vpop.xlane.xlu0 %7232
      %vm7234 = vcmp.eq.f32.partialorder %v7231, %v7233
      %v7235 = vsel %vm7234, %v7230, inf
      %7236 = vmin.xlane.f32.xlu0 %v7235
      %v7237 = vpop.xlane.xlu0 %7236
      %v7238 = vcvt.f32.s32 %v7237
      %v7239 = vcvt.f32.s32 %v7233
      %v7240 = vshll.u32 %v7239, 16
      %v7241 = vadd.s32 %v7240, %v7238
      %v7242 = vsel %vm4865, %v5616, 2147483647
      %v7243 = vand.u32 %v7242, 65535
      %v7244 = vshra.s32 %v7242, 16
      %v7245 = vcvt.s32.f32 %v7243
      %v7246 = vcvt.s32.f32 %v7244
      %7247 = vmin.xlane.f32.xlu0 %v7246
      %v7248 = vpop.xlane.xlu0 %7247
      %vm7249 = vcmp.eq.f32.partialorder %v7246, %v7248
      %v7250 = vsel %vm7249, %v7245, inf
      %7251 = vmin.xlane.f32.xlu0 %v7250
      %v7252 = vpop.xlane.xlu0 %7251
      %v7253 = vcvt.f32.s32 %v7252
      %v7254 = vcvt.f32.s32 %v7248
      %v7255 = vshll.u32 %v7254, 16
      %v7256 = vadd.s32 %v7255, %v7253
      %v7257 = vsel %vm4865, %v5617, 2147483647
      %v7258 = vand.u32 %v7257, 65535
      %v7259 = vshra.s32 %v7257, 16
      %v7260 = vcvt.s32.f32 %v7258
      %v7261 = vcvt.s32.f32 %v7259
      %7262 = vmin.xlane.f32.xlu0 %v7261
      %v7263 = vpop.xlane.xlu0 %7262
      %vm7264 = vcmp.eq.f32.partialorder %v7261, %v7263
      %v7265 = vsel %vm7264, %v7260, inf
      %7266 = vmin.xlane.f32.xlu0 %v7265
      %v7267 = vpop.xlane.xlu0 %7266
      %v7268 = vcvt.f32.s32 %v7267
      %v7269 = vcvt.f32.s32 %v7263
      %v7270 = vshll.u32 %v7269, 16
      %v7271 = vadd.s32 %v7270, %v7268
      %v7272 = vsel %vm4865, %v5618, 2147483647
      %v7273 = vand.u32 %v7272, 65535
      %v7274 = vshra.s32 %v7272, 16
      %v7275 = vcvt.s32.f32 %v7273
      %v7276 = vcvt.s32.f32 %v7274
      %7277 = vmin.xlane.f32.xlu0 %v7276
      %v7278 = vpop.xlane.xlu0 %7277
      %vm7279 = vcmp.eq.f32.partialorder %v7276, %v7278
      %v7280 = vsel %vm7279, %v7275, inf
      %7281 = vmin.xlane.f32.xlu0 %v7280
      %v7282 = vpop.xlane.xlu0 %7281
      %v7283 = vcvt.f32.s32 %v7282
      %v7284 = vcvt.f32.s32 %v7278
      %v7285 = vshll.u32 %v7284, 16
      %v7286 = vadd.s32 %v7285, %v7283
      %v7287 = vsel %vm4865, %v5619, 2147483647
      %v7288 = vand.u32 %v7287, 65535
      %v7289 = vshra.s32 %v7287, 16
      %v7290 = vcvt.s32.f32 %v7288
      %v7291 = vcvt.s32.f32 %v7289
      %7292 = vmin.xlane.f32.xlu0 %v7291
      %v7293 = vpop.xlane.xlu0 %7292
      %vm7294 = vcmp.eq.f32.partialorder %v7291, %v7293
      %v7295 = vsel %vm7294, %v7290, inf
      %7296 = vmin.xlane.f32.xlu0 %v7295
      %v7297 = vpop.xlane.xlu0 %7296
      %v7298 = vcvt.f32.s32 %v7297
      %v7299 = vcvt.f32.s32 %v7293
      %v7300 = vshll.u32 %v7299, 16
      %v7301 = vadd.s32 %v7300, %v7298
      %v7302 = vsel %vm4865, %v5620, 2147483647
      %v7303 = vand.u32 %v7302, 65535
      %v7304 = vshra.s32 %v7302, 16
      %v7305 = vcvt.s32.f32 %v7303
      %v7306 = vcvt.s32.f32 %v7304
      %7307 = vmin.xlane.f32.xlu0 %v7306
      %v7308 = vpop.xlane.xlu0 %7307
      %vm7309 = vcmp.eq.f32.partialorder %v7306, %v7308
      %v7310 = vsel %vm7309, %v7305, inf
      %7311 = vmin.xlane.f32.xlu0 %v7310
      %v7312 = vpop.xlane.xlu0 %7311
      %v7313 = vcvt.f32.s32 %v7312
      %v7314 = vcvt.f32.s32 %v7308
      %v7315 = vshll.u32 %v7314, 16
      %v7316 = vadd.s32 %v7315, %v7313
      %v7317 = vsel %vm4865, %v5621, 2147483647
      %v7318 = vand.u32 %v7317, 65535
      %v7319 = vshra.s32 %v7317, 16
      %v7320 = vcvt.s32.f32 %v7318
      %v7321 = vcvt.s32.f32 %v7319
      %7322 = vmin.xlane.f32.xlu0 %v7321
      %v7323 = vpop.xlane.xlu0 %7322
      %vm7324 = vcmp.eq.f32.partialorder %v7321, %v7323
      %v7325 = vsel %vm7324, %v7320, inf
      %7326 = vmin.xlane.f32.xlu0 %v7325
      %v7327 = vpop.xlane.xlu0 %7326
      %v7328 = vcvt.f32.s32 %v7327
      %v7329 = vcvt.f32.s32 %v7323
      %v7330 = vshll.u32 %v7329, 16
      %v7331 = vadd.s32 %v7330, %v7328
      %v7332 = vsel %vm4865, %v5622, 2147483647
      %v7333 = vand.u32 %v7332, 65535
      %v7334 = vshra.s32 %v7332, 16
      %v7335 = vcvt.s32.f32 %v7333
      %v7336 = vcvt.s32.f32 %v7334
      %7337 = vmin.xlane.f32.xlu0 %v7336
      %v7338 = vpop.xlane.xlu0 %7337
      %vm7339 = vcmp.eq.f32.partialorder %v7336, %v7338
      %v7340 = vsel %vm7339, %v7335, inf
      %7341 = vmin.xlane.f32.xlu0 %v7340
      %v7342 = vpop.xlane.xlu0 %7341
      %v7343 = vcvt.f32.s32 %v7342
      %v7344 = vcvt.f32.s32 %v7338
      %v7345 = vshll.u32 %v7344, 16
      %v7346 = vadd.s32 %v7345, %v7343
      %v7347 = vsel %vm4865, %v5623, 2147483647
      %v7348 = vand.u32 %v7347, 65535
      %v7349 = vshra.s32 %v7347, 16
      %v7350 = vcvt.s32.f32 %v7348
      %v7351 = vcvt.s32.f32 %v7349
      %7352 = vmin.xlane.f32.xlu0 %v7351
      %v7353 = vpop.xlane.xlu0 %7352
      %vm7354 = vcmp.eq.f32.partialorder %v7351, %v7353
      %v7355 = vsel %vm7354, %v7350, inf
      %7356 = vmin.xlane.f32.xlu0 %v7355
      %v7357 = vpop.xlane.xlu0 %7356
      %v7358 = vcvt.f32.s32 %v7357
      %v7359 = vcvt.f32.s32 %v7353
      %v7360 = vshll.u32 %v7359, 16
      %v7361 = vadd.s32 %v7360, %v7358
      %v7362 = vsel %vm4865, %v5624, 2147483647
      %v7363 = vand.u32 %v7362, 65535
      %v7364 = vshra.s32 %v7362, 16
      %v7365 = vcvt.s32.f32 %v7363
      %v7366 = vcvt.s32.f32 %v7364
      %7367 = vmin.xlane.f32.xlu0 %v7366
      %v7368 = vpop.xlane.xlu0 %7367
      %vm7369 = vcmp.eq.f32.partialorder %v7366, %v7368
      %v7370 = vsel %vm7369, %v7365, inf
      %7371 = vmin.xlane.f32.xlu0 %v7370
      %v7372 = vpop.xlane.xlu0 %7371
      %v7373 = vcvt.f32.s32 %v7372
      %v7374 = vcvt.f32.s32 %v7368
      %v7375 = vshll.u32 %v7374, 16
      %v7376 = vadd.s32 %v7375, %v7373
      %v7377 = vsel %vm4865, %v5625, 2147483647
      %v7378 = vand.u32 %v7377, 65535
      %v7379 = vshra.s32 %v7377, 16
      %v7380 = vcvt.s32.f32 %v7378
      %v7381 = vcvt.s32.f32 %v7379
      %7382 = vmin.xlane.f32.xlu0 %v7381
      %v7383 = vpop.xlane.xlu0 %7382
      %vm7384 = vcmp.eq.f32.partialorder %v7381, %v7383
      %v7385 = vsel %vm7384, %v7380, inf
      %7386 = vmin.xlane.f32.xlu0 %v7385
      %v7387 = vpop.xlane.xlu0 %7386
      %v7388 = vcvt.f32.s32 %v7387
      %v7389 = vcvt.f32.s32 %v7383
      %v7390 = vshll.u32 %v7389, 16
      %v7391 = vadd.s32 %v7390, %v7388
      %v7392 = vsel %vm4865, %v5626, 2147483647
      %v7393 = vand.u32 %v7392, 65535
      %v7394 = vshra.s32 %v7392, 16
      %v7395 = vcvt.s32.f32 %v7393
      %v7396 = vcvt.s32.f32 %v7394
      %7397 = vmin.xlane.f32.xlu0 %v7396
      %v7398 = vpop.xlane.xlu0 %7397
      %vm7399 = vcmp.eq.f32.partialorder %v7396, %v7398
      %v7400 = vsel %vm7399, %v7395, inf
      %7401 = vmin.xlane.f32.xlu0 %v7400
      %v7402 = vpop.xlane.xlu0 %7401
      %v7403 = vcvt.f32.s32 %v7402
      %v7404 = vcvt.f32.s32 %v7398
      %v7405 = vshll.u32 %v7404, 16
      %v7406 = vadd.s32 %v7405, %v7403
      %v7407 = vsel %vm4865, %v5627, 2147483647
      %v7408 = vand.u32 %v7407, 65535
      %v7409 = vshra.s32 %v7407, 16
      %v7410 = vcvt.s32.f32 %v7408
      %v7411 = vcvt.s32.f32 %v7409
      %7412 = vmin.xlane.f32.xlu0 %v7411
      %v7413 = vpop.xlane.xlu0 %7412
      %vm7414 = vcmp.eq.f32.partialorder %v7411, %v7413
      %v7415 = vsel %vm7414, %v7410, inf
      %7416 = vmin.xlane.f32.xlu0 %v7415
      %v7417 = vpop.xlane.xlu0 %7416
      %v7418 = vcvt.f32.s32 %v7417
      %v7419 = vcvt.f32.s32 %v7413
      %v7420 = vshll.u32 %v7419, 16
      %v7421 = vadd.s32 %v7420, %v7418
      %v7422 = vsel %vm4865, %v5628, 2147483647
      %v7423 = vand.u32 %v7422, 65535
      %v7424 = vshra.s32 %v7422, 16
      %v7425 = vcvt.s32.f32 %v7423
      %v7426 = vcvt.s32.f32 %v7424
      %7427 = vmin.xlane.f32.xlu0 %v7426
      %v7428 = vpop.xlane.xlu0 %7427
      %vm7429 = vcmp.eq.f32.partialorder %v7426, %v7428
      %v7430 = vsel %vm7429, %v7425, inf
      %7431 = vmin.xlane.f32.xlu0 %v7430
      %v7432 = vpop.xlane.xlu0 %7431
      %v7433 = vcvt.f32.s32 %v7432
      %v7434 = vcvt.f32.s32 %v7428
      %v7435 = vshll.u32 %v7434, 16
      %v7436 = vadd.s32 %v7435, %v7433
      %v7437 = vsel %vm4865, %v5629, 2147483647
      %v7438 = vand.u32 %v7437, 65535
      %v7439 = vshra.s32 %v7437, 16
      %v7440 = vcvt.s32.f32 %v7438
      %v7441 = vcvt.s32.f32 %v7439
      %7442 = vmin.xlane.f32.xlu0 %v7441
      %v7443 = vpop.xlane.xlu0 %7442
      %vm7444 = vcmp.eq.f32.partialorder %v7441, %v7443
      %v7445 = vsel %vm7444, %v7440, inf
      %7446 = vmin.xlane.f32.xlu0 %v7445
      %v7447 = vpop.xlane.xlu0 %7446
      %v7448 = vcvt.f32.s32 %v7447
      %v7449 = vcvt.f32.s32 %v7443
      %v7450 = vshll.u32 %v7449, 16
      %v7451 = vadd.s32 %v7450, %v7448
      %v7452 = vsel %vm4865, %v5630, 2147483647
      %v7453 = vand.u32 %v7452, 65535
      %v7454 = vshra.s32 %v7452, 16
      %v7455 = vcvt.s32.f32 %v7453
      %v7456 = vcvt.s32.f32 %v7454
      %7457 = vmin.xlane.f32.xlu0 %v7456
      %v7458 = vpop.xlane.xlu0 %7457
      %vm7459 = vcmp.eq.f32.partialorder %v7456, %v7458
      %v7460 = vsel %vm7459, %v7455, inf
      %7461 = vmin.xlane.f32.xlu0 %v7460
      %v7462 = vpop.xlane.xlu0 %7461
      %v7463 = vcvt.f32.s32 %v7462
      %v7464 = vcvt.f32.s32 %v7458
      %v7465 = vshll.u32 %v7464, 16
      %v7466 = vadd.s32 %v7465, %v7463
      %v7467 = vsel %vm4865, %v5631, 2147483647
      %v7468 = vand.u32 %v7467, 65535
      %v7469 = vshra.s32 %v7467, 16
      %v7470 = vcvt.s32.f32 %v7468
      %v7471 = vcvt.s32.f32 %v7469
      %7472 = vmin.xlane.f32.xlu0 %v7471
      %v7473 = vpop.xlane.xlu0 %7472
      %vm7474 = vcmp.eq.f32.partialorder %v7471, %v7473
      %v7475 = vsel %vm7474, %v7470, inf
      %7476 = vmin.xlane.f32.xlu0 %v7475
      %v7477 = vpop.xlane.xlu0 %7476
      %v7478 = vcvt.f32.s32 %v7477
      %v7479 = vcvt.f32.s32 %v7473
      %v7480 = vshll.u32 %v7479, 16
      %v7481 = vadd.s32 %v7480, %v7478
      %v7482 = vsel %vm4865, %v5632, 2147483647
      %v7483 = vand.u32 %v7482, 65535
      %v7484 = vshra.s32 %v7482, 16
      %v7485 = vcvt.s32.f32 %v7483
      %v7486 = vcvt.s32.f32 %v7484
      %7487 = vmin.xlane.f32.xlu0 %v7486
      %v7488 = vpop.xlane.xlu0 %7487
      %vm7489 = vcmp.eq.f32.partialorder %v7486, %v7488
      %v7490 = vsel %vm7489, %v7485, inf
      %7491 = vmin.xlane.f32.xlu0 %v7490
      %v7492 = vpop.xlane.xlu0 %7491
      %v7493 = vcvt.f32.s32 %v7492
      %v7494 = vcvt.f32.s32 %v7488
      %v7495 = vshll.u32 %v7494, 16
      %v7496 = vadd.s32 %v7495, %v7493
      %v7497 = vsel %vm4865, %v5633, 2147483647
      %v7498 = vand.u32 %v7497, 65535
      %v7499 = vshra.s32 %v7497, 16
      %v7500 = vcvt.s32.f32 %v7498
      %v7501 = vcvt.s32.f32 %v7499
      %7502 = vmin.xlane.f32.xlu0 %v7501
      %v7503 = vpop.xlane.xlu0 %7502
      %vm7504 = vcmp.eq.f32.partialorder %v7501, %v7503
      %v7505 = vsel %vm7504, %v7500, inf
      %7506 = vmin.xlane.f32.xlu0 %v7505
      %v7507 = vpop.xlane.xlu0 %7506
      %v7508 = vcvt.f32.s32 %v7507
      %v7509 = vcvt.f32.s32 %v7503
      %v7510 = vshll.u32 %v7509, 16
      %v7511 = vadd.s32 %v7510, %v7508
      %v7512 = vsel %vm4865, %v5634, 2147483647
      %v7513 = vand.u32 %v7512, 65535
      %v7514 = vshra.s32 %v7512, 16
      %v7515 = vcvt.s32.f32 %v7513
      %v7516 = vcvt.s32.f32 %v7514
      %7517 = vmin.xlane.f32.xlu0 %v7516
      %v7518 = vpop.xlane.xlu0 %7517
      %vm7519 = vcmp.eq.f32.partialorder %v7516, %v7518
      %v7520 = vsel %vm7519, %v7515, inf
      %7521 = vmin.xlane.f32.xlu0 %v7520
      %v7522 = vpop.xlane.xlu0 %7521
      %v7523 = vcvt.f32.s32 %v7522
      %v7524 = vcvt.f32.s32 %v7518
      %v7525 = vshll.u32 %v7524, 16
      %v7526 = vadd.s32 %v7525, %v7523
      %v7527 = vsel %vm4865, %v5635, 2147483647
      %v7528 = vand.u32 %v7527, 65535
      %v7529 = vshra.s32 %v7527, 16
      %v7530 = vcvt.s32.f32 %v7528
      %v7531 = vcvt.s32.f32 %v7529
      %7532 = vmin.xlane.f32.xlu0 %v7531
      %v7533 = vpop.xlane.xlu0 %7532
      %vm7534 = vcmp.eq.f32.partialorder %v7531, %v7533
      %v7535 = vsel %vm7534, %v7530, inf
      %7536 = vmin.xlane.f32.xlu0 %v7535
      %v7537 = vpop.xlane.xlu0 %7536
      %v7538 = vcvt.f32.s32 %v7537
      %v7539 = vcvt.f32.s32 %v7533
      %v7540 = vshll.u32 %v7539, 16
      %v7541 = vadd.s32 %v7540, %v7538
      %v7542 = vsel %vm4865, %v5636, 2147483647
      %v7543 = vand.u32 %v7542, 65535
      %v7544 = vshra.s32 %v7542, 16
      %v7545 = vcvt.s32.f32 %v7543
      %v7546 = vcvt.s32.f32 %v7544
      %7547 = vmin.xlane.f32.xlu0 %v7546
      %v7548 = vpop.xlane.xlu0 %7547
      %vm7549 = vcmp.eq.f32.partialorder %v7546, %v7548
      %v7550 = vsel %vm7549, %v7545, inf
      %7551 = vmin.xlane.f32.xlu0 %v7550
      %v7552 = vpop.xlane.xlu0 %7551
      %v7553 = vcvt.f32.s32 %v7552
      %v7554 = vcvt.f32.s32 %v7548
      %v7555 = vshll.u32 %v7554, 16
      %v7556 = vadd.s32 %v7555, %v7553
      %vm7557 = vcmp.lt.s32.totalorder %v5651, 7
      %v7558 = vsel %vm7557, %v5651, 7
      %vm7559 = vcmp.lt.s32.totalorder %v5666, 7
      %v7560 = vsel %vm7559, %v5666, 7
      %vm7561 = vcmp.lt.s32.totalorder %v5681, 7
      %v7562 = vsel %vm7561, %v5681, 7
      %vm7563 = vcmp.lt.s32.totalorder %v5696, 7
      %v7564 = vsel %vm7563, %v5696, 7
      %vm7565 = vcmp.lt.s32.totalorder %v5711, 7
      %v7566 = vsel %vm7565, %v5711, 7
      %vm7567 = vcmp.lt.s32.totalorder %v5726, 7
      %v7568 = vsel %vm7567, %v5726, 7
      %vm7569 = vcmp.lt.s32.totalorder %v5741, 7
      %v7570 = vsel %vm7569, %v5741, 7
      %vm7571 = vcmp.lt.s32.totalorder %v5756, 7
      %v7572 = vsel %vm7571, %v5756, 7
      %vm7573 = vcmp.lt.s32.totalorder %v5771, 7
      %v7574 = vsel %vm7573, %v5771, 7
      %vm7575 = vcmp.lt.s32.totalorder %v5786, 7
      %v7576 = vsel %vm7575, %v5786, 7
      %vm7577 = vcmp.lt.s32.totalorder %v5801, 7
      %v7578 = vsel %vm7577, %v5801, 7
      %vm7579 = vcmp.lt.s32.totalorder %v5816, 7
      %v7580 = vsel %vm7579, %v5816, 7
      %vm7581 = vcmp.lt.s32.totalorder %v5831, 7
      %v7582 = vsel %vm7581, %v5831, 7
      %vm7583 = vcmp.lt.s32.totalorder %v5846, 7
      %v7584 = vsel %vm7583, %v5846, 7
      %vm7585 = vcmp.lt.s32.totalorder %v5861, 7
      %v7586 = vsel %vm7585, %v5861, 7
      %vm7587 = vcmp.lt.s32.totalorder %v5876, 7
      %v7588 = vsel %vm7587, %v5876, 7
      %vm7589 = vcmp.lt.s32.totalorder %v5891, 7
      %v7590 = vsel %vm7589, %v5891, 7
      %vm7591 = vcmp.lt.s32.totalorder %v5906, 7
      %v7592 = vsel %vm7591, %v5906, 7
      %vm7593 = vcmp.lt.s32.totalorder %v5921, 7
      %v7594 = vsel %vm7593, %v5921, 7
      %vm7595 = vcmp.lt.s32.totalorder %v5936, 7
      %v7596 = vsel %vm7595, %v5936, 7
      %vm7597 = vcmp.lt.s32.totalorder %v5951, 7
      %v7598 = vsel %vm7597, %v5951, 7
      %vm7599 = vcmp.lt.s32.totalorder %v5966, 7
      %v7600 = vsel %vm7599, %v5966, 7
      %vm7601 = vcmp.lt.s32.totalorder %v5981, 7
      %v7602 = vsel %vm7601, %v5981, 7
      %vm7603 = vcmp.lt.s32.totalorder %v5996, 7
      %v7604 = vsel %vm7603, %v5996, 7
      %vm7605 = vcmp.lt.s32.totalorder %v6011, 7
      %v7606 = vsel %vm7605, %v6011, 7
      %vm7607 = vcmp.lt.s32.totalorder %v6026, 7
      %v7608 = vsel %vm7607, %v6026, 7
      %vm7609 = vcmp.lt.s32.totalorder %v6041, 7
      %v7610 = vsel %vm7609, %v6041, 7
      %vm7611 = vcmp.lt.s32.totalorder %v6056, 7
      %v7612 = vsel %vm7611, %v6056, 7
      %vm7613 = vcmp.lt.s32.totalorder %v6071, 7
      %v7614 = vsel %vm7613, %v6071, 7
      %vm7615 = vcmp.lt.s32.totalorder %v6086, 7
      %v7616 = vsel %vm7615, %v6086, 7
      %vm7617 = vcmp.lt.s32.totalorder %v6101, 7
      %v7618 = vsel %vm7617, %v6101, 7
      %vm7619 = vcmp.lt.s32.totalorder %v6116, 7
      %v7620 = vsel %vm7619, %v6116, 7
      %vm7621 = vcmp.lt.s32.totalorder %v6131, 7
      %v7622 = vsel %vm7621, %v6131, 7
      %vm7623 = vcmp.lt.s32.totalorder %v6146, 7
      %v7624 = vsel %vm7623, %v6146, 7
      %vm7625 = vcmp.lt.s32.totalorder %v6161, 7
      %v7626 = vsel %vm7625, %v6161, 7
      %vm7627 = vcmp.lt.s32.totalorder %v6176, 7
      %v7628 = vsel %vm7627, %v6176, 7
      %vm7629 = vcmp.lt.s32.totalorder %v6191, 7
      %v7630 = vsel %vm7629, %v6191, 7
      %vm7631 = vcmp.lt.s32.totalorder %v6206, 7
      %v7632 = vsel %vm7631, %v6206, 7
      %vm7633 = vcmp.lt.s32.totalorder %v6221, 7
      %v7634 = vsel %vm7633, %v6221, 7
      %vm7635 = vcmp.lt.s32.totalorder %v6236, 7
      %v7636 = vsel %vm7635, %v6236, 7
      %vm7637 = vcmp.lt.s32.totalorder %v6251, 7
      %v7638 = vsel %vm7637, %v6251, 7
      %vm7639 = vcmp.lt.s32.totalorder %v6266, 7
      %v7640 = vsel %vm7639, %v6266, 7
      %vm7641 = vcmp.lt.s32.totalorder %v6281, 7
      %v7642 = vsel %vm7641, %v6281, 7
      %vm7643 = vcmp.lt.s32.totalorder %v6296, 7
      %v7644 = vsel %vm7643, %v6296, 7
      %vm7645 = vcmp.lt.s32.totalorder %v6311, 7
      %v7646 = vsel %vm7645, %v6311, 7
      %vm7647 = vcmp.lt.s32.totalorder %v6326, 7
      %v7648 = vsel %vm7647, %v6326, 7
      %vm7649 = vcmp.lt.s32.totalorder %v6341, 7
      %v7650 = vsel %vm7649, %v6341, 7
      %vm7651 = vcmp.lt.s32.totalorder %v6356, 7
      %v7652 = vsel %vm7651, %v6356, 7
      %vm7653 = vcmp.lt.s32.totalorder %v6371, 7
      %v7654 = vsel %vm7653, %v6371, 7
      %vm7655 = vcmp.lt.s32.totalorder %v6386, 7
      %v7656 = vsel %vm7655, %v6386, 7
      %vm7657 = vcmp.lt.s32.totalorder %v6401, 7
      %v7658 = vsel %vm7657, %v6401, 7
      %vm7659 = vcmp.lt.s32.totalorder %v6416, 7
      %v7660 = vsel %vm7659, %v6416, 7
      %vm7661 = vcmp.lt.s32.totalorder %v6431, 7
      %v7662 = vsel %vm7661, %v6431, 7
      %vm7663 = vcmp.lt.s32.totalorder %v6446, 7
      %v7664 = vsel %vm7663, %v6446, 7
      %vm7665 = vcmp.lt.s32.totalorder %v6461, 7
      %v7666 = vsel %vm7665, %v6461, 7
      %vm7667 = vcmp.lt.s32.totalorder %v6476, 7
      %v7668 = vsel %vm7667, %v6476, 7
      %vm7669 = vcmp.lt.s32.totalorder %v6491, 7
      %v7670 = vsel %vm7669, %v6491, 7
      %vm7671 = vcmp.lt.s32.totalorder %v6506, 7
      %v7672 = vsel %vm7671, %v6506, 7
      %vm7673 = vcmp.lt.s32.totalorder %v6521, 7
      %v7674 = vsel %vm7673, %v6521, 7
      %vm7675 = vcmp.lt.s32.totalorder %v6536, 7
      %v7676 = vsel %vm7675, %v6536, 7
      %vm7677 = vcmp.lt.s32.totalorder %v6551, 7
      %v7678 = vsel %vm7677, %v6551, 7
      %vm7679 = vcmp.lt.s32.totalorder %v6566, 7
      %v7680 = vsel %vm7679, %v6566, 7
      %vm7681 = vcmp.lt.s32.totalorder %v6581, 7
      %v7682 = vsel %vm7681, %v6581, 7
      %vm7683 = vcmp.lt.s32.totalorder %v6596, 7
      %v7684 = vsel %vm7683, %v6596, 7
      %vm7685 = vcmp.lt.s32.totalorder %v6611, 7
      %v7686 = vsel %vm7685, %v6611, 7
      %vm7687 = vcmp.lt.s32.totalorder %v6626, 7
      %v7688 = vsel %vm7687, %v6626, 7
      %vm7689 = vcmp.lt.s32.totalorder %v6641, 7
      %v7690 = vsel %vm7689, %v6641, 7
      %vm7691 = vcmp.lt.s32.totalorder %v6656, 7
      %v7692 = vsel %vm7691, %v6656, 7
      %vm7693 = vcmp.lt.s32.totalorder %v6671, 7
      %v7694 = vsel %vm7693, %v6671, 7
      %vm7695 = vcmp.lt.s32.totalorder %v6686, 7
      %v7696 = vsel %vm7695, %v6686, 7
      %vm7697 = vcmp.lt.s32.totalorder %v6701, 7
      %v7698 = vsel %vm7697, %v6701, 7
      %vm7699 = vcmp.lt.s32.totalorder %v6716, 7
      %v7700 = vsel %vm7699, %v6716, 7
      %vm7701 = vcmp.lt.s32.totalorder %v6731, 7
      %v7702 = vsel %vm7701, %v6731, 7
      %vm7703 = vcmp.lt.s32.totalorder %v6746, 7
      %v7704 = vsel %vm7703, %v6746, 7
      %vm7705 = vcmp.lt.s32.totalorder %v6761, 7
      %v7706 = vsel %vm7705, %v6761, 7
      %vm7707 = vcmp.lt.s32.totalorder %v6776, 7
      %v7708 = vsel %vm7707, %v6776, 7
      %vm7709 = vcmp.lt.s32.totalorder %v6791, 7
      %v7710 = vsel %vm7709, %v6791, 7
      %vm7711 = vcmp.lt.s32.totalorder %v6806, 7
      %v7712 = vsel %vm7711, %v6806, 7
      %vm7713 = vcmp.lt.s32.totalorder %v6821, 7
      %v7714 = vsel %vm7713, %v6821, 7
      %vm7715 = vcmp.lt.s32.totalorder %v6836, 7
      %v7716 = vsel %vm7715, %v6836, 7
      %vm7717 = vcmp.lt.s32.totalorder %v6851, 7
      %v7718 = vsel %vm7717, %v6851, 7
      %vm7719 = vcmp.lt.s32.totalorder %v6866, 7
      %v7720 = vsel %vm7719, %v6866, 7
      %vm7721 = vcmp.lt.s32.totalorder %v6881, 7
      %v7722 = vsel %vm7721, %v6881, 7
      %vm7723 = vcmp.lt.s32.totalorder %v6896, 7
      %v7724 = vsel %vm7723, %v6896, 7
      %vm7725 = vcmp.lt.s32.totalorder %v6911, 7
      %v7726 = vsel %vm7725, %v6911, 7
      %vm7727 = vcmp.lt.s32.totalorder %v6926, 7
      %v7728 = vsel %vm7727, %v6926, 7
      %vm7729 = vcmp.lt.s32.totalorder %v6941, 7
      %v7730 = vsel %vm7729, %v6941, 7
      %vm7731 = vcmp.lt.s32.totalorder %v6956, 7
      %v7732 = vsel %vm7731, %v6956, 7
      %vm7733 = vcmp.lt.s32.totalorder %v6971, 7
      %v7734 = vsel %vm7733, %v6971, 7
      %vm7735 = vcmp.lt.s32.totalorder %v6986, 7
      %v7736 = vsel %vm7735, %v6986, 7
      %vm7737 = vcmp.lt.s32.totalorder %v7001, 7
      %v7738 = vsel %vm7737, %v7001, 7
      %vm7739 = vcmp.lt.s32.totalorder %v7016, 7
      %v7740 = vsel %vm7739, %v7016, 7
      %vm7741 = vcmp.lt.s32.totalorder %v7031, 7
      %v7742 = vsel %vm7741, %v7031, 7
      %vm7743 = vcmp.lt.s32.totalorder %v7046, 7
      %v7744 = vsel %vm7743, %v7046, 7
      %vm7745 = vcmp.lt.s32.totalorder %v7061, 7
      %v7746 = vsel %vm7745, %v7061, 7
      %vm7747 = vcmp.lt.s32.totalorder %v7076, 7
      %v7748 = vsel %vm7747, %v7076, 7
      %vm7749 = vcmp.lt.s32.totalorder %v7091, 7
      %v7750 = vsel %vm7749, %v7091, 7
      %vm7751 = vcmp.lt.s32.totalorder %v7106, 7
      %v7752 = vsel %vm7751, %v7106, 7
      %vm7753 = vcmp.lt.s32.totalorder %v7121, 7
      %v7754 = vsel %vm7753, %v7121, 7
      %vm7755 = vcmp.lt.s32.totalorder %v7136, 7
      %v7756 = vsel %vm7755, %v7136, 7
      %vm7757 = vcmp.lt.s32.totalorder %v7151, 7
      %v7758 = vsel %vm7757, %v7151, 7
      %vm7759 = vcmp.lt.s32.totalorder %v7166, 7
      %v7760 = vsel %vm7759, %v7166, 7
      %vm7761 = vcmp.lt.s32.totalorder %v7181, 7
      %v7762 = vsel %vm7761, %v7181, 7
      %vm7763 = vcmp.lt.s32.totalorder %v7196, 7
      %v7764 = vsel %vm7763, %v7196, 7
      %vm7765 = vcmp.lt.s32.totalorder %v7211, 7
      %v7766 = vsel %vm7765, %v7211, 7
      %vm7767 = vcmp.lt.s32.totalorder %v7226, 7
      %v7768 = vsel %vm7767, %v7226, 7
      %vm7769 = vcmp.lt.s32.totalorder %v7241, 7
      %v7770 = vsel %vm7769, %v7241, 7
      %vm7771 = vcmp.lt.s32.totalorder %v7256, 7
      %v7772 = vsel %vm7771, %v7256, 7
      %vm7773 = vcmp.lt.s32.totalorder %v7271, 7
      %v7774 = vsel %vm7773, %v7271, 7
      %vm7775 = vcmp.lt.s32.totalorder %v7286, 7
      %v7776 = vsel %vm7775, %v7286, 7
      %vm7777 = vcmp.lt.s32.totalorder %v7301, 7
      %v7778 = vsel %vm7777, %v7301, 7
      %vm7779 = vcmp.lt.s32.totalorder %v7316, 7
      %v7780 = vsel %vm7779, %v7316, 7
      %vm7781 = vcmp.lt.s32.totalorder %v7331, 7
      %v7782 = vsel %vm7781, %v7331, 7
      %vm7783 = vcmp.lt.s32.totalorder %v7346, 7
      %v7784 = vsel %vm7783, %v7346, 7
      %vm7785 = vcmp.lt.s32.totalorder %v7361, 7
      %v7786 = vsel %vm7785, %v7361, 7
      %vm7787 = vcmp.lt.s32.totalorder %v7376, 7
      %v7788 = vsel %vm7787, %v7376, 7
      %vm7789 = vcmp.lt.s32.totalorder %v7391, 7
      %v7790 = vsel %vm7789, %v7391, 7
      %vm7791 = vcmp.lt.s32.totalorder %v7406, 7
      %v7792 = vsel %vm7791, %v7406, 7
      %vm7793 = vcmp.lt.s32.totalorder %v7421, 7
      %v7794 = vsel %vm7793, %v7421, 7
      %vm7795 = vcmp.lt.s32.totalorder %v7436, 7
      %v7796 = vsel %vm7795, %v7436, 7
      %vm7797 = vcmp.lt.s32.totalorder %v7451, 7
      %v7798 = vsel %vm7797, %v7451, 7
      %vm7799 = vcmp.lt.s32.totalorder %v7466, 7
      %v7800 = vsel %vm7799, %v7466, 7
      %vm7801 = vcmp.lt.s32.totalorder %v7481, 7
      %v7802 = vsel %vm7801, %v7481, 7
      %vm7803 = vcmp.lt.s32.totalorder %v7496, 7
      %v7804 = vsel %vm7803, %v7496, 7
      %vm7805 = vcmp.lt.s32.totalorder %v7511, 7
      %v7806 = vsel %vm7805, %v7511, 7
      %vm7807 = vcmp.lt.s32.totalorder %v7526, 7
      %v7808 = vsel %vm7807, %v7526, 7
      %vm7809 = vcmp.lt.s32.totalorder %v7541, 7
      %v7810 = vsel %vm7809, %v7541, 7
      %vm7811 = vcmp.lt.s32.totalorder %v7556, 7
      %v7812 = vsel %vm7811, %v7556, 7
      %7813 = vst.msk [vmem:[%s374] sm:$0xff] %vm5250, %v7558
      %7814 = vst.msk [vmem:[%s374 + $0x8] sm:$0xff] %vm5250, %v7560
      %7815 = vst.msk [vmem:[%s374 + $0x10] sm:$0xff] %vm5250, %v7562
      %7816 = vst.msk [vmem:[%s374 + $0x18] sm:$0xff] %vm5250, %v7564
      %7817 = vst.msk [vmem:[%s374 + $0x20] sm:$0xff] %vm5250, %v7566
      %7818 = vst.msk [vmem:[%s374 + $0x28] sm:$0xff] %vm5250, %v7568
      %7819 = vst.msk [vmem:[%s374 + $0x30] sm:$0xff] %vm5250, %v7570
      %7820 = vst.msk [vmem:[%s374 + $0x38] sm:$0xff] %vm5250, %v7572
      %7821 = vst.msk [vmem:[%s374 + $0x40] sm:$0xff] %vm5250, %v7574
      %7822 = vst.msk [vmem:[%s374 + $0x48] sm:$0xff] %vm5250, %v7576
      %7823 = vst.msk [vmem:[%s374 + $0x50] sm:$0xff] %vm5250, %v7578
      %7824 = vst.msk [vmem:[%s374 + $0x58] sm:$0xff] %vm5250, %v7580
      %7825 = vst.msk [vmem:[%s374 + $0x60] sm:$0xff] %vm5250, %v7582
      %7826 = vst.msk [vmem:[%s374 + $0x68] sm:$0xff] %vm5250, %v7584
      %7827 = vst.msk [vmem:[%s374 + $0x70] sm:$0xff] %vm5250, %v7586
      %7828 = vst.msk [vmem:[%s374 + $0x78] sm:$0xff] %vm5250, %v7588
      %7829 = vst.msk [vmem:[%s374 + $0x80] sm:$0xff] %vm5250, %v7590
      %7830 = vst.msk [vmem:[%s374 + $0x88] sm:$0xff] %vm5250, %v7592
      %7831 = vst.msk [vmem:[%s374 + $0x90] sm:$0xff] %vm5250, %v7594
      %7832 = vst.msk [vmem:[%s374 + $0x98] sm:$0xff] %vm5250, %v7596
      %7833 = vst.msk [vmem:[%s374 + $0xa0] sm:$0xff] %vm5250, %v7598
      %7834 = vst.msk [vmem:[%s374 + $0xa8] sm:$0xff] %vm5250, %v7600
      %7835 = vst.msk [vmem:[%s374 + $0xb0] sm:$0xff] %vm5250, %v7602
      %7836 = vst.msk [vmem:[%s374 + $0xb8] sm:$0xff] %vm5250, %v7604
      %7837 = vst.msk [vmem:[%s374 + $0xc0] sm:$0xff] %vm5250, %v7606
      %7838 = vst.msk [vmem:[%s374 + $0xc8] sm:$0xff] %vm5250, %v7608
      %7839 = vst.msk [vmem:[%s374 + $0xd0] sm:$0xff] %vm5250, %v7610
      %7840 = vst.msk [vmem:[%s374 + $0xd8] sm:$0xff] %vm5250, %v7612
      %7841 = vst.msk [vmem:[%s374 + $0xe0] sm:$0xff] %vm5250, %v7614
      %7842 = vst.msk [vmem:[%s374 + $0xe8] sm:$0xff] %vm5250, %v7616
      %7843 = vst.msk [vmem:[%s374 + $0xf0] sm:$0xff] %vm5250, %v7618
      %7844 = vst.msk [vmem:[%s374 + $0xf8] sm:$0xff] %vm5250, %v7620
      %7845 = vst.msk [vmem:[%s374 + $0x100] sm:$0xff] %vm5250, %v7622
      %7846 = vst.msk [vmem:[%s374 + $0x108] sm:$0xff] %vm5250, %v7624
      %7847 = vst.msk [vmem:[%s374 + $0x110] sm:$0xff] %vm5250, %v7626
      %7848 = vst.msk [vmem:[%s374 + $0x118] sm:$0xff] %vm5250, %v7628
      %7849 = vst.msk [vmem:[%s374 + $0x120] sm:$0xff] %vm5250, %v7630
      %7850 = vst.msk [vmem:[%s374 + $0x128] sm:$0xff] %vm5250, %v7632
      %7851 = vst.msk [vmem:[%s374 + $0x130] sm:$0xff] %vm5250, %v7634
      %7852 = vst.msk [vmem:[%s374 + $0x138] sm:$0xff] %vm5250, %v7636
      %7853 = vst.msk [vmem:[%s374 + $0x140] sm:$0xff] %vm5250, %v7638
      %7854 = vst.msk [vmem:[%s374 + $0x148] sm:$0xff] %vm5250, %v7640
      %7855 = vst.msk [vmem:[%s374 + $0x150] sm:$0xff] %vm5250, %v7642
      %7856 = vst.msk [vmem:[%s374 + $0x158] sm:$0xff] %vm5250, %v7644
      %7857 = vst.msk [vmem:[%s374 + $0x160] sm:$0xff] %vm5250, %v7646
      %7858 = vst.msk [vmem:[%s374 + $0x168] sm:$0xff] %vm5250, %v7648
      %7859 = vst.msk [vmem:[%s374 + $0x170] sm:$0xff] %vm5250, %v7650
      %7860 = vst.msk [vmem:[%s374 + $0x178] sm:$0xff] %vm5250, %v7652
      %7861 = vst.msk [vmem:[%s374 + $0x180] sm:$0xff] %vm5250, %v7654
      %7862 = vst.msk [vmem:[%s374 + $0x188] sm:$0xff] %vm5250, %v7656
      %7863 = vst.msk [vmem:[%s374 + $0x190] sm:$0xff] %vm5250, %v7658
      %7864 = vst.msk [vmem:[%s374 + $0x198] sm:$0xff] %vm5250, %v7660
      %7865 = vst.msk [vmem:[%s374 + $0x1a0] sm:$0xff] %vm5250, %v7662
      %7866 = vst.msk [vmem:[%s374 + $0x1a8] sm:$0xff] %vm5250, %v7664
      %7867 = vst.msk [vmem:[%s374 + $0x1b0] sm:$0xff] %vm5250, %v7666
      %7868 = vst.msk [vmem:[%s374 + $0x1b8] sm:$0xff] %vm5250, %v7668
      %7869 = vst.msk [vmem:[%s374 + $0x1c0] sm:$0xff] %vm5250, %v7670
      %7870 = vst.msk [vmem:[%s374 + $0x1c8] sm:$0xff] %vm5250, %v7672
      %7871 = vst.msk [vmem:[%s374 + $0x1d0] sm:$0xff] %vm5250, %v7674
      %7872 = vst.msk [vmem:[%s374 + $0x1d8] sm:$0xff] %vm5250, %v7676
      %7873 = vst.msk [vmem:[%s374 + $0x1e0] sm:$0xff] %vm5250, %v7678
      %7874 = vst.msk [vmem:[%s374 + $0x1e8] sm:$0xff] %vm5250, %v7680
      %7875 = vst.msk [vmem:[%s374 + $0x1f0] sm:$0xff] %vm5250, %v7682
      %7876 = vst.msk [vmem:[%s374 + $0x1f8] sm:$0xff] %vm5250, %v7684
      %7877 = vst.msk [vmem:[%s374 + $0x200] sm:$0xff] %vm5250, %v7686
      %7878 = vst.msk [vmem:[%s374 + $0x208] sm:$0xff] %vm5250, %v7688
      %7879 = vst.msk [vmem:[%s374 + $0x210] sm:$0xff] %vm5250, %v7690
      %7880 = vst.msk [vmem:[%s374 + $0x218] sm:$0xff] %vm5250, %v7692
      %7881 = vst.msk [vmem:[%s374 + $0x220] sm:$0xff] %vm5250, %v7694
      %7882 = vst.msk [vmem:[%s374 + $0x228] sm:$0xff] %vm5250, %v7696
      %7883 = vst.msk [vmem:[%s374 + $0x230] sm:$0xff] %vm5250, %v7698
      %7884 = vst.msk [vmem:[%s374 + $0x238] sm:$0xff] %vm5250, %v7700
      %7885 = vst.msk [vmem:[%s374 + $0x240] sm:$0xff] %vm5250, %v7702
      %7886 = vst.msk [vmem:[%s374 + $0x248] sm:$0xff] %vm5250, %v7704
      %7887 = vst.msk [vmem:[%s374 + $0x250] sm:$0xff] %vm5250, %v7706
      %7888 = vst.msk [vmem:[%s374 + $0x258] sm:$0xff] %vm5250, %v7708
      %7889 = vst.msk [vmem:[%s374 + $0x260] sm:$0xff] %vm5250, %v7710
      %7890 = vst.msk [vmem:[%s374 + $0x268] sm:$0xff] %vm5250, %v7712
      %7891 = vst.msk [vmem:[%s374 + $0x270] sm:$0xff] %vm5250, %v7714
      %7892 = vst.msk [vmem:[%s374 + $0x278] sm:$0xff] %vm5250, %v7716
      %7893 = vst.msk [vmem:[%s374 + $0x280] sm:$0xff] %vm5250, %v7718
      %7894 = vst.msk [vmem:[%s374 + $0x288] sm:$0xff] %vm5250, %v7720
      %7895 = vst.msk [vmem:[%s374 + $0x290] sm:$0xff] %vm5250, %v7722
      %7896 = vst.msk [vmem:[%s374 + $0x298] sm:$0xff] %vm5250, %v7724
      %7897 = vst.msk [vmem:[%s374 + $0x2a0] sm:$0xff] %vm5250, %v7726
      %7898 = vst.msk [vmem:[%s374 + $0x2a8] sm:$0xff] %vm5250, %v7728
      %7899 = vst.msk [vmem:[%s374 + $0x2b0] sm:$0xff] %vm5250, %v7730
      %7900 = vst.msk [vmem:[%s374 + $0x2b8] sm:$0xff] %vm5250, %v7732
      %7901 = vst.msk [vmem:[%s374 + $0x2c0] sm:$0xff] %vm5250, %v7734
      %7902 = vst.msk [vmem:[%s374 + $0x2c8] sm:$0xff] %vm5250, %v7736
      %7903 = vst.msk [vmem:[%s374 + $0x2d0] sm:$0xff] %vm5250, %v7738
      %7904 = vst.msk [vmem:[%s374 + $0x2d8] sm:$0xff] %vm5250, %v7740
      %7905 = vst.msk [vmem:[%s374 + $0x2e0] sm:$0xff] %vm5250, %v7742
      %7906 = vst.msk [vmem:[%s374 + $0x2e8] sm:$0xff] %vm5250, %v7744
      %7907 = vst.msk [vmem:[%s374 + $0x2f0] sm:$0xff] %vm5250, %v7746
      %7908 = vst.msk [vmem:[%s374 + $0x2f8] sm:$0xff] %vm5250, %v7748
      %7909 = vst.msk [vmem:[%s374 + $0x300] sm:$0xff] %vm5250, %v7750
      %7910 = vst.msk [vmem:[%s374 + $0x308] sm:$0xff] %vm5250, %v7752
      %7911 = vst.msk [vmem:[%s374 + $0x310] sm:$0xff] %vm5250, %v7754
      %7912 = vst.msk [vmem:[%s374 + $0x318] sm:$0xff] %vm5250, %v7756
      %7913 = vst.msk [vmem:[%s374 + $0x320] sm:$0xff] %vm5250, %v7758
      %7914 = vst.msk [vmem:[%s374 + $0x328] sm:$0xff] %vm5250, %v7760
      %7915 = vst.msk [vmem:[%s374 + $0x330] sm:$0xff] %vm5250, %v7762
      %7916 = vst.msk [vmem:[%s374 + $0x338] sm:$0xff] %vm5250, %v7764
      %7917 = vst.msk [vmem:[%s374 + $0x340] sm:$0xff] %vm5250, %v7766
      %7918 = vst.msk [vmem:[%s374 + $0x348] sm:$0xff] %vm5250, %v7768
      %7919 = vst.msk [vmem:[%s374 + $0x350] sm:$0xff] %vm5250, %v7770
      %7920 = vst.msk [vmem:[%s374 + $0x358] sm:$0xff] %vm5250, %v7772
      %7921 = vst.msk [vmem:[%s374 + $0x360] sm:$0xff] %vm5250, %v7774
      %7922 = vst.msk [vmem:[%s374 + $0x368] sm:$0xff] %vm5250, %v7776
      %7923 = vst.msk [vmem:[%s374 + $0x370] sm:$0xff] %vm5250, %v7778
      %7924 = vst.msk [vmem:[%s374 + $0x378] sm:$0xff] %vm5250, %v7780
      %7925 = vst.msk [vmem:[%s374 + $0x380] sm:$0xff] %vm5250, %v7782
      %7926 = vst.msk [vmem:[%s374 + $0x388] sm:$0xff] %vm5250, %v7784
      %7927 = vst.msk [vmem:[%s374 + $0x390] sm:$0xff] %vm5250, %v7786
      %7928 = vst.msk [vmem:[%s374 + $0x398] sm:$0xff] %vm5250, %v7788
      %7929 = vst.msk [vmem:[%s374 + $0x3a0] sm:$0xff] %vm5250, %v7790
      %7930 = vst.msk [vmem:[%s374 + $0x3a8] sm:$0xff] %vm5250, %v7792
      %7931 = vst.msk [vmem:[%s374 + $0x3b0] sm:$0xff] %vm5250, %v7794
      %7932 = vst.msk [vmem:[%s374 + $0x3b8] sm:$0xff] %vm5250, %v7796
      %7933 = vst.msk [vmem:[%s374 + $0x3c0] sm:$0xff] %vm5250, %v7798
      %7934 = vst.msk [vmem:[%s374 + $0x3c8] sm:$0xff] %vm5250, %v7800
      %7935 = vst.msk [vmem:[%s374 + $0x3d0] sm:$0xff] %vm5250, %v7802
      %7936 = vst.msk [vmem:[%s374 + $0x3d8] sm:$0xff] %vm5250, %v7804
      %7937 = vst.msk [vmem:[%s374 + $0x3e0] sm:$0xff] %vm5250, %v7806
      %7938 = vst.msk [vmem:[%s374 + $0x3e8] sm:$0xff] %vm5250, %v7808
      %7939 = vst.msk [vmem:[%s374 + $0x3f0] sm:$0xff] %vm5250, %v7810
      %7940 = vst.msk [vmem:[%s374 + $0x3f8] sm:$0xff] %vm5250, %v7812
      %s7941 = smul.u32 128, %s29
      %p7942 = scmp.lt.s32.totalorder %s28, 1
      %s7943 = scalar_select %p7942, %s28, 1
      %p7944 = scmp.lt.s32.totalorder %s7941, 511
      %s7945 = scalar_select %p7944, %s7941, 511
      %s7946 = smul.addr %s7943, 512
      %s7947 = sadd.s32 %s7945, %s7946
      %s7948 = smul.addr %s7947, 8
      %s7949 = scalar_lea.vmem %s4, %s7948
      %s7950 = smul.u32 128, %s29
      %p7951 = scmp.lt.s32.totalorder %s28, 1
      %s7952 = scalar_select %p7951, %s28, 1
      %p7953 = scmp.lt.s32.totalorder %s7950, 511
      %s7954 = scalar_select %p7953, %s7950, 511
      %s7955 = smul.addr %s7952, 512
      %s7956 = sadd.s32 %s7954, %s7955
      %s7957 = smul.addr %s7956, 8
      %s7958 = scalar_lea.vmem %s5, %s7957
      %s7959 = smul.u32 128, %s29
      %p7960 = scmp.lt.s32.totalorder %s28, 1
      %s7961 = scalar_select %p7960, %s28, 1
      %p7962 = scmp.lt.s32.totalorder %s7959, 511
      %s7963 = scalar_select %p7962, %s7959, 511
      %s7964 = smul.addr %s7961, 512
      %s7965 = sadd.s32 %s7963, %s7964
      %s7966 = smul.addr %s7965, 8
      %s7967 = scalar_lea.vmem %s6, %s7966
      // Predicated region
      $region33: #{_decode_score_topk.1} parent=31 // pred_check
        %p7968 = pneg %p138
      $region34: #{_decode_score_topk.1} parent=31 // pred_check_branch
        %7970 = sbr.rel (%p7968) target = $region36
      $region35: #{_decode_score_topk.1} parent=31 // pred_region
        %s7971 = smul.u32 128, %s29
      $region36: #{_decode_score_topk.1} parent=31 // pred_fallthru
        _
      // Predicated region
      $region37: #{_decode_score_topk.1} parent=31 // pred_check
        %p7972 = pneg %p166
      $region38: #{_decode_score_topk.1} parent=31 // pred_check_branch
        %7974 = sbr.rel (%p7972) target = $region40
      $region39: #{_decode_score_topk.1} parent=31 // pred_region
        %s7975 = smul.u32 128, %s29
      $region40: #{_decode_score_topk.1} parent=31 // pred_fallthru
        _
      // Predicated region
      $region41: #{_decode_score_topk.1} parent=31 // pred_check
        %p7976 = pneg %p194
      $region42: #{_decode_score_topk.1} parent=31 // pred_check_branch
        %7978 = sbr.rel (%p7976) target = $region44
      $region43: #{_decode_score_topk.1} parent=31 // pred_region
        %s7979 = smul.u32 128, %s29
      $region44: #{_decode_score_topk.1} parent=31 // pred_fallthru
        _
    $region32: #{_decode_score_topk.1} parent=5 // pred_fallthru
      _
    %p7980 = scmp.le.s32.totalorder 2, %s19
    // Predicated region
    $region45: #{_decode_score_topk.1} parent=5 // pred_check
      %p7981 = pneg %p7980
    $region46: #{_decode_score_topk.1} parent=5 // pred_check_branch
      %7983 = sbr.rel (%p7981) target = $region48
    $region47: #{_decode_score_topk.1} parent=5 // pred_region
      %s7984 = ssub.s32 %s19, 2
      // Predicated region
      $region49: #{_decode_score_topk.1} parent=47 // pred_check
        %p7985 = pneg %p144
      $region50: #{_decode_score_topk.1} parent=47 // pred_check_branch
        %7987 = sbr.rel (%p7985) target = $region52
      $region51: #{_decode_score_topk.1} parent=47 // pred_region
        %s7988 = smul.u32 128, %s31
        %p7989 = scmp.lt.s32.totalorder %s30, 1
        %s7990 = scalar_select %p7989, %s30, 1
        %p7991 = scmp.lt.s32.totalorder %s7988, 511
        %s7992 = scalar_select %p7991, %s7988, 511
        %s7993 = smul.addr %s7990, 512
        %s7994 = sadd.s32 %s7992, %s7993
        %s7995 = smul.addr %s7994, 8
        %s7996 = scalar_lea.vmem %s4, %s7995
      $region52: #{_decode_score_topk.1} parent=47 // pred_fallthru
        _
      // Predicated region
      $region53: #{_decode_score_topk.1} parent=47 // pred_check
        %p7997 = pneg %p172
      $region54: #{_decode_score_topk.1} parent=47 // pred_check_branch
        %7999 = sbr.rel (%p7997) target = $region56
      $region55: #{_decode_score_topk.1} parent=47 // pred_region
        %s8000 = smul.u32 128, %s31
        %p8001 = scmp.lt.s32.totalorder %s30, 1
        %s8002 = scalar_select %p8001, %s30, 1
        %p8003 = scmp.lt.s32.totalorder %s8000, 511
        %s8004 = scalar_select %p8003, %s8000, 511
        %s8005 = smul.addr %s8002, 512
        %s8006 = sadd.s32 %s8004, %s8005
        %s8007 = smul.addr %s8006, 8
        %s8008 = scalar_lea.vmem %s5, %s8007
      $region56: #{_decode_score_topk.1} parent=47 // pred_fallthru
        _
      // Predicated region
      $region57: #{_decode_score_topk.1} parent=47 // pred_check
        %p8009 = pneg %p200
      $region58: #{_decode_score_topk.1} parent=47 // pred_check_branch
        %8011 = sbr.rel (%p8009) target = $region60
      $region59: #{_decode_score_topk.1} parent=47 // pred_region
        %s8012 = smul.u32 128, %s31
        %p8013 = scmp.lt.s32.totalorder %s30, 1
        %s8014 = scalar_select %p8013, %s30, 1
        %p8015 = scmp.lt.s32.totalorder %s8012, 511
        %s8016 = scalar_select %p8015, %s8012, 511
        %s8017 = smul.addr %s8014, 512
        %s8018 = sadd.s32 %s8016, %s8017
        %s8019 = smul.addr %s8018, 8
        %s8020 = scalar_lea.vmem %s6, %s8019
      $region60: #{_decode_score_topk.1} parent=47 // pred_fallthru
        _
    $region48: #{_decode_score_topk.1} parent=5 // pred_fallthru
      _
  $region6: #{_decode_score_topk.1} parent=0 // loop_footer
    %s23 = sadd.s32 1, %s19
  $region7: #{_decode_score_topk.1} parent=0 // loop_footer_branch
    %18 = sbr.rel target = $region3
  $region8: #{_decode_score_topk.1} parent=0 // loop_exit
    _

</llo_original>
